<compile_context>
chip_gen: v7x
topology: tpu7x:2x2x1
jax: 0.10.0
libtpu: 0.0.40
codegen_flags: <defaults>
</compile_context>

<pallas_src>
import jax
import jax.numpy as jnp
import numpy as np
from jax.experimental import pallas as pl
from jax.experimental.pallas import tpu as pltpu


# ----------------------------------------------------------------------------
# The fused forward kernel.
# ----------------------------------------------------------------------------
def _cnn_policy_kernel(x_ref, g1_ref, w1_ref, b1_ref,
                       g2_ref, w2_ref, b2_ref,
                       g3_ref, w3_ref, b3_ref,
                       sfc_ref, wfc_ref, bfc_ref,
                       whd_ref, bhd_ref, out_ref):
    """Entire CNNPolicy forward in one kernel; everything stays in VMEM.

    Every stage has the form  relu( sum_i (G_i @ act) @ W_i + b ):
      - G_i: constant 0/1 row-gather matrices = the in-kernel im2col,
      - W_i: per-kernel-position weight slices (torch layout folded at init).
    Only 2-D MXU matmuls and VPU elementwise ops; no strided slices,
    reshapes or transposes inside the kernel.
    """
    f32 = jnp.float32

    def gather_gemm_relu(g_ref, w_ref, b_ref, act):
        acc = None
        for i in range(g_ref.shape[0]):          # static unroll: 4 / 16 / 9 / 4
            patches = jnp.dot(g_ref[i], act, preferred_element_type=f32)
            term = jnp.dot(patches, w_ref[i], preferred_element_type=f32)
            acc = term if acc is None else acc + term
        return jnp.maximum(acc + b_ref[...], 0.0)

    x = x_ref[...]                                         # (288, 48) bf16 (exact 0..255)
    a1 = gather_gemm_relu(g1_ref, w1_ref, b1_ref, x)       # (248, 32)  conv1 (+/255 folded)
    a2 = gather_gemm_relu(g2_ref, w2_ref, b2_ref, a1)      # (32, 64)   conv2
    a3 = gather_gemm_relu(g3_ref, w3_ref, b3_ref, a2)      # (8, 64)    conv3
    hid = gather_gemm_relu(sfc_ref, wfc_ref, bfc_ref, a3)  # (8, 512)   flatten + FC
    out_ref[...] = (jnp.dot(hid, whd_ref[...], preferred_element_type=f32)
                    + bhd_ref[...])                        # (8, 128)   fused pi|vf heads


def _full_block(a):
    nd = a.ndim
    return pl.BlockSpec(a.shape, lambda i: (0,) * nd)


# ----------------------------------------------------------------------------
# One-time host-side construction of the kernel constants.
# ----------------------------------------------------------------------------
def build_kernel_params(params, batch, n_actions):
    f32 = np.float32

    def pad8(v):
        return ((v + 7) // 8) * 8

    def conv_gather(hin, win, hout, wout, kk, stride, m_in_pad, m_out_pad):
        g = np.zeros((kk * kk, m_out_pad, m_in_pad), f32)
        for ki in range(kk):
            for kj in range(kk):
                idx = ki * kk + kj
                for n in range(batch):
                    for oh in range(hout):
                        for ow in range(wout):
                            r = (n * hout + oh) * wout + ow
                            c = (n * hin + stride * oh + ki) * win + stride * ow + kj
                            g[idx, r, c] = 1.0
        return g

    # geometry for 48x48 inputs: conv stack 11x11 -> 4x4 -> 2x2 (64 channels)
    ho1 = wo1 = 11
    ho2 = wo2 = 4
    ho3 = wo3 = 2
    m0 = batch * 12 * 12                 # rows of the space-to-depth(4) input (288)
    m1 = pad8(batch * ho1 * wo1)         # 242 -> 248
    m2 = pad8(batch * ho2 * wo2)         # 32
    m3 = pad8(batch * ho3 * wo3)         # 8
    mpad = max(8, pad8(batch))           # padded batch rows for FC / heads
    head_pad = 128                       # lane-dense fused head width

    # conv1 (8x8, stride 4)  ==  2x2 stride-1 conv on the space-to-depth(4) input
    g1 = conv_gather(12, 12, ho1, wo1, 2, 1, m0, m1)
    w1 = np.asarray(params["w1"], f32)                                  # (32, 3, 8, 8)
    w1k = (w1.reshape(32, 3, 2, 4, 2, 4).transpose(2, 4, 3, 5, 1, 0)
             .reshape(4, 48, 32) / 255.0).astype(f32)                   # /255 folded in

    g2 = conv_gather(ho1, wo1, ho2, wo2, 4, 2, m1, m2)
    w2k = np.asarray(params["w2"], f32).transpose(2, 3, 1, 0).reshape(16, 32, 64)

    g3 = conv_gather(ho2, wo2, ho3, wo3, 3, 1, m2, m3)
    w3k = np.asarray(params["w3"], f32).transpose(2, 3, 1, 0).reshape(9, 64, 64)

    # flatten (torch C,H,W order) + FC in the same gather/weight form:
    #   hidden = relu( sum_p (S_p @ a3) @ wfc[torch_rows_of_spatial_p, :] + bfc )
    n_pos = ho3 * wo3                                                   # 4
    sfc = np.zeros((n_pos, mpad, m3), f32)
    for p in range(n_pos):
        for n in range(batch):
            sfc[p, n, n * n_pos + p] = 1.0
    wfck = (np.asarray(params["wfc"], f32)
            .reshape(64, n_pos, 512).transpose(1, 0, 2))                # (4, 64, 512)

    # fused pi / vf head, zero-padded to 128 lanes
    whd = np.zeros((512, head_pad), f32)
    whd[:, :n_actions] = np.asarray(params["wpi"], f32)
    whd[:, n_actions:n_actions + 1] = np.asarray(params["wvf"], f32)
    bhd = np.zeros((1, head_pad), f32)
    bhd[0, :n_actions] = np.asarray(params["bpi"], f32)
    bhd[0, n_actions] = np.asarray(params["bvf"], f32)[0]

    return {
        "g1": jnp.asarray(g1, jnp.bfloat16),        # 0/1 -> exact in bf16
        "w1k": jnp.asarray(w1k),
        "b1": jnp.asarray(params["b1"], jnp.float32).reshape(1, 32),
        "g2": jnp.asarray(g2),
        "w2k": jnp.asarray(w2k),
        "b2": jnp.asarray(params["b2"], jnp.float32).reshape(1, 64),
        "g3": jnp.asarray(g3),
        "w3k": jnp.asarray(w3k),
        "b3": jnp.asarray(params["b3"], jnp.float32).reshape(1, 64),
        "sfc": jnp.asarray(sfc),
        "wfck": jnp.asarray(wfck),
        "bfc": jnp.asarray(params["bfc"], jnp.float32).reshape(1, 512),
        "whd": jnp.asarray(whd),
        "bhd": jnp.asarray(bhd),
        "batch": batch,
        "n_actions": n_actions,
        "mpad": mpad,
        "head_pad": head_pad,
    }


# ----------------------------------------------------------------------------
# Full CNNPolicy forward: (logits, value)
# ----------------------------------------------------------------------------
def cnn_policy_forward(kp, obs_nhwc):
    batch = obs_nhwc.shape[0]
    n_actions = kp["n_actions"]
    mpad, head_pad = kp["mpad"], kp["head_pad"]

    # permute(0,3,1,2) and /255 are folded into the kernel constants.  The only
    # host-side prep is one cheap space-to-depth(4) of the tiny raw frame
    # (cast to bf16: 0..255 exact), which turns the 8x8/stride-4 conv1 into a
    # unit-stride 2x2 conv the kernel expresses as plain matmuls.
    n, hh, ww, cc = obs_nhwc.shape
    x = obs_nhwc.astype(jnp.bfloat16).reshape(n, hh // 4, 4, ww // 4, 4, cc)
    x = x.transpose(0, 1, 3, 2, 4, 5).reshape(n * (hh // 4) * (ww // 4), 16 * cc)

    arrays = [x, kp["g1"], kp["w1k"], kp["b1"],
              kp["g2"], kp["w2k"], kp["b2"],
              kp["g3"], kp["w3k"], kp["b3"],
              kp["sfc"], kp["wfck"], kp["bfc"],
              kp["whd"], kp["bhd"]]

    def gemm_flops(g, w):
        kk, mo, mi = g.shape
        _, ci, co = w.shape
        return 2 * kk * (mo * mi * ci + mo * ci * co)

    flops = int(gemm_flops(kp["g1"], kp["w1k"]) + gemm_flops(kp["g2"], kp["w2k"])
                + gemm_flops(kp["g3"], kp["w3k"]) + gemm_flops(kp["sfc"], kp["wfck"])
                + 2 * mpad * kp["whd"].shape[0] * head_pad)
    bytes_accessed = int(sum(a.size * a.dtype.itemsize for a in arrays)
                         + mpad * head_pad * 4)

    out = pl.pallas_call(
        _cnn_policy_kernel,
        out_shape=jax.ShapeDtypeStruct((mpad, head_pad), jnp.float32),
        grid=(1,),
        in_specs=[_full_block(a) for a in arrays],
        out_specs=pl.BlockSpec((mpad, head_pad), lambda i: (0, 0)),
        compiler_params=pltpu.CompilerParams(
            dimension_semantics=("arbitrary",),
            vmem_limit_bytes=32 * 1024 * 1024),
        cost_estimate=pl.CostEstimate(flops=flops, transcendentals=0,
                                      bytes_accessed=bytes_accessed),
    )(*arrays)

    logits = out[:batch, :n_actions]
    value = out[:batch, n_actions:n_actions + 1]
    return logits, value
    # TODO(synk): get_action_and_value's Categorical sampling / log_prob /
    # entropy is not part of the forward pass and is left to plain JAX.


# ----------------------------------------------------------------------------
# Pure-JAX reference (lax.conv, torch semantics) for correctness checking.
# ----------------------------------------------------------------------------
def reference_forward(params, obs_nhwc):
    x = obs_nhwc.astype(jnp.float32).transpose(0, 3, 1, 2) * (1.0 / 255.0)

    def conv(x, w, b, s):
        y = jax.lax.conv_general_dilated(
            x, w, (s, s), "VALID", dimension_numbers=("NCHW", "OIHW", "NCHW"))
        return jax.nn.relu(y + b[None, :, None, None])

    x = conv(x, params["w1"], params["b1"], 4)
    x = conv(x, params["w2"], params["b2"], 2)
    x = conv(x, params["w3"], params["b3"], 1)
    flat = x.reshape(x.shape[0], -1)
    hidden = jax.nn.relu(flat @ params["wfc"] + params["bfc"])
    return hidden @ params["wpi"] + params["bpi"], hidden @ params["wvf"] + params["bvf"]


def init_params(key, conv_out_size, n_actions):
    ks = jax.random.split(key, 12)
    s = 0.05
    return {
        "w1": jax.random.normal(ks[0], (32, 3, 8, 8), jnp.float32) * s,
        "b1": jax.random.normal(ks[1], (32,), jnp.float32) * s,
        "w2": jax.random.normal(ks[2], (64, 32, 4, 4), jnp.float32) * s,
        "b2": jax.random.normal(ks[3], (64,), jnp.float32) * s,
        "w3": jax.random.normal(ks[4], (64, 64, 3, 3), jnp.float32) * s,
        "b3": jax.random.normal(ks[5], (64,), jnp.float32) * s,
        "wfc": jax.random.normal(ks[6], (conv_out_size, 512), jnp.float32) * s,
        "bfc": jax.random.normal(ks[7], (512,), jnp.float32) * s,
        "wpi": jax.random.normal(ks[8], (512, n_actions), jnp.float32) * s,
        "bpi": jax.random.normal(ks[9], (n_actions,), jnp.float32) * s,
        "wvf": jax.random.normal(ks[10], (512, 1), jnp.float32) * s,
        "bvf": jax.random.normal(ks[11], (1,), jnp.float32) * s,
    }


if __name__ == "__main__":
    key = jax.random.PRNGKey(0)
    k_obs, k_par = jax.random.split(key)

    # Small shapes consistent with the module: batch=2, 48x48x3 uint8 frames,
    # Pong action space n=6.  conv stack at 48x48: 11x11 -> 4x4 -> 2x2 (64 ch).
    B, H, W, C = 2, 48, 48, 3
    n_actions = 6
    conv_out_size = 64 * 2 * 2

    obs = jax.random.randint(k_obs, (B, H, W, C), 0, 256, dtype=jnp.int32).astype(jnp.uint8)
    params = init_params(k_par, conv_out_size, n_actions)
    kp = build_kernel_params(params, B, n_actions)

    fwd = jax.jit(lambda o: cnn_policy_forward(kp, o))
    logits, value = fwd(obs)
    jax.block_until_ready((logits, value))

    ref_logits, ref_value = reference_forward(params, obs)
    assert logits.shape == (B, n_actions) and value.shape == (B, 1)
    assert jnp.allclose(logits, ref_logits, atol=1e-4, rtol=1e-4)
    assert jnp.allclose(value, ref_value, atol=1e-4, rtol=1e-4)

    print("KERNEL_OK")
</pallas_src>

<mosaic_0001>
module attributes {stable_mosaic.version = 11 : i64} {
  func.func @_cnn_policy_kernel(%arg0: i32, %arg1: memref<288x48xbf16, #tpu.memory_space<vmem>>, %arg2: memref<4x248x288xbf16, #tpu.memory_space<vmem>>, %arg3: memref<4x48x32xf32, #tpu.memory_space<vmem>>, %arg4: memref<1x32xf32, #tpu.memory_space<vmem>>, %arg5: memref<16x32x248xf32, #tpu.memory_space<vmem>>, %arg6: memref<16x32x64xf32, #tpu.memory_space<vmem>>, %arg7: memref<1x64xf32, #tpu.memory_space<vmem>>, %arg8: memref<9x8x32xf32, #tpu.memory_space<vmem>>, %arg9: memref<9x64x64xf32, #tpu.memory_space<vmem>>, %arg10: memref<1x64xf32, #tpu.memory_space<vmem>>, %arg11: memref<4x8x8xf32, #tpu.memory_space<vmem>>, %arg12: memref<4x64x512xf32, #tpu.memory_space<vmem>>, %arg13: memref<1x512xf32, #tpu.memory_space<vmem>>, %arg14: memref<512x128xf32, #tpu.memory_space<vmem>>, %arg15: memref<1x128xf32, #tpu.memory_space<vmem>>, %arg16: memref<8x128xf32, #tpu.memory_space<vmem>>) attributes {dimension_semantics = [#tpu.dimension_semantics<arbitrary>], iteration_bounds = array<i64: 1>, scalar_prefetch = 0 : i64, scratch_operands = 0 : i64, tpu.core_type = #tpu.core_type<tc>, window_params = [{pipeline_mode = #tpu.pipeline_mode<synchronous>, transform_indices = @transform_0, window_bounds = array<i64: 288, 48>}, {pipeline_mode = #tpu.pipeline_mode<synchronous>, transform_indices = @transform_1, window_bounds = array<i64: 4, 248, 288>}, {pipeline_mode = #tpu.pipeline_mode<synchronous>, transform_indices = @transform_2, window_bounds = array<i64: 4, 48, 32>}, {pipeline_mode = #tpu.pipeline_mode<synchronous>, transform_indices = @transform_3, window_bounds = array<i64: 1, 32>}, {pipeline_mode = #tpu.pipeline_mode<synchronous>, transform_indices = @transform_4, window_bounds = array<i64: 16, 32, 248>}, {pipeline_mode = #tpu.pipeline_mode<synchronous>, transform_indices = @transform_5, window_bounds = array<i64: 16, 32, 64>}, {pipeline_mode = #tpu.pipeline_mode<synchronous>, transform_indices = @transform_6, window_bounds = array<i64: 1, 64>}, {pipeline_mode = #tpu.pipeline_mode<synchronous>, transform_indices = @transform_7, window_bounds = array<i64: 9, 8, 32>}, {pipeline_mode = #tpu.pipeline_mode<synchronous>, transform_indices = @transform_8, window_bounds = array<i64: 9, 64, 64>}, {pipeline_mode = #tpu.pipeline_mode<synchronous>, transform_indices = @transform_9, window_bounds = array<i64: 1, 64>}, {pipeline_mode = #tpu.pipeline_mode<synchronous>, transform_indices = @transform_10, window_bounds = array<i64: 4, 8, 8>}, {pipeline_mode = #tpu.pipeline_mode<synchronous>, transform_indices = @transform_11, window_bounds = array<i64: 4, 64, 512>}, {pipeline_mode = #tpu.pipeline_mode<synchronous>, transform_indices = @transform_12, window_bounds = array<i64: 1, 512>}, {pipeline_mode = #tpu.pipeline_mode<synchronous>, transform_indices = @transform_13, window_bounds = array<i64: 512, 128>}, {pipeline_mode = #tpu.pipeline_mode<synchronous>, transform_indices = @transform_14, window_bounds = array<i64: 1, 128>}, {pipeline_mode = #tpu.pipeline_mode<synchronous>, transform_indices = @transform_15, window_bounds = array<i64: 8, 128>}]} {
    %c0 = arith.constant 0 : index
    %c0_0 = arith.constant 0 : index
    %0 = vector.load %arg1[%c0, %c0_0] : memref<288x48xbf16, #tpu.memory_space<vmem>>, vector<288x48xbf16>
    %c0_1 = arith.constant 0 : index
    %c0_2 = arith.constant 0 : index
    %c0_3 = arith.constant 0 : index
    %1 = vector.load %arg2[%c0_1, %c0_2, %c0_3] : memref<4x248x288xbf16, #tpu.memory_space<vmem>>, vector<1x248x288xbf16>
    %2 = vector.shape_cast %1 : vector<1x248x288xbf16> to vector<248x288xbf16>
    %cst = arith.constant dense<0.000000e+00> : vector<248x48xf32>
    %3 = tpu.matmul %2, %0, %cst {dimension_numbers = #tpu.dot_dimension_numbers<[1], [0], [0], [1], [0, 0, 1, 1], [], []>} : vector<248x288xbf16>, vector<288x48xbf16>, vector<248x48xf32> -> vector<248x48xf32>
    %c0_4 = arith.constant 0 : index
    %c0_5 = arith.constant 0 : index
    %c0_6 = arith.constant 0 : index
    %4 = vector.load %arg3[%c0_4, %c0_5, %c0_6] : memref<4x48x32xf32, #tpu.memory_space<vmem>>, vector<1x48x32xf32>
    %5 = vector.shape_cast %4 : vector<1x48x32xf32> to vector<48x32xf32>
    %cst_7 = arith.constant dense<0.000000e+00> : vector<248x32xf32>
    %6 = tpu.matmul %3, %5, %cst_7 {dimension_numbers = #tpu.dot_dimension_numbers<[1], [0], [0], [1], [0, 0, 1, 1], [], []>} : vector<248x48xf32>, vector<48x32xf32>, vector<248x32xf32> -> vector<248x32xf32>
    %c1 = arith.constant 1 : index
    %c0_8 = arith.constant 0 : index
    %c0_9 = arith.constant 0 : index
    %7 = vector.load %arg2[%c1, %c0_8, %c0_9] : memref<4x248x288xbf16, #tpu.memory_space<vmem>>, vector<1x248x288xbf16>
    %8 = vector.shape_cast %7 : vector<1x248x288xbf16> to vector<248x288xbf16>
    %cst_10 = arith.constant dense<0.000000e+00> : vector<248x48xf32>
    %9 = tpu.matmul %8, %0, %cst_10 {dimension_numbers = #tpu.dot_dimension_numbers<[1], [0], [0], [1], [0, 0, 1, 1], [], []>} : vector<248x288xbf16>, vector<288x48xbf16>, vector<248x48xf32> -> vector<248x48xf32>
    %c1_11 = arith.constant 1 : index
    %c0_12 = arith.constant 0 : index
    %c0_13 = arith.constant 0 : index
    %10 = vector.load %arg3[%c1_11, %c0_12, %c0_13] : memref<4x48x32xf32, #tpu.memory_space<vmem>>, vector<1x48x32xf32>
    %11 = vector.shape_cast %10 : vector<1x48x32xf32> to vector<48x32xf32>
    %cst_14 = arith.constant dense<0.000000e+00> : vector<248x32xf32>
    %12 = tpu.matmul %9, %11, %cst_14 {dimension_numbers = #tpu.dot_dimension_numbers<[1], [0], [0], [1], [0, 0, 1, 1], [], []>} : vector<248x48xf32>, vector<48x32xf32>, vector<248x32xf32> -> vector<248x32xf32>
    %13 = arith.addf %6, %12 : vector<248x32xf32>
    %c2 = arith.constant 2 : index
    %c0_15 = arith.constant 0 : index
    %c0_16 = arith.constant 0 : index
    %14 = vector.load %arg2[%c2, %c0_15, %c0_16] : memref<4x248x288xbf16, #tpu.memory_space<vmem>>, vector<1x248x288xbf16>
    %15 = vector.shape_cast %14 : vector<1x248x288xbf16> to vector<248x288xbf16>
    %cst_17 = arith.constant dense<0.000000e+00> : vector<248x48xf32>
    %16 = tpu.matmul %15, %0, %cst_17 {dimension_numbers = #tpu.dot_dimension_numbers<[1], [0], [0], [1], [0, 0, 1, 1], [], []>} : vector<248x288xbf16>, vector<288x48xbf16>, vector<248x48xf32> -> vector<248x48xf32>
    %c2_18 = arith.constant 2 : index
    %c0_19 = arith.constant 0 : index
    %c0_20 = arith.constant 0 : index
    %17 = vector.load %arg3[%c2_18, %c0_19, %c0_20] : memref<4x48x32xf32, #tpu.memory_space<vmem>>, vector<1x48x32xf32>
    %18 = vector.shape_cast %17 : vector<1x48x32xf32> to vector<48x32xf32>
    %cst_21 = arith.constant dense<0.000000e+00> : vector<248x32xf32>
    %19 = tpu.matmul %16, %18, %cst_21 {dimension_numbers = #tpu.dot_dimension_numbers<[1], [0], [0], [1], [0, 0, 1, 1], [], []>} : vector<248x48xf32>, vector<48x32xf32>, vector<248x32xf32> -> vector<248x32xf32>
    %20 = arith.addf %13, %19 : vector<248x32xf32>
    %c3 = arith.constant 3 : index
    %c0_22 = arith.constant 0 : index
    %c0_23 = arith.constant 0 : index
    %21 = vector.load %arg2[%c3, %c0_22, %c0_23] : memref<4x248x288xbf16, #tpu.memory_space<vmem>>, vector<1x248x288xbf16>
    %22 = vector.shape_cast %21 : vector<1x248x288xbf16> to vector<248x288xbf16>
    %cst_24 = arith.constant dense<0.000000e+00> : vector<248x48xf32>
    %23 = tpu.matmul %22, %0, %cst_24 {dimension_numbers = #tpu.dot_dimension_numbers<[1], [0], [0], [1], [0, 0, 1, 1], [], []>} : vector<248x288xbf16>, vector<288x48xbf16>, vector<248x48xf32> -> vector<248x48xf32>
    %c3_25 = arith.constant 3 : index
    %c0_26 = arith.constant 0 : index
    %c0_27 = arith.constant 0 : index
    %24 = vector.load %arg3[%c3_25, %c0_26, %c0_27] : memref<4x48x32xf32, #tpu.memory_space<vmem>>, vector<1x48x32xf32>
    %25 = vector.shape_cast %24 : vector<1x48x32xf32> to vector<48x32xf32>
    %cst_28 = arith.constant dense<0.000000e+00> : vector<248x32xf32>
    %26 = tpu.matmul %23, %25, %cst_28 {dimension_numbers = #tpu.dot_dimension_numbers<[1], [0], [0], [1], [0, 0, 1, 1], [], []>} : vector<248x48xf32>, vector<48x32xf32>, vector<248x32xf32> -> vector<248x32xf32>
    %27 = arith.addf %20, %26 : vector<248x32xf32>
    %c0_29 = arith.constant 0 : index
    %c0_30 = arith.constant 0 : index
    %28 = vector.load %arg4[%c0_29, %c0_30] : memref<1x32xf32, #tpu.memory_space<vmem>>, vector<1x32xf32>
    %29 = vector.broadcast %28 : vector<1x32xf32> to vector<248x32xf32>
    %30 = arith.addf %27, %29 : vector<248x32xf32>
    %cst_31 = arith.constant 0.000000e+00 : f32
    %31 = vector.broadcast %cst_31 : f32 to vector<248x32xf32>
    %32 = arith.maximumf %30, %31 : vector<248x32xf32>
    %c0_32 = arith.constant 0 : index
    %c0_33 = arith.constant 0 : index
    %c0_34 = arith.constant 0 : index
    %33 = vector.load %arg5[%c0_32, %c0_33, %c0_34] : memref<16x32x248xf32, #tpu.memory_space<vmem>>, vector<1x32x248xf32>
    %34 = vector.shape_cast %33 : vector<1x32x248xf32> to vector<32x248xf32>
    %cst_35 = arith.constant dense<0.000000e+00> : vector<32x32xf32>
    %35 = tpu.matmul %34, %32, %cst_35 {dimension_numbers = #tpu.dot_dimension_numbers<[1], [0], [0], [1], [0, 0, 1, 1], [], []>} : vector<32x248xf32>, vector<248x32xf32>, vector<32x32xf32> -> vector<32x32xf32>
    %c0_36 = arith.constant 0 : index
    %c0_37 = arith.constant 0 : index
    %c0_38 = arith.constant 0 : index
    %36 = vector.load %arg6[%c0_36, %c0_37, %c0_38] : memref<16x32x64xf32, #tpu.memory_space<vmem>>, vector<1x32x64xf32>
    %37 = vector.shape_cast %36 : vector<1x32x64xf32> to vector<32x64xf32>
    %cst_39 = arith.constant dense<0.000000e+00> : vector<32x64xf32>
    %38 = tpu.matmul %35, %37, %cst_39 {dimension_numbers = #tpu.dot_dimension_numbers<[1], [0], [0], [1], [0, 0, 1, 1], [], []>} : vector<32x32xf32>, vector<32x64xf32>, vector<32x64xf32> -> vector<32x64xf32>
    %c1_40 = arith.constant 1 : index
    %c0_41 = arith.constant 0 : index
    %c0_42 = arith.constant 0 : index
    %39 = vector.load %arg5[%c1_40, %c0_41, %c0_42] : memref<16x32x248xf32, #tpu.memory_space<vmem>>, vector<1x32x248xf32>
    %40 = vector.shape_cast %39 : vector<1x32x248xf32> to vector<32x248xf32>
    %cst_43 = arith.constant dense<0.000000e+00> : vector<32x32xf32>
    %41 = tpu.matmul %40, %32, %cst_43 {dimension_numbers = #tpu.dot_dimension_numbers<[1], [0], [0], [1], [0, 0, 1, 1], [], []>} : vector<32x248xf32>, vector<248x32xf32>, vector<32x32xf32> -> vector<32x32xf32>
    %c1_44 = arith.constant 1 : index
    %c0_45 = arith.constant 0 : index
    %c0_46 = arith.constant 0 : index
    %42 = vector.load %arg6[%c1_44, %c0_45, %c0_46] : memref<16x32x64xf32, #tpu.memory_space<vmem>>, vector<1x32x64xf32>
    %43 = vector.shape_cast %42 : vector<1x32x64xf32> to vector<32x64xf32>
    %cst_47 = arith.constant dense<0.000000e+00> : vector<32x64xf32>
    %44 = tpu.matmul %41, %43, %cst_47 {dimension_numbers = #tpu.dot_dimension_numbers<[1], [0], [0], [1], [0, 0, 1, 1], [], []>} : vector<32x32xf32>, vector<32x64xf32>, vector<32x64xf32> -> vector<32x64xf32>
    %45 = arith.addf %38, %44 : vector<32x64xf32>
    %c2_48 = arith.constant 2 : index
    %c0_49 = arith.constant 0 : index
    %c0_50 = arith.constant 0 : index
    %46 = vector.load %arg5[%c2_48, %c0_49, %c0_50] : memref<16x32x248xf32, #tpu.memory_space<vmem>>, vector<1x32x248xf32>
    %47 = vector.shape_cast %46 : vector<1x32x248xf32> to vector<32x248xf32>
    %cst_51 = arith.constant dense<0.000000e+00> : vector<32x32xf32>
    %48 = tpu.matmul %47, %32, %cst_51 {dimension_numbers = #tpu.dot_dimension_numbers<[1], [0], [0], [1], [0, 0, 1, 1], [], []>} : vector<32x248xf32>, vector<248x32xf32>, vector<32x32xf32> -> vector<32x32xf32>
    %c2_52 = arith.constant 2 : index
    %c0_53 = arith.constant 0 : index
    %c0_54 = arith.constant 0 : index
    %49 = vector.load %arg6[%c2_52, %c0_53, %c0_54] : memref<16x32x64xf32, #tpu.memory_space<vmem>>, vector<1x32x64xf32>
    %50 = vector.shape_cast %49 : vector<1x32x64xf32> to vector<32x64xf32>
    %cst_55 = arith.constant dense<0.000000e+00> : vector<32x64xf32>
    %51 = tpu.matmul %48, %50, %cst_55 {dimension_numbers = #tpu.dot_dimension_numbers<[1], [0], [0], [1], [0, 0, 1, 1], [], []>} : vector<32x32xf32>, vector<32x64xf32>, vector<32x64xf32> -> vector<32x64xf32>
    %52 = arith.addf %45, %51 : vector<32x64xf32>
    %c3_56 = arith.constant 3 : index
    %c0_57 = arith.constant 0 : index
    %c0_58 = arith.constant 0 : index
    %53 = vector.load %arg5[%c3_56, %c0_57, %c0_58] : memref<16x32x248xf32, #tpu.memory_space<vmem>>, vector<1x32x248xf32>
    %54 = vector.shape_cast %53 : vector<1x32x248xf32> to vector<32x248xf32>
    %cst_59 = arith.constant dense<0.000000e+00> : vector<32x32xf32>
    %55 = tpu.matmul %54, %32, %cst_59 {dimension_numbers = #tpu.dot_dimension_numbers<[1], [0], [0], [1], [0, 0, 1, 1], [], []>} : vector<32x248xf32>, vector<248x32xf32>, vector<32x32xf32> -> vector<32x32xf32>
    %c3_60 = arith.constant 3 : index
    %c0_61 = arith.constant 0 : index
    %c0_62 = arith.constant 0 : index
    %56 = vector.load %arg6[%c3_60, %c0_61, %c0_62] : memref<16x32x64xf32, #tpu.memory_space<vmem>>, vector<1x32x64xf32>
    %57 = vector.shape_cast %56 : vector<1x32x64xf32> to vector<32x64xf32>
    %cst_63 = arith.constant dense<0.000000e+00> : vector<32x64xf32>
    %58 = tpu.matmul %55, %57, %cst_63 {dimension_numbers = #tpu.dot_dimension_numbers<[1], [0], [0], [1], [0, 0, 1, 1], [], []>} : vector<32x32xf32>, vector<32x64xf32>, vector<32x64xf32> -> vector<32x64xf32>
    %59 = arith.addf %52, %58 : vector<32x64xf32>
    %c4 = arith.constant 4 : index
    %c0_64 = arith.constant 0 : index
    %c0_65 = arith.constant 0 : index
    %60 = vector.load %arg5[%c4, %c0_64, %c0_65] : memref<16x32x248xf32, #tpu.memory_space<vmem>>, vector<1x32x248xf32>
    %61 = vector.shape_cast %60 : vector<1x32x248xf32> to vector<32x248xf32>
    %cst_66 = arith.constant dense<0.000000e+00> : vector<32x32xf32>
    %62 = tpu.matmul %61, %32, %cst_66 {dimension_numbers = #tpu.dot_dimension_numbers<[1], [0], [0], [1], [0, 0, 1, 1], [], []>} : vector<32x248xf32>, vector<248x32xf32>, vector<32x32xf32> -> vector<32x32xf32>
    %c4_67 = arith.constant 4 : index
    %c0_68 = arith.constant 0 : index
    %c0_69 = arith.constant 0 : index
    %63 = vector.load %arg6[%c4_67, %c0_68, %c0_69] : memref<16x32x64xf32, #tpu.memory_space<vmem>>, vector<1x32x64xf32>
    %64 = vector.shape_cast %63 : vector<1x32x64xf32> to vector<32x64xf32>
    %cst_70 = arith.constant dense<0.000000e+00> : vector<32x64xf32>
    %65 = tpu.matmul %62, %64, %cst_70 {dimension_numbers = #tpu.dot_dimension_numbers<[1], [0], [0], [1], [0, 0, 1, 1], [], []>} : vector<32x32xf32>, vector<32x64xf32>, vector<32x64xf32> -> vector<32x64xf32>
    %66 = arith.addf %59, %65 : vector<32x64xf32>
    %c5 = arith.constant 5 : index
    %c0_71 = arith.constant 0 : index
    %c0_72 = arith.constant 0 : index
    %67 = vector.load %arg5[%c5, %c0_71, %c0_72] : memref<16x32x248xf32, #tpu.memory_space<vmem>>, vector<1x32x248xf32>
    %68 = vector.shape_cast %67 : vector<1x32x248xf32> to vector<32x248xf32>
    %cst_73 = arith.constant dense<0.000000e+00> : vector<32x32xf32>
    %69 = tpu.matmul %68, %32, %cst_73 {dimension_numbers = #tpu.dot_dimension_numbers<[1], [0], [0], [1], [0, 0, 1, 1], [], []>} : vector<32x248xf32>, vector<248x32xf32>, vector<32x32xf32> -> vector<32x32xf32>
    %c5_74 = arith.constant 5 : index
    %c0_75 = arith.constant 0 : index
    %c0_76 = arith.constant 0 : index
    %70 = vector.load %arg6[%c5_74, %c0_75, %c0_76] : memref<16x32x64xf32, #tpu.memory_space<vmem>>, vector<1x32x64xf32>
    %71 = vector.shape_cast %70 : vector<1x32x64xf32> to vector<32x64xf32>
    %cst_77 = arith.constant dense<0.000000e+00> : vector<32x64xf32>
    %72 = tpu.matmul %69, %71, %cst_77 {dimension_numbers = #tpu.dot_dimension_numbers<[1], [0], [0], [1], [0, 0, 1, 1], [], []>} : vector<32x32xf32>, vector<32x64xf32>, vector<32x64xf32> -> vector<32x64xf32>
    %73 = arith.addf %66, %72 : vector<32x64xf32>
    %c6 = arith.constant 6 : index
    %c0_78 = arith.constant 0 : index
    %c0_79 = arith.constant 0 : index
    %74 = vector.load %arg5[%c6, %c0_78, %c0_79] : memref<16x32x248xf32, #tpu.memory_space<vmem>>, vector<1x32x248xf32>
    %75 = vector.shape_cast %74 : vector<1x32x248xf32> to vector<32x248xf32>
    %cst_80 = arith.constant dense<0.000000e+00> : vector<32x32xf32>
    %76 = tpu.matmul %75, %32, %cst_80 {dimension_numbers = #tpu.dot_dimension_numbers<[1], [0], [0], [1], [0, 0, 1, 1], [], []>} : vector<32x248xf32>, vector<248x32xf32>, vector<32x32xf32> -> vector<32x32xf32>
    %c6_81 = arith.constant 6 : index
    %c0_82 = arith.constant 0 : index
    %c0_83 = arith.constant 0 : index
    %77 = vector.load %arg6[%c6_81, %c0_82, %c0_83] : memref<16x32x64xf32, #tpu.memory_space<vmem>>, vector<1x32x64xf32>
    %78 = vector.shape_cast %77 : vector<1x32x64xf32> to vector<32x64xf32>
    %cst_84 = arith.constant dense<0.000000e+00> : vector<32x64xf32>
    %79 = tpu.matmul %76, %78, %cst_84 {dimension_numbers = #tpu.dot_dimension_numbers<[1], [0], [0], [1], [0, 0, 1, 1], [], []>} : vector<32x32xf32>, vector<32x64xf32>, vector<32x64xf32> -> vector<32x64xf32>
    %80 = arith.addf %73, %79 : vector<32x64xf32>
    %c7 = arith.constant 7 : index
    %c0_85 = arith.constant 0 : index
    %c0_86 = arith.constant 0 : index
    %81 = vector.load %arg5[%c7, %c0_85, %c0_86] : memref<16x32x248xf32, #tpu.memory_space<vmem>>, vector<1x32x248xf32>
    %82 = vector.shape_cast %81 : vector<1x32x248xf32> to vector<32x248xf32>
    %cst_87 = arith.constant dense<0.000000e+00> : vector<32x32xf32>
    %83 = tpu.matmul %82, %32, %cst_87 {dimension_numbers = #tpu.dot_dimension_numbers<[1], [0], [0], [1], [0, 0, 1, 1], [], []>} : vector<32x248xf32>, vector<248x32xf32>, vector<32x32xf32> -> vector<32x32xf32>
    %c7_88 = arith.constant 7 : index
    %c0_89 = arith.constant 0 : index
    %c0_90 = arith.constant 0 : index
    %84 = vector.load %arg6[%c7_88, %c0_89, %c0_90] : memref<16x32x64xf32, #tpu.memory_space<vmem>>, vector<1x32x64xf32>
    %85 = vector.shape_cast %84 : vector<1x32x64xf32> to vector<32x64xf32>
    %cst_91 = arith.constant dense<0.000000e+00> : vector<32x64xf32>
    %86 = tpu.matmul %83, %85, %cst_91 {dimension_numbers = #tpu.dot_dimension_numbers<[1], [0], [0], [1], [0, 0, 1, 1], [], []>} : vector<32x32xf32>, vector<32x64xf32>, vector<32x64xf32> -> vector<32x64xf32>
    %87 = arith.addf %80, %86 : vector<32x64xf32>
    %c8 = arith.constant 8 : index
    %c0_92 = arith.constant 0 : index
    %c0_93 = arith.constant 0 : index
    %88 = vector.load %arg5[%c8, %c0_92, %c0_93] : memref<16x32x248xf32, #tpu.memory_space<vmem>>, vector<1x32x248xf32>
    %89 = vector.shape_cast %88 : vector<1x32x248xf32> to vector<32x248xf32>
    %cst_94 = arith.constant dense<0.000000e+00> : vector<32x32xf32>
    %90 = tpu.matmul %89, %32, %cst_94 {dimension_numbers = #tpu.dot_dimension_numbers<[1], [0], [0], [1], [0, 0, 1, 1], [], []>} : vector<32x248xf32>, vector<248x32xf32>, vector<32x32xf32> -> vector<32x32xf32>
    %c8_95 = arith.constant 8 : index
    %c0_96 = arith.constant 0 : index
    %c0_97 = arith.constant 0 : index
    %91 = vector.load %arg6[%c8_95, %c0_96, %c0_97] : memref<16x32x64xf32, #tpu.memory_space<vmem>>, vector<1x32x64xf32>
    %92 = vector.shape_cast %91 : vector<1x32x64xf32> to vector<32x64xf32>
    %cst_98 = arith.constant dense<0.000000e+00> : vector<32x64xf32>
    %93 = tpu.matmul %90, %92, %cst_98 {dimension_numbers = #tpu.dot_dimension_numbers<[1], [0], [0], [1], [0, 0, 1, 1], [], []>} : vector<32x32xf32>, vector<32x64xf32>, vector<32x64xf32> -> vector<32x64xf32>
    %94 = arith.addf %87, %93 : vector<32x64xf32>
    %c9 = arith.constant 9 : index
    %c0_99 = arith.constant 0 : index
    %c0_100 = arith.constant 0 : index
    %95 = vector.load %arg5[%c9, %c0_99, %c0_100] : memref<16x32x248xf32, #tpu.memory_space<vmem>>, vector<1x32x248xf32>
    %96 = vector.shape_cast %95 : vector<1x32x248xf32> to vector<32x248xf32>
    %cst_101 = arith.constant dense<0.000000e+00> : vector<32x32xf32>
    %97 = tpu.matmul %96, %32, %cst_101 {dimension_numbers = #tpu.dot_dimension_numbers<[1], [0], [0], [1], [0, 0, 1, 1], [], []>} : vector<32x248xf32>, vector<248x32xf32>, vector<32x32xf32> -> vector<32x32xf32>
    %c9_102 = arith.constant 9 : index
    %c0_103 = arith.constant 0 : index
    %c0_104 = arith.constant 0 : index
    %98 = vector.load %arg6[%c9_102, %c0_103, %c0_104] : memref<16x32x64xf32, #tpu.memory_space<vmem>>, vector<1x32x64xf32>
    %99 = vector.shape_cast %98 : vector<1x32x64xf32> to vector<32x64xf32>
    %cst_105 = arith.constant dense<0.000000e+00> : vector<32x64xf32>
    %100 = tpu.matmul %97, %99, %cst_105 {dimension_numbers = #tpu.dot_dimension_numbers<[1], [0], [0], [1], [0, 0, 1, 1], [], []>} : vector<32x32xf32>, vector<32x64xf32>, vector<32x64xf32> -> vector<32x64xf32>
    %101 = arith.addf %94, %100 : vector<32x64xf32>
    %c10 = arith.constant 10 : index
    %c0_106 = arith.constant 0 : index
    %c0_107 = arith.constant 0 : index
    %102 = vector.load %arg5[%c10, %c0_106, %c0_107] : memref<16x32x248xf32, #tpu.memory_space<vmem>>, vector<1x32x248xf32>
    %103 = vector.shape_cast %102 : vector<1x32x248xf32> to vector<32x248xf32>
    %cst_108 = arith.constant dense<0.000000e+00> : vector<32x32xf32>
    %104 = tpu.matmul %103, %32, %cst_108 {dimension_numbers = #tpu.dot_dimension_numbers<[1], [0], [0], [1], [0, 0, 1, 1], [], []>} : vector<32x248xf32>, vector<248x32xf32>, vector<32x32xf32> -> vector<32x32xf32>
    %c10_109 = arith.constant 10 : index
    %c0_110 = arith.constant 0 : index
    %c0_111 = arith.constant 0 : index
    %105 = vector.load %arg6[%c10_109, %c0_110, %c0_111] : memref<16x32x64xf32, #tpu.memory_space<vmem>>, vector<1x32x64xf32>
    %106 = vector.shape_cast %105 : vector<1x32x64xf32> to vector<32x64xf32>
    %cst_112 = arith.constant dense<0.000000e+00> : vector<32x64xf32>
    %107 = tpu.matmul %104, %106, %cst_112 {dimension_numbers = #tpu.dot_dimension_numbers<[1], [0], [0], [1], [0, 0, 1, 1], [], []>} : vector<32x32xf32>, vector<32x64xf32>, vector<32x64xf32> -> vector<32x64xf32>
    %108 = arith.addf %101, %107 : vector<32x64xf32>
    %c11 = arith.constant 11 : index
    %c0_113 = arith.constant 0 : index
    %c0_114 = arith.constant 0 : index
    %109 = vector.load %arg5[%c11, %c0_113, %c0_114] : memref<16x32x248xf32, #tpu.memory_space<vmem>>, vector<1x32x248xf32>
    %110 = vector.shape_cast %109 : vector<1x32x248xf32> to vector<32x248xf32>
    %cst_115 = arith.constant dense<0.000000e+00> : vector<32x32xf32>
    %111 = tpu.matmul %110, %32, %cst_115 {dimension_numbers = #tpu.dot_dimension_numbers<[1], [0], [0], [1], [0, 0, 1, 1], [], []>} : vector<32x248xf32>, vector<248x32xf32>, vector<32x32xf32> -> vector<32x32xf32>
    %c11_116 = arith.constant 11 : index
    %c0_117 = arith.constant 0 : index
    %c0_118 = arith.constant 0 : index
    %112 = vector.load %arg6[%c11_116, %c0_117, %c0_118] : memref<16x32x64xf32, #tpu.memory_space<vmem>>, vector<1x32x64xf32>
    %113 = vector.shape_cast %112 : vector<1x32x64xf32> to vector<32x64xf32>
    %cst_119 = arith.constant dense<0.000000e+00> : vector<32x64xf32>
    %114 = tpu.matmul %111, %113, %cst_119 {dimension_numbers = #tpu.dot_dimension_numbers<[1], [0], [0], [1], [0, 0, 1, 1], [], []>} : vector<32x32xf32>, vector<32x64xf32>, vector<32x64xf32> -> vector<32x64xf32>
    %115 = arith.addf %108, %114 : vector<32x64xf32>
    %c12 = arith.constant 12 : index
    %c0_120 = arith.constant 0 : index
    %c0_121 = arith.constant 0 : index
    %116 = vector.load %arg5[%c12, %c0_120, %c0_121] : memref<16x32x248xf32, #tpu.memory_space<vmem>>, vector<1x32x248xf32>
    %117 = vector.shape_cast %116 : vector<1x32x248xf32> to vector<32x248xf32>
    %cst_122 = arith.constant dense<0.000000e+00> : vector<32x32xf32>
    %118 = tpu.matmul %117, %32, %cst_122 {dimension_numbers = #tpu.dot_dimension_numbers<[1], [0], [0], [1], [0, 0, 1, 1], [], []>} : vector<32x248xf32>, vector<248x32xf32>, vector<32x32xf32> -> vector<32x32xf32>
    %c12_123 = arith.constant 12 : index
    %c0_124 = arith.constant 0 : index
    %c0_125 = arith.constant 0 : index
    %119 = vector.load %arg6[%c12_123, %c0_124, %c0_125] : memref<16x32x64xf32, #tpu.memory_space<vmem>>, vector<1x32x64xf32>
    %120 = vector.shape_cast %119 : vector<1x32x64xf32> to vector<32x64xf32>
    %cst_126 = arith.constant dense<0.000000e+00> : vector<32x64xf32>
    %121 = tpu.matmul %118, %120, %cst_126 {dimension_numbers = #tpu.dot_dimension_numbers<[1], [0], [0], [1], [0, 0, 1, 1], [], []>} : vector<32x32xf32>, vector<32x64xf32>, vector<32x64xf32> -> vector<32x64xf32>
    %122 = arith.addf %115, %121 : vector<32x64xf32>
    %c13 = arith.constant 13 : index
    %c0_127 = arith.constant 0 : index
    %c0_128 = arith.constant 0 : index
    %123 = vector.load %arg5[%c13, %c0_127, %c0_128] : memref<16x32x248xf32, #tpu.memory_space<vmem>>, vector<1x32x248xf32>
    %124 = vector.shape_cast %123 : vector<1x32x248xf32> to vector<32x248xf32>
    %cst_129 = arith.constant dense<0.000000e+00> : vector<32x32xf32>
    %125 = tpu.matmul %124, %32, %cst_129 {dimension_numbers = #tpu.dot_dimension_numbers<[1], [0], [0], [1], [0, 0, 1, 1], [], []>} : vector<32x248xf32>, vector<248x32xf32>, vector<32x32xf32> -> vector<32x32xf32>
    %c13_130 = arith.constant 13 : index
    %c0_131 = arith.constant 0 : index
    %c0_132 = arith.constant 0 : index
    %126 = vector.load %arg6[%c13_130, %c0_131, %c0_132] : memref<16x32x64xf32, #tpu.memory_space<vmem>>, vector<1x32x64xf32>
    %127 = vector.shape_cast %126 : vector<1x32x64xf32> to vector<32x64xf32>
    %cst_133 = arith.constant dense<0.000000e+00> : vector<32x64xf32>
    %128 = tpu.matmul %125, %127, %cst_133 {dimension_numbers = #tpu.dot_dimension_numbers<[1], [0], [0], [1], [0, 0, 1, 1], [], []>} : vector<32x32xf32>, vector<32x64xf32>, vector<32x64xf32> -> vector<32x64xf32>
    %129 = arith.addf %122, %128 : vector<32x64xf32>
    %c14 = arith.constant 14 : index
    %c0_134 = arith.constant 0 : index
    %c0_135 = arith.constant 0 : index
    %130 = vector.load %arg5[%c14, %c0_134, %c0_135] : memref<16x32x248xf32, #tpu.memory_space<vmem>>, vector<1x32x248xf32>
    %131 = vector.shape_cast %130 : vector<1x32x248xf32> to vector<32x248xf32>
    %cst_136 = arith.constant dense<0.000000e+00> : vector<32x32xf32>
    %132 = tpu.matmul %131, %32, %cst_136 {dimension_numbers = #tpu.dot_dimension_numbers<[1], [0], [0], [1], [0, 0, 1, 1], [], []>} : vector<32x248xf32>, vector<248x32xf32>, vector<32x32xf32> -> vector<32x32xf32>
    %c14_137 = arith.constant 14 : index
    %c0_138 = arith.constant 0 : index
    %c0_139 = arith.constant 0 : index
    %133 = vector.load %arg6[%c14_137, %c0_138, %c0_139] : memref<16x32x64xf32, #tpu.memory_space<vmem>>, vector<1x32x64xf32>
    %134 = vector.shape_cast %133 : vector<1x32x64xf32> to vector<32x64xf32>
    %cst_140 = arith.constant dense<0.000000e+00> : vector<32x64xf32>
    %135 = tpu.matmul %132, %134, %cst_140 {dimension_numbers = #tpu.dot_dimension_numbers<[1], [0], [0], [1], [0, 0, 1, 1], [], []>} : vector<32x32xf32>, vector<32x64xf32>, vector<32x64xf32> -> vector<32x64xf32>
    %136 = arith.addf %129, %135 : vector<32x64xf32>
    %c15 = arith.constant 15 : index
    %c0_141 = arith.constant 0 : index
    %c0_142 = arith.constant 0 : index
    %137 = vector.load %arg5[%c15, %c0_141, %c0_142] : memref<16x32x248xf32, #tpu.memory_space<vmem>>, vector<1x32x248xf32>
    %138 = vector.shape_cast %137 : vector<1x32x248xf32> to vector<32x248xf32>
    %cst_143 = arith.constant dense<0.000000e+00> : vector<32x32xf32>
    %139 = tpu.matmul %138, %32, %cst_143 {dimension_numbers = #tpu.dot_dimension_numbers<[1], [0], [0], [1], [0, 0, 1, 1], [], []>} : vector<32x248xf32>, vector<248x32xf32>, vector<32x32xf32> -> vector<32x32xf32>
    %c15_144 = arith.constant 15 : index
    %c0_145 = arith.constant 0 : index
    %c0_146 = arith.constant 0 : index
    %140 = vector.load %arg6[%c15_144, %c0_145, %c0_146] : memref<16x32x64xf32, #tpu.memory_space<vmem>>, vector<1x32x64xf32>
    %141 = vector.shape_cast %140 : vector<1x32x64xf32> to vector<32x64xf32>
    %cst_147 = arith.constant dense<0.000000e+00> : vector<32x64xf32>
    %142 = tpu.matmul %139, %141, %cst_147 {dimension_numbers = #tpu.dot_dimension_numbers<[1], [0], [0], [1], [0, 0, 1, 1], [], []>} : vector<32x32xf32>, vector<32x64xf32>, vector<32x64xf32> -> vector<32x64xf32>
    %143 = arith.addf %136, %142 : vector<32x64xf32>
    %c0_148 = arith.constant 0 : index
    %c0_149 = arith.constant 0 : index
    %144 = vector.load %arg7[%c0_148, %c0_149] : memref<1x64xf32, #tpu.memory_space<vmem>>, vector<1x64xf32>
    %145 = vector.broadcast %144 : vector<1x64xf32> to vector<32x64xf32>
    %146 = arith.addf %143, %145 : vector<32x64xf32>
    %cst_150 = arith.constant 0.000000e+00 : f32
    %147 = vector.broadcast %cst_150 : f32 to vector<32x64xf32>
    %148 = arith.maximumf %146, %147 : vector<32x64xf32>
    %c0_151 = arith.constant 0 : index
    %c0_152 = arith.constant 0 : index
    %c0_153 = arith.constant 0 : index
    %149 = vector.load %arg8[%c0_151, %c0_152, %c0_153] : memref<9x8x32xf32, #tpu.memory_space<vmem>>, vector<1x8x32xf32>
    %150 = vector.shape_cast %149 : vector<1x8x32xf32> to vector<8x32xf32>
    %cst_154 = arith.constant dense<0.000000e+00> : vector<8x64xf32>
    %151 = tpu.matmul %150, %148, %cst_154 {dimension_numbers = #tpu.dot_dimension_numbers<[1], [0], [0], [1], [0, 0, 1, 1], [], []>} : vector<8x32xf32>, vector<32x64xf32>, vector<8x64xf32> -> vector<8x64xf32>
    %c0_155 = arith.constant 0 : index
    %c0_156 = arith.constant 0 : index
    %c0_157 = arith.constant 0 : index
    %152 = vector.load %arg9[%c0_155, %c0_156, %c0_157] : memref<9x64x64xf32, #tpu.memory_space<vmem>>, vector<1x64x64xf32>
    %153 = vector.shape_cast %152 : vector<1x64x64xf32> to vector<64x64xf32>
    %cst_158 = arith.constant dense<0.000000e+00> : vector<8x64xf32>
    %154 = tpu.matmul %151, %153, %cst_158 {dimension_numbers = #tpu.dot_dimension_numbers<[1], [0], [0], [1], [0, 0, 1, 1], [], []>} : vector<8x64xf32>, vector<64x64xf32>, vector<8x64xf32> -> vector<8x64xf32>
    %c1_159 = arith.constant 1 : index
    %c0_160 = arith.constant 0 : index
    %c0_161 = arith.constant 0 : index
    %155 = vector.load %arg8[%c1_159, %c0_160, %c0_161] : memref<9x8x32xf32, #tpu.memory_space<vmem>>, vector<1x8x32xf32>
    %156 = vector.shape_cast %155 : vector<1x8x32xf32> to vector<8x32xf32>
    %cst_162 = arith.constant dense<0.000000e+00> : vector<8x64xf32>
    %157 = tpu.matmul %156, %148, %cst_162 {dimension_numbers = #tpu.dot_dimension_numbers<[1], [0], [0], [1], [0, 0, 1, 1], [], []>} : vector<8x32xf32>, vector<32x64xf32>, vector<8x64xf32> -> vector<8x64xf32>
    %c1_163 = arith.constant 1 : index
    %c0_164 = arith.constant 0 : index
    %c0_165 = arith.constant 0 : index
    %158 = vector.load %arg9[%c1_163, %c0_164, %c0_165] : memref<9x64x64xf32, #tpu.memory_space<vmem>>, vector<1x64x64xf32>
    %159 = vector.shape_cast %158 : vector<1x64x64xf32> to vector<64x64xf32>
    %cst_166 = arith.constant dense<0.000000e+00> : vector<8x64xf32>
    %160 = tpu.matmul %157, %159, %cst_166 {dimension_numbers = #tpu.dot_dimension_numbers<[1], [0], [0], [1], [0, 0, 1, 1], [], []>} : vector<8x64xf32>, vector<64x64xf32>, vector<8x64xf32> -> vector<8x64xf32>
    %161 = arith.addf %154, %160 : vector<8x64xf32>
    %c2_167 = arith.constant 2 : index
    %c0_168 = arith.constant 0 : index
    %c0_169 = arith.constant 0 : index
    %162 = vector.load %arg8[%c2_167, %c0_168, %c0_169] : memref<9x8x32xf32, #tpu.memory_space<vmem>>, vector<1x8x32xf32>
    %163 = vector.shape_cast %162 : vector<1x8x32xf32> to vector<8x32xf32>
    %cst_170 = arith.constant dense<0.000000e+00> : vector<8x64xf32>
    %164 = tpu.matmul %163, %148, %cst_170 {dimension_numbers = #tpu.dot_dimension_numbers<[1], [0], [0], [1], [0, 0, 1, 1], [], []>} : vector<8x32xf32>, vector<32x64xf32>, vector<8x64xf32> -> vector<8x64xf32>
    %c2_171 = arith.constant 2 : index
    %c0_172 = arith.constant 0 : index
    %c0_173 = arith.constant 0 : index
    %165 = vector.load %arg9[%c2_171, %c0_172, %c0_173] : memref<9x64x64xf32, #tpu.memory_space<vmem>>, vector<1x64x64xf32>
    %166 = vector.shape_cast %165 : vector<1x64x64xf32> to vector<64x64xf32>
    %cst_174 = arith.constant dense<0.000000e+00> : vector<8x64xf32>
    %167 = tpu.matmul %164, %166, %cst_174 {dimension_numbers = #tpu.dot_dimension_numbers<[1], [0], [0], [1], [0, 0, 1, 1], [], []>} : vector<8x64xf32>, vector<64x64xf32>, vector<8x64xf32> -> vector<8x64xf32>
    %168 = arith.addf %161, %167 : vector<8x64xf32>
    %c3_175 = arith.constant 3 : index
    %c0_176 = arith.constant 0 : index
    %c0_177 = arith.constant 0 : index
    %169 = vector.load %arg8[%c3_175, %c0_176, %c0_177] : memref<9x8x32xf32, #tpu.memory_space<vmem>>, vector<1x8x32xf32>
    %170 = vector.shape_cast %169 : vector<1x8x32xf32> to vector<8x32xf32>
    %cst_178 = arith.constant dense<0.000000e+00> : vector<8x64xf32>
    %171 = tpu.matmul %170, %148, %cst_178 {dimension_numbers = #tpu.dot_dimension_numbers<[1], [0], [0], [1], [0, 0, 1, 1], [], []>} : vector<8x32xf32>, vector<32x64xf32>, vector<8x64xf32> -> vector<8x64xf32>
    %c3_179 = arith.constant 3 : index
    %c0_180 = arith.constant 0 : index
    %c0_181 = arith.constant 0 : index
    %172 = vector.load %arg9[%c3_179, %c0_180, %c0_181] : memref<9x64x64xf32, #tpu.memory_space<vmem>>, vector<1x64x64xf32>
    %173 = vector.shape_cast %172 : vector<1x64x64xf32> to vector<64x64xf32>
    %cst_182 = arith.constant dense<0.000000e+00> : vector<8x64xf32>
    %174 = tpu.matmul %171, %173, %cst_182 {dimension_numbers = #tpu.dot_dimension_numbers<[1], [0], [0], [1], [0, 0, 1, 1], [], []>} : vector<8x64xf32>, vector<64x64xf32>, vector<8x64xf32> -> vector<8x64xf32>
    %175 = arith.addf %168, %174 : vector<8x64xf32>
    %c4_183 = arith.constant 4 : index
    %c0_184 = arith.constant 0 : index
    %c0_185 = arith.constant 0 : index
    %176 = vector.load %arg8[%c4_183, %c0_184, %c0_185] : memref<9x8x32xf32, #tpu.memory_space<vmem>>, vector<1x8x32xf32>
    %177 = vector.shape_cast %176 : vector<1x8x32xf32> to vector<8x32xf32>
    %cst_186 = arith.constant dense<0.000000e+00> : vector<8x64xf32>
    %178 = tpu.matmul %177, %148, %cst_186 {dimension_numbers = #tpu.dot_dimension_numbers<[1], [0], [0], [1], [0, 0, 1, 1], [], []>} : vector<8x32xf32>, vector<32x64xf32>, vector<8x64xf32> -> vector<8x64xf32>
    %c4_187 = arith.constant 4 : index
    %c0_188 = arith.constant 0 : index
    %c0_189 = arith.constant 0 : index
    %179 = vector.load %arg9[%c4_187, %c0_188, %c0_189] : memref<9x64x64xf32, #tpu.memory_space<vmem>>, vector<1x64x64xf32>
    %180 = vector.shape_cast %179 : vector<1x64x64xf32> to vector<64x64xf32>
    %cst_190 = arith.constant dense<0.000000e+00> : vector<8x64xf32>
    %181 = tpu.matmul %178, %180, %cst_190 {dimension_numbers = #tpu.dot_dimension_numbers<[1], [0], [0], [1], [0, 0, 1, 1], [], []>} : vector<8x64xf32>, vector<64x64xf32>, vector<8x64xf32> -> vector<8x64xf32>
    %182 = arith.addf %175, %181 : vector<8x64xf32>
    %c5_191 = arith.constant 5 : index
    %c0_192 = arith.constant 0 : index
    %c0_193 = arith.constant 0 : index
    %183 = vector.load %arg8[%c5_191, %c0_192, %c0_193] : memref<9x8x32xf32, #tpu.memory_space<vmem>>, vector<1x8x32xf32>
    %184 = vector.shape_cast %183 : vector<1x8x32xf32> to vector<8x32xf32>
    %cst_194 = arith.constant dense<0.000000e+00> : vector<8x64xf32>
    %185 = tpu.matmul %184, %148, %cst_194 {dimension_numbers = #tpu.dot_dimension_numbers<[1], [0], [0], [1], [0, 0, 1, 1], [], []>} : vector<8x32xf32>, vector<32x64xf32>, vector<8x64xf32> -> vector<8x64xf32>
    %c5_195 = arith.constant 5 : index
    %c0_196 = arith.constant 0 : index
    %c0_197 = arith.constant 0 : index
    %186 = vector.load %arg9[%c5_195, %c0_196, %c0_197] : memref<9x64x64xf32, #tpu.memory_space<vmem>>, vector<1x64x64xf32>
    %187 = vector.shape_cast %186 : vector<1x64x64xf32> to vector<64x64xf32>
    %cst_198 = arith.constant dense<0.000000e+00> : vector<8x64xf32>
    %188 = tpu.matmul %185, %187, %cst_198 {dimension_numbers = #tpu.dot_dimension_numbers<[1], [0], [0], [1], [0, 0, 1, 1], [], []>} : vector<8x64xf32>, vector<64x64xf32>, vector<8x64xf32> -> vector<8x64xf32>
    %189 = arith.addf %182, %188 : vector<8x64xf32>
    %c6_199 = arith.constant 6 : index
    %c0_200 = arith.constant 0 : index
    %c0_201 = arith.constant 0 : index
    %190 = vector.load %arg8[%c6_199, %c0_200, %c0_201] : memref<9x8x32xf32, #tpu.memory_space<vmem>>, vector<1x8x32xf32>
    %191 = vector.shape_cast %190 : vector<1x8x32xf32> to vector<8x32xf32>
    %cst_202 = arith.constant dense<0.000000e+00> : vector<8x64xf32>
    %192 = tpu.matmul %191, %148, %cst_202 {dimension_numbers = #tpu.dot_dimension_numbers<[1], [0], [0], [1], [0, 0, 1, 1], [], []>} : vector<8x32xf32>, vector<32x64xf32>, vector<8x64xf32> -> vector<8x64xf32>
    %c6_203 = arith.constant 6 : index
    %c0_204 = arith.constant 0 : index
    %c0_205 = arith.constant 0 : index
    %193 = vector.load %arg9[%c6_203, %c0_204, %c0_205] : memref<9x64x64xf32, #tpu.memory_space<vmem>>, vector<1x64x64xf32>
    %194 = vector.shape_cast %193 : vector<1x64x64xf32> to vector<64x64xf32>
    %cst_206 = arith.constant dense<0.000000e+00> : vector<8x64xf32>
    %195 = tpu.matmul %192, %194, %cst_206 {dimension_numbers = #tpu.dot_dimension_numbers<[1], [0], [0], [1], [0, 0, 1, 1], [], []>} : vector<8x64xf32>, vector<64x64xf32>, vector<8x64xf32> -> vector<8x64xf32>
    %196 = arith.addf %189, %195 : vector<8x64xf32>
    %c7_207 = arith.constant 7 : index
    %c0_208 = arith.constant 0 : index
    %c0_209 = arith.constant 0 : index
    %197 = vector.load %arg8[%c7_207, %c0_208, %c0_209] : memref<9x8x32xf32, #tpu.memory_space<vmem>>, vector<1x8x32xf32>
    %198 = vector.shape_cast %197 : vector<1x8x32xf32> to vector<8x32xf32>
    %cst_210 = arith.constant dense<0.000000e+00> : vector<8x64xf32>
    %199 = tpu.matmul %198, %148, %cst_210 {dimension_numbers = #tpu.dot_dimension_numbers<[1], [0], [0], [1], [0, 0, 1, 1], [], []>} : vector<8x32xf32>, vector<32x64xf32>, vector<8x64xf32> -> vector<8x64xf32>
    %c7_211 = arith.constant 7 : index
    %c0_212 = arith.constant 0 : index
    %c0_213 = arith.constant 0 : index
    %200 = vector.load %arg9[%c7_211, %c0_212, %c0_213] : memref<9x64x64xf32, #tpu.memory_space<vmem>>, vector<1x64x64xf32>
    %201 = vector.shape_cast %200 : vector<1x64x64xf32> to vector<64x64xf32>
    %cst_214 = arith.constant dense<0.000000e+00> : vector<8x64xf32>
    %202 = tpu.matmul %199, %201, %cst_214 {dimension_numbers = #tpu.dot_dimension_numbers<[1], [0], [0], [1], [0, 0, 1, 1], [], []>} : vector<8x64xf32>, vector<64x64xf32>, vector<8x64xf32> -> vector<8x64xf32>
    %203 = arith.addf %196, %202 : vector<8x64xf32>
    %c8_215 = arith.constant 8 : index
    %c0_216 = arith.constant 0 : index
    %c0_217 = arith.constant 0 : index
    %204 = vector.load %arg8[%c8_215, %c0_216, %c0_217] : memref<9x8x32xf32, #tpu.memory_space<vmem>>, vector<1x8x32xf32>
    %205 = vector.shape_cast %204 : vector<1x8x32xf32> to vector<8x32xf32>
    %cst_218 = arith.constant dense<0.000000e+00> : vector<8x64xf32>
    %206 = tpu.matmul %205, %148, %cst_218 {dimension_numbers = #tpu.dot_dimension_numbers<[1], [0], [0], [1], [0, 0, 1, 1], [], []>} : vector<8x32xf32>, vector<32x64xf32>, vector<8x64xf32> -> vector<8x64xf32>
    %c8_219 = arith.constant 8 : index
    %c0_220 = arith.constant 0 : index
    %c0_221 = arith.constant 0 : index
    %207 = vector.load %arg9[%c8_219, %c0_220, %c0_221] : memref<9x64x64xf32, #tpu.memory_space<vmem>>, vector<1x64x64xf32>
    %208 = vector.shape_cast %207 : vector<1x64x64xf32> to vector<64x64xf32>
    %cst_222 = arith.constant dense<0.000000e+00> : vector<8x64xf32>
    %209 = tpu.matmul %206, %208, %cst_222 {dimension_numbers = #tpu.dot_dimension_numbers<[1], [0], [0], [1], [0, 0, 1, 1], [], []>} : vector<8x64xf32>, vector<64x64xf32>, vector<8x64xf32> -> vector<8x64xf32>
    %210 = arith.addf %203, %209 : vector<8x64xf32>
    %c0_223 = arith.constant 0 : index
    %c0_224 = arith.constant 0 : index
    %211 = vector.load %arg10[%c0_223, %c0_224] : memref<1x64xf32, #tpu.memory_space<vmem>>, vector<1x64xf32>
    %212 = vector.broadcast %211 : vector<1x64xf32> to vector<8x64xf32>
    %213 = arith.addf %210, %212 : vector<8x64xf32>
    %cst_225 = arith.constant 0.000000e+00 : f32
    %214 = vector.broadcast %cst_225 : f32 to vector<8x64xf32>
    %215 = arith.maximumf %213, %214 : vector<8x64xf32>
    %c0_226 = arith.constant 0 : index
    %c0_227 = arith.constant 0 : index
    %c0_228 = arith.constant 0 : index
    %216 = vector.load %arg11[%c0_226, %c0_227, %c0_228] : memref<4x8x8xf32, #tpu.memory_space<vmem>>, vector<1x8x8xf32>
    %217 = vector.shape_cast %216 : vector<1x8x8xf32> to vector<8x8xf32>
    %cst_229 = arith.constant dense<0.000000e+00> : vector<8x64xf32>
    %218 = tpu.matmul %217, %215, %cst_229 {dimension_numbers = #tpu.dot_dimension_numbers<[1], [0], [0], [1], [0, 0, 1, 1], [], []>} : vector<8x8xf32>, vector<8x64xf32>, vector<8x64xf32> -> vector<8x64xf32>
    %c0_230 = arith.constant 0 : index
    %c0_231 = arith.constant 0 : index
    %c0_232 = arith.constant 0 : index
    %219 = vector.load %arg12[%c0_230, %c0_231, %c0_232] : memref<4x64x512xf32, #tpu.memory_space<vmem>>, vector<1x64x512xf32>
    %220 = vector.shape_cast %219 : vector<1x64x512xf32> to vector<64x512xf32>
    %cst_233 = arith.constant dense<0.000000e+00> : vector<8x512xf32>
    %221 = tpu.matmul %218, %220, %cst_233 {dimension_numbers = #tpu.dot_dimension_numbers<[1], [0], [0], [1], [0, 0, 1, 1], [], []>} : vector<8x64xf32>, vector<64x512xf32>, vector<8x512xf32> -> vector<8x512xf32>
    %c1_234 = arith.constant 1 : index
    %c0_235 = arith.constant 0 : index
    %c0_236 = arith.constant 0 : index
    %222 = vector.load %arg11[%c1_234, %c0_235, %c0_236] : memref<4x8x8xf32, #tpu.memory_space<vmem>>, vector<1x8x8xf32>
    %223 = vector.shape_cast %222 : vector<1x8x8xf32> to vector<8x8xf32>
    %cst_237 = arith.constant dense<0.000000e+00> : vector<8x64xf32>
    %224 = tpu.matmul %223, %215, %cst_237 {dimension_numbers = #tpu.dot_dimension_numbers<[1], [0], [0], [1], [0, 0, 1, 1], [], []>} : vector<8x8xf32>, vector<8x64xf32>, vector<8x64xf32> -> vector<8x64xf32>
    %c1_238 = arith.constant 1 : index
    %c0_239 = arith.constant 0 : index
    %c0_240 = arith.constant 0 : index
    %225 = vector.load %arg12[%c1_238, %c0_239, %c0_240] : memref<4x64x512xf32, #tpu.memory_space<vmem>>, vector<1x64x512xf32>
    %226 = vector.shape_cast %225 : vector<1x64x512xf32> to vector<64x512xf32>
    %cst_241 = arith.constant dense<0.000000e+00> : vector<8x512xf32>
    %227 = tpu.matmul %224, %226, %cst_241 {dimension_numbers = #tpu.dot_dimension_numbers<[1], [0], [0], [1], [0, 0, 1, 1], [], []>} : vector<8x64xf32>, vector<64x512xf32>, vector<8x512xf32> -> vector<8x512xf32>
    %228 = arith.addf %221, %227 : vector<8x512xf32>
    %c2_242 = arith.constant 2 : index
    %c0_243 = arith.constant 0 : index
    %c0_244 = arith.constant 0 : index
    %229 = vector.load %arg11[%c2_242, %c0_243, %c0_244] : memref<4x8x8xf32, #tpu.memory_space<vmem>>, vector<1x8x8xf32>
    %230 = vector.shape_cast %229 : vector<1x8x8xf32> to vector<8x8xf32>
    %cst_245 = arith.constant dense<0.000000e+00> : vector<8x64xf32>
    %231 = tpu.matmul %230, %215, %cst_245 {dimension_numbers = #tpu.dot_dimension_numbers<[1], [0], [0], [1], [0, 0, 1, 1], [], []>} : vector<8x8xf32>, vector<8x64xf32>, vector<8x64xf32> -> vector<8x64xf32>
    %c2_246 = arith.constant 2 : index
    %c0_247 = arith.constant 0 : index
    %c0_248 = arith.constant 0 : index
    %232 = vector.load %arg12[%c2_246, %c0_247, %c0_248] : memref<4x64x512xf32, #tpu.memory_space<vmem>>, vector<1x64x512xf32>
    %233 = vector.shape_cast %232 : vector<1x64x512xf32> to vector<64x512xf32>
    %cst_249 = arith.constant dense<0.000000e+00> : vector<8x512xf32>
    %234 = tpu.matmul %231, %233, %cst_249 {dimension_numbers = #tpu.dot_dimension_numbers<[1], [0], [0], [1], [0, 0, 1, 1], [], []>} : vector<8x64xf32>, vector<64x512xf32>, vector<8x512xf32> -> vector<8x512xf32>
    %235 = arith.addf %228, %234 : vector<8x512xf32>
    %c3_250 = arith.constant 3 : index
    %c0_251 = arith.constant 0 : index
    %c0_252 = arith.constant 0 : index
    %236 = vector.load %arg11[%c3_250, %c0_251, %c0_252] : memref<4x8x8xf32, #tpu.memory_space<vmem>>, vector<1x8x8xf32>
    %237 = vector.shape_cast %236 : vector<1x8x8xf32> to vector<8x8xf32>
    %cst_253 = arith.constant dense<0.000000e+00> : vector<8x64xf32>
    %238 = tpu.matmul %237, %215, %cst_253 {dimension_numbers = #tpu.dot_dimension_numbers<[1], [0], [0], [1], [0, 0, 1, 1], [], []>} : vector<8x8xf32>, vector<8x64xf32>, vector<8x64xf32> -> vector<8x64xf32>
    %c3_254 = arith.constant 3 : index
    %c0_255 = arith.constant 0 : index
    %c0_256 = arith.constant 0 : index
    %239 = vector.load %arg12[%c3_254, %c0_255, %c0_256] : memref<4x64x512xf32, #tpu.memory_space<vmem>>, vector<1x64x512xf32>
    %240 = vector.shape_cast %239 : vector<1x64x512xf32> to vector<64x512xf32>
    %cst_257 = arith.constant dense<0.000000e+00> : vector<8x512xf32>
    %241 = tpu.matmul %238, %240, %cst_257 {dimension_numbers = #tpu.dot_dimension_numbers<[1], [0], [0], [1], [0, 0, 1, 1], [], []>} : vector<8x64xf32>, vector<64x512xf32>, vector<8x512xf32> -> vector<8x512xf32>
    %242 = arith.addf %235, %241 : vector<8x512xf32>
    %c0_258 = arith.constant 0 : index
    %c0_259 = arith.constant 0 : index
    %243 = vector.load %arg13[%c0_258, %c0_259] : memref<1x512xf32, #tpu.memory_space<vmem>>, vector<1x512xf32>
    %244 = vector.broadcast %243 : vector<1x512xf32> to vector<8x512xf32>
    %245 = arith.addf %242, %244 : vector<8x512xf32>
    %cst_260 = arith.constant 0.000000e+00 : f32
    %246 = vector.broadcast %cst_260 : f32 to vector<8x512xf32>
    %247 = arith.maximumf %245, %246 : vector<8x512xf32>
    %c0_261 = arith.constant 0 : index
    %c0_262 = arith.constant 0 : index
    %248 = vector.load %arg14[%c0_261, %c0_262] : memref<512x128xf32, #tpu.memory_space<vmem>>, vector<512x128xf32>
    %cst_263 = arith.constant dense<0.000000e+00> : vector<8x128xf32>
    %249 = tpu.matmul %247, %248, %cst_263 {dimension_numbers = #tpu.dot_dimension_numbers<[1], [0], [0], [1], [0, 0, 1, 1], [], []>} : vector<8x512xf32>, vector<512x128xf32>, vector<8x128xf32> -> vector<8x128xf32>
    %c0_264 = arith.constant 0 : index
    %c0_265 = arith.constant 0 : index
    %250 = vector.load %arg15[%c0_264, %c0_265] : memref<1x128xf32, #tpu.memory_space<vmem>>, vector<1x128xf32>
    %251 = vector.broadcast %250 : vector<1x128xf32> to vector<8x128xf32>
    %252 = arith.addf %249, %251 : vector<8x128xf32>
    %c0_266 = arith.constant 0 : index
    %c0_267 = arith.constant 0 : index
    %253 = vector.load %arg16[%c0_266, %c0_267] : memref<8x128xf32, #tpu.memory_space<vmem>>, vector<8x128xf32>
    tpu.vector_store %arg16[%c0_266, %c0_267], %252 {strides = array<i32>} : memref<8x128xf32, #tpu.memory_space<vmem>>, vector<8x128xf32>,
    return
  }
  func.func @transform_0(%arg0: i32) -> (i32, i32) {
    %c0_i32 = arith.constant 0 : i32
    %c0_i32_0 = arith.constant 0 : i32
    %c0_i32_1 = arith.constant 0 : i32
    return %c0_i32, %c0_i32_0 : i32, i32
  }
  func.func @transform_1(%arg0: i32) -> (i32, i32, i32) {
    %c0_i32 = arith.constant 0 : i32
    %c0_i32_0 = arith.constant 0 : i32
    %c0_i32_1 = arith.constant 0 : i32
    %c0_i32_2 = arith.constant 0 : i32
    return %c0_i32, %c0_i32_0, %c0_i32_1 : i32, i32, i32
  }
  func.func @transform_2(%arg0: i32) -> (i32, i32, i32) {
    %c0_i32 = arith.constant 0 : i32
    %c0_i32_0 = arith.constant 0 : i32
    %c0_i32_1 = arith.constant 0 : i32
    %c0_i32_2 = arith.constant 0 : i32
    return %c0_i32, %c0_i32_0, %c0_i32_1 : i32, i32, i32
  }
  func.func @transform_3(%arg0: i32) -> (i32, i32) {
    %c0_i32 = arith.constant 0 : i32
    %c0_i32_0 = arith.constant 0 : i32
    %c0_i32_1 = arith.constant 0 : i32
    return %c0_i32, %c0_i32_0 : i32, i32
  }
  func.func @transform_4(%arg0: i32) -> (i32, i32, i32) {
    %c0_i32 = arith.constant 0 : i32
    %c0_i32_0 = arith.constant 0 : i32
    %c0_i32_1 = arith.constant 0 : i32
    %c0_i32_2 = arith.constant 0 : i32
    return %c0_i32, %c0_i32_0, %c0_i32_1 : i32, i32, i32
  }
  func.func @transform_5(%arg0: i32) -> (i32, i32, i32) {
    %c0_i32 = arith.constant 0 : i32
    %c0_i32_0 = arith.constant 0 : i32
    %c0_i32_1 = arith.constant 0 : i32
    %c0_i32_2 = arith.constant 0 : i32
    return %c0_i32, %c0_i32_0, %c0_i32_1 : i32, i32, i32
  }
  func.func @transform_6(%arg0: i32) -> (i32, i32) {
    %c0_i32 = arith.constant 0 : i32
    %c0_i32_0 = arith.constant 0 : i32
    %c0_i32_1 = arith.constant 0 : i32
    return %c0_i32, %c0_i32_0 : i32, i32
  }
  func.func @transform_7(%arg0: i32) -> (i32, i32, i32) {
    %c0_i32 = arith.constant 0 : i32
    %c0_i32_0 = arith.constant 0 : i32
    %c0_i32_1 = arith.constant 0 : i32
    %c0_i32_2 = arith.constant 0 : i32
    return %c0_i32, %c0_i32_0, %c0_i32_1 : i32, i32, i32
  }
  func.func @transform_8(%arg0: i32) -> (i32, i32, i32) {
    %c0_i32 = arith.constant 0 : i32
    %c0_i32_0 = arith.constant 0 : i32
    %c0_i32_1 = arith.constant 0 : i32
    %c0_i32_2 = arith.constant 0 : i32
    return %c0_i32, %c0_i32_0, %c0_i32_1 : i32, i32, i32
  }
  func.func @transform_9(%arg0: i32) -> (i32, i32) {
    %c0_i32 = arith.constant 0 : i32
    %c0_i32_0 = arith.constant 0 : i32
    %c0_i32_1 = arith.constant 0 : i32
    return %c0_i32, %c0_i32_0 : i32, i32
  }
  func.func @transform_10(%arg0: i32) -> (i32, i32, i32) {
    %c0_i32 = arith.constant 0 : i32
    %c0_i32_0 = arith.constant 0 : i32
    %c0_i32_1 = arith.constant 0 : i32
    %c0_i32_2 = arith.constant 0 : i32
    return %c0_i32, %c0_i32_0, %c0_i32_1 : i32, i32, i32
  }
  func.func @transform_11(%arg0: i32) -> (i32, i32, i32) {
    %c0_i32 = arith.constant 0 : i32
    %c0_i32_0 = arith.constant 0 : i32
    %c0_i32_1 = arith.constant 0 : i32
    %c0_i32_2 = arith.constant 0 : i32
    return %c0_i32, %c0_i32_0, %c0_i32_1 : i32, i32, i32
  }
  func.func @transform_12(%arg0: i32) -> (i32, i32) {
    %c0_i32 = arith.constant 0 : i32
    %c0_i32_0 = arith.constant 0 : i32
    %c0_i32_1 = arith.constant 0 : i32
    return %c0_i32, %c0_i32_0 : i32, i32
  }
  func.func @transform_13(%arg0: i32) -> (i32, i32) {
    %c0_i32 = arith.constant 0 : i32
    %c0_i32_0 = arith.constant 0 : i32
    %c0_i32_1 = arith.constant 0 : i32
    return %c0_i32, %c0_i32_0 : i32, i32
  }
  func.func @transform_14(%arg0: i32) -> (i32, i32) {
    %c0_i32 = arith.constant 0 : i32
    %c0_i32_0 = arith.constant 0 : i32
    %c0_i32_1 = arith.constant 0 : i32
    return %c0_i32, %c0_i32_0 : i32, i32
  }
  func.func @transform_15(%arg0: i32) -> (i32, i32) {
    %c0_i32 = arith.constant 0 : i32
    %c0_i32_0 = arith.constant 0 : i32
    %c0_i32_1 = arith.constant 0 : i32
    return %c0_i32, %c0_i32_0 : i32, i32
  }
}

</mosaic_0001>

<llo_original>
// kernel: _lambda_.1
$region0: #{_lambda_.1}
  #allocation0 [shape = 'u32[]', space=smem, size = 0x4, offset = 0x4, fixed_abs, tag = 'smem constant byte address 0x4 - core index']
  #allocation1 [shape = 'u32[144,128]{1,0:T(1,128)}', space=vmem, size = 0x12000, scoped, tag = 'internal scratch']
  %s0 = inlined_call_operand.vmem [shape: bf16[288,48], index: 0, kind: input, shape index: {}]
  %s1 = inlined_call_operand.vmem [shape: bf16[4,248,288], index: 1, kind: input, shape index: {}]
  %s2 = inlined_call_operand.vmem [shape: f32[4,48,32], index: 2, kind: input, shape index: {}]
  %s3 = inlined_call_operand.vmem [shape: f32[1,32], index: 3, kind: input, shape index: {}]
  %s4 = inlined_call_operand.vmem [shape: f32[16,32,248], index: 4, kind: input, shape index: {}]
  %s5 = inlined_call_operand.vmem [shape: f32[16,32,64], index: 5, kind: input, shape index: {}]
  %s6 = inlined_call_operand.vmem [shape: f32[1,64], index: 6, kind: input, shape index: {}]
  %s7 = inlined_call_operand.vmem [shape: f32[9,8,32], index: 7, kind: input, shape index: {}]
  %s8 = inlined_call_operand.vmem [shape: f32[9,64,64], index: 8, kind: input, shape index: {}]
  %s9 = inlined_call_operand.vmem [shape: f32[1,64], index: 9, kind: input, shape index: {}]
  %s10 = inlined_call_operand.vmem [shape: f32[4,8,8], index: 10, kind: input, shape index: {}]
  %s11 = inlined_call_operand.vmem [shape: f32[4,64,512], index: 11, kind: input, shape index: {}]
  %s12 = inlined_call_operand.vmem [shape: f32[1,512], index: 12, kind: input, shape index: {}]
  %s13 = inlined_call_operand.vmem [shape: f32[512,128], index: 13, kind: input, shape index: {}]
  %s14 = inlined_call_operand.vmem [shape: f32[1,128], index: 14, kind: input, shape index: {}]
  %s15 = inlined_call_operand.vmem [shape: f32[8,128], index: 15, kind: output, shape index: {}]
  %s16 = sld [smem:[#allocation0]]
  $region70: #{_lambda_.1} parent=0
    _
  %s18 = ssub.s32 1, %s16
  %s19 = scalar_select 0, %s18, %s16
  // Predicated region
  $region2: #{_lambda_.1} parent=0 // pred_check
    _
  $region3: #{_lambda_.1} parent=0 // pred_check_branch
    %21 = sbr.rel (0) target = $region5
  $region4: #{_lambda_.1} parent=0 // pred_region
    _
  $region5: #{_lambda_.1} parent=0 // pred_fallthru
    _
  // Predicated region
  $region6: #{_lambda_.1} parent=0 // pred_check
    _
  $region7: #{_lambda_.1} parent=0 // pred_check_branch
    %23 = sbr.rel (0) target = $region9
  $region8: #{_lambda_.1} parent=0 // pred_region
    _
  $region9: #{_lambda_.1} parent=0 // pred_fallthru
    _
  // Predicated region
  $region10: #{_lambda_.1} parent=0 // pred_check
    _
  $region11: #{_lambda_.1} parent=0 // pred_check_branch
    %25 = sbr.rel (0) target = $region13
  $region12: #{_lambda_.1} parent=0 // pred_region
    _
  $region13: #{_lambda_.1} parent=0 // pred_fallthru
    _
  // Predicated region
  $region14: #{_lambda_.1} parent=0 // pred_check
    _
  $region15: #{_lambda_.1} parent=0 // pred_check_branch
    %27 = sbr.rel (0) target = $region17
  $region16: #{_lambda_.1} parent=0 // pred_region
    _
  $region17: #{_lambda_.1} parent=0 // pred_fallthru
    _
  // Predicated region
  $region18: #{_lambda_.1} parent=0 // pred_check
    _
  $region19: #{_lambda_.1} parent=0 // pred_check_branch
    %29 = sbr.rel (0) target = $region21
  $region20: #{_lambda_.1} parent=0 // pred_region
    _
  $region21: #{_lambda_.1} parent=0 // pred_fallthru
    _
  // Predicated region
  $region22: #{_lambda_.1} parent=0 // pred_check
    _
  $region23: #{_lambda_.1} parent=0 // pred_check_branch
    %31 = sbr.rel (0) target = $region25
  $region24: #{_lambda_.1} parent=0 // pred_region
    _
  $region25: #{_lambda_.1} parent=0 // pred_fallthru
    _
  // Predicated region
  $region26: #{_lambda_.1} parent=0 // pred_check
    _
  $region27: #{_lambda_.1} parent=0 // pred_check_branch
    %33 = sbr.rel (0) target = $region29
  $region28: #{_lambda_.1} parent=0 // pred_region
    _
  $region29: #{_lambda_.1} parent=0 // pred_fallthru
    _
  // Predicated region
  $region30: #{_lambda_.1} parent=0 // pred_check
    _
  $region31: #{_lambda_.1} parent=0 // pred_check_branch
    %35 = sbr.rel (0) target = $region33
  $region32: #{_lambda_.1} parent=0 // pred_region
    _
  $region33: #{_lambda_.1} parent=0 // pred_fallthru
    _
  // Predicated region
  $region34: #{_lambda_.1} parent=0 // pred_check
    _
  $region35: #{_lambda_.1} parent=0 // pred_check_branch
    %37 = sbr.rel (0) target = $region37
  $region36: #{_lambda_.1} parent=0 // pred_region
    _
  $region37: #{_lambda_.1} parent=0 // pred_fallthru
    _
  // Predicated region
  $region38: #{_lambda_.1} parent=0 // pred_check
    _
  $region39: #{_lambda_.1} parent=0 // pred_check_branch
    %39 = sbr.rel (0) target = $region41
  $region40: #{_lambda_.1} parent=0 // pred_region
    _
  $region41: #{_lambda_.1} parent=0 // pred_fallthru
    _
  // Predicated region
  $region42: #{_lambda_.1} parent=0 // pred_check
    _
  $region43: #{_lambda_.1} parent=0 // pred_check_branch
    %41 = sbr.rel (0) target = $region45
  $region44: #{_lambda_.1} parent=0 // pred_region
    _
  $region45: #{_lambda_.1} parent=0 // pred_fallthru
    _
  // Predicated region
  $region46: #{_lambda_.1} parent=0 // pred_check
    _
  $region47: #{_lambda_.1} parent=0 // pred_check_branch
    %43 = sbr.rel (0) target = $region49
  $region48: #{_lambda_.1} parent=0 // pred_region
    _
  $region49: #{_lambda_.1} parent=0 // pred_fallthru
    _
  // Predicated region
  $region50: #{_lambda_.1} parent=0 // pred_check
    _
  $region51: #{_lambda_.1} parent=0 // pred_check_branch
    %45 = sbr.rel (0) target = $region53
  $region52: #{_lambda_.1} parent=0 // pred_region
    _
  $region53: #{_lambda_.1} parent=0 // pred_fallthru
    _
  // Predicated region
  $region54: #{_lambda_.1} parent=0 // pred_check
    _
  $region55: #{_lambda_.1} parent=0 // pred_check_branch
    %47 = sbr.rel (0) target = $region57
  $region56: #{_lambda_.1} parent=0 // pred_region
    _
  $region57: #{_lambda_.1} parent=0 // pred_fallthru
    _
  // Predicated region
  $region58: #{_lambda_.1} parent=0 // pred_check
    _
  $region59: #{_lambda_.1} parent=0 // pred_check_branch
    %49 = sbr.rel (0) target = $region61
  $region60: #{_lambda_.1} parent=0 // pred_region
    _
  $region61: #{_lambda_.1} parent=0 // pred_fallthru
    _
  %v51 = vld [vmem:[%s0] sm:$0xf]
  %v52 = vld [vmem:[%s0 + $0x4] sm:$0xf]
  %v53 = vld [vmem:[%s0 + $0x8] sm:$0xf]
  %v54 = vld [vmem:[%s0 + $0xc] sm:$0xf]
  %v55 = vld [vmem:[%s0 + $0x10] sm:$0xf]
  %v56 = vld [vmem:[%s0 + $0x14] sm:$0xf]
  %v57 = vld [vmem:[%s0 + $0x18] sm:$0xf]
  %v58 = vld [vmem:[%s0 + $0x1c] sm:$0xf]
  %v59 = vld [vmem:[%s0 + $0x20] sm:$0xf]
  %v60 = vld [vmem:[%s0 + $0x24] sm:$0xf]
  %v61 = vld [vmem:[%s0 + $0x28] sm:$0xf]
  %v62 = vld [vmem:[%s0 + $0x2c] sm:$0xf]
  %v63 = vld [vmem:[%s0 + $0x30] sm:$0xf]
  %v64 = vld [vmem:[%s0 + $0x34] sm:$0xf]
  %v65 = vld [vmem:[%s0 + $0x38] sm:$0xf]
  %v66 = vld [vmem:[%s0 + $0x3c] sm:$0xf]
  %v67 = vld [vmem:[%s0 + $0x40] sm:$0xf]
  %v68 = vld [vmem:[%s0 + $0x44] sm:$0xf]
  %v69 = vld [vmem:[%s0 + $0x48] sm:$0xf]
  %v70 = vld [vmem:[%s0 + $0x4c] sm:$0xf]
  %v71 = vld [vmem:[%s0 + $0x50] sm:$0xf]
  %v72 = vld [vmem:[%s0 + $0x54] sm:$0xf]
  %v73 = vld [vmem:[%s0 + $0x58] sm:$0xf]
  %v74 = vld [vmem:[%s0 + $0x5c] sm:$0xf]
  %v75 = vld [vmem:[%s0 + $0x60] sm:$0xf]
  %v76 = vld [vmem:[%s0 + $0x64] sm:$0xf]
  %v77 = vld [vmem:[%s0 + $0x68] sm:$0xf]
  %v78 = vld [vmem:[%s0 + $0x6c] sm:$0xf]
  %v79 = vld [vmem:[%s0 + $0x70] sm:$0xf]
  %v80 = vld [vmem:[%s0 + $0x74] sm:$0xf]
  %v81 = vld [vmem:[%s0 + $0x78] sm:$0xf]
  %v82 = vld [vmem:[%s0 + $0x7c] sm:$0xf]
  %v83 = vld [vmem:[%s0 + $0x80] sm:$0xf]
  %v84 = vld [vmem:[%s0 + $0x84] sm:$0xf]
  %v85 = vld [vmem:[%s0 + $0x88] sm:$0xf]
  %v86 = vld [vmem:[%s0 + $0x8c] sm:$0xf]
  %v87 = vld [vmem:[%s1] sm:$0xff]
  %v88 = vld [vmem:[%s1 + $0x8] sm:$0xf]
  %v89 = vld [vmem:[%s1 + $0xc] sm:$0xff]
  %v90 = vld [vmem:[%s1 + $0x14] sm:$0xf]
  %v91 = vld [vmem:[%s1 + $0x18] sm:$0xff]
  %v92 = vld [vmem:[%s1 + $0x20] sm:$0xf]
  %v93 = vld [vmem:[%s1 + $0x24] sm:$0xff]
  %v94 = vld [vmem:[%s1 + $0x2c] sm:$0xf]
  %v95 = vld [vmem:[%s1 + $0x30] sm:$0xff]
  %v96 = vld [vmem:[%s1 + $0x38] sm:$0xf]
  %v97 = vld [vmem:[%s1 + $0x3c] sm:$0xff]
  %v98 = vld [vmem:[%s1 + $0x44] sm:$0xf]
  %v99 = vld [vmem:[%s1 + $0x48] sm:$0xff]
  %v100 = vld [vmem:[%s1 + $0x50] sm:$0xf]
  %v101 = vld [vmem:[%s1 + $0x54] sm:$0xff]
  %v102 = vld [vmem:[%s1 + $0x5c] sm:$0xf]
  %v103 = vld [vmem:[%s1 + $0x60] sm:$0xff]
  %v104 = vld [vmem:[%s1 + $0x68] sm:$0xf]
  %v105 = vld [vmem:[%s1 + $0x6c] sm:$0xff]
  %v106 = vld [vmem:[%s1 + $0x74] sm:$0xf]
  %v107 = vld [vmem:[%s1 + $0x78] sm:$0xff]
  %v108 = vld [vmem:[%s1 + $0x80] sm:$0xf]
  %v109 = vld [vmem:[%s1 + $0x84] sm:$0xff]
  %v110 = vld [vmem:[%s1 + $0x8c] sm:$0xf]
  %v111 = vld [vmem:[%s1 + $0x90] sm:$0xff]
  %v112 = vld [vmem:[%s1 + $0x98] sm:$0xf]
  %v113 = vld [vmem:[%s1 + $0x9c] sm:$0xff]
  %v114 = vld [vmem:[%s1 + $0xa4] sm:$0xf]
  %v115 = vld [vmem:[%s1 + $0xa8] sm:$0xff]
  %v116 = vld [vmem:[%s1 + $0xb0] sm:$0xf]
  %v117 = vld [vmem:[%s1 + $0xb4] sm:$0xff]
  %v118 = vld [vmem:[%s1 + $0xbc] sm:$0xf]
  %v119 = vld [vmem:[%s1 + $0xc0] sm:$0xff]
  %v120 = vld [vmem:[%s1 + $0xc8] sm:$0xf]
  %v121 = vld [vmem:[%s1 + $0xcc] sm:$0xff]
  %v122 = vld [vmem:[%s1 + $0xd4] sm:$0xf]
  %v123 = vld [vmem:[%s1 + $0xd8] sm:$0xff]
  %v124 = vld [vmem:[%s1 + $0xe0] sm:$0xf]
  %v125 = vld [vmem:[%s1 + $0xe4] sm:$0xff]
  %v126 = vld [vmem:[%s1 + $0xec] sm:$0xf]
  %v127 = vld [vmem:[%s1 + $0xf0] sm:$0xff]
  %v128 = vld [vmem:[%s1 + $0xf8] sm:$0xf]
  %v129 = vld [vmem:[%s1 + $0xfc] sm:$0xff]
  %v130 = vld [vmem:[%s1 + $0x104] sm:$0xf]
  %v131 = vld [vmem:[%s1 + $0x108] sm:$0xff]
  %v132 = vld [vmem:[%s1 + $0x110] sm:$0xf]
  %v133 = vld [vmem:[%s1 + $0x114] sm:$0xff]
  %v134 = vld [vmem:[%s1 + $0x11c] sm:$0xf]
  %v135 = vld [vmem:[%s1 + $0x120] sm:$0xff]
  %v136 = vld [vmem:[%s1 + $0x128] sm:$0xf]
  %v137 = vld [vmem:[%s1 + $0x12c] sm:$0xff]
  %v138 = vld [vmem:[%s1 + $0x134] sm:$0xf]
  %v139 = vld [vmem:[%s1 + $0x138] sm:$0xff]
  %v140 = vld [vmem:[%s1 + $0x140] sm:$0xf]
  %v141 = vld [vmem:[%s1 + $0x144] sm:$0xff]
  %v142 = vld [vmem:[%s1 + $0x14c] sm:$0xf]
  %v143 = vld [vmem:[%s1 + $0x150] sm:$0xff]
  %v144 = vld [vmem:[%s1 + $0x158] sm:$0xf]
  %v145 = vld [vmem:[%s1 + $0x15c] sm:$0xff]
  %v146 = vld [vmem:[%s1 + $0x164] sm:$0xf]
  %v147 = vld [vmem:[%s1 + $0x168] sm:$0xff]
  %v148 = vld [vmem:[%s1 + $0x170] sm:$0xf]
  %v211 = vunpack.c.l.b16 %v87
  %v212 = vunpack.c.h.b16 %v87
  %v213 = vunpack.c.l.b16 %v88
  %v214 = vunpack.c.l.b16 %v89
  %v215 = vunpack.c.h.b16 %v89
  %v216 = vunpack.c.l.b16 %v90
  %v217 = vunpack.c.l.b16 %v91
  %v218 = vunpack.c.h.b16 %v91
  %v219 = vunpack.c.l.b16 %v92
  %v220 = vunpack.c.l.b16 %v93
  %v221 = vunpack.c.h.b16 %v93
  %v222 = vunpack.c.l.b16 %v94
  %v223 = vunpack.c.l.b16 %v95
  %v224 = vunpack.c.h.b16 %v95
  %v225 = vunpack.c.l.b16 %v96
  %v226 = vunpack.c.l.b16 %v97
  %v227 = vunpack.c.h.b16 %v97
  %v228 = vunpack.c.l.b16 %v98
  %v229 = vunpack.c.l.b16 %v99
  %v230 = vunpack.c.h.b16 %v99
  %v231 = vunpack.c.l.b16 %v100
  %v232 = vunpack.c.l.b16 %v101
  %v233 = vunpack.c.h.b16 %v101
  %v234 = vunpack.c.l.b16 %v102
  %v235 = vunpack.c.l.b16 %v103
  %v236 = vunpack.c.h.b16 %v103
  %v237 = vunpack.c.l.b16 %v104
  %v238 = vunpack.c.l.b16 %v105
  %v239 = vunpack.c.h.b16 %v105
  %v240 = vunpack.c.l.b16 %v106
  %v241 = vunpack.c.l.b16 %v107
  %v242 = vunpack.c.h.b16 %v107
  %v243 = vunpack.c.l.b16 %v108
  %v244 = vunpack.c.l.b16 %v109
  %v245 = vunpack.c.h.b16 %v109
  %v246 = vunpack.c.l.b16 %v110
  %v247 = vunpack.c.l.b16 %v111
  %v248 = vunpack.c.h.b16 %v111
  %v249 = vunpack.c.l.b16 %v112
  %v250 = vunpack.c.l.b16 %v113
  %v251 = vunpack.c.h.b16 %v113
  %v252 = vunpack.c.l.b16 %v114
  %v253 = vunpack.c.l.b16 %v115
  %v254 = vunpack.c.h.b16 %v115
  %v255 = vunpack.c.l.b16 %v116
  %v256 = vunpack.c.l.b16 %v117
  %v257 = vunpack.c.h.b16 %v117
  %v258 = vunpack.c.l.b16 %v118
  %v259 = vunpack.c.l.b16 %v119
  %v260 = vunpack.c.h.b16 %v119
  %v261 = vunpack.c.l.b16 %v120
  %v262 = vunpack.c.l.b16 %v121
  %v263 = vunpack.c.h.b16 %v121
  %v264 = vunpack.c.l.b16 %v122
  %v265 = vunpack.c.l.b16 %v123
  %v266 = vunpack.c.h.b16 %v123
  %v267 = vunpack.c.l.b16 %v124
  %v268 = vunpack.c.l.b16 %v125
  %v269 = vunpack.c.h.b16 %v125
  %v270 = vunpack.c.l.b16 %v126
  %v271 = vunpack.c.l.b16 %v127
  %v272 = vunpack.c.h.b16 %v127
  %v273 = vunpack.c.l.b16 %v128
  %v274 = vunpack.c.l.b16 %v129
  %v275 = vunpack.c.h.b16 %v129
  %v276 = vunpack.c.l.b16 %v130
  %v277 = vunpack.c.l.b16 %v131
  %v278 = vunpack.c.h.b16 %v131
  %v279 = vunpack.c.l.b16 %v132
  %v280 = vunpack.c.l.b16 %v133
  %v281 = vunpack.c.h.b16 %v133
  %v282 = vunpack.c.l.b16 %v134
  %v283 = vunpack.c.l.b16 %v135
  %v284 = vunpack.c.h.b16 %v135
  %v285 = vunpack.c.l.b16 %v136
  %v286 = vunpack.c.l.b16 %v137
  %v287 = vunpack.c.h.b16 %v137
  %v288 = vunpack.c.l.b16 %v138
  %v289 = vunpack.c.l.b16 %v139
  %v290 = vunpack.c.h.b16 %v139
  %v291 = vunpack.c.l.b16 %v140
  %v292 = vunpack.c.l.b16 %v141
  %v293 = vunpack.c.h.b16 %v141
  %v294 = vunpack.c.l.b16 %v142
  %v295 = vunpack.c.l.b16 %v143
  %v296 = vunpack.c.h.b16 %v143
  %v297 = vunpack.c.l.b16 %v144
  %v298 = vunpack.c.l.b16 %v145
  %v299 = vunpack.c.h.b16 %v145
  %v300 = vunpack.c.l.b16 %v146
  %v301 = vunpack.c.l.b16 %v147
  %v302 = vunpack.c.h.b16 %v147
  %v303 = vunpack.c.l.b16 %v148
  %v304 = vpack.c.b16 %v214, %v211
  %v305 = vpack.c.b16 %v215, %v212
  %v306 = vpack.c.b16 %v216, %v213
  %v307 = vpack.c.b16 %v220, %v217
  %v308 = vpack.c.b16 %v221, %v218
  %v309 = vpack.c.b16 %v222, %v219
  %v310 = vpack.c.b16 %v226, %v223
  %v311 = vpack.c.b16 %v227, %v224
  %v312 = vpack.c.b16 %v228, %v225
  %v313 = vpack.c.b16 %v232, %v229
  %v314 = vpack.c.b16 %v233, %v230
  %v315 = vpack.c.b16 %v234, %v231
  %v316 = vpack.c.b16 %v238, %v235
  %v317 = vpack.c.b16 %v239, %v236
  %v318 = vpack.c.b16 %v240, %v237
  %v319 = vpack.c.b16 %v244, %v241
  %v320 = vpack.c.b16 %v245, %v242
  %v321 = vpack.c.b16 %v246, %v243
  %v322 = vpack.c.b16 %v250, %v247
  %v323 = vpack.c.b16 %v251, %v248
  %v324 = vpack.c.b16 %v252, %v249
  %v325 = vpack.c.b16 %v256, %v253
  %v326 = vpack.c.b16 %v257, %v254
  %v327 = vpack.c.b16 %v258, %v255
  %v328 = vpack.c.b16 %v262, %v259
  %v329 = vpack.c.b16 %v263, %v260
  %v330 = vpack.c.b16 %v264, %v261
  %v331 = vpack.c.b16 %v268, %v265
  %v332 = vpack.c.b16 %v269, %v266
  %v333 = vpack.c.b16 %v270, %v267
  %v334 = vpack.c.b16 %v274, %v271
  %v335 = vpack.c.b16 %v275, %v272
  %v336 = vpack.c.b16 %v276, %v273
  %v337 = vpack.c.b16 %v280, %v277
  %v338 = vpack.c.b16 %v281, %v278
  %v339 = vpack.c.b16 %v282, %v279
  %v340 = vpack.c.b16 %v286, %v283
  %v341 = vpack.c.b16 %v287, %v284
  %v342 = vpack.c.b16 %v288, %v285
  %v343 = vpack.c.b16 %v292, %v289
  %v344 = vpack.c.b16 %v293, %v290
  %v345 = vpack.c.b16 %v294, %v291
  %v346 = vpack.c.b16 %v298, %v295
  %v347 = vpack.c.b16 %v299, %v296
  %v348 = vpack.c.b16 %v300, %v297
  %v349 = vpack.c.b16 %v301, %v301
  %v350 = vpack.c.b16 %v302, %v302
  %v351 = vpack.c.b16 %v303, %v303
  %v420 = vunpack.c.l.b16 %v51
  %v421 = vunpack.c.l.b16 %v52
  %v422 = vunpack.c.l.b16 %v53
  %v423 = vunpack.c.l.b16 %v54
  %v424 = vunpack.c.l.b16 %v55
  %v425 = vunpack.c.l.b16 %v56
  %v426 = vunpack.c.l.b16 %v57
  %v427 = vunpack.c.l.b16 %v58
  %v428 = vunpack.c.l.b16 %v59
  %v429 = vunpack.c.l.b16 %v60
  %v430 = vunpack.c.l.b16 %v61
  %v431 = vunpack.c.l.b16 %v62
  %v432 = vunpack.c.l.b16 %v63
  %v433 = vunpack.c.l.b16 %v64
  %v434 = vunpack.c.l.b16 %v65
  %v435 = vunpack.c.l.b16 %v66
  %v436 = vunpack.c.l.b16 %v67
  %v437 = vunpack.c.l.b16 %v68
  %v438 = vunpack.c.l.b16 %v69
  %v439 = vunpack.c.l.b16 %v70
  %v440 = vunpack.c.l.b16 %v71
  %v441 = vunpack.c.l.b16 %v72
  %v442 = vunpack.c.l.b16 %v73
  %v443 = vunpack.c.l.b16 %v74
  %v444 = vunpack.c.l.b16 %v75
  %v445 = vunpack.c.l.b16 %v76
  %v446 = vunpack.c.l.b16 %v77
  %v447 = vunpack.c.l.b16 %v78
  %v448 = vunpack.c.l.b16 %v79
  %v449 = vunpack.c.l.b16 %v80
  %v450 = vunpack.c.l.b16 %v81
  %v451 = vunpack.c.l.b16 %v82
  %v452 = vunpack.c.l.b16 %v83
  %v453 = vunpack.c.l.b16 %v84
  %v454 = vunpack.c.l.b16 %v85
  %v455 = vunpack.c.l.b16 %v86
  %v456 = vpack.c.b16 %v421, %v420
  %v457 = vpack.c.b16 %v423, %v422
  %v458 = vpack.c.b16 %v425, %v424
  %v459 = vpack.c.b16 %v427, %v426
  %v460 = vpack.c.b16 %v429, %v428
  %v461 = vpack.c.b16 %v431, %v430
  %v462 = vpack.c.b16 %v433, %v432
  %v463 = vpack.c.b16 %v435, %v434
  %v464 = vpack.c.b16 %v437, %v436
  %v465 = vpack.c.b16 %v439, %v438
  %v466 = vpack.c.b16 %v441, %v440
  %v467 = vpack.c.b16 %v443, %v442
  %v468 = vpack.c.b16 %v445, %v444
  %v469 = vpack.c.b16 %v447, %v446
  %v470 = vpack.c.b16 %v449, %v448
  %v471 = vpack.c.b16 %v451, %v450
  %v472 = vpack.c.b16 %v453, %v452
  %v473 = vpack.c.b16 %v455, %v454
  %vm492 = vcmask 261120
  %v494 = vsel %vm492, %v306, 0
  %v497 = vsel %vm492, %v309, 0
  %v500 = vsel %vm492, %v312, 0
  %v503 = vsel %vm492, %v315, 0
  %v506 = vsel %vm492, %v318, 0
  %v509 = vsel %vm492, %v321, 0
  %v512 = vsel %vm492, %v324, 0
  %v515 = vsel %vm492, %v327, 0
  %v518 = vsel %vm492, %v330, 0
  %v521 = vsel %vm492, %v333, 0
  %v524 = vsel %vm492, %v336, 0
  %v527 = vsel %vm492, %v339, 0
  %v530 = vsel %vm492, %v342, 0
  %v533 = vsel %vm492, %v345, 0
  %v536 = vsel %vm492, %v348, 0
  %v539 = vsel %vm492, %v351, 0
  %541 = vmatprep.subr.bf16.mxu0 0
  %542 = vmatpush1.bf16.msra.mxu0 %v456
  %543 = vmatprep.subr.bf16.mxu0 0
  %544 = vmatpush1.bf16.msra.mxu0 %v457
  %545 = vmatprep.subr.bf16.mxu0 0
  %546 = vmatpush1.bf16.msra.mxu0 %v458
  %547 = vmatprep.subr.bf16.mxu0 0
  %548 = vmatpush1.bf16.msra.mxu0 %v459
  %549 = vmatprep.subr.bf16.mxu0 0
  %550 = vmatpush1.bf16.msra.mxu0 %v460
  %551 = vmatprep.subr.bf16.mxu0 0
  %552 = vmatpush1.bf16.msra.mxu0 %v461
  %553 = vmatprep.subr.bf16.mxu0 0
  %554 = vmatpush1.bf16.msra.mxu0 %v462
  %555 = vmatprep.subr.bf16.mxu0 0
  %556 = vmatpush1.bf16.msra.mxu0 %v463
  %557 = vmatprep.subr.bf16.mxu0 0
  %558 = vmatpush1.bf16.msra.mxu0 %v464
  %559 = vmatprep.subr.bf16.mxu0 0
  %560 = vmatpush1.bf16.msra.mxu0 %v465
  %561 = vmatprep.subr.bf16.mxu0 0
  %562 = vmatpush1.bf16.msra.mxu0 %v466
  %563 = vmatprep.subr.bf16.mxu0 0
  %564 = vmatpush1.bf16.msra.mxu0 %v467
  %565 = vmatprep.subr.bf16.mxu0 0
  %566 = vmatpush1.bf16.msra.mxu0 %v468
  %567 = vmatprep.subr.bf16.mxu0 0
  %568 = vmatpush1.bf16.msra.mxu0 %v469
  %569 = vmatprep.subr.bf16.mxu0 0
  %570 = vmatpush1.bf16.msra.mxu0 %v470
  %571 = vmatprep.subr.bf16.mxu0 0
  %572 = vmatpush1.bf16.msra.mxu0 %v471
  %573 = vmatprep.mubr.bf16.mxu0 %v305
  %574 = vmatmul.mubr.bf16.gmra.mrb[0].mxu0 %v304
  %v575 = vpop.f32.mrb[0].mxu0
  %v576 = vadd.f32 0.0, %v575
  %v577 = vpop.f32.mrb[0].mxu0
  %v578 = vpop.f32.mrb[0].mxu0
  %v579 = vadd.f32 0.0, %v578
  %v580 = vpop.f32.mrb[0].mxu0
  %581 = vmatprep.mubr.bf16.mxu0 %v308
  %582 = vmatmul.mubr.bf16.gmra.mrb[0].mxu0 %v307
  %v583 = vpop.f32.mrb[0].mxu0
  %v584 = vadd.f32 0.0, %v583
  %v585 = vpop.f32.mrb[0].mxu0
  %v586 = vpop.f32.mrb[0].mxu0
  %v587 = vadd.f32 0.0, %v586
  %v588 = vpop.f32.mrb[0].mxu0
  %589 = vmatprep.mubr.bf16.mxu0 %v311
  %590 = vmatmul.mubr.bf16.gmra.mrb[0].mxu0 %v310
  %v591 = vpop.f32.mrb[0].mxu0
  %v592 = vadd.f32 0.0, %v591
  %v593 = vpop.f32.mrb[0].mxu0
  %v594 = vpop.f32.mrb[0].mxu0
  %v595 = vadd.f32 0.0, %v594
  %v596 = vpop.f32.mrb[0].mxu0
  %597 = vmatprep.mubr.bf16.mxu0 %v314
  %598 = vmatmul.mubr.bf16.gmra.mrb[0].mxu0 %v313
  %v599 = vpop.f32.mrb[0].mxu0
  %v600 = vadd.f32 0.0, %v599
  %v601 = vpop.f32.mrb[0].mxu0
  %v602 = vpop.f32.mrb[0].mxu0
  %v603 = vadd.f32 0.0, %v602
  %v604 = vpop.f32.mrb[0].mxu0
  %605 = vmatprep.mubr.bf16.mxu0 %v317
  %606 = vmatmul.mubr.bf16.gmra.mrb[0].mxu0 %v316
  %v607 = vpop.f32.mrb[0].mxu0
  %v608 = vadd.f32 0.0, %v607
  %v609 = vpop.f32.mrb[0].mxu0
  %v610 = vpop.f32.mrb[0].mxu0
  %v611 = vadd.f32 0.0, %v610
  %v612 = vpop.f32.mrb[0].mxu0
  %613 = vmatprep.mubr.bf16.mxu0 %v320
  %614 = vmatmul.mubr.bf16.gmra.mrb[0].mxu0 %v319
  %v615 = vpop.f32.mrb[0].mxu0
  %v616 = vadd.f32 0.0, %v615
  %v617 = vpop.f32.mrb[0].mxu0
  %v618 = vpop.f32.mrb[0].mxu0
  %v619 = vadd.f32 0.0, %v618
  %v620 = vpop.f32.mrb[0].mxu0
  %621 = vmatprep.mubr.bf16.mxu0 %v323
  %622 = vmatmul.mubr.bf16.gmra.mrb[0].mxu0 %v322
  %v623 = vpop.f32.mrb[0].mxu0
  %v624 = vadd.f32 0.0, %v623
  %v625 = vpop.f32.mrb[0].mxu0
  %v626 = vpop.f32.mrb[0].mxu0
  %v627 = vadd.f32 0.0, %v626
  %v628 = vpop.f32.mrb[0].mxu0
  %629 = vmatprep.mubr.bf16.mxu0 %v326
  %630 = vmatmul.mubr.bf16.gmra.mrb[0].mxu0 %v325
  %v631 = vpop.f32.mrb[0].mxu0
  %v632 = vadd.f32 0.0, %v631
  %v633 = vpop.f32.mrb[0].mxu0
  %v634 = vpop.f32.mrb[0].mxu0
  %v635 = vadd.f32 0.0, %v634
  %v636 = vpop.f32.mrb[0].mxu0
  %637 = vmatprep.mubr.bf16.mxu0 %v329
  %638 = vmatmul.mubr.bf16.gmra.mrb[0].mxu0 %v328
  %v639 = vpop.f32.mrb[0].mxu0
  %v640 = vadd.f32 0.0, %v639
  %v641 = vpop.f32.mrb[0].mxu0
  %v642 = vpop.f32.mrb[0].mxu0
  %v643 = vadd.f32 0.0, %v642
  %v644 = vpop.f32.mrb[0].mxu0
  %645 = vmatprep.mubr.bf16.mxu0 %v332
  %646 = vmatmul.mubr.bf16.gmra.mrb[0].mxu0 %v331
  %v647 = vpop.f32.mrb[0].mxu0
  %v648 = vadd.f32 0.0, %v647
  %v649 = vpop.f32.mrb[0].mxu0
  %v650 = vpop.f32.mrb[0].mxu0
  %v651 = vadd.f32 0.0, %v650
  %v652 = vpop.f32.mrb[0].mxu0
  %653 = vmatprep.mubr.bf16.mxu0 %v335
  %654 = vmatmul.mubr.bf16.gmra.mrb[0].mxu0 %v334
  %v655 = vpop.f32.mrb[0].mxu0
  %v656 = vadd.f32 0.0, %v655
  %v657 = vpop.f32.mrb[0].mxu0
  %v658 = vpop.f32.mrb[0].mxu0
  %v659 = vadd.f32 0.0, %v658
  %v660 = vpop.f32.mrb[0].mxu0
  %661 = vmatprep.mubr.bf16.mxu0 %v338
  %662 = vmatmul.mubr.bf16.gmra.mrb[0].mxu0 %v337
  %v663 = vpop.f32.mrb[0].mxu0
  %v664 = vadd.f32 0.0, %v663
  %v665 = vpop.f32.mrb[0].mxu0
  %v666 = vpop.f32.mrb[0].mxu0
  %v667 = vadd.f32 0.0, %v666
  %v668 = vpop.f32.mrb[0].mxu0
  %669 = vmatprep.mubr.bf16.mxu0 %v341
  %670 = vmatmul.mubr.bf16.gmra.mrb[0].mxu0 %v340
  %v671 = vpop.f32.mrb[0].mxu0
  %v672 = vadd.f32 0.0, %v671
  %v673 = vpop.f32.mrb[0].mxu0
  %v674 = vpop.f32.mrb[0].mxu0
  %v675 = vadd.f32 0.0, %v674
  %v676 = vpop.f32.mrb[0].mxu0
  %677 = vmatprep.mubr.bf16.mxu0 %v344
  %678 = vmatmul.mubr.bf16.gmra.mrb[0].mxu0 %v343
  %v679 = vpop.f32.mrb[0].mxu0
  %v680 = vadd.f32 0.0, %v679
  %v681 = vpop.f32.mrb[0].mxu0
  %v682 = vpop.f32.mrb[0].mxu0
  %v683 = vadd.f32 0.0, %v682
  %v684 = vpop.f32.mrb[0].mxu0
  %685 = vmatprep.mubr.bf16.mxu0 %v347
  %686 = vmatmul.mubr.bf16.gmra.mrb[0].mxu0 %v346
  %v687 = vpop.f32.mrb[0].mxu0
  %v688 = vadd.f32 0.0, %v687
  %v689 = vpop.f32.mrb[0].mxu0
  %v690 = vpop.f32.mrb[0].mxu0
  %v691 = vadd.f32 0.0, %v690
  %v692 = vpop.f32.mrb[0].mxu0
  %693 = vmatprep.mubr.bf16.mxu0 %v350
  %694 = vmatmul.mubr.bf16.gmra.mrb[0].mxu0 %v349
  %v695 = vpop.f32.mrb[0].mxu0
  %v696 = vadd.f32 0.0, %v695
  %v697 = vpop.f32.mrb[0].mxu0
  %v698 = vpop.f32.mrb[0].mxu0
  %v699 = vpop.f32.mrb[0].mxu0
  %700 = vdwg.mxu0
  %701 = vmatprep.subr.bf16.mxu0 0
  %702 = vmatpush1.bf16.msra.mxu0 %v472
  %703 = vmatprep.subr.bf16.mxu0 0
  %704 = vmatpush1.bf16.msra.mxu0 %v473
  %705 = vmatprep.subr.bf16.mxu0 0
  %706 = vmatpush1.bf16.msra.mxu0 0
  %707 = vmatprep.subr.bf16.mxu0 0
  %708 = vmatpush1.bf16.msra.mxu0 0
  %709 = vmatprep.subr.bf16.mxu0 0
  %710 = vmatpush1.bf16.msra.mxu0 0
  %711 = vmatprep.subr.bf16.mxu0 0
  %712 = vmatpush1.bf16.msra.mxu0 0
  %713 = vmatprep.subr.bf16.mxu0 0
  %714 = vmatpush1.bf16.msra.mxu0 0
  %715 = vmatprep.subr.bf16.mxu0 0
  %716 = vmatpush1.bf16.msra.mxu0 0
  %717 = vmatprep.subr.bf16.mxu0 0
  %718 = vmatpush1.bf16.msra.mxu0 0
  %719 = vmatprep.subr.bf16.mxu0 0
  %720 = vmatpush1.bf16.msra.mxu0 0
  %721 = vmatprep.subr.bf16.mxu0 0
  %722 = vmatpush1.bf16.msra.mxu0 0
  %723 = vmatprep.subr.bf16.mxu0 0
  %724 = vmatpush1.bf16.msra.mxu0 0
  %725 = vmatprep.subr.bf16.mxu0 0
  %726 = vmatpush1.bf16.msra.mxu0 0
  %727 = vmatprep.subr.bf16.mxu0 0
  %728 = vmatpush1.bf16.msra.mxu0 0
  %729 = vmatprep.subr.bf16.mxu0 0
  %730 = vmatpush1.bf16.msra.mxu0 0
  %731 = vmatprep.subr.bf16.mxu0 0
  %732 = vmatpush1.bf16.msra.mxu0 0
  %733 = vmatprep.mubr.bf16.mxu0 0
  %734 = vmatmul.mubr.bf16.gmra.mrb[0].mxu0 %v494
  %v735 = vpop.f32.mrb[0].mxu0
  %v736 = vadd.f32 %v576, %v735
  %v737 = vpop.f32.mrb[0].mxu0
  %v738 = vpop.f32.mrb[0].mxu0
  %v739 = vadd.f32 %v579, %v738
  %v740 = vpop.f32.mrb[0].mxu0
  %741 = vmatprep.mubr.bf16.mxu0 0
  %742 = vmatmul.mubr.bf16.gmra.mrb[0].mxu0 %v497
  %v743 = vpop.f32.mrb[0].mxu0
  %v744 = vadd.f32 %v584, %v743
  %v745 = vpop.f32.mrb[0].mxu0
  %v746 = vpop.f32.mrb[0].mxu0
  %v747 = vadd.f32 %v587, %v746
  %v748 = vpop.f32.mrb[0].mxu0
  %749 = vmatprep.mubr.bf16.mxu0 0
  %750 = vmatmul.mubr.bf16.gmra.mrb[0].mxu0 %v500
  %v751 = vpop.f32.mrb[0].mxu0
  %v752 = vadd.f32 %v592, %v751
  %v753 = vpop.f32.mrb[0].mxu0
  %v754 = vpop.f32.mrb[0].mxu0
  %v755 = vadd.f32 %v595, %v754
  %v756 = vpop.f32.mrb[0].mxu0
  %757 = vmatprep.mubr.bf16.mxu0 0
  %758 = vmatmul.mubr.bf16.gmra.mrb[0].mxu0 %v503
  %v759 = vpop.f32.mrb[0].mxu0
  %v760 = vadd.f32 %v600, %v759
  %v761 = vpop.f32.mrb[0].mxu0
  %v762 = vpop.f32.mrb[0].mxu0
  %v763 = vadd.f32 %v603, %v762
  %v764 = vpop.f32.mrb[0].mxu0
  %765 = vmatprep.mubr.bf16.mxu0 0
  %766 = vmatmul.mubr.bf16.gmra.mrb[0].mxu0 %v506
  %v767 = vpop.f32.mrb[0].mxu0
  %v768 = vadd.f32 %v608, %v767
  %v769 = vpop.f32.mrb[0].mxu0
  %v770 = vpop.f32.mrb[0].mxu0
  %v771 = vadd.f32 %v611, %v770
  %v772 = vpop.f32.mrb[0].mxu0
  %773 = vmatprep.mubr.bf16.mxu0 0
  %774 = vmatmul.mubr.bf16.gmra.mrb[0].mxu0 %v509
  %v775 = vpop.f32.mrb[0].mxu0
  %v776 = vadd.f32 %v616, %v775
  %v777 = vpop.f32.mrb[0].mxu0
  %v778 = vpop.f32.mrb[0].mxu0
  %v779 = vadd.f32 %v619, %v778
  %v780 = vpop.f32.mrb[0].mxu0
  %781 = vmatprep.mubr.bf16.mxu0 0
  %782 = vmatmul.mubr.bf16.gmra.mrb[0].mxu0 %v512
  %v783 = vpop.f32.mrb[0].mxu0
  %v784 = vadd.f32 %v624, %v783
  %v785 = vpop.f32.mrb[0].mxu0
  %v786 = vpop.f32.mrb[0].mxu0
  %v787 = vadd.f32 %v627, %v786
  %v788 = vpop.f32.mrb[0].mxu0
  %789 = vmatprep.mubr.bf16.mxu0 0
  %790 = vmatmul.mubr.bf16.gmra.mrb[0].mxu0 %v515
  %v791 = vpop.f32.mrb[0].mxu0
  %v792 = vadd.f32 %v632, %v791
  %v793 = vpop.f32.mrb[0].mxu0
  %v794 = vpop.f32.mrb[0].mxu0
  %v795 = vadd.f32 %v635, %v794
  %v796 = vpop.f32.mrb[0].mxu0
  %797 = vmatprep.mubr.bf16.mxu0 0
  %798 = vmatmul.mubr.bf16.gmra.mrb[0].mxu0 %v518
  %v799 = vpop.f32.mrb[0].mxu0
  %v800 = vadd.f32 %v640, %v799
  %v801 = vpop.f32.mrb[0].mxu0
  %v802 = vpop.f32.mrb[0].mxu0
  %v803 = vadd.f32 %v643, %v802
  %v804 = vpop.f32.mrb[0].mxu0
  %805 = vmatprep.mubr.bf16.mxu0 0
  %806 = vmatmul.mubr.bf16.gmra.mrb[0].mxu0 %v521
  %v807 = vpop.f32.mrb[0].mxu0
  %v808 = vadd.f32 %v648, %v807
  %v809 = vpop.f32.mrb[0].mxu0
  %v810 = vpop.f32.mrb[0].mxu0
  %v811 = vadd.f32 %v651, %v810
  %v812 = vpop.f32.mrb[0].mxu0
  %813 = vmatprep.mubr.bf16.mxu0 0
  %814 = vmatmul.mubr.bf16.gmra.mrb[0].mxu0 %v524
  %v815 = vpop.f32.mrb[0].mxu0
  %v816 = vadd.f32 %v656, %v815
  %v817 = vpop.f32.mrb[0].mxu0
  %v818 = vpop.f32.mrb[0].mxu0
  %v819 = vadd.f32 %v659, %v818
  %v820 = vpop.f32.mrb[0].mxu0
  %821 = vmatprep.mubr.bf16.mxu0 0
  %822 = vmatmul.mubr.bf16.gmra.mrb[0].mxu0 %v527
  %v823 = vpop.f32.mrb[0].mxu0
  %v824 = vadd.f32 %v664, %v823
  %v825 = vpop.f32.mrb[0].mxu0
  %v826 = vpop.f32.mrb[0].mxu0
  %v827 = vadd.f32 %v667, %v826
  %v828 = vpop.f32.mrb[0].mxu0
  %829 = vmatprep.mubr.bf16.mxu0 0
  %830 = vmatmul.mubr.bf16.gmra.mrb[0].mxu0 %v530
  %v831 = vpop.f32.mrb[0].mxu0
  %v832 = vadd.f32 %v672, %v831
  %v833 = vpop.f32.mrb[0].mxu0
  %v834 = vpop.f32.mrb[0].mxu0
  %v835 = vadd.f32 %v675, %v834
  %v836 = vpop.f32.mrb[0].mxu0
  %837 = vmatprep.mubr.bf16.mxu0 0
  %838 = vmatmul.mubr.bf16.gmra.mrb[0].mxu0 %v533
  %v839 = vpop.f32.mrb[0].mxu0
  %v840 = vadd.f32 %v680, %v839
  %v841 = vpop.f32.mrb[0].mxu0
  %v842 = vpop.f32.mrb[0].mxu0
  %v843 = vadd.f32 %v683, %v842
  %v844 = vpop.f32.mrb[0].mxu0
  %845 = vmatprep.mubr.bf16.mxu0 0
  %846 = vmatmul.mubr.bf16.gmra.mrb[0].mxu0 %v536
  %v847 = vpop.f32.mrb[0].mxu0
  %v848 = vadd.f32 %v688, %v847
  %v849 = vpop.f32.mrb[0].mxu0
  %v850 = vpop.f32.mrb[0].mxu0
  %v851 = vadd.f32 %v691, %v850
  %v852 = vpop.f32.mrb[0].mxu0
  %853 = vmatprep.mubr.bf16.mxu0 0
  %854 = vmatmul.mubr.bf16.gmra.mrb[0].mxu0 %v539
  %v855 = vpop.f32.mrb[0].mxu0
  %v856 = vadd.f32 %v696, %v855
  %v857 = vpop.f32.mrb[0].mxu0
  %v858 = vpop.f32.mrb[0].mxu0
  %v859 = vpop.f32.mrb[0].mxu0
  %860 = vdwg.mxu0
  %v861 = vld [vmem:[%s2] sm:$0xff]
  %v862 = vld [vmem:[%s2 + $0x8] sm:$0xff]
  %v863 = vld [vmem:[%s2 + $0x10] sm:$0xff]
  %v864 = vld [vmem:[%s2 + $0x18] sm:$0xff]
  %v865 = vld [vmem:[%s2 + $0x20] sm:$0xff]
  %v866 = vld [vmem:[%s2 + $0x28] sm:$0xff]
  %s867 = scalar_lea.vmem %s1, 372
  %v868 = vld [vmem:[%s867] sm:$0xff]
  %v869 = vld [vmem:[%s867 + $0x8] sm:$0xf]
  %v870 = vld [vmem:[%s867 + $0xc] sm:$0xff]
  %v871 = vld [vmem:[%s867 + $0x14] sm:$0xf]
  %v872 = vld [vmem:[%s867 + $0x18] sm:$0xff]
  %v873 = vld [vmem:[%s867 + $0x20] sm:$0xf]
  %v874 = vld [vmem:[%s867 + $0x24] sm:$0xff]
  %v875 = vld [vmem:[%s867 + $0x2c] sm:$0xf]
  %v876 = vld [vmem:[%s867 + $0x30] sm:$0xff]
  %v877 = vld [vmem:[%s867 + $0x38] sm:$0xf]
  %v878 = vld [vmem:[%s867 + $0x3c] sm:$0xff]
  %v879 = vld [vmem:[%s867 + $0x44] sm:$0xf]
  %v880 = vld [vmem:[%s867 + $0x48] sm:$0xff]
  %v881 = vld [vmem:[%s867 + $0x50] sm:$0xf]
  %v882 = vld [vmem:[%s867 + $0x54] sm:$0xff]
  %v883 = vld [vmem:[%s867 + $0x5c] sm:$0xf]
  %v884 = vld [vmem:[%s867 + $0x60] sm:$0xff]
  %v885 = vld [vmem:[%s867 + $0x68] sm:$0xf]
  %v886 = vld [vmem:[%s867 + $0x6c] sm:$0xff]
  %v887 = vld [vmem:[%s867 + $0x74] sm:$0xf]
  %v888 = vld [vmem:[%s867 + $0x78] sm:$0xff]
  %v889 = vld [vmem:[%s867 + $0x80] sm:$0xf]
  %v890 = vld [vmem:[%s867 + $0x84] sm:$0xff]
  %v891 = vld [vmem:[%s867 + $0x8c] sm:$0xf]
  %v892 = vld [vmem:[%s867 + $0x90] sm:$0xff]
  %v893 = vld [vmem:[%s867 + $0x98] sm:$0xf]
  %v894 = vld [vmem:[%s867 + $0x9c] sm:$0xff]
  %v895 = vld [vmem:[%s867 + $0xa4] sm:$0xf]
  %v896 = vld [vmem:[%s867 + $0xa8] sm:$0xff]
  %v897 = vld [vmem:[%s867 + $0xb0] sm:$0xf]
  %v898 = vld [vmem:[%s867 + $0xb4] sm:$0xff]
  %v899 = vld [vmem:[%s867 + $0xbc] sm:$0xf]
  %v900 = vld [vmem:[%s867 + $0xc0] sm:$0xff]
  %v901 = vld [vmem:[%s867 + $0xc8] sm:$0xf]
  %v902 = vld [vmem:[%s867 + $0xcc] sm:$0xff]
  %v903 = vld [vmem:[%s867 + $0xd4] sm:$0xf]
  %v904 = vld [vmem:[%s867 + $0xd8] sm:$0xff]
  %v905 = vld [vmem:[%s867 + $0xe0] sm:$0xf]
  %v906 = vld [vmem:[%s867 + $0xe4] sm:$0xff]
  %v907 = vld [vmem:[%s867 + $0xec] sm:$0xf]
  %v908 = vld [vmem:[%s867 + $0xf0] sm:$0xff]
  %v909 = vld [vmem:[%s867 + $0xf8] sm:$0xf]
  %v910 = vld [vmem:[%s867 + $0xfc] sm:$0xff]
  %v911 = vld [vmem:[%s867 + $0x104] sm:$0xf]
  %v912 = vld [vmem:[%s867 + $0x108] sm:$0xff]
  %v913 = vld [vmem:[%s867 + $0x110] sm:$0xf]
  %v914 = vld [vmem:[%s867 + $0x114] sm:$0xff]
  %v915 = vld [vmem:[%s867 + $0x11c] sm:$0xf]
  %v916 = vld [vmem:[%s867 + $0x120] sm:$0xff]
  %v917 = vld [vmem:[%s867 + $0x128] sm:$0xf]
  %v918 = vld [vmem:[%s867 + $0x12c] sm:$0xff]
  %v919 = vld [vmem:[%s867 + $0x134] sm:$0xf]
  %v920 = vld [vmem:[%s867 + $0x138] sm:$0xff]
  %v921 = vld [vmem:[%s867 + $0x140] sm:$0xf]
  %v922 = vld [vmem:[%s867 + $0x144] sm:$0xff]
  %v923 = vld [vmem:[%s867 + $0x14c] sm:$0xf]
  %v924 = vld [vmem:[%s867 + $0x150] sm:$0xff]
  %v925 = vld [vmem:[%s867 + $0x158] sm:$0xf]
  %v926 = vld [vmem:[%s867 + $0x15c] sm:$0xff]
  %v927 = vld [vmem:[%s867 + $0x164] sm:$0xf]
  %v928 = vld [vmem:[%s867 + $0x168] sm:$0xff]
  %v929 = vld [vmem:[%s867 + $0x170] sm:$0xf]
  %v992 = vunpack.c.l.b16 %v868
  %v993 = vunpack.c.h.b16 %v868
  %v994 = vunpack.c.l.b16 %v869
  %v995 = vunpack.c.l.b16 %v870
  %v996 = vunpack.c.h.b16 %v870
  %v997 = vunpack.c.l.b16 %v871
  %v998 = vunpack.c.l.b16 %v872
  %v999 = vunpack.c.h.b16 %v872
  %v1000 = vunpack.c.l.b16 %v873
  %v1001 = vunpack.c.l.b16 %v874
  %v1002 = vunpack.c.h.b16 %v874
  %v1003 = vunpack.c.l.b16 %v875
  %v1004 = vunpack.c.l.b16 %v876
  %v1005 = vunpack.c.h.b16 %v876
  %v1006 = vunpack.c.l.b16 %v877
  %v1007 = vunpack.c.l.b16 %v878
  %v1008 = vunpack.c.h.b16 %v878
  %v1009 = vunpack.c.l.b16 %v879
  %v1010 = vunpack.c.l.b16 %v880
  %v1011 = vunpack.c.h.b16 %v880
  %v1012 = vunpack.c.l.b16 %v881
  %v1013 = vunpack.c.l.b16 %v882
  %v1014 = vunpack.c.h.b16 %v882
  %v1015 = vunpack.c.l.b16 %v883
  %v1016 = vunpack.c.l.b16 %v884
  %v1017 = vunpack.c.h.b16 %v884
  %v1018 = vunpack.c.l.b16 %v885
  %v1019 = vunpack.c.l.b16 %v886
  %v1020 = vunpack.c.h.b16 %v886
  %v1021 = vunpack.c.l.b16 %v887
  %v1022 = vunpack.c.l.b16 %v888
  %v1023 = vunpack.c.h.b16 %v888
  %v1024 = vunpack.c.l.b16 %v889
  %v1025 = vunpack.c.l.b16 %v890
  %v1026 = vunpack.c.h.b16 %v890
  %v1027 = vunpack.c.l.b16 %v891
  %v1028 = vunpack.c.l.b16 %v892
  %v1029 = vunpack.c.h.b16 %v892
  %v1030 = vunpack.c.l.b16 %v893
  %v1031 = vunpack.c.l.b16 %v894
  %v1032 = vunpack.c.h.b16 %v894
  %v1033 = vunpack.c.l.b16 %v895
  %v1034 = vunpack.c.l.b16 %v896
  %v1035 = vunpack.c.h.b16 %v896
  %v1036 = vunpack.c.l.b16 %v897
  %v1037 = vunpack.c.l.b16 %v898
  %v1038 = vunpack.c.h.b16 %v898
  %v1039 = vunpack.c.l.b16 %v899
  %v1040 = vunpack.c.l.b16 %v900
  %v1041 = vunpack.c.h.b16 %v900
  %v1042 = vunpack.c.l.b16 %v901
  %v1043 = vunpack.c.l.b16 %v902
  %v1044 = vunpack.c.h.b16 %v902
  %v1045 = vunpack.c.l.b16 %v903
  %v1046 = vunpack.c.l.b16 %v904
  %v1047 = vunpack.c.h.b16 %v904
  %v1048 = vunpack.c.l.b16 %v905
  %v1049 = vunpack.c.l.b16 %v906
  %v1050 = vunpack.c.h.b16 %v906
  %v1051 = vunpack.c.l.b16 %v907
  %v1052 = vunpack.c.l.b16 %v908
  %v1053 = vunpack.c.h.b16 %v908
  %v1054 = vunpack.c.l.b16 %v909
  %v1055 = vunpack.c.l.b16 %v910
  %v1056 = vunpack.c.h.b16 %v910
  %v1057 = vunpack.c.l.b16 %v911
  %v1058 = vunpack.c.l.b16 %v912
  %v1059 = vunpack.c.h.b16 %v912
  %v1060 = vunpack.c.l.b16 %v913
  %v1061 = vunpack.c.l.b16 %v914
  %v1062 = vunpack.c.h.b16 %v914
  %v1063 = vunpack.c.l.b16 %v915
  %v1064 = vunpack.c.l.b16 %v916
  %v1065 = vunpack.c.h.b16 %v916
  %v1066 = vunpack.c.l.b16 %v917
  %v1067 = vunpack.c.l.b16 %v918
  %v1068 = vunpack.c.h.b16 %v918
  %v1069 = vunpack.c.l.b16 %v919
  %v1070 = vunpack.c.l.b16 %v920
  %v1071 = vunpack.c.h.b16 %v920
  %v1072 = vunpack.c.l.b16 %v921
  %v1073 = vunpack.c.l.b16 %v922
  %v1074 = vunpack.c.h.b16 %v922
  %v1075 = vunpack.c.l.b16 %v923
  %v1076 = vunpack.c.l.b16 %v924
  %v1077 = vunpack.c.h.b16 %v924
  %v1078 = vunpack.c.l.b16 %v925
  %v1079 = vunpack.c.l.b16 %v926
  %v1080 = vunpack.c.h.b16 %v926
  %v1081 = vunpack.c.l.b16 %v927
  %v1082 = vunpack.c.l.b16 %v928
  %v1083 = vunpack.c.h.b16 %v928
  %v1084 = vunpack.c.l.b16 %v929
  %v1085 = vpack.c.b16 %v995, %v992
  %v1086 = vpack.c.b16 %v996, %v993
  %v1087 = vpack.c.b16 %v997, %v994
  %v1088 = vpack.c.b16 %v1001, %v998
  %v1089 = vpack.c.b16 %v1002, %v999
  %v1090 = vpack.c.b16 %v1003, %v1000
  %v1091 = vpack.c.b16 %v1007, %v1004
  %v1092 = vpack.c.b16 %v1008, %v1005
  %v1093 = vpack.c.b16 %v1009, %v1006
  %v1094 = vpack.c.b16 %v1013, %v1010
  %v1095 = vpack.c.b16 %v1014, %v1011
  %v1096 = vpack.c.b16 %v1015, %v1012
  %v1097 = vpack.c.b16 %v1019, %v1016
  %v1098 = vpack.c.b16 %v1020, %v1017
  %v1099 = vpack.c.b16 %v1021, %v1018
  %v1100 = vpack.c.b16 %v1025, %v1022
  %v1101 = vpack.c.b16 %v1026, %v1023
  %v1102 = vpack.c.b16 %v1027, %v1024
  %v1103 = vpack.c.b16 %v1031, %v1028
  %v1104 = vpack.c.b16 %v1032, %v1029
  %v1105 = vpack.c.b16 %v1033, %v1030
  %v1106 = vpack.c.b16 %v1037, %v1034
  %v1107 = vpack.c.b16 %v1038, %v1035
  %v1108 = vpack.c.b16 %v1039, %v1036
  %v1109 = vpack.c.b16 %v1043, %v1040
  %v1110 = vpack.c.b16 %v1044, %v1041
  %v1111 = vpack.c.b16 %v1045, %v1042
  %v1112 = vpack.c.b16 %v1049, %v1046
  %v1113 = vpack.c.b16 %v1050, %v1047
  %v1114 = vpack.c.b16 %v1051, %v1048
  %v1115 = vpack.c.b16 %v1055, %v1052
  %v1116 = vpack.c.b16 %v1056, %v1053
  %v1117 = vpack.c.b16 %v1057, %v1054
  %v1118 = vpack.c.b16 %v1061, %v1058
  %v1119 = vpack.c.b16 %v1062, %v1059
  %v1120 = vpack.c.b16 %v1063, %v1060
  %v1121 = vpack.c.b16 %v1067, %v1064
  %v1122 = vpack.c.b16 %v1068, %v1065
  %v1123 = vpack.c.b16 %v1069, %v1066
  %v1124 = vpack.c.b16 %v1073, %v1070
  %v1125 = vpack.c.b16 %v1074, %v1071
  %v1126 = vpack.c.b16 %v1075, %v1072
  %v1127 = vpack.c.b16 %v1079, %v1076
  %v1128 = vpack.c.b16 %v1080, %v1077
  %v1129 = vpack.c.b16 %v1081, %v1078
  %v1130 = vpack.c.b16 %v1082, %v1082
  %v1131 = vpack.c.b16 %v1083, %v1083
  %v1132 = vpack.c.b16 %v1084, %v1084
  %v1166 = vsel %vm492, %v1087, 0
  %v1169 = vsel %vm492, %v1090, 0
  %v1172 = vsel %vm492, %v1093, 0
  %v1175 = vsel %vm492, %v1096, 0
  %v1178 = vsel %vm492, %v1099, 0
  %v1181 = vsel %vm492, %v1102, 0
  %v1184 = vsel %vm492, %v1105, 0
  %v1187 = vsel %vm492, %v1108, 0
  %v1190 = vsel %vm492, %v1111, 0
  %v1193 = vsel %vm492, %v1114, 0
  %v1196 = vsel %vm492, %v1117, 0
  %v1199 = vsel %vm492, %v1120, 0
  %v1202 = vsel %vm492, %v1123, 0
  %v1205 = vsel %vm492, %v1126, 0
  %v1208 = vsel %vm492, %v1129, 0
  %v1211 = vsel %vm492, %v1132, 0
  %1213 = vmatprep.subr.bf16.mxu0 0
  %1214 = vmatpush1.bf16.msra.mxu0 %v456
  %1215 = vmatprep.subr.bf16.mxu0 0
  %1216 = vmatpush1.bf16.msra.mxu0 %v457
  %1217 = vmatprep.subr.bf16.mxu0 0
  %1218 = vmatpush1.bf16.msra.mxu0 %v458
  %1219 = vmatprep.subr.bf16.mxu0 0
  %1220 = vmatpush1.bf16.msra.mxu0 %v459
  %1221 = vmatprep.subr.bf16.mxu0 0
  %1222 = vmatpush1.bf16.msra.mxu0 %v460
  %1223 = vmatprep.subr.bf16.mxu0 0
  %1224 = vmatpush1.bf16.msra.mxu0 %v461
  %1225 = vmatprep.subr.bf16.mxu0 0
  %1226 = vmatpush1.bf16.msra.mxu0 %v462
  %1227 = vmatprep.subr.bf16.mxu0 0
  %1228 = vmatpush1.bf16.msra.mxu0 %v463
  %1229 = vmatprep.subr.bf16.mxu0 0
  %1230 = vmatpush1.bf16.msra.mxu0 %v464
  %1231 = vmatprep.subr.bf16.mxu0 0
  %1232 = vmatpush1.bf16.msra.mxu0 %v465
  %1233 = vmatprep.subr.bf16.mxu0 0
  %1234 = vmatpush1.bf16.msra.mxu0 %v466
  %1235 = vmatprep.subr.bf16.mxu0 0
  %1236 = vmatpush1.bf16.msra.mxu0 %v467
  %1237 = vmatprep.subr.bf16.mxu0 0
  %1238 = vmatpush1.bf16.msra.mxu0 %v468
  %1239 = vmatprep.subr.bf16.mxu0 0
  %1240 = vmatpush1.bf16.msra.mxu0 %v469
  %1241 = vmatprep.subr.bf16.mxu0 0
  %1242 = vmatpush1.bf16.msra.mxu0 %v470
  %1243 = vmatprep.subr.bf16.mxu0 0
  %1244 = vmatpush1.bf16.msra.mxu0 %v471
  %1245 = vmatprep.mubr.bf16.mxu0 %v1086
  %1246 = vmatmul.mubr.bf16.gmra.mrb[0].mxu0 %v1085
  %v1247 = vpop.f32.mrb[0].mxu0
  %v1248 = vadd.f32 0.0, %v1247
  %v1249 = vpop.f32.mrb[0].mxu0
  %v1250 = vpop.f32.mrb[0].mxu0
  %v1251 = vadd.f32 0.0, %v1250
  %v1252 = vpop.f32.mrb[0].mxu0
  %1253 = vmatprep.mubr.bf16.mxu0 %v1089
  %1254 = vmatmul.mubr.bf16.gmra.mrb[0].mxu0 %v1088
  %v1255 = vpop.f32.mrb[0].mxu0
  %v1256 = vadd.f32 0.0, %v1255
  %v1257 = vpop.f32.mrb[0].mxu0
  %v1258 = vpop.f32.mrb[0].mxu0
  %v1259 = vadd.f32 0.0, %v1258
  %v1260 = vpop.f32.mrb[0].mxu0
  %1261 = vmatprep.mubr.bf16.mxu0 %v1092
  %1262 = vmatmul.mubr.bf16.gmra.mrb[0].mxu0 %v1091
  %v1263 = vpop.f32.mrb[0].mxu0
  %v1264 = vadd.f32 0.0, %v1263
  %v1265 = vpop.f32.mrb[0].mxu0
  %v1266 = vpop.f32.mrb[0].mxu0
  %v1267 = vadd.f32 0.0, %v1266
  %v1268 = vpop.f32.mrb[0].mxu0
  %1269 = vmatprep.mubr.bf16.mxu0 %v1095
  %1270 = vmatmul.mubr.bf16.gmra.mrb[0].mxu0 %v1094
  %v1271 = vpop.f32.mrb[0].mxu0
  %v1272 = vadd.f32 0.0, %v1271
  %v1273 = vpop.f32.mrb[0].mxu0
  %v1274 = vpop.f32.mrb[0].mxu0
  %v1275 = vadd.f32 0.0, %v1274
  %v1276 = vpop.f32.mrb[0].mxu0
  %1277 = vmatprep.mubr.bf16.mxu0 %v1098
  %1278 = vmatmul.mubr.bf16.gmra.mrb[0].mxu0 %v1097
  %v1279 = vpop.f32.mrb[0].mxu0
  %v1280 = vadd.f32 0.0, %v1279
  %v1281 = vpop.f32.mrb[0].mxu0
  %v1282 = vpop.f32.mrb[0].mxu0
  %v1283 = vadd.f32 0.0, %v1282
  %v1284 = vpop.f32.mrb[0].mxu0
  %1285 = vmatprep.mubr.bf16.mxu0 %v1101
  %1286 = vmatmul.mubr.bf16.gmra.mrb[0].mxu0 %v1100
  %v1287 = vpop.f32.mrb[0].mxu0
  %v1288 = vadd.f32 0.0, %v1287
  %v1289 = vpop.f32.mrb[0].mxu0
  %v1290 = vpop.f32.mrb[0].mxu0
  %v1291 = vadd.f32 0.0, %v1290
  %v1292 = vpop.f32.mrb[0].mxu0
  %1293 = vmatprep.mubr.bf16.mxu0 %v1104
  %1294 = vmatmul.mubr.bf16.gmra.mrb[0].mxu0 %v1103
  %v1295 = vpop.f32.mrb[0].mxu0
  %v1296 = vadd.f32 0.0, %v1295
  %v1297 = vpop.f32.mrb[0].mxu0
  %v1298 = vpop.f32.mrb[0].mxu0
  %v1299 = vadd.f32 0.0, %v1298
  %v1300 = vpop.f32.mrb[0].mxu0
  %1301 = vmatprep.mubr.bf16.mxu0 %v1107
  %1302 = vmatmul.mubr.bf16.gmra.mrb[0].mxu0 %v1106
  %v1303 = vpop.f32.mrb[0].mxu0
  %v1304 = vadd.f32 0.0, %v1303
  %v1305 = vpop.f32.mrb[0].mxu0
  %v1306 = vpop.f32.mrb[0].mxu0
  %v1307 = vadd.f32 0.0, %v1306
  %v1308 = vpop.f32.mrb[0].mxu0
  %1309 = vmatprep.mubr.bf16.mxu0 %v1110
  %1310 = vmatmul.mubr.bf16.gmra.mrb[0].mxu0 %v1109
  %v1311 = vpop.f32.mrb[0].mxu0
  %v1312 = vadd.f32 0.0, %v1311
  %v1313 = vpop.f32.mrb[0].mxu0
  %v1314 = vpop.f32.mrb[0].mxu0
  %v1315 = vadd.f32 0.0, %v1314
  %v1316 = vpop.f32.mrb[0].mxu0
  %1317 = vmatprep.mubr.bf16.mxu0 %v1113
  %1318 = vmatmul.mubr.bf16.gmra.mrb[0].mxu0 %v1112
  %v1319 = vpop.f32.mrb[0].mxu0
  %v1320 = vadd.f32 0.0, %v1319
  %v1321 = vpop.f32.mrb[0].mxu0
  %v1322 = vpop.f32.mrb[0].mxu0
  %v1323 = vadd.f32 0.0, %v1322
  %v1324 = vpop.f32.mrb[0].mxu0
  %1325 = vmatprep.mubr.bf16.mxu0 %v1116
  %1326 = vmatmul.mubr.bf16.gmra.mrb[0].mxu0 %v1115
  %v1327 = vpop.f32.mrb[0].mxu0
  %v1328 = vadd.f32 0.0, %v1327
  %v1329 = vpop.f32.mrb[0].mxu0
  %v1330 = vpop.f32.mrb[0].mxu0
  %v1331 = vadd.f32 0.0, %v1330
  %v1332 = vpop.f32.mrb[0].mxu0
  %1333 = vmatprep.mubr.bf16.mxu0 %v1119
  %1334 = vmatmul.mubr.bf16.gmra.mrb[0].mxu0 %v1118
  %v1335 = vpop.f32.mrb[0].mxu0
  %v1336 = vadd.f32 0.0, %v1335
  %v1337 = vpop.f32.mrb[0].mxu0
  %v1338 = vpop.f32.mrb[0].mxu0
  %v1339 = vadd.f32 0.0, %v1338
  %v1340 = vpop.f32.mrb[0].mxu0
  %1341 = vmatprep.mubr.bf16.mxu0 %v1122
  %1342 = vmatmul.mubr.bf16.gmra.mrb[0].mxu0 %v1121
  %v1343 = vpop.f32.mrb[0].mxu0
  %v1344 = vadd.f32 0.0, %v1343
  %v1345 = vpop.f32.mrb[0].mxu0
  %v1346 = vpop.f32.mrb[0].mxu0
  %v1347 = vadd.f32 0.0, %v1346
  %v1348 = vpop.f32.mrb[0].mxu0
  %1349 = vmatprep.mubr.bf16.mxu0 %v1125
  %1350 = vmatmul.mubr.bf16.gmra.mrb[0].mxu0 %v1124
  %v1351 = vpop.f32.mrb[0].mxu0
  %v1352 = vadd.f32 0.0, %v1351
  %v1353 = vpop.f32.mrb[0].mxu0
  %v1354 = vpop.f32.mrb[0].mxu0
  %v1355 = vadd.f32 0.0, %v1354
  %v1356 = vpop.f32.mrb[0].mxu0
  %1357 = vmatprep.mubr.bf16.mxu0 %v1128
  %1358 = vmatmul.mubr.bf16.gmra.mrb[0].mxu0 %v1127
  %v1359 = vpop.f32.mrb[0].mxu0
  %v1360 = vadd.f32 0.0, %v1359
  %v1361 = vpop.f32.mrb[0].mxu0
  %v1362 = vpop.f32.mrb[0].mxu0
  %v1363 = vadd.f32 0.0, %v1362
  %v1364 = vpop.f32.mrb[0].mxu0
  %1365 = vmatprep.mubr.bf16.mxu0 %v1131
  %1366 = vmatmul.mubr.bf16.gmra.mrb[0].mxu0 %v1130
  %v1367 = vpop.f32.mrb[0].mxu0
  %v1368 = vadd.f32 0.0, %v1367
  %v1369 = vpop.f32.mrb[0].mxu0
  %v1370 = vpop.f32.mrb[0].mxu0
  %v1371 = vpop.f32.mrb[0].mxu0
  %1372 = vdwg.mxu0
  %1373 = vmatprep.subr.bf16.mxu0 0
  %1374 = vmatpush1.bf16.msra.mxu0 %v472
  %1375 = vmatprep.subr.bf16.mxu0 0
  %1376 = vmatpush1.bf16.msra.mxu0 %v473
  %1377 = vmatprep.subr.bf16.mxu0 0
  %1378 = vmatpush1.bf16.msra.mxu0 0
  %1379 = vmatprep.subr.bf16.mxu0 0
  %1380 = vmatpush1.bf16.msra.mxu0 0
  %1381 = vmatprep.subr.bf16.mxu0 0
  %1382 = vmatpush1.bf16.msra.mxu0 0
  %1383 = vmatprep.subr.bf16.mxu0 0
  %1384 = vmatpush1.bf16.msra.mxu0 0
  %1385 = vmatprep.subr.bf16.mxu0 0
  %1386 = vmatpush1.bf16.msra.mxu0 0
  %1387 = vmatprep.subr.bf16.mxu0 0
  %1388 = vmatpush1.bf16.msra.mxu0 0
  %1389 = vmatprep.subr.bf16.mxu0 0
  %1390 = vmatpush1.bf16.msra.mxu0 0
  %1391 = vmatprep.subr.bf16.mxu0 0
  %1392 = vmatpush1.bf16.msra.mxu0 0
  %1393 = vmatprep.subr.bf16.mxu0 0
  %1394 = vmatpush1.bf16.msra.mxu0 0
  %1395 = vmatprep.subr.bf16.mxu0 0
  %1396 = vmatpush1.bf16.msra.mxu0 0
  %1397 = vmatprep.subr.bf16.mxu0 0
  %1398 = vmatpush1.bf16.msra.mxu0 0
  %1399 = vmatprep.subr.bf16.mxu0 0
  %1400 = vmatpush1.bf16.msra.mxu0 0
  %1401 = vmatprep.subr.bf16.mxu0 0
  %1402 = vmatpush1.bf16.msra.mxu0 0
  %1403 = vmatprep.subr.bf16.mxu0 0
  %1404 = vmatpush1.bf16.msra.mxu0 0
  %1405 = vmatprep.mubr.bf16.mxu0 0
  %1406 = vmatmul.mubr.bf16.gmra.mrb[0].mxu0 %v1166
  %v1407 = vpop.f32.mrb[0].mxu0
  %v1408 = vadd.f32 %v1248, %v1407
  %v1409 = vpop.f32.mrb[0].mxu0
  %v1410 = vpop.f32.mrb[0].mxu0
  %v1411 = vadd.f32 %v1251, %v1410
  %v1412 = vpop.f32.mrb[0].mxu0
  %1413 = vmatprep.mubr.bf16.mxu0 0
  %1414 = vmatmul.mubr.bf16.gmra.mrb[0].mxu0 %v1169
  %v1415 = vpop.f32.mrb[0].mxu0
  %v1416 = vadd.f32 %v1256, %v1415
  %v1417 = vpop.f32.mrb[0].mxu0
  %v1418 = vpop.f32.mrb[0].mxu0
  %v1419 = vadd.f32 %v1259, %v1418
  %v1420 = vpop.f32.mrb[0].mxu0
  %1421 = vmatprep.mubr.bf16.mxu0 0
  %1422 = vmatmul.mubr.bf16.gmra.mrb[0].mxu0 %v1172
  %v1423 = vpop.f32.mrb[0].mxu0
  %v1424 = vadd.f32 %v1264, %v1423
  %v1425 = vpop.f32.mrb[0].mxu0
  %v1426 = vpop.f32.mrb[0].mxu0
  %v1427 = vadd.f32 %v1267, %v1426
  %v1428 = vpop.f32.mrb[0].mxu0
  %1429 = vmatprep.mubr.bf16.mxu0 0
  %1430 = vmatmul.mubr.bf16.gmra.mrb[0].mxu0 %v1175
  %v1431 = vpop.f32.mrb[0].mxu0
  %v1432 = vadd.f32 %v1272, %v1431
  %v1433 = vpop.f32.mrb[0].mxu0
  %v1434 = vpop.f32.mrb[0].mxu0
  %v1435 = vadd.f32 %v1275, %v1434
  %v1436 = vpop.f32.mrb[0].mxu0
  %1437 = vmatprep.mubr.bf16.mxu0 0
  %1438 = vmatmul.mubr.bf16.gmra.mrb[0].mxu0 %v1178
  %v1439 = vpop.f32.mrb[0].mxu0
  %v1440 = vadd.f32 %v1280, %v1439
  %v1441 = vpop.f32.mrb[0].mxu0
  %v1442 = vpop.f32.mrb[0].mxu0
  %v1443 = vadd.f32 %v1283, %v1442
  %v1444 = vpop.f32.mrb[0].mxu0
  %1445 = vmatprep.mubr.bf16.mxu0 0
  %1446 = vmatmul.mubr.bf16.gmra.mrb[0].mxu0 %v1181
  %v1447 = vpop.f32.mrb[0].mxu0
  %v1448 = vadd.f32 %v1288, %v1447
  %v1449 = vpop.f32.mrb[0].mxu0
  %v1450 = vpop.f32.mrb[0].mxu0
  %v1451 = vadd.f32 %v1291, %v1450
  %v1452 = vpop.f32.mrb[0].mxu0
  %1453 = vmatprep.mubr.bf16.mxu0 0
  %1454 = vmatmul.mubr.bf16.gmra.mrb[0].mxu0 %v1184
  %v1455 = vpop.f32.mrb[0].mxu0
  %v1456 = vadd.f32 %v1296, %v1455
  %v1457 = vpop.f32.mrb[0].mxu0
  %v1458 = vpop.f32.mrb[0].mxu0
  %v1459 = vadd.f32 %v1299, %v1458
  %v1460 = vpop.f32.mrb[0].mxu0
  %1461 = vmatprep.mubr.bf16.mxu0 0
  %1462 = vmatmul.mubr.bf16.gmra.mrb[0].mxu0 %v1187
  %v1463 = vpop.f32.mrb[0].mxu0
  %v1464 = vadd.f32 %v1304, %v1463
  %v1465 = vpop.f32.mrb[0].mxu0
  %v1466 = vpop.f32.mrb[0].mxu0
  %v1467 = vadd.f32 %v1307, %v1466
  %v1468 = vpop.f32.mrb[0].mxu0
  %1469 = vmatprep.mubr.bf16.mxu0 0
  %1470 = vmatmul.mubr.bf16.gmra.mrb[0].mxu0 %v1190
  %v1471 = vpop.f32.mrb[0].mxu0
  %v1472 = vadd.f32 %v1312, %v1471
  %v1473 = vpop.f32.mrb[0].mxu0
  %v1474 = vpop.f32.mrb[0].mxu0
  %v1475 = vadd.f32 %v1315, %v1474
  %v1476 = vpop.f32.mrb[0].mxu0
  %1477 = vmatprep.mubr.bf16.mxu0 0
  %1478 = vmatmul.mubr.bf16.gmra.mrb[0].mxu0 %v1193
  %v1479 = vpop.f32.mrb[0].mxu0
  %v1480 = vadd.f32 %v1320, %v1479
  %v1481 = vpop.f32.mrb[0].mxu0
  %v1482 = vpop.f32.mrb[0].mxu0
  %v1483 = vadd.f32 %v1323, %v1482
  %v1484 = vpop.f32.mrb[0].mxu0
  %1485 = vmatprep.mubr.bf16.mxu0 0
  %1486 = vmatmul.mubr.bf16.gmra.mrb[0].mxu0 %v1196
  %v1487 = vpop.f32.mrb[0].mxu0
  %v1488 = vadd.f32 %v1328, %v1487
  %v1489 = vpop.f32.mrb[0].mxu0
  %v1490 = vpop.f32.mrb[0].mxu0
  %v1491 = vadd.f32 %v1331, %v1490
  %v1492 = vpop.f32.mrb[0].mxu0
  %1493 = vmatprep.mubr.bf16.mxu0 0
  %1494 = vmatmul.mubr.bf16.gmra.mrb[0].mxu0 %v1199
  %v1495 = vpop.f32.mrb[0].mxu0
  %v1496 = vadd.f32 %v1336, %v1495
  %v1497 = vpop.f32.mrb[0].mxu0
  %v1498 = vpop.f32.mrb[0].mxu0
  %v1499 = vadd.f32 %v1339, %v1498
  %v1500 = vpop.f32.mrb[0].mxu0
  %1501 = vmatprep.mubr.bf16.mxu0 0
  %1502 = vmatmul.mubr.bf16.gmra.mrb[0].mxu0 %v1202
  %v1503 = vpop.f32.mrb[0].mxu0
  %v1504 = vadd.f32 %v1344, %v1503
  %v1505 = vpop.f32.mrb[0].mxu0
  %v1506 = vpop.f32.mrb[0].mxu0
  %v1507 = vadd.f32 %v1347, %v1506
  %v1508 = vpop.f32.mrb[0].mxu0
  %1509 = vmatprep.mubr.bf16.mxu0 0
  %1510 = vmatmul.mubr.bf16.gmra.mrb[0].mxu0 %v1205
  %v1511 = vpop.f32.mrb[0].mxu0
  %v1512 = vadd.f32 %v1352, %v1511
  %v1513 = vpop.f32.mrb[0].mxu0
  %v1514 = vpop.f32.mrb[0].mxu0
  %v1515 = vadd.f32 %v1355, %v1514
  %v1516 = vpop.f32.mrb[0].mxu0
  %1517 = vmatprep.mubr.bf16.mxu0 0
  %1518 = vmatmul.mubr.bf16.gmra.mrb[0].mxu0 %v1208
  %v1519 = vpop.f32.mrb[0].mxu0
  %v1520 = vadd.f32 %v1360, %v1519
  %v1521 = vpop.f32.mrb[0].mxu0
  %v1522 = vpop.f32.mrb[0].mxu0
  %v1523 = vadd.f32 %v1363, %v1522
  %v1524 = vpop.f32.mrb[0].mxu0
  %1525 = vmatprep.mubr.bf16.mxu0 0
  %1526 = vmatmul.mubr.bf16.gmra.mrb[0].mxu0 %v1211
  %v1527 = vpop.f32.mrb[0].mxu0
  %v1528 = vadd.f32 %v1368, %v1527
  %v1529 = vpop.f32.mrb[0].mxu0
  %v1530 = vpop.f32.mrb[0].mxu0
  %v1531 = vpop.f32.mrb[0].mxu0
  %1532 = vdwg.mxu0
  %s1533 = scalar_lea.vmem %s2, 48
  %v1534 = vld [vmem:[%s1533] sm:$0xff]
  %v1535 = vld [vmem:[%s1533 + $0x8] sm:$0xff]
  %v1536 = vld [vmem:[%s1533 + $0x10] sm:$0xff]
  %v1537 = vld [vmem:[%s1533 + $0x18] sm:$0xff]
  %v1538 = vld [vmem:[%s1533 + $0x20] sm:$0xff]
  %v1539 = vld [vmem:[%s1533 + $0x28] sm:$0xff]
  %vm1540 = vcmask 392192
  %v1542 = vsel %vm1540, %v1408, 0
  %v1545 = vsel %vm1540, %v1411, 0
  %v1548 = vsel %vm1540, %v1416, 0
  %v1551 = vsel %vm1540, %v1419, 0
  %v1554 = vsel %vm1540, %v1424, 0
  %v1557 = vsel %vm1540, %v1427, 0
  %v1560 = vsel %vm1540, %v1432, 0
  %v1563 = vsel %vm1540, %v1435, 0
  %v1566 = vsel %vm1540, %v1440, 0
  %v1569 = vsel %vm1540, %v1443, 0
  %v1572 = vsel %vm1540, %v1448, 0
  %v1575 = vsel %vm1540, %v1451, 0
  %v1578 = vsel %vm1540, %v1456, 0
  %v1581 = vsel %vm1540, %v1459, 0
  %v1584 = vsel %vm1540, %v1464, 0
  %v1587 = vsel %vm1540, %v1467, 0
  %v1590 = vsel %vm1540, %v1472, 0
  %v1593 = vsel %vm1540, %v1475, 0
  %v1596 = vsel %vm1540, %v1480, 0
  %v1599 = vsel %vm1540, %v1483, 0
  %v1602 = vsel %vm1540, %v1488, 0
  %v1605 = vsel %vm1540, %v1491, 0
  %v1608 = vsel %vm1540, %v1496, 0
  %v1611 = vsel %vm1540, %v1499, 0
  %v1614 = vsel %vm1540, %v1504, 0
  %v1617 = vsel %vm1540, %v1507, 0
  %v1620 = vsel %vm1540, %v1512, 0
  %v1623 = vsel %vm1540, %v1515, 0
  %v1626 = vsel %vm1540, %v1520, 0
  %v1629 = vsel %vm1540, %v1523, 0
  %v1632 = vsel %vm1540, %v1528, 0
  %1634 = vmatprep.subr.mxu0 0.0
  %1635 = vmatpush1.msra.mxu0 %v1534
  %1636 = vmatprep.subr.mxu0 0.0
  %1637 = vmatpush1.msra.mxu0 %v1535
  %1638 = vmatprep.subr.mxu0 0.0
  %1639 = vmatpush1.msra.mxu0 %v1536
  %1640 = vmatprep.subr.mxu0 0.0
  %1641 = vmatpush1.msra.mxu0 %v1537
  %1642 = vmatprep.subr.mxu0 0.0
  %1643 = vmatpush1.msra.mxu0 %v1538
  %1644 = vmatprep.subr.mxu0 0.0
  %1645 = vmatpush1.msra.mxu0 %v1539
  %1646 = vmatprep.subr.mxu0 0.0
  %1647 = vmatpush1.msra.mxu0 0.0
  %1648 = vmatprep.subr.mxu0 0.0
  %1649 = vmatpush1.msra.mxu0 0.0
  %1650 = vmatprep.subr.mxu0 0.0
  %1651 = vmatpush1.msra.mxu0 0.0
  %1652 = vmatprep.subr.mxu0 0.0
  %1653 = vmatpush1.msra.mxu0 0.0
  %1654 = vmatprep.subr.mxu0 0.0
  %1655 = vmatpush1.msra.mxu0 0.0
  %1656 = vmatprep.subr.mxu0 0.0
  %1657 = vmatpush1.msra.mxu0 0.0
  %1658 = vmatprep.subr.mxu0 0.0
  %1659 = vmatpush1.msra.mxu0 0.0
  %1660 = vmatprep.subr.mxu0 0.0
  %1661 = vmatpush1.msra.mxu0 0.0
  %1662 = vmatprep.subr.mxu0 0.0
  %1663 = vmatpush1.msra.mxu0 0.0
  %1664 = vmatprep.subr.mxu0 0.0
  %1665 = vmatpush1.msra.mxu0 0.0
  %1666 = vmatprep.subr.mxu0 0.0
  %1667 = vmatpush1.msra.mxu0 0.0
  %1668 = vmatprep.subr.mxu0 0.0
  %1669 = vmatpush1.msra.mxu0 0.0
  %1670 = vmatprep.subr.mxu0 0.0
  %1671 = vmatpush1.msra.mxu0 0.0
  %1672 = vmatprep.subr.mxu0 0.0
  %1673 = vmatpush1.msra.mxu0 0.0
  %1674 = vmatprep.subr.mxu0 0.0
  %1675 = vmatpush1.msra.mxu0 0.0
  %1676 = vmatprep.subr.mxu0 0.0
  %1677 = vmatpush1.msra.mxu0 0.0
  %1678 = vmatprep.subr.mxu0 0.0
  %1679 = vmatpush1.msra.mxu0 0.0
  %1680 = vmatprep.subr.mxu0 0.0
  %1681 = vmatpush1.msra.mxu0 0.0
  %1682 = vmatprep.subr.mxu0 0.0
  %1683 = vmatpush1.msra.mxu0 0.0
  %1684 = vmatprep.subr.mxu0 0.0
  %1685 = vmatpush1.msra.mxu0 0.0
  %1686 = vmatprep.subr.mxu0 0.0
  %1687 = vmatpush1.msra.mxu0 0.0
  %1688 = vmatprep.subr.mxu0 0.0
  %1689 = vmatpush1.msra.mxu0 0.0
  %1690 = vmatprep.subr.mxu0 0.0
  %1691 = vmatpush1.msra.mxu0 0.0
  %1692 = vmatprep.subr.mxu0 0.0
  %1693 = vmatpush1.msra.mxu0 0.0
  %1694 = vmatprep.subr.mxu0 0.0
  %1695 = vmatpush1.msra.mxu0 0.0
  %1696 = vmatprep.subr.mxu0 0.0
  %1697 = vmatpush1.msra.mxu0 0.0
  %1698 = vmatprep.mubr.f32.mxu0 0.0
  %1699 = vmatmul.mubr.f32.gmra.mrb[0].mxu0 %v1542
  %v1700 = vpop.f32.mrb[0].mxu0
  %v1701 = vadd.f32 0.0, %v1700
  %v1702 = vpop.f32.mrb[0].mxu0
  %1703 = vmatprep.mubr.f32.mxu0 0.0
  %1704 = vmatmul.mubr.f32.gmra.mrb[0].mxu0 %v1545
  %v1705 = vpop.f32.mrb[0].mxu0
  %v1706 = vadd.f32 0.0, %v1705
  %v1707 = vpop.f32.mrb[0].mxu0
  %1708 = vmatprep.mubr.f32.mxu0 0.0
  %1709 = vmatmul.mubr.f32.gmra.mrb[0].mxu0 %v1548
  %v1710 = vpop.f32.mrb[0].mxu0
  %v1711 = vadd.f32 0.0, %v1710
  %v1712 = vpop.f32.mrb[0].mxu0
  %1713 = vmatprep.mubr.f32.mxu0 0.0
  %1714 = vmatmul.mubr.f32.gmra.mrb[0].mxu0 %v1551
  %v1715 = vpop.f32.mrb[0].mxu0
  %v1716 = vadd.f32 0.0, %v1715
  %v1717 = vpop.f32.mrb[0].mxu0
  %1718 = vmatprep.mubr.f32.mxu0 0.0
  %1719 = vmatmul.mubr.f32.gmra.mrb[0].mxu0 %v1554
  %v1720 = vpop.f32.mrb[0].mxu0
  %v1721 = vadd.f32 0.0, %v1720
  %v1722 = vpop.f32.mrb[0].mxu0
  %1723 = vmatprep.mubr.f32.mxu0 0.0
  %1724 = vmatmul.mubr.f32.gmra.mrb[0].mxu0 %v1557
  %v1725 = vpop.f32.mrb[0].mxu0
  %v1726 = vadd.f32 0.0, %v1725
  %v1727 = vpop.f32.mrb[0].mxu0
  %1728 = vmatprep.mubr.f32.mxu0 0.0
  %1729 = vmatmul.mubr.f32.gmra.mrb[0].mxu0 %v1560
  %v1730 = vpop.f32.mrb[0].mxu0
  %v1731 = vadd.f32 0.0, %v1730
  %v1732 = vpop.f32.mrb[0].mxu0
  %1733 = vmatprep.mubr.f32.mxu0 0.0
  %1734 = vmatmul.mubr.f32.gmra.mrb[0].mxu0 %v1563
  %v1735 = vpop.f32.mrb[0].mxu0
  %v1736 = vadd.f32 0.0, %v1735
  %v1737 = vpop.f32.mrb[0].mxu0
  %1738 = vmatprep.mubr.f32.mxu0 0.0
  %1739 = vmatmul.mubr.f32.gmra.mrb[0].mxu0 %v1566
  %v1740 = vpop.f32.mrb[0].mxu0
  %v1741 = vadd.f32 0.0, %v1740
  %v1742 = vpop.f32.mrb[0].mxu0
  %1743 = vmatprep.mubr.f32.mxu0 0.0
  %1744 = vmatmul.mubr.f32.gmra.mrb[0].mxu0 %v1569
  %v1745 = vpop.f32.mrb[0].mxu0
  %v1746 = vadd.f32 0.0, %v1745
  %v1747 = vpop.f32.mrb[0].mxu0
  %1748 = vmatprep.mubr.f32.mxu0 0.0
  %1749 = vmatmul.mubr.f32.gmra.mrb[0].mxu0 %v1572
  %v1750 = vpop.f32.mrb[0].mxu0
  %v1751 = vadd.f32 0.0, %v1750
  %v1752 = vpop.f32.mrb[0].mxu0
  %1753 = vmatprep.mubr.f32.mxu0 0.0
  %1754 = vmatmul.mubr.f32.gmra.mrb[0].mxu0 %v1575
  %v1755 = vpop.f32.mrb[0].mxu0
  %v1756 = vadd.f32 0.0, %v1755
  %v1757 = vpop.f32.mrb[0].mxu0
  %1758 = vmatprep.mubr.f32.mxu0 0.0
  %1759 = vmatmul.mubr.f32.gmra.mrb[0].mxu0 %v1578
  %v1760 = vpop.f32.mrb[0].mxu0
  %v1761 = vadd.f32 0.0, %v1760
  %v1762 = vpop.f32.mrb[0].mxu0
  %1763 = vmatprep.mubr.f32.mxu0 0.0
  %1764 = vmatmul.mubr.f32.gmra.mrb[0].mxu0 %v1581
  %v1765 = vpop.f32.mrb[0].mxu0
  %v1766 = vadd.f32 0.0, %v1765
  %v1767 = vpop.f32.mrb[0].mxu0
  %1768 = vmatprep.mubr.f32.mxu0 0.0
  %1769 = vmatmul.mubr.f32.gmra.mrb[0].mxu0 %v1584
  %v1770 = vpop.f32.mrb[0].mxu0
  %v1771 = vadd.f32 0.0, %v1770
  %v1772 = vpop.f32.mrb[0].mxu0
  %1773 = vmatprep.mubr.f32.mxu0 0.0
  %1774 = vmatmul.mubr.f32.gmra.mrb[0].mxu0 %v1587
  %v1775 = vpop.f32.mrb[0].mxu0
  %v1776 = vadd.f32 0.0, %v1775
  %v1777 = vpop.f32.mrb[0].mxu0
  %1778 = vmatprep.mubr.f32.mxu0 0.0
  %1779 = vmatmul.mubr.f32.gmra.mrb[0].mxu0 %v1590
  %v1780 = vpop.f32.mrb[0].mxu0
  %v1781 = vadd.f32 0.0, %v1780
  %v1782 = vpop.f32.mrb[0].mxu0
  %1783 = vmatprep.mubr.f32.mxu0 0.0
  %1784 = vmatmul.mubr.f32.gmra.mrb[0].mxu0 %v1593
  %v1785 = vpop.f32.mrb[0].mxu0
  %v1786 = vadd.f32 0.0, %v1785
  %v1787 = vpop.f32.mrb[0].mxu0
  %1788 = vmatprep.mubr.f32.mxu0 0.0
  %1789 = vmatmul.mubr.f32.gmra.mrb[0].mxu0 %v1596
  %v1790 = vpop.f32.mrb[0].mxu0
  %v1791 = vadd.f32 0.0, %v1790
  %v1792 = vpop.f32.mrb[0].mxu0
  %1793 = vmatprep.mubr.f32.mxu0 0.0
  %1794 = vmatmul.mubr.f32.gmra.mrb[0].mxu0 %v1599
  %v1795 = vpop.f32.mrb[0].mxu0
  %v1796 = vadd.f32 0.0, %v1795
  %v1797 = vpop.f32.mrb[0].mxu0
  %1798 = vmatprep.mubr.f32.mxu0 0.0
  %1799 = vmatmul.mubr.f32.gmra.mrb[0].mxu0 %v1602
  %v1800 = vpop.f32.mrb[0].mxu0
  %v1801 = vadd.f32 0.0, %v1800
  %v1802 = vpop.f32.mrb[0].mxu0
  %1803 = vmatprep.mubr.f32.mxu0 0.0
  %1804 = vmatmul.mubr.f32.gmra.mrb[0].mxu0 %v1605
  %v1805 = vpop.f32.mrb[0].mxu0
  %v1806 = vadd.f32 0.0, %v1805
  %v1807 = vpop.f32.mrb[0].mxu0
  %1808 = vmatprep.mubr.f32.mxu0 0.0
  %1809 = vmatmul.mubr.f32.gmra.mrb[0].mxu0 %v1608
  %v1810 = vpop.f32.mrb[0].mxu0
  %v1811 = vadd.f32 0.0, %v1810
  %v1812 = vpop.f32.mrb[0].mxu0
  %1813 = vmatprep.mubr.f32.mxu0 0.0
  %1814 = vmatmul.mubr.f32.gmra.mrb[0].mxu0 %v1611
  %v1815 = vpop.f32.mrb[0].mxu0
  %v1816 = vadd.f32 0.0, %v1815
  %v1817 = vpop.f32.mrb[0].mxu0
  %1818 = vmatprep.mubr.f32.mxu0 0.0
  %1819 = vmatmul.mubr.f32.gmra.mrb[0].mxu0 %v1614
  %v1820 = vpop.f32.mrb[0].mxu0
  %v1821 = vadd.f32 0.0, %v1820
  %v1822 = vpop.f32.mrb[0].mxu0
  %1823 = vmatprep.mubr.f32.mxu0 0.0
  %1824 = vmatmul.mubr.f32.gmra.mrb[0].mxu0 %v1617
  %v1825 = vpop.f32.mrb[0].mxu0
  %v1826 = vadd.f32 0.0, %v1825
  %v1827 = vpop.f32.mrb[0].mxu0
  %1828 = vmatprep.mubr.f32.mxu0 0.0
  %1829 = vmatmul.mubr.f32.gmra.mrb[0].mxu0 %v1620
  %v1830 = vpop.f32.mrb[0].mxu0
  %v1831 = vadd.f32 0.0, %v1830
  %v1832 = vpop.f32.mrb[0].mxu0
  %1833 = vmatprep.mubr.f32.mxu0 0.0
  %1834 = vmatmul.mubr.f32.gmra.mrb[0].mxu0 %v1623
  %v1835 = vpop.f32.mrb[0].mxu0
  %v1836 = vadd.f32 0.0, %v1835
  %v1837 = vpop.f32.mrb[0].mxu0
  %1838 = vmatprep.mubr.f32.mxu0 0.0
  %1839 = vmatmul.mubr.f32.gmra.mrb[0].mxu0 %v1626
  %v1840 = vpop.f32.mrb[0].mxu0
  %v1841 = vadd.f32 0.0, %v1840
  %v1842 = vpop.f32.mrb[0].mxu0
  %1843 = vmatprep.mubr.f32.mxu0 0.0
  %1844 = vmatmul.mubr.f32.gmra.mrb[0].mxu0 %v1629
  %v1845 = vpop.f32.mrb[0].mxu0
  %v1846 = vadd.f32 0.0, %v1845
  %v1847 = vpop.f32.mrb[0].mxu0
  %1848 = vmatprep.mubr.f32.mxu0 0.0
  %1849 = vmatmul.mubr.f32.gmra.mrb[0].mxu0 %v1632
  %v1850 = vpop.f32.mrb[0].mxu0
  %v1851 = vadd.f32 0.0, %v1850
  %v1852 = vpop.f32.mrb[0].mxu0
  %1853 = vdwg.mxu0
  %v1855 = vsel %vm1540, %v736, 0
  %v1858 = vsel %vm1540, %v739, 0
  %v1861 = vsel %vm1540, %v744, 0
  %v1864 = vsel %vm1540, %v747, 0
  %v1867 = vsel %vm1540, %v752, 0
  %v1870 = vsel %vm1540, %v755, 0
  %v1873 = vsel %vm1540, %v760, 0
  %v1876 = vsel %vm1540, %v763, 0
  %v1879 = vsel %vm1540, %v768, 0
  %v1882 = vsel %vm1540, %v771, 0
  %v1885 = vsel %vm1540, %v776, 0
  %v1888 = vsel %vm1540, %v779, 0
  %v1891 = vsel %vm1540, %v784, 0
  %v1894 = vsel %vm1540, %v787, 0
  %v1897 = vsel %vm1540, %v792, 0
  %v1900 = vsel %vm1540, %v795, 0
  %v1903 = vsel %vm1540, %v800, 0
  %v1906 = vsel %vm1540, %v803, 0
  %v1909 = vsel %vm1540, %v808, 0
  %v1912 = vsel %vm1540, %v811, 0
  %v1915 = vsel %vm1540, %v816, 0
  %v1918 = vsel %vm1540, %v819, 0
  %v1921 = vsel %vm1540, %v824, 0
  %v1924 = vsel %vm1540, %v827, 0
  %v1927 = vsel %vm1540, %v832, 0
  %v1930 = vsel %vm1540, %v835, 0
  %v1933 = vsel %vm1540, %v840, 0
  %v1936 = vsel %vm1540, %v843, 0
  %v1939 = vsel %vm1540, %v848, 0
  %v1942 = vsel %vm1540, %v851, 0
  %v1945 = vsel %vm1540, %v856, 0
  %1947 = vmatprep.subr.mxu0 0.0
  %1948 = vmatpush1.msra.mxu0 %v861
  %1949 = vmatprep.subr.mxu0 0.0
  %1950 = vmatpush1.msra.mxu0 %v862
  %1951 = vmatprep.subr.mxu0 0.0
  %1952 = vmatpush1.msra.mxu0 %v863
  %1953 = vmatprep.subr.mxu0 0.0
  %1954 = vmatpush1.msra.mxu0 %v864
  %1955 = vmatprep.subr.mxu0 0.0
  %1956 = vmatpush1.msra.mxu0 %v865
  %1957 = vmatprep.subr.mxu0 0.0
  %1958 = vmatpush1.msra.mxu0 %v866
  %1959 = vmatprep.subr.mxu0 0.0
  %1960 = vmatpush1.msra.mxu0 0.0
  %1961 = vmatprep.subr.mxu0 0.0
  %1962 = vmatpush1.msra.mxu0 0.0
  %1963 = vmatprep.subr.mxu0 0.0
  %1964 = vmatpush1.msra.mxu0 0.0
  %1965 = vmatprep.subr.mxu0 0.0
  %1966 = vmatpush1.msra.mxu0 0.0
  %1967 = vmatprep.subr.mxu0 0.0
  %1968 = vmatpush1.msra.mxu0 0.0
  %1969 = vmatprep.subr.mxu0 0.0
  %1970 = vmatpush1.msra.mxu0 0.0
  %1971 = vmatprep.subr.mxu0 0.0
  %1972 = vmatpush1.msra.mxu0 0.0
  %1973 = vmatprep.subr.mxu0 0.0
  %1974 = vmatpush1.msra.mxu0 0.0
  %1975 = vmatprep.subr.mxu0 0.0
  %1976 = vmatpush1.msra.mxu0 0.0
  %1977 = vmatprep.subr.mxu0 0.0
  %1978 = vmatpush1.msra.mxu0 0.0
  %1979 = vmatprep.subr.mxu0 0.0
  %1980 = vmatpush1.msra.mxu0 0.0
  %1981 = vmatprep.subr.mxu0 0.0
  %1982 = vmatpush1.msra.mxu0 0.0
  %1983 = vmatprep.subr.mxu0 0.0
  %1984 = vmatpush1.msra.mxu0 0.0
  %1985 = vmatprep.subr.mxu0 0.0
  %1986 = vmatpush1.msra.mxu0 0.0
  %1987 = vmatprep.subr.mxu0 0.0
  %1988 = vmatpush1.msra.mxu0 0.0
  %1989 = vmatprep.subr.mxu0 0.0
  %1990 = vmatpush1.msra.mxu0 0.0
  %1991 = vmatprep.subr.mxu0 0.0
  %1992 = vmatpush1.msra.mxu0 0.0
  %1993 = vmatprep.subr.mxu0 0.0
  %1994 = vmatpush1.msra.mxu0 0.0
  %1995 = vmatprep.subr.mxu0 0.0
  %1996 = vmatpush1.msra.mxu0 0.0
  %1997 = vmatprep.subr.mxu0 0.0
  %1998 = vmatpush1.msra.mxu0 0.0
  %1999 = vmatprep.subr.mxu0 0.0
  %2000 = vmatpush1.msra.mxu0 0.0
  %2001 = vmatprep.subr.mxu0 0.0
  %2002 = vmatpush1.msra.mxu0 0.0
  %2003 = vmatprep.subr.mxu0 0.0
  %2004 = vmatpush1.msra.mxu0 0.0
  %2005 = vmatprep.subr.mxu0 0.0
  %2006 = vmatpush1.msra.mxu0 0.0
  %2007 = vmatprep.subr.mxu0 0.0
  %2008 = vmatpush1.msra.mxu0 0.0
  %2009 = vmatprep.subr.mxu0 0.0
  %2010 = vmatpush1.msra.mxu0 0.0
  %2011 = vmatprep.mubr.f32.mxu0 0.0
  %2012 = vmatmul.mubr.f32.gmra.mrb[0].mxu0 %v1855
  %v2013 = vpop.f32.mrb[0].mxu0
  %v2014 = vadd.f32 %v1701, %v2013
  %v2015 = vpop.f32.mrb[0].mxu0
  %2016 = vmatprep.mubr.f32.mxu0 0.0
  %2017 = vmatmul.mubr.f32.gmra.mrb[0].mxu0 %v1858
  %v2018 = vpop.f32.mrb[0].mxu0
  %v2019 = vadd.f32 %v1706, %v2018
  %v2020 = vpop.f32.mrb[0].mxu0
  %2021 = vmatprep.mubr.f32.mxu0 0.0
  %2022 = vmatmul.mubr.f32.gmra.mrb[0].mxu0 %v1861
  %v2023 = vpop.f32.mrb[0].mxu0
  %v2024 = vadd.f32 %v1711, %v2023
  %v2025 = vpop.f32.mrb[0].mxu0
  %2026 = vmatprep.mubr.f32.mxu0 0.0
  %2027 = vmatmul.mubr.f32.gmra.mrb[0].mxu0 %v1864
  %v2028 = vpop.f32.mrb[0].mxu0
  %v2029 = vadd.f32 %v1716, %v2028
  %v2030 = vpop.f32.mrb[0].mxu0
  %2031 = vmatprep.mubr.f32.mxu0 0.0
  %2032 = vmatmul.mubr.f32.gmra.mrb[0].mxu0 %v1867
  %v2033 = vpop.f32.mrb[0].mxu0
  %v2034 = vadd.f32 %v1721, %v2033
  %v2035 = vpop.f32.mrb[0].mxu0
  %2036 = vmatprep.mubr.f32.mxu0 0.0
  %2037 = vmatmul.mubr.f32.gmra.mrb[0].mxu0 %v1870
  %v2038 = vpop.f32.mrb[0].mxu0
  %v2039 = vadd.f32 %v1726, %v2038
  %v2040 = vpop.f32.mrb[0].mxu0
  %2041 = vmatprep.mubr.f32.mxu0 0.0
  %2042 = vmatmul.mubr.f32.gmra.mrb[0].mxu0 %v1873
  %v2043 = vpop.f32.mrb[0].mxu0
  %v2044 = vadd.f32 %v1731, %v2043
  %v2045 = vpop.f32.mrb[0].mxu0
  %2046 = vmatprep.mubr.f32.mxu0 0.0
  %2047 = vmatmul.mubr.f32.gmra.mrb[0].mxu0 %v1876
  %v2048 = vpop.f32.mrb[0].mxu0
  %v2049 = vadd.f32 %v1736, %v2048
  %v2050 = vpop.f32.mrb[0].mxu0
  %2051 = vmatprep.mubr.f32.mxu0 0.0
  %2052 = vmatmul.mubr.f32.gmra.mrb[0].mxu0 %v1879
  %v2053 = vpop.f32.mrb[0].mxu0
  %v2054 = vadd.f32 %v1741, %v2053
  %v2055 = vpop.f32.mrb[0].mxu0
  %2056 = vmatprep.mubr.f32.mxu0 0.0
  %2057 = vmatmul.mubr.f32.gmra.mrb[0].mxu0 %v1882
  %v2058 = vpop.f32.mrb[0].mxu0
  %v2059 = vadd.f32 %v1746, %v2058
  %v2060 = vpop.f32.mrb[0].mxu0
  %2061 = vmatprep.mubr.f32.mxu0 0.0
  %2062 = vmatmul.mubr.f32.gmra.mrb[0].mxu0 %v1885
  %v2063 = vpop.f32.mrb[0].mxu0
  %v2064 = vadd.f32 %v1751, %v2063
  %v2065 = vpop.f32.mrb[0].mxu0
  %2066 = vmatprep.mubr.f32.mxu0 0.0
  %2067 = vmatmul.mubr.f32.gmra.mrb[0].mxu0 %v1888
  %v2068 = vpop.f32.mrb[0].mxu0
  %v2069 = vadd.f32 %v1756, %v2068
  %v2070 = vpop.f32.mrb[0].mxu0
  %2071 = vmatprep.mubr.f32.mxu0 0.0
  %2072 = vmatmul.mubr.f32.gmra.mrb[0].mxu0 %v1891
  %v2073 = vpop.f32.mrb[0].mxu0
  %v2074 = vadd.f32 %v1761, %v2073
  %v2075 = vpop.f32.mrb[0].mxu0
  %2076 = vmatprep.mubr.f32.mxu0 0.0
  %2077 = vmatmul.mubr.f32.gmra.mrb[0].mxu0 %v1894
  %v2078 = vpop.f32.mrb[0].mxu0
  %v2079 = vadd.f32 %v1766, %v2078
  %v2080 = vpop.f32.mrb[0].mxu0
  %2081 = vmatprep.mubr.f32.mxu0 0.0
  %2082 = vmatmul.mubr.f32.gmra.mrb[0].mxu0 %v1897
  %v2083 = vpop.f32.mrb[0].mxu0
  %v2084 = vadd.f32 %v1771, %v2083
  %v2085 = vpop.f32.mrb[0].mxu0
  %2086 = vmatprep.mubr.f32.mxu0 0.0
  %2087 = vmatmul.mubr.f32.gmra.mrb[0].mxu0 %v1900
  %v2088 = vpop.f32.mrb[0].mxu0
  %v2089 = vadd.f32 %v1776, %v2088
  %v2090 = vpop.f32.mrb[0].mxu0
  %2091 = vmatprep.mubr.f32.mxu0 0.0
  %2092 = vmatmul.mubr.f32.gmra.mrb[0].mxu0 %v1903
  %v2093 = vpop.f32.mrb[0].mxu0
  %v2094 = vadd.f32 %v1781, %v2093
  %v2095 = vpop.f32.mrb[0].mxu0
  %2096 = vmatprep.mubr.f32.mxu0 0.0
  %2097 = vmatmul.mubr.f32.gmra.mrb[0].mxu0 %v1906
  %v2098 = vpop.f32.mrb[0].mxu0
  %v2099 = vadd.f32 %v1786, %v2098
  %v2100 = vpop.f32.mrb[0].mxu0
  %2101 = vmatprep.mubr.f32.mxu0 0.0
  %2102 = vmatmul.mubr.f32.gmra.mrb[0].mxu0 %v1909
  %v2103 = vpop.f32.mrb[0].mxu0
  %v2104 = vadd.f32 %v1791, %v2103
  %v2105 = vpop.f32.mrb[0].mxu0
  %2106 = vmatprep.mubr.f32.mxu0 0.0
  %2107 = vmatmul.mubr.f32.gmra.mrb[0].mxu0 %v1912
  %v2108 = vpop.f32.mrb[0].mxu0
  %v2109 = vadd.f32 %v1796, %v2108
  %v2110 = vpop.f32.mrb[0].mxu0
  %2111 = vmatprep.mubr.f32.mxu0 0.0
  %2112 = vmatmul.mubr.f32.gmra.mrb[0].mxu0 %v1915
  %v2113 = vpop.f32.mrb[0].mxu0
  %v2114 = vadd.f32 %v1801, %v2113
  %v2115 = vpop.f32.mrb[0].mxu0
  %2116 = vmatprep.mubr.f32.mxu0 0.0
  %2117 = vmatmul.mubr.f32.gmra.mrb[0].mxu0 %v1918
  %v2118 = vpop.f32.mrb[0].mxu0
  %v2119 = vadd.f32 %v1806, %v2118
  %v2120 = vpop.f32.mrb[0].mxu0
  %2121 = vmatprep.mubr.f32.mxu0 0.0
  %2122 = vmatmul.mubr.f32.gmra.mrb[0].mxu0 %v1921
  %v2123 = vpop.f32.mrb[0].mxu0
  %v2124 = vadd.f32 %v1811, %v2123
  %v2125 = vpop.f32.mrb[0].mxu0
  %2126 = vmatprep.mubr.f32.mxu0 0.0
  %2127 = vmatmul.mubr.f32.gmra.mrb[0].mxu0 %v1924
  %v2128 = vpop.f32.mrb[0].mxu0
  %v2129 = vadd.f32 %v1816, %v2128
  %v2130 = vpop.f32.mrb[0].mxu0
  %2131 = vmatprep.mubr.f32.mxu0 0.0
  %2132 = vmatmul.mubr.f32.gmra.mrb[0].mxu0 %v1927
  %v2133 = vpop.f32.mrb[0].mxu0
  %v2134 = vadd.f32 %v1821, %v2133
  %v2135 = vpop.f32.mrb[0].mxu0
  %2136 = vmatprep.mubr.f32.mxu0 0.0
  %2137 = vmatmul.mubr.f32.gmra.mrb[0].mxu0 %v1930
  %v2138 = vpop.f32.mrb[0].mxu0
  %v2139 = vadd.f32 %v1826, %v2138
  %v2140 = vpop.f32.mrb[0].mxu0
  %2141 = vmatprep.mubr.f32.mxu0 0.0
  %2142 = vmatmul.mubr.f32.gmra.mrb[0].mxu0 %v1933
  %v2143 = vpop.f32.mrb[0].mxu0
  %v2144 = vadd.f32 %v1831, %v2143
  %v2145 = vpop.f32.mrb[0].mxu0
  %2146 = vmatprep.mubr.f32.mxu0 0.0
  %2147 = vmatmul.mubr.f32.gmra.mrb[0].mxu0 %v1936
  %v2148 = vpop.f32.mrb[0].mxu0
  %v2149 = vadd.f32 %v1836, %v2148
  %v2150 = vpop.f32.mrb[0].mxu0
  %2151 = vmatprep.mubr.f32.mxu0 0.0
  %2152 = vmatmul.mubr.f32.gmra.mrb[0].mxu0 %v1939
  %v2153 = vpop.f32.mrb[0].mxu0
  %v2154 = vadd.f32 %v1841, %v2153
  %v2155 = vpop.f32.mrb[0].mxu0
  %2156 = vmatprep.mubr.f32.mxu0 0.0
  %2157 = vmatmul.mubr.f32.gmra.mrb[0].mxu0 %v1942
  %v2158 = vpop.f32.mrb[0].mxu0
  %v2159 = vadd.f32 %v1846, %v2158
  %v2160 = vpop.f32.mrb[0].mxu0
  %2161 = vmatprep.mubr.f32.mxu0 0.0
  %2162 = vmatmul.mubr.f32.gmra.mrb[0].mxu0 %v1945
  %v2163 = vpop.f32.mrb[0].mxu0
  %v2164 = vadd.f32 %v1851, %v2163
  %v2165 = vpop.f32.mrb[0].mxu0
  %2166 = vdwg.mxu0
  %s2167 = scalar_lea.vmem %s1, 744
  %v2168 = vld [vmem:[%s2167] sm:$0xff]
  %v2169 = vld [vmem:[%s2167 + $0x8] sm:$0xf]
  %v2170 = vld [vmem:[%s2167 + $0xc] sm:$0xff]
  %v2171 = vld [vmem:[%s2167 + $0x14] sm:$0xf]
  %v2172 = vld [vmem:[%s2167 + $0x18] sm:$0xff]
  %v2173 = vld [vmem:[%s2167 + $0x20] sm:$0xf]
  %v2174 = vld [vmem:[%s2167 + $0x24] sm:$0xff]
  %v2175 = vld [vmem:[%s2167 + $0x2c] sm:$0xf]
  %v2176 = vld [vmem:[%s2167 + $0x30] sm:$0xff]
  %v2177 = vld [vmem:[%s2167 + $0x38] sm:$0xf]
  %v2178 = vld [vmem:[%s2167 + $0x3c] sm:$0xff]
  %v2179 = vld [vmem:[%s2167 + $0x44] sm:$0xf]
  %v2180 = vld [vmem:[%s2167 + $0x48] sm:$0xff]
  %v2181 = vld [vmem:[%s2167 + $0x50] sm:$0xf]
  %v2182 = vld [vmem:[%s2167 + $0x54] sm:$0xff]
  %v2183 = vld [vmem:[%s2167 + $0x5c] sm:$0xf]
  %v2184 = vld [vmem:[%s2167 + $0x60] sm:$0xff]
  %v2185 = vld [vmem:[%s2167 + $0x68] sm:$0xf]
  %v2186 = vld [vmem:[%s2167 + $0x6c] sm:$0xff]
  %v2187 = vld [vmem:[%s2167 + $0x74] sm:$0xf]
  %v2188 = vld [vmem:[%s2167 + $0x78] sm:$0xff]
  %v2189 = vld [vmem:[%s2167 + $0x80] sm:$0xf]
  %v2190 = vld [vmem:[%s2167 + $0x84] sm:$0xff]
  %v2191 = vld [vmem:[%s2167 + $0x8c] sm:$0xf]
  %v2192 = vld [vmem:[%s2167 + $0x90] sm:$0xff]
  %v2193 = vld [vmem:[%s2167 + $0x98] sm:$0xf]
  %v2194 = vld [vmem:[%s2167 + $0x9c] sm:$0xff]
  %v2195 = vld [vmem:[%s2167 + $0xa4] sm:$0xf]
  %v2196 = vld [vmem:[%s2167 + $0xa8] sm:$0xff]
  %v2197 = vld [vmem:[%s2167 + $0xb0] sm:$0xf]
  %v2198 = vld [vmem:[%s2167 + $0xb4] sm:$0xff]
  %v2199 = vld [vmem:[%s2167 + $0xbc] sm:$0xf]
  %v2200 = vld [vmem:[%s2167 + $0xc0] sm:$0xff]
  %v2201 = vld [vmem:[%s2167 + $0xc8] sm:$0xf]
  %v2202 = vld [vmem:[%s2167 + $0xcc] sm:$0xff]
  %v2203 = vld [vmem:[%s2167 + $0xd4] sm:$0xf]
  %v2204 = vld [vmem:[%s2167 + $0xd8] sm:$0xff]
  %v2205 = vld [vmem:[%s2167 + $0xe0] sm:$0xf]
  %v2206 = vld [vmem:[%s2167 + $0xe4] sm:$0xff]
  %v2207 = vld [vmem:[%s2167 + $0xec] sm:$0xf]
  %v2208 = vld [vmem:[%s2167 + $0xf0] sm:$0xff]
  %v2209 = vld [vmem:[%s2167 + $0xf8] sm:$0xf]
  %v2210 = vld [vmem:[%s2167 + $0xfc] sm:$0xff]
  %v2211 = vld [vmem:[%s2167 + $0x104] sm:$0xf]
  %v2212 = vld [vmem:[%s2167 + $0x108] sm:$0xff]
  %v2213 = vld [vmem:[%s2167 + $0x110] sm:$0xf]
  %v2214 = vld [vmem:[%s2167 + $0x114] sm:$0xff]
  %v2215 = vld [vmem:[%s2167 + $0x11c] sm:$0xf]
  %v2216 = vld [vmem:[%s2167 + $0x120] sm:$0xff]
  %v2217 = vld [vmem:[%s2167 + $0x128] sm:$0xf]
  %v2218 = vld [vmem:[%s2167 + $0x12c] sm:$0xff]
  %v2219 = vld [vmem:[%s2167 + $0x134] sm:$0xf]
  %v2220 = vld [vmem:[%s2167 + $0x138] sm:$0xff]
  %v2221 = vld [vmem:[%s2167 + $0x140] sm:$0xf]
  %v2222 = vld [vmem:[%s2167 + $0x144] sm:$0xff]
  %v2223 = vld [vmem:[%s2167 + $0x14c] sm:$0xf]
  %v2224 = vld [vmem:[%s2167 + $0x150] sm:$0xff]
  %v2225 = vld [vmem:[%s2167 + $0x158] sm:$0xf]
  %v2226 = vld [vmem:[%s2167 + $0x15c] sm:$0xff]
  %v2227 = vld [vmem:[%s2167 + $0x164] sm:$0xf]
  %v2228 = vld [vmem:[%s2167 + $0x168] sm:$0xff]
  %v2229 = vld [vmem:[%s2167 + $0x170] sm:$0xf]
  %v2292 = vunpack.c.l.b16 %v2168
  %v2293 = vunpack.c.h.b16 %v2168
  %v2294 = vunpack.c.l.b16 %v2169
  %v2295 = vunpack.c.l.b16 %v2170
  %v2296 = vunpack.c.h.b16 %v2170
  %v2297 = vunpack.c.l.b16 %v2171
  %v2298 = vunpack.c.l.b16 %v2172
  %v2299 = vunpack.c.h.b16 %v2172
  %v2300 = vunpack.c.l.b16 %v2173
  %v2301 = vunpack.c.l.b16 %v2174
  %v2302 = vunpack.c.h.b16 %v2174
  %v2303 = vunpack.c.l.b16 %v2175
  %v2304 = vunpack.c.l.b16 %v2176
  %v2305 = vunpack.c.h.b16 %v2176
  %v2306 = vunpack.c.l.b16 %v2177
  %v2307 = vunpack.c.l.b16 %v2178
  %v2308 = vunpack.c.h.b16 %v2178
  %v2309 = vunpack.c.l.b16 %v2179
  %v2310 = vunpack.c.l.b16 %v2180
  %v2311 = vunpack.c.h.b16 %v2180
  %v2312 = vunpack.c.l.b16 %v2181
  %v2313 = vunpack.c.l.b16 %v2182
  %v2314 = vunpack.c.h.b16 %v2182
  %v2315 = vunpack.c.l.b16 %v2183
  %v2316 = vunpack.c.l.b16 %v2184
  %v2317 = vunpack.c.h.b16 %v2184
  %v2318 = vunpack.c.l.b16 %v2185
  %v2319 = vunpack.c.l.b16 %v2186
  %v2320 = vunpack.c.h.b16 %v2186
  %v2321 = vunpack.c.l.b16 %v2187
  %v2322 = vunpack.c.l.b16 %v2188
  %v2323 = vunpack.c.h.b16 %v2188
  %v2324 = vunpack.c.l.b16 %v2189
  %v2325 = vunpack.c.l.b16 %v2190
  %v2326 = vunpack.c.h.b16 %v2190
  %v2327 = vunpack.c.l.b16 %v2191
  %v2328 = vunpack.c.l.b16 %v2192
  %v2329 = vunpack.c.h.b16 %v2192
  %v2330 = vunpack.c.l.b16 %v2193
  %v2331 = vunpack.c.l.b16 %v2194
  %v2332 = vunpack.c.h.b16 %v2194
  %v2333 = vunpack.c.l.b16 %v2195
  %v2334 = vunpack.c.l.b16 %v2196
  %v2335 = vunpack.c.h.b16 %v2196
  %v2336 = vunpack.c.l.b16 %v2197
  %v2337 = vunpack.c.l.b16 %v2198
  %v2338 = vunpack.c.h.b16 %v2198
  %v2339 = vunpack.c.l.b16 %v2199
  %v2340 = vunpack.c.l.b16 %v2200
  %v2341 = vunpack.c.h.b16 %v2200
  %v2342 = vunpack.c.l.b16 %v2201
  %v2343 = vunpack.c.l.b16 %v2202
  %v2344 = vunpack.c.h.b16 %v2202
  %v2345 = vunpack.c.l.b16 %v2203
  %v2346 = vunpack.c.l.b16 %v2204
  %v2347 = vunpack.c.h.b16 %v2204
  %v2348 = vunpack.c.l.b16 %v2205
  %v2349 = vunpack.c.l.b16 %v2206
  %v2350 = vunpack.c.h.b16 %v2206
  %v2351 = vunpack.c.l.b16 %v2207
  %v2352 = vunpack.c.l.b16 %v2208
  %v2353 = vunpack.c.h.b16 %v2208
  %v2354 = vunpack.c.l.b16 %v2209
  %v2355 = vunpack.c.l.b16 %v2210
  %v2356 = vunpack.c.h.b16 %v2210
  %v2357 = vunpack.c.l.b16 %v2211
  %v2358 = vunpack.c.l.b16 %v2212
  %v2359 = vunpack.c.h.b16 %v2212
  %v2360 = vunpack.c.l.b16 %v2213
  %v2361 = vunpack.c.l.b16 %v2214
  %v2362 = vunpack.c.h.b16 %v2214
  %v2363 = vunpack.c.l.b16 %v2215
  %v2364 = vunpack.c.l.b16 %v2216
  %v2365 = vunpack.c.h.b16 %v2216
  %v2366 = vunpack.c.l.b16 %v2217
  %v2367 = vunpack.c.l.b16 %v2218
  %v2368 = vunpack.c.h.b16 %v2218
  %v2369 = vunpack.c.l.b16 %v2219
  %v2370 = vunpack.c.l.b16 %v2220
  %v2371 = vunpack.c.h.b16 %v2220
  %v2372 = vunpack.c.l.b16 %v2221
  %v2373 = vunpack.c.l.b16 %v2222
  %v2374 = vunpack.c.h.b16 %v2222
  %v2375 = vunpack.c.l.b16 %v2223
  %v2376 = vunpack.c.l.b16 %v2224
  %v2377 = vunpack.c.h.b16 %v2224
  %v2378 = vunpack.c.l.b16 %v2225
  %v2379 = vunpack.c.l.b16 %v2226
  %v2380 = vunpack.c.h.b16 %v2226
  %v2381 = vunpack.c.l.b16 %v2227
  %v2382 = vunpack.c.l.b16 %v2228
  %v2383 = vunpack.c.h.b16 %v2228
  %v2384 = vunpack.c.l.b16 %v2229
  %v2385 = vpack.c.b16 %v2295, %v2292
  %v2386 = vpack.c.b16 %v2296, %v2293
  %v2387 = vpack.c.b16 %v2297, %v2294
  %v2388 = vpack.c.b16 %v2301, %v2298
  %v2389 = vpack.c.b16 %v2302, %v2299
  %v2390 = vpack.c.b16 %v2303, %v2300
  %v2391 = vpack.c.b16 %v2307, %v2304
  %v2392 = vpack.c.b16 %v2308, %v2305
  %v2393 = vpack.c.b16 %v2309, %v2306
  %v2394 = vpack.c.b16 %v2313, %v2310
  %v2395 = vpack.c.b16 %v2314, %v2311
  %v2396 = vpack.c.b16 %v2315, %v2312
  %v2397 = vpack.c.b16 %v2319, %v2316
  %v2398 = vpack.c.b16 %v2320, %v2317
  %v2399 = vpack.c.b16 %v2321, %v2318
  %v2400 = vpack.c.b16 %v2325, %v2322
  %v2401 = vpack.c.b16 %v2326, %v2323
  %v2402 = vpack.c.b16 %v2327, %v2324
  %v2403 = vpack.c.b16 %v2331, %v2328
  %v2404 = vpack.c.b16 %v2332, %v2329
  %v2405 = vpack.c.b16 %v2333, %v2330
  %v2406 = vpack.c.b16 %v2337, %v2334
  %v2407 = vpack.c.b16 %v2338, %v2335
  %v2408 = vpack.c.b16 %v2339, %v2336
  %v2409 = vpack.c.b16 %v2343, %v2340
  %v2410 = vpack.c.b16 %v2344, %v2341
  %v2411 = vpack.c.b16 %v2345, %v2342
  %v2412 = vpack.c.b16 %v2349, %v2346
  %v2413 = vpack.c.b16 %v2350, %v2347
  %v2414 = vpack.c.b16 %v2351, %v2348
  %v2415 = vpack.c.b16 %v2355, %v2352
  %v2416 = vpack.c.b16 %v2356, %v2353
  %v2417 = vpack.c.b16 %v2357, %v2354
  %v2418 = vpack.c.b16 %v2361, %v2358
  %v2419 = vpack.c.b16 %v2362, %v2359
  %v2420 = vpack.c.b16 %v2363, %v2360
  %v2421 = vpack.c.b16 %v2367, %v2364
  %v2422 = vpack.c.b16 %v2368, %v2365
  %v2423 = vpack.c.b16 %v2369, %v2366
  %v2424 = vpack.c.b16 %v2373, %v2370
  %v2425 = vpack.c.b16 %v2374, %v2371
  %v2426 = vpack.c.b16 %v2375, %v2372
  %v2427 = vpack.c.b16 %v2379, %v2376
  %v2428 = vpack.c.b16 %v2380, %v2377
  %v2429 = vpack.c.b16 %v2381, %v2378
  %v2430 = vpack.c.b16 %v2382, %v2382
  %v2431 = vpack.c.b16 %v2383, %v2383
  %v2432 = vpack.c.b16 %v2384, %v2384
  %v2466 = vsel %vm492, %v2387, 0
  %v2469 = vsel %vm492, %v2390, 0
  %v2472 = vsel %vm492, %v2393, 0
  %v2475 = vsel %vm492, %v2396, 0
  %v2478 = vsel %vm492, %v2399, 0
  %v2481 = vsel %vm492, %v2402, 0
  %v2484 = vsel %vm492, %v2405, 0
  %v2487 = vsel %vm492, %v2408, 0
  %v2490 = vsel %vm492, %v2411, 0
  %v2493 = vsel %vm492, %v2414, 0
  %v2496 = vsel %vm492, %v2417, 0
  %v2499 = vsel %vm492, %v2420, 0
  %v2502 = vsel %vm492, %v2423, 0
  %v2505 = vsel %vm492, %v2426, 0
  %v2508 = vsel %vm492, %v2429, 0
  %v2511 = vsel %vm492, %v2432, 0
  %2513 = vmatprep.subr.bf16.mxu0 0
  %2514 = vmatpush1.bf16.msra.mxu0 %v456
  %2515 = vmatprep.subr.bf16.mxu0 0
  %2516 = vmatpush1.bf16.msra.mxu0 %v457
  %2517 = vmatprep.subr.bf16.mxu0 0
  %2518 = vmatpush1.bf16.msra.mxu0 %v458
  %2519 = vmatprep.subr.bf16.mxu0 0
  %2520 = vmatpush1.bf16.msra.mxu0 %v459
  %2521 = vmatprep.subr.bf16.mxu0 0
  %2522 = vmatpush1.bf16.msra.mxu0 %v460
  %2523 = vmatprep.subr.bf16.mxu0 0
  %2524 = vmatpush1.bf16.msra.mxu0 %v461
  %2525 = vmatprep.subr.bf16.mxu0 0
  %2526 = vmatpush1.bf16.msra.mxu0 %v462
  %2527 = vmatprep.subr.bf16.mxu0 0
  %2528 = vmatpush1.bf16.msra.mxu0 %v463
  %2529 = vmatprep.subr.bf16.mxu0 0
  %2530 = vmatpush1.bf16.msra.mxu0 %v464
  %2531 = vmatprep.subr.bf16.mxu0 0
  %2532 = vmatpush1.bf16.msra.mxu0 %v465
  %2533 = vmatprep.subr.bf16.mxu0 0
  %2534 = vmatpush1.bf16.msra.mxu0 %v466
  %2535 = vmatprep.subr.bf16.mxu0 0
  %2536 = vmatpush1.bf16.msra.mxu0 %v467
  %2537 = vmatprep.subr.bf16.mxu0 0
  %2538 = vmatpush1.bf16.msra.mxu0 %v468
  %2539 = vmatprep.subr.bf16.mxu0 0
  %2540 = vmatpush1.bf16.msra.mxu0 %v469
  %2541 = vmatprep.subr.bf16.mxu0 0
  %2542 = vmatpush1.bf16.msra.mxu0 %v470
  %2543 = vmatprep.subr.bf16.mxu0 0
  %2544 = vmatpush1.bf16.msra.mxu0 %v471
  %2545 = vmatprep.mubr.bf16.mxu0 %v2386
  %2546 = vmatmul.mubr.bf16.gmra.mrb[0].mxu0 %v2385
  %v2547 = vpop.f32.mrb[0].mxu0
  %v2548 = vadd.f32 0.0, %v2547
  %v2549 = vpop.f32.mrb[0].mxu0
  %v2550 = vpop.f32.mrb[0].mxu0
  %v2551 = vadd.f32 0.0, %v2550
  %v2552 = vpop.f32.mrb[0].mxu0
  %2553 = vmatprep.mubr.bf16.mxu0 %v2389
  %2554 = vmatmul.mubr.bf16.gmra.mrb[0].mxu0 %v2388
  %v2555 = vpop.f32.mrb[0].mxu0
  %v2556 = vadd.f32 0.0, %v2555
  %v2557 = vpop.f32.mrb[0].mxu0
  %v2558 = vpop.f32.mrb[0].mxu0
  %v2559 = vadd.f32 0.0, %v2558
  %v2560 = vpop.f32.mrb[0].mxu0
  %2561 = vmatprep.mubr.bf16.mxu0 %v2392
  %2562 = vmatmul.mubr.bf16.gmra.mrb[0].mxu0 %v2391
  %v2563 = vpop.f32.mrb[0].mxu0
  %v2564 = vadd.f32 0.0, %v2563
  %v2565 = vpop.f32.mrb[0].mxu0
  %v2566 = vpop.f32.mrb[0].mxu0
  %v2567 = vadd.f32 0.0, %v2566
  %v2568 = vpop.f32.mrb[0].mxu0
  %2569 = vmatprep.mubr.bf16.mxu0 %v2395
  %2570 = vmatmul.mubr.bf16.gmra.mrb[0].mxu0 %v2394
  %v2571 = vpop.f32.mrb[0].mxu0
  %v2572 = vadd.f32 0.0, %v2571
  %v2573 = vpop.f32.mrb[0].mxu0
  %v2574 = vpop.f32.mrb[0].mxu0
  %v2575 = vadd.f32 0.0, %v2574
  %v2576 = vpop.f32.mrb[0].mxu0
  %2577 = vmatprep.mubr.bf16.mxu0 %v2398
  %2578 = vmatmul.mubr.bf16.gmra.mrb[0].mxu0 %v2397
  %v2579 = vpop.f32.mrb[0].mxu0
  %v2580 = vadd.f32 0.0, %v2579
  %v2581 = vpop.f32.mrb[0].mxu0
  %v2582 = vpop.f32.mrb[0].mxu0
  %v2583 = vadd.f32 0.0, %v2582
  %v2584 = vpop.f32.mrb[0].mxu0
  %2585 = vmatprep.mubr.bf16.mxu0 %v2401
  %2586 = vmatmul.mubr.bf16.gmra.mrb[0].mxu0 %v2400
  %v2587 = vpop.f32.mrb[0].mxu0
  %v2588 = vadd.f32 0.0, %v2587
  %v2589 = vpop.f32.mrb[0].mxu0
  %v2590 = vpop.f32.mrb[0].mxu0
  %v2591 = vadd.f32 0.0, %v2590
  %v2592 = vpop.f32.mrb[0].mxu0
  %2593 = vmatprep.mubr.bf16.mxu0 %v2404
  %2594 = vmatmul.mubr.bf16.gmra.mrb[0].mxu0 %v2403
  %v2595 = vpop.f32.mrb[0].mxu0
  %v2596 = vadd.f32 0.0, %v2595
  %v2597 = vpop.f32.mrb[0].mxu0
  %v2598 = vpop.f32.mrb[0].mxu0
  %v2599 = vadd.f32 0.0, %v2598
  %v2600 = vpop.f32.mrb[0].mxu0
  %2601 = vmatprep.mubr.bf16.mxu0 %v2407
  %2602 = vmatmul.mubr.bf16.gmra.mrb[0].mxu0 %v2406
  %v2603 = vpop.f32.mrb[0].mxu0
  %v2604 = vadd.f32 0.0, %v2603
  %v2605 = vpop.f32.mrb[0].mxu0
  %v2606 = vpop.f32.mrb[0].mxu0
  %v2607 = vadd.f32 0.0, %v2606
  %v2608 = vpop.f32.mrb[0].mxu0
  %2609 = vmatprep.mubr.bf16.mxu0 %v2410
  %2610 = vmatmul.mubr.bf16.gmra.mrb[0].mxu0 %v2409
  %v2611 = vpop.f32.mrb[0].mxu0
  %v2612 = vadd.f32 0.0, %v2611
  %v2613 = vpop.f32.mrb[0].mxu0
  %v2614 = vpop.f32.mrb[0].mxu0
  %v2615 = vadd.f32 0.0, %v2614
  %v2616 = vpop.f32.mrb[0].mxu0
  %2617 = vmatprep.mubr.bf16.mxu0 %v2413
  %2618 = vmatmul.mubr.bf16.gmra.mrb[0].mxu0 %v2412
  %v2619 = vpop.f32.mrb[0].mxu0
  %v2620 = vadd.f32 0.0, %v2619
  %v2621 = vpop.f32.mrb[0].mxu0
  %v2622 = vpop.f32.mrb[0].mxu0
  %v2623 = vadd.f32 0.0, %v2622
  %v2624 = vpop.f32.mrb[0].mxu0
  %2625 = vmatprep.mubr.bf16.mxu0 %v2416
  %2626 = vmatmul.mubr.bf16.gmra.mrb[0].mxu0 %v2415
  %v2627 = vpop.f32.mrb[0].mxu0
  %v2628 = vadd.f32 0.0, %v2627
  %v2629 = vpop.f32.mrb[0].mxu0
  %v2630 = vpop.f32.mrb[0].mxu0
  %v2631 = vadd.f32 0.0, %v2630
  %v2632 = vpop.f32.mrb[0].mxu0
  %2633 = vmatprep.mubr.bf16.mxu0 %v2419
  %2634 = vmatmul.mubr.bf16.gmra.mrb[0].mxu0 %v2418
  %v2635 = vpop.f32.mrb[0].mxu0
  %v2636 = vadd.f32 0.0, %v2635
  %v2637 = vpop.f32.mrb[0].mxu0
  %v2638 = vpop.f32.mrb[0].mxu0
  %v2639 = vadd.f32 0.0, %v2638
  %v2640 = vpop.f32.mrb[0].mxu0
  %2641 = vmatprep.mubr.bf16.mxu0 %v2422
  %2642 = vmatmul.mubr.bf16.gmra.mrb[0].mxu0 %v2421
  %v2643 = vpop.f32.mrb[0].mxu0
  %v2644 = vadd.f32 0.0, %v2643
  %v2645 = vpop.f32.mrb[0].mxu0
  %v2646 = vpop.f32.mrb[0].mxu0
  %v2647 = vadd.f32 0.0, %v2646
  %v2648 = vpop.f32.mrb[0].mxu0
  %2649 = vmatprep.mubr.bf16.mxu0 %v2425
  %2650 = vmatmul.mubr.bf16.gmra.mrb[0].mxu0 %v2424
  %v2651 = vpop.f32.mrb[0].mxu0
  %v2652 = vadd.f32 0.0, %v2651
  %v2653 = vpop.f32.mrb[0].mxu0
  %v2654 = vpop.f32.mrb[0].mxu0
  %v2655 = vadd.f32 0.0, %v2654
  %v2656 = vpop.f32.mrb[0].mxu0
  %2657 = vmatprep.mubr.bf16.mxu0 %v2428
  %2658 = vmatmul.mubr.bf16.gmra.mrb[0].mxu0 %v2427
  %v2659 = vpop.f32.mrb[0].mxu0
  %v2660 = vadd.f32 0.0, %v2659
  %v2661 = vpop.f32.mrb[0].mxu0
  %v2662 = vpop.f32.mrb[0].mxu0
  %v2663 = vadd.f32 0.0, %v2662
  %v2664 = vpop.f32.mrb[0].mxu0
  %2665 = vmatprep.mubr.bf16.mxu0 %v2431
  %2666 = vmatmul.mubr.bf16.gmra.mrb[0].mxu0 %v2430
  %v2667 = vpop.f32.mrb[0].mxu0
  %v2668 = vadd.f32 0.0, %v2667
  %v2669 = vpop.f32.mrb[0].mxu0
  %v2670 = vpop.f32.mrb[0].mxu0
  %v2671 = vpop.f32.mrb[0].mxu0
  %2672 = vdwg.mxu0
  %2673 = vmatprep.subr.bf16.mxu0 0
  %2674 = vmatpush1.bf16.msra.mxu0 %v472
  %2675 = vmatprep.subr.bf16.mxu0 0
  %2676 = vmatpush1.bf16.msra.mxu0 %v473
  %2677 = vmatprep.subr.bf16.mxu0 0
  %2678 = vmatpush1.bf16.msra.mxu0 0
  %2679 = vmatprep.subr.bf16.mxu0 0
  %2680 = vmatpush1.bf16.msra.mxu0 0
  %2681 = vmatprep.subr.bf16.mxu0 0
  %2682 = vmatpush1.bf16.msra.mxu0 0
  %2683 = vmatprep.subr.bf16.mxu0 0
  %2684 = vmatpush1.bf16.msra.mxu0 0
  %2685 = vmatprep.subr.bf16.mxu0 0
  %2686 = vmatpush1.bf16.msra.mxu0 0
  %2687 = vmatprep.subr.bf16.mxu0 0
  %2688 = vmatpush1.bf16.msra.mxu0 0
  %2689 = vmatprep.subr.bf16.mxu0 0
  %2690 = vmatpush1.bf16.msra.mxu0 0
  %2691 = vmatprep.subr.bf16.mxu0 0
  %2692 = vmatpush1.bf16.msra.mxu0 0
  %2693 = vmatprep.subr.bf16.mxu0 0
  %2694 = vmatpush1.bf16.msra.mxu0 0
  %2695 = vmatprep.subr.bf16.mxu0 0
  %2696 = vmatpush1.bf16.msra.mxu0 0
  %2697 = vmatprep.subr.bf16.mxu0 0
  %2698 = vmatpush1.bf16.msra.mxu0 0
  %2699 = vmatprep.subr.bf16.mxu0 0
  %2700 = vmatpush1.bf16.msra.mxu0 0
  %2701 = vmatprep.subr.bf16.mxu0 0
  %2702 = vmatpush1.bf16.msra.mxu0 0
  %2703 = vmatprep.subr.bf16.mxu0 0
  %2704 = vmatpush1.bf16.msra.mxu0 0
  %2705 = vmatprep.mubr.bf16.mxu0 0
  %2706 = vmatmul.mubr.bf16.gmra.mrb[0].mxu0 %v2466
  %v2707 = vpop.f32.mrb[0].mxu0
  %v2708 = vadd.f32 %v2548, %v2707
  %v2709 = vpop.f32.mrb[0].mxu0
  %v2710 = vpop.f32.mrb[0].mxu0
  %v2711 = vadd.f32 %v2551, %v2710
  %v2712 = vpop.f32.mrb[0].mxu0
  %2713 = vmatprep.mubr.bf16.mxu0 0
  %2714 = vmatmul.mubr.bf16.gmra.mrb[0].mxu0 %v2469
  %v2715 = vpop.f32.mrb[0].mxu0
  %v2716 = vadd.f32 %v2556, %v2715
  %v2717 = vpop.f32.mrb[0].mxu0
  %v2718 = vpop.f32.mrb[0].mxu0
  %v2719 = vadd.f32 %v2559, %v2718
  %v2720 = vpop.f32.mrb[0].mxu0
  %2721 = vmatprep.mubr.bf16.mxu0 0
  %2722 = vmatmul.mubr.bf16.gmra.mrb[0].mxu0 %v2472
  %v2723 = vpop.f32.mrb[0].mxu0
  %v2724 = vadd.f32 %v2564, %v2723
  %v2725 = vpop.f32.mrb[0].mxu0
  %v2726 = vpop.f32.mrb[0].mxu0
  %v2727 = vadd.f32 %v2567, %v2726
  %v2728 = vpop.f32.mrb[0].mxu0
  %2729 = vmatprep.mubr.bf16.mxu0 0
  %2730 = vmatmul.mubr.bf16.gmra.mrb[0].mxu0 %v2475
  %v2731 = vpop.f32.mrb[0].mxu0
  %v2732 = vadd.f32 %v2572, %v2731
  %v2733 = vpop.f32.mrb[0].mxu0
  %v2734 = vpop.f32.mrb[0].mxu0
  %v2735 = vadd.f32 %v2575, %v2734
  %v2736 = vpop.f32.mrb[0].mxu0
  %2737 = vmatprep.mubr.bf16.mxu0 0
  %2738 = vmatmul.mubr.bf16.gmra.mrb[0].mxu0 %v2478
  %v2739 = vpop.f32.mrb[0].mxu0
  %v2740 = vadd.f32 %v2580, %v2739
  %v2741 = vpop.f32.mrb[0].mxu0
  %v2742 = vpop.f32.mrb[0].mxu0
  %v2743 = vadd.f32 %v2583, %v2742
  %v2744 = vpop.f32.mrb[0].mxu0
  %2745 = vmatprep.mubr.bf16.mxu0 0
  %2746 = vmatmul.mubr.bf16.gmra.mrb[0].mxu0 %v2481
  %v2747 = vpop.f32.mrb[0].mxu0
  %v2748 = vadd.f32 %v2588, %v2747
  %v2749 = vpop.f32.mrb[0].mxu0
  %v2750 = vpop.f32.mrb[0].mxu0
  %v2751 = vadd.f32 %v2591, %v2750
  %v2752 = vpop.f32.mrb[0].mxu0
  %2753 = vmatprep.mubr.bf16.mxu0 0
  %2754 = vmatmul.mubr.bf16.gmra.mrb[0].mxu0 %v2484
  %v2755 = vpop.f32.mrb[0].mxu0
  %v2756 = vadd.f32 %v2596, %v2755
  %v2757 = vpop.f32.mrb[0].mxu0
  %v2758 = vpop.f32.mrb[0].mxu0
  %v2759 = vadd.f32 %v2599, %v2758
  %v2760 = vpop.f32.mrb[0].mxu0
  %2761 = vmatprep.mubr.bf16.mxu0 0
  %2762 = vmatmul.mubr.bf16.gmra.mrb[0].mxu0 %v2487
  %v2763 = vpop.f32.mrb[0].mxu0
  %v2764 = vadd.f32 %v2604, %v2763
  %v2765 = vpop.f32.mrb[0].mxu0
  %v2766 = vpop.f32.mrb[0].mxu0
  %v2767 = vadd.f32 %v2607, %v2766
  %v2768 = vpop.f32.mrb[0].mxu0
  %2769 = vmatprep.mubr.bf16.mxu0 0
  %2770 = vmatmul.mubr.bf16.gmra.mrb[0].mxu0 %v2490
  %v2771 = vpop.f32.mrb[0].mxu0
  %v2772 = vadd.f32 %v2612, %v2771
  %v2773 = vpop.f32.mrb[0].mxu0
  %v2774 = vpop.f32.mrb[0].mxu0
  %v2775 = vadd.f32 %v2615, %v2774
  %v2776 = vpop.f32.mrb[0].mxu0
  %2777 = vmatprep.mubr.bf16.mxu0 0
  %2778 = vmatmul.mubr.bf16.gmra.mrb[0].mxu0 %v2493
  %v2779 = vpop.f32.mrb[0].mxu0
  %v2780 = vadd.f32 %v2620, %v2779
  %v2781 = vpop.f32.mrb[0].mxu0
  %v2782 = vpop.f32.mrb[0].mxu0
  %v2783 = vadd.f32 %v2623, %v2782
  %v2784 = vpop.f32.mrb[0].mxu0
  %2785 = vmatprep.mubr.bf16.mxu0 0
  %2786 = vmatmul.mubr.bf16.gmra.mrb[0].mxu0 %v2496
  %v2787 = vpop.f32.mrb[0].mxu0
  %v2788 = vadd.f32 %v2628, %v2787
  %v2789 = vpop.f32.mrb[0].mxu0
  %v2790 = vpop.f32.mrb[0].mxu0
  %v2791 = vadd.f32 %v2631, %v2790
  %v2792 = vpop.f32.mrb[0].mxu0
  %2793 = vmatprep.mubr.bf16.mxu0 0
  %2794 = vmatmul.mubr.bf16.gmra.mrb[0].mxu0 %v2499
  %v2795 = vpop.f32.mrb[0].mxu0
  %v2796 = vadd.f32 %v2636, %v2795
  %v2797 = vpop.f32.mrb[0].mxu0
  %v2798 = vpop.f32.mrb[0].mxu0
  %v2799 = vadd.f32 %v2639, %v2798
  %v2800 = vpop.f32.mrb[0].mxu0
  %2801 = vmatprep.mubr.bf16.mxu0 0
  %2802 = vmatmul.mubr.bf16.gmra.mrb[0].mxu0 %v2502
  %v2803 = vpop.f32.mrb[0].mxu0
  %v2804 = vadd.f32 %v2644, %v2803
  %v2805 = vpop.f32.mrb[0].mxu0
  %v2806 = vpop.f32.mrb[0].mxu0
  %v2807 = vadd.f32 %v2647, %v2806
  %v2808 = vpop.f32.mrb[0].mxu0
  %2809 = vmatprep.mubr.bf16.mxu0 0
  %2810 = vmatmul.mubr.bf16.gmra.mrb[0].mxu0 %v2505
  %v2811 = vpop.f32.mrb[0].mxu0
  %v2812 = vadd.f32 %v2652, %v2811
  %v2813 = vpop.f32.mrb[0].mxu0
  %v2814 = vpop.f32.mrb[0].mxu0
  %v2815 = vadd.f32 %v2655, %v2814
  %v2816 = vpop.f32.mrb[0].mxu0
  %2817 = vmatprep.mubr.bf16.mxu0 0
  %2818 = vmatmul.mubr.bf16.gmra.mrb[0].mxu0 %v2508
  %v2819 = vpop.f32.mrb[0].mxu0
  %v2820 = vadd.f32 %v2660, %v2819
  %v2821 = vpop.f32.mrb[0].mxu0
  %v2822 = vpop.f32.mrb[0].mxu0
  %v2823 = vadd.f32 %v2663, %v2822
  %v2824 = vpop.f32.mrb[0].mxu0
  %2825 = vmatprep.mubr.bf16.mxu0 0
  %2826 = vmatmul.mubr.bf16.gmra.mrb[0].mxu0 %v2511
  %v2827 = vpop.f32.mrb[0].mxu0
  %v2828 = vadd.f32 %v2668, %v2827
  %v2829 = vpop.f32.mrb[0].mxu0
  %v2830 = vpop.f32.mrb[0].mxu0
  %v2831 = vpop.f32.mrb[0].mxu0
  %2832 = vdwg.mxu0
  %s2833 = scalar_lea.vmem %s2, 96
  %v2834 = vld [vmem:[%s2833] sm:$0xff]
  %v2835 = vld [vmem:[%s2833 + $0x8] sm:$0xff]
  %v2836 = vld [vmem:[%s2833 + $0x10] sm:$0xff]
  %v2837 = vld [vmem:[%s2833 + $0x18] sm:$0xff]
  %v2838 = vld [vmem:[%s2833 + $0x20] sm:$0xff]
  %v2839 = vld [vmem:[%s2833 + $0x28] sm:$0xff]
  %v2841 = vsel %vm1540, %v2708, 0
  %v2844 = vsel %vm1540, %v2711, 0
  %v2847 = vsel %vm1540, %v2716, 0
  %v2850 = vsel %vm1540, %v2719, 0
  %v2853 = vsel %vm1540, %v2724, 0
  %v2856 = vsel %vm1540, %v2727, 0
  %v2859 = vsel %vm1540, %v2732, 0
  %v2862 = vsel %vm1540, %v2735, 0
  %v2865 = vsel %vm1540, %v2740, 0
  %v2868 = vsel %vm1540, %v2743, 0
  %v2871 = vsel %vm1540, %v2748, 0
  %v2874 = vsel %vm1540, %v2751, 0
  %v2877 = vsel %vm1540, %v2756, 0
  %v2880 = vsel %vm1540, %v2759, 0
  %v2883 = vsel %vm1540, %v2764, 0
  %v2886 = vsel %vm1540, %v2767, 0
  %v2889 = vsel %vm1540, %v2772, 0
  %v2892 = vsel %vm1540, %v2775, 0
  %v2895 = vsel %vm1540, %v2780, 0
  %v2898 = vsel %vm1540, %v2783, 0
  %v2901 = vsel %vm1540, %v2788, 0
  %v2904 = vsel %vm1540, %v2791, 0
  %v2907 = vsel %vm1540, %v2796, 0
  %v2910 = vsel %vm1540, %v2799, 0
  %v2913 = vsel %vm1540, %v2804, 0
  %v2916 = vsel %vm1540, %v2807, 0
  %v2919 = vsel %vm1540, %v2812, 0
  %v2922 = vsel %vm1540, %v2815, 0
  %v2925 = vsel %vm1540, %v2820, 0
  %v2928 = vsel %vm1540, %v2823, 0
  %v2931 = vsel %vm1540, %v2828, 0
  %2933 = vmatprep.subr.mxu0 0.0
  %2934 = vmatpush1.msra.mxu0 %v2834
  %2935 = vmatprep.subr.mxu0 0.0
  %2936 = vmatpush1.msra.mxu0 %v2835
  %2937 = vmatprep.subr.mxu0 0.0
  %2938 = vmatpush1.msra.mxu0 %v2836
  %2939 = vmatprep.subr.mxu0 0.0
  %2940 = vmatpush1.msra.mxu0 %v2837
  %2941 = vmatprep.subr.mxu0 0.0
  %2942 = vmatpush1.msra.mxu0 %v2838
  %2943 = vmatprep.subr.mxu0 0.0
  %2944 = vmatpush1.msra.mxu0 %v2839
  %2945 = vmatprep.subr.mxu0 0.0
  %2946 = vmatpush1.msra.mxu0 0.0
  %2947 = vmatprep.subr.mxu0 0.0
  %2948 = vmatpush1.msra.mxu0 0.0
  %2949 = vmatprep.subr.mxu0 0.0
  %2950 = vmatpush1.msra.mxu0 0.0
  %2951 = vmatprep.subr.mxu0 0.0
  %2952 = vmatpush1.msra.mxu0 0.0
  %2953 = vmatprep.subr.mxu0 0.0
  %2954 = vmatpush1.msra.mxu0 0.0
  %2955 = vmatprep.subr.mxu0 0.0
  %2956 = vmatpush1.msra.mxu0 0.0
  %2957 = vmatprep.subr.mxu0 0.0
  %2958 = vmatpush1.msra.mxu0 0.0
  %2959 = vmatprep.subr.mxu0 0.0
  %2960 = vmatpush1.msra.mxu0 0.0
  %2961 = vmatprep.subr.mxu0 0.0
  %2962 = vmatpush1.msra.mxu0 0.0
  %2963 = vmatprep.subr.mxu0 0.0
  %2964 = vmatpush1.msra.mxu0 0.0
  %2965 = vmatprep.subr.mxu0 0.0
  %2966 = vmatpush1.msra.mxu0 0.0
  %2967 = vmatprep.subr.mxu0 0.0
  %2968 = vmatpush1.msra.mxu0 0.0
  %2969 = vmatprep.subr.mxu0 0.0
  %2970 = vmatpush1.msra.mxu0 0.0
  %2971 = vmatprep.subr.mxu0 0.0
  %2972 = vmatpush1.msra.mxu0 0.0
  %2973 = vmatprep.subr.mxu0 0.0
  %2974 = vmatpush1.msra.mxu0 0.0
  %2975 = vmatprep.subr.mxu0 0.0
  %2976 = vmatpush1.msra.mxu0 0.0
  %2977 = vmatprep.subr.mxu0 0.0
  %2978 = vmatpush1.msra.mxu0 0.0
  %2979 = vmatprep.subr.mxu0 0.0
  %2980 = vmatpush1.msra.mxu0 0.0
  %2981 = vmatprep.subr.mxu0 0.0
  %2982 = vmatpush1.msra.mxu0 0.0
  %2983 = vmatprep.subr.mxu0 0.0
  %2984 = vmatpush1.msra.mxu0 0.0
  %2985 = vmatprep.subr.mxu0 0.0
  %2986 = vmatpush1.msra.mxu0 0.0
  %2987 = vmatprep.subr.mxu0 0.0
  %2988 = vmatpush1.msra.mxu0 0.0
  %2989 = vmatprep.subr.mxu0 0.0
  %2990 = vmatpush1.msra.mxu0 0.0
  %2991 = vmatprep.subr.mxu0 0.0
  %2992 = vmatpush1.msra.mxu0 0.0
  %2993 = vmatprep.subr.mxu0 0.0
  %2994 = vmatpush1.msra.mxu0 0.0
  %2995 = vmatprep.subr.mxu0 0.0
  %2996 = vmatpush1.msra.mxu0 0.0
  %2997 = vmatprep.mubr.f32.mxu0 0.0
  %2998 = vmatmul.mubr.f32.gmra.mrb[0].mxu0 %v2841
  %v2999 = vpop.f32.mrb[0].mxu0
  %v3000 = vadd.f32 0.0, %v2999
  %v3001 = vpop.f32.mrb[0].mxu0
  %3002 = vmatprep.mubr.f32.mxu0 0.0
  %3003 = vmatmul.mubr.f32.gmra.mrb[0].mxu0 %v2844
  %v3004 = vpop.f32.mrb[0].mxu0
  %v3005 = vadd.f32 0.0, %v3004
  %v3006 = vpop.f32.mrb[0].mxu0
  %3007 = vmatprep.mubr.f32.mxu0 0.0
  %3008 = vmatmul.mubr.f32.gmra.mrb[0].mxu0 %v2847
  %v3009 = vpop.f32.mrb[0].mxu0
  %v3010 = vadd.f32 0.0, %v3009
  %v3011 = vpop.f32.mrb[0].mxu0
  %3012 = vmatprep.mubr.f32.mxu0 0.0
  %3013 = vmatmul.mubr.f32.gmra.mrb[0].mxu0 %v2850
  %v3014 = vpop.f32.mrb[0].mxu0
  %v3015 = vadd.f32 0.0, %v3014
  %v3016 = vpop.f32.mrb[0].mxu0
  %3017 = vmatprep.mubr.f32.mxu0 0.0
  %3018 = vmatmul.mubr.f32.gmra.mrb[0].mxu0 %v2853
  %v3019 = vpop.f32.mrb[0].mxu0
  %v3020 = vadd.f32 0.0, %v3019
  %v3021 = vpop.f32.mrb[0].mxu0
  %3022 = vmatprep.mubr.f32.mxu0 0.0
  %3023 = vmatmul.mubr.f32.gmra.mrb[0].mxu0 %v2856
  %v3024 = vpop.f32.mrb[0].mxu0
  %v3025 = vadd.f32 0.0, %v3024
  %v3026 = vpop.f32.mrb[0].mxu0
  %3027 = vmatprep.mubr.f32.mxu0 0.0
  %3028 = vmatmul.mubr.f32.gmra.mrb[0].mxu0 %v2859
  %v3029 = vpop.f32.mrb[0].mxu0
  %v3030 = vadd.f32 0.0, %v3029
  %v3031 = vpop.f32.mrb[0].mxu0
  %3032 = vmatprep.mubr.f32.mxu0 0.0
  %3033 = vmatmul.mubr.f32.gmra.mrb[0].mxu0 %v2862
  %v3034 = vpop.f32.mrb[0].mxu0
  %v3035 = vadd.f32 0.0, %v3034
  %v3036 = vpop.f32.mrb[0].mxu0
  %3037 = vmatprep.mubr.f32.mxu0 0.0
  %3038 = vmatmul.mubr.f32.gmra.mrb[0].mxu0 %v2865
  %v3039 = vpop.f32.mrb[0].mxu0
  %v3040 = vadd.f32 0.0, %v3039
  %v3041 = vpop.f32.mrb[0].mxu0
  %3042 = vmatprep.mubr.f32.mxu0 0.0
  %3043 = vmatmul.mubr.f32.gmra.mrb[0].mxu0 %v2868
  %v3044 = vpop.f32.mrb[0].mxu0
  %v3045 = vadd.f32 0.0, %v3044
  %v3046 = vpop.f32.mrb[0].mxu0
  %3047 = vmatprep.mubr.f32.mxu0 0.0
  %3048 = vmatmul.mubr.f32.gmra.mrb[0].mxu0 %v2871
  %v3049 = vpop.f32.mrb[0].mxu0
  %v3050 = vadd.f32 0.0, %v3049
  %v3051 = vpop.f32.mrb[0].mxu0
  %3052 = vmatprep.mubr.f32.mxu0 0.0
  %3053 = vmatmul.mubr.f32.gmra.mrb[0].mxu0 %v2874
  %v3054 = vpop.f32.mrb[0].mxu0
  %v3055 = vadd.f32 0.0, %v3054
  %v3056 = vpop.f32.mrb[0].mxu0
  %3057 = vmatprep.mubr.f32.mxu0 0.0
  %3058 = vmatmul.mubr.f32.gmra.mrb[0].mxu0 %v2877
  %v3059 = vpop.f32.mrb[0].mxu0
  %v3060 = vadd.f32 0.0, %v3059
  %v3061 = vpop.f32.mrb[0].mxu0
  %3062 = vmatprep.mubr.f32.mxu0 0.0
  %3063 = vmatmul.mubr.f32.gmra.mrb[0].mxu0 %v2880
  %v3064 = vpop.f32.mrb[0].mxu0
  %v3065 = vadd.f32 0.0, %v3064
  %v3066 = vpop.f32.mrb[0].mxu0
  %3067 = vmatprep.mubr.f32.mxu0 0.0
  %3068 = vmatmul.mubr.f32.gmra.mrb[0].mxu0 %v2883
  %v3069 = vpop.f32.mrb[0].mxu0
  %v3070 = vadd.f32 0.0, %v3069
  %v3071 = vpop.f32.mrb[0].mxu0
  %3072 = vmatprep.mubr.f32.mxu0 0.0
  %3073 = vmatmul.mubr.f32.gmra.mrb[0].mxu0 %v2886
  %v3074 = vpop.f32.mrb[0].mxu0
  %v3075 = vadd.f32 0.0, %v3074
  %v3076 = vpop.f32.mrb[0].mxu0
  %3077 = vmatprep.mubr.f32.mxu0 0.0
  %3078 = vmatmul.mubr.f32.gmra.mrb[0].mxu0 %v2889
  %v3079 = vpop.f32.mrb[0].mxu0
  %v3080 = vadd.f32 0.0, %v3079
  %v3081 = vpop.f32.mrb[0].mxu0
  %3082 = vmatprep.mubr.f32.mxu0 0.0
  %3083 = vmatmul.mubr.f32.gmra.mrb[0].mxu0 %v2892
  %v3084 = vpop.f32.mrb[0].mxu0
  %v3085 = vadd.f32 0.0, %v3084
  %v3086 = vpop.f32.mrb[0].mxu0
  %3087 = vmatprep.mubr.f32.mxu0 0.0
  %3088 = vmatmul.mubr.f32.gmra.mrb[0].mxu0 %v2895
  %v3089 = vpop.f32.mrb[0].mxu0
  %v3090 = vadd.f32 0.0, %v3089
  %v3091 = vpop.f32.mrb[0].mxu0
  %3092 = vmatprep.mubr.f32.mxu0 0.0
  %3093 = vmatmul.mubr.f32.gmra.mrb[0].mxu0 %v2898
  %v3094 = vpop.f32.mrb[0].mxu0
  %v3095 = vadd.f32 0.0, %v3094
  %v3096 = vpop.f32.mrb[0].mxu0
  %3097 = vmatprep.mubr.f32.mxu0 0.0
  %3098 = vmatmul.mubr.f32.gmra.mrb[0].mxu0 %v2901
  %v3099 = vpop.f32.mrb[0].mxu0
  %v3100 = vadd.f32 0.0, %v3099
  %v3101 = vpop.f32.mrb[0].mxu0
  %3102 = vmatprep.mubr.f32.mxu0 0.0
  %3103 = vmatmul.mubr.f32.gmra.mrb[0].mxu0 %v2904
  %v3104 = vpop.f32.mrb[0].mxu0
  %v3105 = vadd.f32 0.0, %v3104
  %v3106 = vpop.f32.mrb[0].mxu0
  %3107 = vmatprep.mubr.f32.mxu0 0.0
  %3108 = vmatmul.mubr.f32.gmra.mrb[0].mxu0 %v2907
  %v3109 = vpop.f32.mrb[0].mxu0
  %v3110 = vadd.f32 0.0, %v3109
  %v3111 = vpop.f32.mrb[0].mxu0
  %3112 = vmatprep.mubr.f32.mxu0 0.0
  %3113 = vmatmul.mubr.f32.gmra.mrb[0].mxu0 %v2910
  %v3114 = vpop.f32.mrb[0].mxu0
  %v3115 = vadd.f32 0.0, %v3114
  %v3116 = vpop.f32.mrb[0].mxu0
  %3117 = vmatprep.mubr.f32.mxu0 0.0
  %3118 = vmatmul.mubr.f32.gmra.mrb[0].mxu0 %v2913
  %v3119 = vpop.f32.mrb[0].mxu0
  %v3120 = vadd.f32 0.0, %v3119
  %v3121 = vpop.f32.mrb[0].mxu0
  %3122 = vmatprep.mubr.f32.mxu0 0.0
  %3123 = vmatmul.mubr.f32.gmra.mrb[0].mxu0 %v2916
  %v3124 = vpop.f32.mrb[0].mxu0
  %v3125 = vadd.f32 0.0, %v3124
  %v3126 = vpop.f32.mrb[0].mxu0
  %3127 = vmatprep.mubr.f32.mxu0 0.0
  %3128 = vmatmul.mubr.f32.gmra.mrb[0].mxu0 %v2919
  %v3129 = vpop.f32.mrb[0].mxu0
  %v3130 = vadd.f32 0.0, %v3129
  %v3131 = vpop.f32.mrb[0].mxu0
  %3132 = vmatprep.mubr.f32.mxu0 0.0
  %3133 = vmatmul.mubr.f32.gmra.mrb[0].mxu0 %v2922
  %v3134 = vpop.f32.mrb[0].mxu0
  %v3135 = vadd.f32 0.0, %v3134
  %v3136 = vpop.f32.mrb[0].mxu0
  %3137 = vmatprep.mubr.f32.mxu0 0.0
  %3138 = vmatmul.mubr.f32.gmra.mrb[0].mxu0 %v2925
  %v3139 = vpop.f32.mrb[0].mxu0
  %v3140 = vadd.f32 0.0, %v3139
  %v3141 = vpop.f32.mrb[0].mxu0
  %3142 = vmatprep.mubr.f32.mxu0 0.0
  %3143 = vmatmul.mubr.f32.gmra.mrb[0].mxu0 %v2928
  %v3144 = vpop.f32.mrb[0].mxu0
  %v3145 = vadd.f32 0.0, %v3144
  %v3146 = vpop.f32.mrb[0].mxu0
  %3147 = vmatprep.mubr.f32.mxu0 0.0
  %3148 = vmatmul.mubr.f32.gmra.mrb[0].mxu0 %v2931
  %v3149 = vpop.f32.mrb[0].mxu0
  %v3150 = vadd.f32 0.0, %v3149
  %v3151 = vpop.f32.mrb[0].mxu0
  %3152 = vdwg.mxu0
  %v3153 = vadd.f32 %v2014, %v3000
  %v3154 = vadd.f32 %v2019, %v3005
  %v3155 = vadd.f32 %v2024, %v3010
  %v3156 = vadd.f32 %v2029, %v3015
  %v3157 = vadd.f32 %v2034, %v3020
  %v3158 = vadd.f32 %v2039, %v3025
  %v3159 = vadd.f32 %v2044, %v3030
  %v3160 = vadd.f32 %v2049, %v3035
  %v3161 = vadd.f32 %v2054, %v3040
  %v3162 = vadd.f32 %v2059, %v3045
  %v3163 = vadd.f32 %v2064, %v3050
  %v3164 = vadd.f32 %v2069, %v3055
  %v3165 = vadd.f32 %v2074, %v3060
  %v3166 = vadd.f32 %v2079, %v3065
  %v3167 = vadd.f32 %v2084, %v3070
  %v3168 = vadd.f32 %v2089, %v3075
  %v3169 = vadd.f32 %v2094, %v3080
  %v3170 = vadd.f32 %v2099, %v3085
  %v3171 = vadd.f32 %v2104, %v3090
  %v3172 = vadd.f32 %v2109, %v3095
  %v3173 = vadd.f32 %v2114, %v3100
  %v3174 = vadd.f32 %v2119, %v3105
  %v3175 = vadd.f32 %v2124, %v3110
  %v3176 = vadd.f32 %v2129, %v3115
  %v3177 = vadd.f32 %v2134, %v3120
  %v3178 = vadd.f32 %v2139, %v3125
  %v3179 = vadd.f32 %v2144, %v3130
  %v3180 = vadd.f32 %v2149, %v3135
  %v3181 = vadd.f32 %v2154, %v3140
  %v3182 = vadd.f32 %v2159, %v3145
  %v3183 = vadd.f32 %v2164, %v3150
  %s3184 = scalar_lea.vmem %s1, 1116
  %v3185 = vld [vmem:[%s3184] sm:$0xff]
  %v3186 = vld [vmem:[%s3184 + $0x8] sm:$0xf]
  %v3187 = vld [vmem:[%s3184 + $0xc] sm:$0xff]
  %v3188 = vld [vmem:[%s3184 + $0x14] sm:$0xf]
  %v3189 = vld [vmem:[%s3184 + $0x18] sm:$0xff]
  %v3190 = vld [vmem:[%s3184 + $0x20] sm:$0xf]
  %v3191 = vld [vmem:[%s3184 + $0x24] sm:$0xff]
  %v3192 = vld [vmem:[%s3184 + $0x2c] sm:$0xf]
  %v3193 = vld [vmem:[%s3184 + $0x30] sm:$0xff]
  %v3194 = vld [vmem:[%s3184 + $0x38] sm:$0xf]
  %v3195 = vld [vmem:[%s3184 + $0x3c] sm:$0xff]
  %v3196 = vld [vmem:[%s3184 + $0x44] sm:$0xf]
  %v3197 = vld [vmem:[%s3184 + $0x48] sm:$0xff]
  %v3198 = vld [vmem:[%s3184 + $0x50] sm:$0xf]
  %v3199 = vld [vmem:[%s3184 + $0x54] sm:$0xff]
  %v3200 = vld [vmem:[%s3184 + $0x5c] sm:$0xf]
  %v3201 = vld [vmem:[%s3184 + $0x60] sm:$0xff]
  %v3202 = vld [vmem:[%s3184 + $0x68] sm:$0xf]
  %v3203 = vld [vmem:[%s3184 + $0x6c] sm:$0xff]
  %v3204 = vld [vmem:[%s3184 + $0x74] sm:$0xf]
  %v3205 = vld [vmem:[%s3184 + $0x78] sm:$0xff]
  %v3206 = vld [vmem:[%s3184 + $0x80] sm:$0xf]
  %v3207 = vld [vmem:[%s3184 + $0x84] sm:$0xff]
  %v3208 = vld [vmem:[%s3184 + $0x8c] sm:$0xf]
  %v3209 = vld [vmem:[%s3184 + $0x90] sm:$0xff]
  %v3210 = vld [vmem:[%s3184 + $0x98] sm:$0xf]
  %v3211 = vld [vmem:[%s3184 + $0x9c] sm:$0xff]
  %v3212 = vld [vmem:[%s3184 + $0xa4] sm:$0xf]
  %v3213 = vld [vmem:[%s3184 + $0xa8] sm:$0xff]
  %v3214 = vld [vmem:[%s3184 + $0xb0] sm:$0xf]
  %v3215 = vld [vmem:[%s3184 + $0xb4] sm:$0xff]
  %v3216 = vld [vmem:[%s3184 + $0xbc] sm:$0xf]
  %v3217 = vld [vmem:[%s3184 + $0xc0] sm:$0xff]
  %v3218 = vld [vmem:[%s3184 + $0xc8] sm:$0xf]
  %v3219 = vld [vmem:[%s3184 + $0xcc] sm:$0xff]
  %v3220 = vld [vmem:[%s3184 + $0xd4] sm:$0xf]
  %v3221 = vld [vmem:[%s3184 + $0xd8] sm:$0xff]
  %v3222 = vld [vmem:[%s3184 + $0xe0] sm:$0xf]
  %v3223 = vld [vmem:[%s3184 + $0xe4] sm:$0xff]
  %v3224 = vld [vmem:[%s3184 + $0xec] sm:$0xf]
  %v3225 = vld [vmem:[%s3184 + $0xf0] sm:$0xff]
  %v3226 = vld [vmem:[%s3184 + $0xf8] sm:$0xf]
  %v3227 = vld [vmem:[%s3184 + $0xfc] sm:$0xff]
  %v3228 = vld [vmem:[%s3184 + $0x104] sm:$0xf]
  %v3229 = vld [vmem:[%s3184 + $0x108] sm:$0xff]
  %v3230 = vld [vmem:[%s3184 + $0x110] sm:$0xf]
  %v3231 = vld [vmem:[%s3184 + $0x114] sm:$0xff]
  %v3232 = vld [vmem:[%s3184 + $0x11c] sm:$0xf]
  %v3233 = vld [vmem:[%s3184 + $0x120] sm:$0xff]
  %v3234 = vld [vmem:[%s3184 + $0x128] sm:$0xf]
  %v3235 = vld [vmem:[%s3184 + $0x12c] sm:$0xff]
  %v3236 = vld [vmem:[%s3184 + $0x134] sm:$0xf]
  %v3237 = vld [vmem:[%s3184 + $0x138] sm:$0xff]
  %v3238 = vld [vmem:[%s3184 + $0x140] sm:$0xf]
  %v3239 = vld [vmem:[%s3184 + $0x144] sm:$0xff]
  %v3240 = vld [vmem:[%s3184 + $0x14c] sm:$0xf]
  %v3241 = vld [vmem:[%s3184 + $0x150] sm:$0xff]
  %v3242 = vld [vmem:[%s3184 + $0x158] sm:$0xf]
  %v3243 = vld [vmem:[%s3184 + $0x15c] sm:$0xff]
  %v3244 = vld [vmem:[%s3184 + $0x164] sm:$0xf]
  %v3245 = vld [vmem:[%s3184 + $0x168] sm:$0xff]
  %v3246 = vld [vmem:[%s3184 + $0x170] sm:$0xf]
  %v3309 = vunpack.c.l.b16 %v3185
  %v3310 = vunpack.c.h.b16 %v3185
  %v3311 = vunpack.c.l.b16 %v3186
  %v3312 = vunpack.c.l.b16 %v3187
  %v3313 = vunpack.c.h.b16 %v3187
  %v3314 = vunpack.c.l.b16 %v3188
  %v3315 = vunpack.c.l.b16 %v3189
  %v3316 = vunpack.c.h.b16 %v3189
  %v3317 = vunpack.c.l.b16 %v3190
  %v3318 = vunpack.c.l.b16 %v3191
  %v3319 = vunpack.c.h.b16 %v3191
  %v3320 = vunpack.c.l.b16 %v3192
  %v3321 = vunpack.c.l.b16 %v3193
  %v3322 = vunpack.c.h.b16 %v3193
  %v3323 = vunpack.c.l.b16 %v3194
  %v3324 = vunpack.c.l.b16 %v3195
  %v3325 = vunpack.c.h.b16 %v3195
  %v3326 = vunpack.c.l.b16 %v3196
  %v3327 = vunpack.c.l.b16 %v3197
  %v3328 = vunpack.c.h.b16 %v3197
  %v3329 = vunpack.c.l.b16 %v3198
  %v3330 = vunpack.c.l.b16 %v3199
  %v3331 = vunpack.c.h.b16 %v3199
  %v3332 = vunpack.c.l.b16 %v3200
  %v3333 = vunpack.c.l.b16 %v3201
  %v3334 = vunpack.c.h.b16 %v3201
  %v3335 = vunpack.c.l.b16 %v3202
  %v3336 = vunpack.c.l.b16 %v3203
  %v3337 = vunpack.c.h.b16 %v3203
  %v3338 = vunpack.c.l.b16 %v3204
  %v3339 = vunpack.c.l.b16 %v3205
  %v3340 = vunpack.c.h.b16 %v3205
  %v3341 = vunpack.c.l.b16 %v3206
  %v3342 = vunpack.c.l.b16 %v3207
  %v3343 = vunpack.c.h.b16 %v3207
  %v3344 = vunpack.c.l.b16 %v3208
  %v3345 = vunpack.c.l.b16 %v3209
  %v3346 = vunpack.c.h.b16 %v3209
  %v3347 = vunpack.c.l.b16 %v3210
  %v3348 = vunpack.c.l.b16 %v3211
  %v3349 = vunpack.c.h.b16 %v3211
  %v3350 = vunpack.c.l.b16 %v3212
  %v3351 = vunpack.c.l.b16 %v3213
  %v3352 = vunpack.c.h.b16 %v3213
  %v3353 = vunpack.c.l.b16 %v3214
  %v3354 = vunpack.c.l.b16 %v3215
  %v3355 = vunpack.c.h.b16 %v3215
  %v3356 = vunpack.c.l.b16 %v3216
  %v3357 = vunpack.c.l.b16 %v3217
  %v3358 = vunpack.c.h.b16 %v3217
  %v3359 = vunpack.c.l.b16 %v3218
  %v3360 = vunpack.c.l.b16 %v3219
  %v3361 = vunpack.c.h.b16 %v3219
  %v3362 = vunpack.c.l.b16 %v3220
  %v3363 = vunpack.c.l.b16 %v3221
  %v3364 = vunpack.c.h.b16 %v3221
  %v3365 = vunpack.c.l.b16 %v3222
  %v3366 = vunpack.c.l.b16 %v3223
  %v3367 = vunpack.c.h.b16 %v3223
  %v3368 = vunpack.c.l.b16 %v3224
  %v3369 = vunpack.c.l.b16 %v3225
  %v3370 = vunpack.c.h.b16 %v3225
  %v3371 = vunpack.c.l.b16 %v3226
  %v3372 = vunpack.c.l.b16 %v3227
  %v3373 = vunpack.c.h.b16 %v3227
  %v3374 = vunpack.c.l.b16 %v3228
  %v3375 = vunpack.c.l.b16 %v3229
  %v3376 = vunpack.c.h.b16 %v3229
  %v3377 = vunpack.c.l.b16 %v3230
  %v3378 = vunpack.c.l.b16 %v3231
  %v3379 = vunpack.c.h.b16 %v3231
  %v3380 = vunpack.c.l.b16 %v3232
  %v3381 = vunpack.c.l.b16 %v3233
  %v3382 = vunpack.c.h.b16 %v3233
  %v3383 = vunpack.c.l.b16 %v3234
  %v3384 = vunpack.c.l.b16 %v3235
  %v3385 = vunpack.c.h.b16 %v3235
  %v3386 = vunpack.c.l.b16 %v3236
  %v3387 = vunpack.c.l.b16 %v3237
  %v3388 = vunpack.c.h.b16 %v3237
  %v3389 = vunpack.c.l.b16 %v3238
  %v3390 = vunpack.c.l.b16 %v3239
  %v3391 = vunpack.c.h.b16 %v3239
  %v3392 = vunpack.c.l.b16 %v3240
  %v3393 = vunpack.c.l.b16 %v3241
  %v3394 = vunpack.c.h.b16 %v3241
  %v3395 = vunpack.c.l.b16 %v3242
  %v3396 = vunpack.c.l.b16 %v3243
  %v3397 = vunpack.c.h.b16 %v3243
  %v3398 = vunpack.c.l.b16 %v3244
  %v3399 = vunpack.c.l.b16 %v3245
  %v3400 = vunpack.c.h.b16 %v3245
  %v3401 = vunpack.c.l.b16 %v3246
  %v3402 = vpack.c.b16 %v3312, %v3309
  %v3403 = vpack.c.b16 %v3313, %v3310
  %v3404 = vpack.c.b16 %v3314, %v3311
  %v3405 = vpack.c.b16 %v3318, %v3315
  %v3406 = vpack.c.b16 %v3319, %v3316
  %v3407 = vpack.c.b16 %v3320, %v3317
  %v3408 = vpack.c.b16 %v3324, %v3321
  %v3409 = vpack.c.b16 %v3325, %v3322
  %v3410 = vpack.c.b16 %v3326, %v3323
  %v3411 = vpack.c.b16 %v3330, %v3327
  %v3412 = vpack.c.b16 %v3331, %v3328
  %v3413 = vpack.c.b16 %v3332, %v3329
  %v3414 = vpack.c.b16 %v3336, %v3333
  %v3415 = vpack.c.b16 %v3337, %v3334
  %v3416 = vpack.c.b16 %v3338, %v3335
  %v3417 = vpack.c.b16 %v3342, %v3339
  %v3418 = vpack.c.b16 %v3343, %v3340
  %v3419 = vpack.c.b16 %v3344, %v3341
  %v3420 = vpack.c.b16 %v3348, %v3345
  %v3421 = vpack.c.b16 %v3349, %v3346
  %v3422 = vpack.c.b16 %v3350, %v3347
  %v3423 = vpack.c.b16 %v3354, %v3351
  %v3424 = vpack.c.b16 %v3355, %v3352
  %v3425 = vpack.c.b16 %v3356, %v3353
  %v3426 = vpack.c.b16 %v3360, %v3357
  %v3427 = vpack.c.b16 %v3361, %v3358
  %v3428 = vpack.c.b16 %v3362, %v3359
  %v3429 = vpack.c.b16 %v3366, %v3363
  %v3430 = vpack.c.b16 %v3367, %v3364
  %v3431 = vpack.c.b16 %v3368, %v3365
  %v3432 = vpack.c.b16 %v3372, %v3369
  %v3433 = vpack.c.b16 %v3373, %v3370
  %v3434 = vpack.c.b16 %v3374, %v3371
  %v3435 = vpack.c.b16 %v3378, %v3375
  %v3436 = vpack.c.b16 %v3379, %v3376
  %v3437 = vpack.c.b16 %v3380, %v3377
  %v3438 = vpack.c.b16 %v3384, %v3381
  %v3439 = vpack.c.b16 %v3385, %v3382
  %v3440 = vpack.c.b16 %v3386, %v3383
  %v3441 = vpack.c.b16 %v3390, %v3387
  %v3442 = vpack.c.b16 %v3391, %v3388
  %v3443 = vpack.c.b16 %v3392, %v3389
  %v3444 = vpack.c.b16 %v3396, %v3393
  %v3445 = vpack.c.b16 %v3397, %v3394
  %v3446 = vpack.c.b16 %v3398, %v3395
  %v3447 = vpack.c.b16 %v3399, %v3399
  %v3448 = vpack.c.b16 %v3400, %v3400
  %v3449 = vpack.c.b16 %v3401, %v3401
  %v3483 = vsel %vm492, %v3404, 0
  %v3486 = vsel %vm492, %v3407, 0
  %v3489 = vsel %vm492, %v3410, 0
  %v3492 = vsel %vm492, %v3413, 0
  %v3495 = vsel %vm492, %v3416, 0
  %v3498 = vsel %vm492, %v3419, 0
  %v3501 = vsel %vm492, %v3422, 0
  %v3504 = vsel %vm492, %v3425, 0
  %v3507 = vsel %vm492, %v3428, 0
  %v3510 = vsel %vm492, %v3431, 0
  %v3513 = vsel %vm492, %v3434, 0
  %v3516 = vsel %vm492, %v3437, 0
  %v3519 = vsel %vm492, %v3440, 0
  %v3522 = vsel %vm492, %v3443, 0
  %v3525 = vsel %vm492, %v3446, 0
  %v3528 = vsel %vm492, %v3449, 0
  %3530 = vmatprep.subr.bf16.mxu0 0
  %3531 = vmatpush1.bf16.msra.mxu0 %v456
  %3532 = vmatprep.subr.bf16.mxu0 0
  %3533 = vmatpush1.bf16.msra.mxu0 %v457
  %3534 = vmatprep.subr.bf16.mxu0 0
  %3535 = vmatpush1.bf16.msra.mxu0 %v458
  %3536 = vmatprep.subr.bf16.mxu0 0
  %3537 = vmatpush1.bf16.msra.mxu0 %v459
  %3538 = vmatprep.subr.bf16.mxu0 0
  %3539 = vmatpush1.bf16.msra.mxu0 %v460
  %3540 = vmatprep.subr.bf16.mxu0 0
  %3541 = vmatpush1.bf16.msra.mxu0 %v461
  %3542 = vmatprep.subr.bf16.mxu0 0
  %3543 = vmatpush1.bf16.msra.mxu0 %v462
  %3544 = vmatprep.subr.bf16.mxu0 0
  %3545 = vmatpush1.bf16.msra.mxu0 %v463
  %3546 = vmatprep.subr.bf16.mxu0 0
  %3547 = vmatpush1.bf16.msra.mxu0 %v464
  %3548 = vmatprep.subr.bf16.mxu0 0
  %3549 = vmatpush1.bf16.msra.mxu0 %v465
  %3550 = vmatprep.subr.bf16.mxu0 0
  %3551 = vmatpush1.bf16.msra.mxu0 %v466
  %3552 = vmatprep.subr.bf16.mxu0 0
  %3553 = vmatpush1.bf16.msra.mxu0 %v467
  %3554 = vmatprep.subr.bf16.mxu0 0
  %3555 = vmatpush1.bf16.msra.mxu0 %v468
  %3556 = vmatprep.subr.bf16.mxu0 0
  %3557 = vmatpush1.bf16.msra.mxu0 %v469
  %3558 = vmatprep.subr.bf16.mxu0 0
  %3559 = vmatpush1.bf16.msra.mxu0 %v470
  %3560 = vmatprep.subr.bf16.mxu0 0
  %3561 = vmatpush1.bf16.msra.mxu0 %v471
  %3562 = vmatprep.mubr.bf16.mxu0 %v3403
  %3563 = vmatmul.mubr.bf16.gmra.mrb[0].mxu0 %v3402
  %v3564 = vpop.f32.mrb[0].mxu0
  %v3565 = vadd.f32 0.0, %v3564
  %v3566 = vpop.f32.mrb[0].mxu0
  %v3567 = vpop.f32.mrb[0].mxu0
  %v3568 = vadd.f32 0.0, %v3567
  %v3569 = vpop.f32.mrb[0].mxu0
  %3570 = vmatprep.mubr.bf16.mxu0 %v3406
  %3571 = vmatmul.mubr.bf16.gmra.mrb[0].mxu0 %v3405
  %v3572 = vpop.f32.mrb[0].mxu0
  %v3573 = vadd.f32 0.0, %v3572
  %v3574 = vpop.f32.mrb[0].mxu0
  %v3575 = vpop.f32.mrb[0].mxu0
  %v3576 = vadd.f32 0.0, %v3575
  %v3577 = vpop.f32.mrb[0].mxu0
  %3578 = vmatprep.mubr.bf16.mxu0 %v3409
  %3579 = vmatmul.mubr.bf16.gmra.mrb[0].mxu0 %v3408
  %v3580 = vpop.f32.mrb[0].mxu0
  %v3581 = vadd.f32 0.0, %v3580
  %v3582 = vpop.f32.mrb[0].mxu0
  %v3583 = vpop.f32.mrb[0].mxu0
  %v3584 = vadd.f32 0.0, %v3583
  %v3585 = vpop.f32.mrb[0].mxu0
  %3586 = vmatprep.mubr.bf16.mxu0 %v3412
  %3587 = vmatmul.mubr.bf16.gmra.mrb[0].mxu0 %v3411
  %v3588 = vpop.f32.mrb[0].mxu0
  %v3589 = vadd.f32 0.0, %v3588
  %v3590 = vpop.f32.mrb[0].mxu0
  %v3591 = vpop.f32.mrb[0].mxu0
  %v3592 = vadd.f32 0.0, %v3591
  %v3593 = vpop.f32.mrb[0].mxu0
  %3594 = vmatprep.mubr.bf16.mxu0 %v3415
  %3595 = vmatmul.mubr.bf16.gmra.mrb[0].mxu0 %v3414
  %v3596 = vpop.f32.mrb[0].mxu0
  %v3597 = vadd.f32 0.0, %v3596
  %v3598 = vpop.f32.mrb[0].mxu0
  %v3599 = vpop.f32.mrb[0].mxu0
  %v3600 = vadd.f32 0.0, %v3599
  %v3601 = vpop.f32.mrb[0].mxu0
  %3602 = vmatprep.mubr.bf16.mxu0 %v3418
  %3603 = vmatmul.mubr.bf16.gmra.mrb[0].mxu0 %v3417
  %v3604 = vpop.f32.mrb[0].mxu0
  %v3605 = vadd.f32 0.0, %v3604
  %v3606 = vpop.f32.mrb[0].mxu0
  %v3607 = vpop.f32.mrb[0].mxu0
  %v3608 = vadd.f32 0.0, %v3607
  %v3609 = vpop.f32.mrb[0].mxu0
  %3610 = vmatprep.mubr.bf16.mxu0 %v3421
  %3611 = vmatmul.mubr.bf16.gmra.mrb[0].mxu0 %v3420
  %v3612 = vpop.f32.mrb[0].mxu0
  %v3613 = vadd.f32 0.0, %v3612
  %v3614 = vpop.f32.mrb[0].mxu0
  %v3615 = vpop.f32.mrb[0].mxu0
  %v3616 = vadd.f32 0.0, %v3615
  %v3617 = vpop.f32.mrb[0].mxu0
  %3618 = vmatprep.mubr.bf16.mxu0 %v3424
  %3619 = vmatmul.mubr.bf16.gmra.mrb[0].mxu0 %v3423
  %v3620 = vpop.f32.mrb[0].mxu0
  %v3621 = vadd.f32 0.0, %v3620
  %v3622 = vpop.f32.mrb[0].mxu0
  %v3623 = vpop.f32.mrb[0].mxu0
  %v3624 = vadd.f32 0.0, %v3623
  %v3625 = vpop.f32.mrb[0].mxu0
  %3626 = vmatprep.mubr.bf16.mxu0 %v3427
  %3627 = vmatmul.mubr.bf16.gmra.mrb[0].mxu0 %v3426
  %v3628 = vpop.f32.mrb[0].mxu0
  %v3629 = vadd.f32 0.0, %v3628
  %v3630 = vpop.f32.mrb[0].mxu0
  %v3631 = vpop.f32.mrb[0].mxu0
  %v3632 = vadd.f32 0.0, %v3631
  %v3633 = vpop.f32.mrb[0].mxu0
  %3634 = vmatprep.mubr.bf16.mxu0 %v3430
  %3635 = vmatmul.mubr.bf16.gmra.mrb[0].mxu0 %v3429
  %v3636 = vpop.f32.mrb[0].mxu0
  %v3637 = vadd.f32 0.0, %v3636
  %v3638 = vpop.f32.mrb[0].mxu0
  %v3639 = vpop.f32.mrb[0].mxu0
  %v3640 = vadd.f32 0.0, %v3639
  %v3641 = vpop.f32.mrb[0].mxu0
  %3642 = vmatprep.mubr.bf16.mxu0 %v3433
  %3643 = vmatmul.mubr.bf16.gmra.mrb[0].mxu0 %v3432
  %v3644 = vpop.f32.mrb[0].mxu0
  %v3645 = vadd.f32 0.0, %v3644
  %v3646 = vpop.f32.mrb[0].mxu0
  %v3647 = vpop.f32.mrb[0].mxu0
  %v3648 = vadd.f32 0.0, %v3647
  %v3649 = vpop.f32.mrb[0].mxu0
  %3650 = vmatprep.mubr.bf16.mxu0 %v3436
  %3651 = vmatmul.mubr.bf16.gmra.mrb[0].mxu0 %v3435
  %v3652 = vpop.f32.mrb[0].mxu0
  %v3653 = vadd.f32 0.0, %v3652
  %v3654 = vpop.f32.mrb[0].mxu0
  %v3655 = vpop.f32.mrb[0].mxu0
  %v3656 = vadd.f32 0.0, %v3655
  %v3657 = vpop.f32.mrb[0].mxu0
  %3658 = vmatprep.mubr.bf16.mxu0 %v3439
  %3659 = vmatmul.mubr.bf16.gmra.mrb[0].mxu0 %v3438
  %v3660 = vpop.f32.mrb[0].mxu0
  %v3661 = vadd.f32 0.0, %v3660
  %v3662 = vpop.f32.mrb[0].mxu0
  %v3663 = vpop.f32.mrb[0].mxu0
  %v3664 = vadd.f32 0.0, %v3663
  %v3665 = vpop.f32.mrb[0].mxu0
  %3666 = vmatprep.mubr.bf16.mxu0 %v3442
  %3667 = vmatmul.mubr.bf16.gmra.mrb[0].mxu0 %v3441
  %v3668 = vpop.f32.mrb[0].mxu0
  %v3669 = vadd.f32 0.0, %v3668
  %v3670 = vpop.f32.mrb[0].mxu0
  %v3671 = vpop.f32.mrb[0].mxu0
  %v3672 = vadd.f32 0.0, %v3671
  %v3673 = vpop.f32.mrb[0].mxu0
  %3674 = vmatprep.mubr.bf16.mxu0 %v3445
  %3675 = vmatmul.mubr.bf16.gmra.mrb[0].mxu0 %v3444
  %v3676 = vpop.f32.mrb[0].mxu0
  %v3677 = vadd.f32 0.0, %v3676
  %v3678 = vpop.f32.mrb[0].mxu0
  %v3679 = vpop.f32.mrb[0].mxu0
  %v3680 = vadd.f32 0.0, %v3679
  %v3681 = vpop.f32.mrb[0].mxu0
  %3682 = vmatprep.mubr.bf16.mxu0 %v3448
  %3683 = vmatmul.mubr.bf16.gmra.mrb[0].mxu0 %v3447
  %v3684 = vpop.f32.mrb[0].mxu0
  %v3685 = vadd.f32 0.0, %v3684
  %v3686 = vpop.f32.mrb[0].mxu0
  %v3687 = vpop.f32.mrb[0].mxu0
  %v3688 = vpop.f32.mrb[0].mxu0
  %3689 = vdwg.mxu0
  %3690 = vmatprep.subr.bf16.mxu0 0
  %3691 = vmatpush1.bf16.msra.mxu0 %v472
  %3692 = vmatprep.subr.bf16.mxu0 0
  %3693 = vmatpush1.bf16.msra.mxu0 %v473
  %3694 = vmatprep.subr.bf16.mxu0 0
  %3695 = vmatpush1.bf16.msra.mxu0 0
  %3696 = vmatprep.subr.bf16.mxu0 0
  %3697 = vmatpush1.bf16.msra.mxu0 0
  %3698 = vmatprep.subr.bf16.mxu0 0
  %3699 = vmatpush1.bf16.msra.mxu0 0
  %3700 = vmatprep.subr.bf16.mxu0 0
  %3701 = vmatpush1.bf16.msra.mxu0 0
  %3702 = vmatprep.subr.bf16.mxu0 0
  %3703 = vmatpush1.bf16.msra.mxu0 0
  %3704 = vmatprep.subr.bf16.mxu0 0
  %3705 = vmatpush1.bf16.msra.mxu0 0
  %3706 = vmatprep.subr.bf16.mxu0 0
  %3707 = vmatpush1.bf16.msra.mxu0 0
  %3708 = vmatprep.subr.bf16.mxu0 0
  %3709 = vmatpush1.bf16.msra.mxu0 0
  %3710 = vmatprep.subr.bf16.mxu0 0
  %3711 = vmatpush1.bf16.msra.mxu0 0
  %3712 = vmatprep.subr.bf16.mxu0 0
  %3713 = vmatpush1.bf16.msra.mxu0 0
  %3714 = vmatprep.subr.bf16.mxu0 0
  %3715 = vmatpush1.bf16.msra.mxu0 0
  %3716 = vmatprep.subr.bf16.mxu0 0
  %3717 = vmatpush1.bf16.msra.mxu0 0
  %3718 = vmatprep.subr.bf16.mxu0 0
  %3719 = vmatpush1.bf16.msra.mxu0 0
  %3720 = vmatprep.subr.bf16.mxu0 0
  %3721 = vmatpush1.bf16.msra.mxu0 0
  %3722 = vmatprep.mubr.bf16.mxu0 0
  %3723 = vmatmul.mubr.bf16.gmra.mrb[0].mxu0 %v3483
  %v3724 = vpop.f32.mrb[0].mxu0
  %v3725 = vadd.f32 %v3565, %v3724
  %v3726 = vpop.f32.mrb[0].mxu0
  %v3727 = vpop.f32.mrb[0].mxu0
  %v3728 = vadd.f32 %v3568, %v3727
  %v3729 = vpop.f32.mrb[0].mxu0
  %3730 = vmatprep.mubr.bf16.mxu0 0
  %3731 = vmatmul.mubr.bf16.gmra.mrb[0].mxu0 %v3486
  %v3732 = vpop.f32.mrb[0].mxu0
  %v3733 = vadd.f32 %v3573, %v3732
  %v3734 = vpop.f32.mrb[0].mxu0
  %v3735 = vpop.f32.mrb[0].mxu0
  %v3736 = vadd.f32 %v3576, %v3735
  %v3737 = vpop.f32.mrb[0].mxu0
  %3738 = vmatprep.mubr.bf16.mxu0 0
  %3739 = vmatmul.mubr.bf16.gmra.mrb[0].mxu0 %v3489
  %v3740 = vpop.f32.mrb[0].mxu0
  %v3741 = vadd.f32 %v3581, %v3740
  %v3742 = vpop.f32.mrb[0].mxu0
  %v3743 = vpop.f32.mrb[0].mxu0
  %v3744 = vadd.f32 %v3584, %v3743
  %v3745 = vpop.f32.mrb[0].mxu0
  %3746 = vmatprep.mubr.bf16.mxu0 0
  %3747 = vmatmul.mubr.bf16.gmra.mrb[0].mxu0 %v3492
  %v3748 = vpop.f32.mrb[0].mxu0
  %v3749 = vadd.f32 %v3589, %v3748
  %v3750 = vpop.f32.mrb[0].mxu0
  %v3751 = vpop.f32.mrb[0].mxu0
  %v3752 = vadd.f32 %v3592, %v3751
  %v3753 = vpop.f32.mrb[0].mxu0
  %3754 = vmatprep.mubr.bf16.mxu0 0
  %3755 = vmatmul.mubr.bf16.gmra.mrb[0].mxu0 %v3495
  %v3756 = vpop.f32.mrb[0].mxu0
  %v3757 = vadd.f32 %v3597, %v3756
  %v3758 = vpop.f32.mrb[0].mxu0
  %v3759 = vpop.f32.mrb[0].mxu0
  %v3760 = vadd.f32 %v3600, %v3759
  %v3761 = vpop.f32.mrb[0].mxu0
  %3762 = vmatprep.mubr.bf16.mxu0 0
  %3763 = vmatmul.mubr.bf16.gmra.mrb[0].mxu0 %v3498
  %v3764 = vpop.f32.mrb[0].mxu0
  %v3765 = vadd.f32 %v3605, %v3764
  %v3766 = vpop.f32.mrb[0].mxu0
  %v3767 = vpop.f32.mrb[0].mxu0
  %v3768 = vadd.f32 %v3608, %v3767
  %v3769 = vpop.f32.mrb[0].mxu0
  %3770 = vmatprep.mubr.bf16.mxu0 0
  %3771 = vmatmul.mubr.bf16.gmra.mrb[0].mxu0 %v3501
  %v3772 = vpop.f32.mrb[0].mxu0
  %v3773 = vadd.f32 %v3613, %v3772
  %v3774 = vpop.f32.mrb[0].mxu0
  %v3775 = vpop.f32.mrb[0].mxu0
  %v3776 = vadd.f32 %v3616, %v3775
  %v3777 = vpop.f32.mrb[0].mxu0
  %3778 = vmatprep.mubr.bf16.mxu0 0
  %3779 = vmatmul.mubr.bf16.gmra.mrb[0].mxu0 %v3504
  %v3780 = vpop.f32.mrb[0].mxu0
  %v3781 = vadd.f32 %v3621, %v3780
  %v3782 = vpop.f32.mrb[0].mxu0
  %v3783 = vpop.f32.mrb[0].mxu0
  %v3784 = vadd.f32 %v3624, %v3783
  %v3785 = vpop.f32.mrb[0].mxu0
  %3786 = vmatprep.mubr.bf16.mxu0 0
  %3787 = vmatmul.mubr.bf16.gmra.mrb[0].mxu0 %v3507
  %v3788 = vpop.f32.mrb[0].mxu0
  %v3789 = vadd.f32 %v3629, %v3788
  %v3790 = vpop.f32.mrb[0].mxu0
  %v3791 = vpop.f32.mrb[0].mxu0
  %v3792 = vadd.f32 %v3632, %v3791
  %v3793 = vpop.f32.mrb[0].mxu0
  %3794 = vmatprep.mubr.bf16.mxu0 0
  %3795 = vmatmul.mubr.bf16.gmra.mrb[0].mxu0 %v3510
  %v3796 = vpop.f32.mrb[0].mxu0
  %v3797 = vadd.f32 %v3637, %v3796
  %v3798 = vpop.f32.mrb[0].mxu0
  %v3799 = vpop.f32.mrb[0].mxu0
  %v3800 = vadd.f32 %v3640, %v3799
  %v3801 = vpop.f32.mrb[0].mxu0
  %3802 = vmatprep.mubr.bf16.mxu0 0
  %3803 = vmatmul.mubr.bf16.gmra.mrb[0].mxu0 %v3513
  %v3804 = vpop.f32.mrb[0].mxu0
  %v3805 = vadd.f32 %v3645, %v3804
  %v3806 = vpop.f32.mrb[0].mxu0
  %v3807 = vpop.f32.mrb[0].mxu0
  %v3808 = vadd.f32 %v3648, %v3807
  %v3809 = vpop.f32.mrb[0].mxu0
  %3810 = vmatprep.mubr.bf16.mxu0 0
  %3811 = vmatmul.mubr.bf16.gmra.mrb[0].mxu0 %v3516
  %v3812 = vpop.f32.mrb[0].mxu0
  %v3813 = vadd.f32 %v3653, %v3812
  %v3814 = vpop.f32.mrb[0].mxu0
  %v3815 = vpop.f32.mrb[0].mxu0
  %v3816 = vadd.f32 %v3656, %v3815
  %v3817 = vpop.f32.mrb[0].mxu0
  %3818 = vmatprep.mubr.bf16.mxu0 0
  %3819 = vmatmul.mubr.bf16.gmra.mrb[0].mxu0 %v3519
  %v3820 = vpop.f32.mrb[0].mxu0
  %v3821 = vadd.f32 %v3661, %v3820
  %v3822 = vpop.f32.mrb[0].mxu0
  %v3823 = vpop.f32.mrb[0].mxu0
  %v3824 = vadd.f32 %v3664, %v3823
  %v3825 = vpop.f32.mrb[0].mxu0
  %3826 = vmatprep.mubr.bf16.mxu0 0
  %3827 = vmatmul.mubr.bf16.gmra.mrb[0].mxu0 %v3522
  %v3828 = vpop.f32.mrb[0].mxu0
  %v3829 = vadd.f32 %v3669, %v3828
  %v3830 = vpop.f32.mrb[0].mxu0
  %v3831 = vpop.f32.mrb[0].mxu0
  %v3832 = vadd.f32 %v3672, %v3831
  %v3833 = vpop.f32.mrb[0].mxu0
  %3834 = vmatprep.mubr.bf16.mxu0 0
  %3835 = vmatmul.mubr.bf16.gmra.mrb[0].mxu0 %v3525
  %v3836 = vpop.f32.mrb[0].mxu0
  %v3837 = vadd.f32 %v3677, %v3836
  %v3838 = vpop.f32.mrb[0].mxu0
  %v3839 = vpop.f32.mrb[0].mxu0
  %v3840 = vadd.f32 %v3680, %v3839
  %v3841 = vpop.f32.mrb[0].mxu0
  %3842 = vmatprep.mubr.bf16.mxu0 0
  %3843 = vmatmul.mubr.bf16.gmra.mrb[0].mxu0 %v3528
  %v3844 = vpop.f32.mrb[0].mxu0
  %v3845 = vadd.f32 %v3685, %v3844
  %v3846 = vpop.f32.mrb[0].mxu0
  %v3847 = vpop.f32.mrb[0].mxu0
  %v3848 = vpop.f32.mrb[0].mxu0
  %3849 = vdwg.mxu0
  %s3850 = scalar_lea.vmem %s2, 144
  %v3851 = vld [vmem:[%s3850] sm:$0xff]
  %v3852 = vld [vmem:[%s3850 + $0x8] sm:$0xff]
  %v3853 = vld [vmem:[%s3850 + $0x10] sm:$0xff]
  %v3854 = vld [vmem:[%s3850 + $0x18] sm:$0xff]
  %v3855 = vld [vmem:[%s3850 + $0x20] sm:$0xff]
  %v3856 = vld [vmem:[%s3850 + $0x28] sm:$0xff]
  %v3858 = vsel %vm1540, %v3725, 0
  %v3861 = vsel %vm1540, %v3728, 0
  %v3864 = vsel %vm1540, %v3733, 0
  %v3867 = vsel %vm1540, %v3736, 0
  %v3870 = vsel %vm1540, %v3741, 0
  %v3873 = vsel %vm1540, %v3744, 0
  %v3876 = vsel %vm1540, %v3749, 0
  %v3879 = vsel %vm1540, %v3752, 0
  %v3882 = vsel %vm1540, %v3757, 0
  %v3885 = vsel %vm1540, %v3760, 0
  %v3888 = vsel %vm1540, %v3765, 0
  %v3891 = vsel %vm1540, %v3768, 0
  %v3894 = vsel %vm1540, %v3773, 0
  %v3897 = vsel %vm1540, %v3776, 0
  %v3900 = vsel %vm1540, %v3781, 0
  %v3903 = vsel %vm1540, %v3784, 0
  %v3906 = vsel %vm1540, %v3789, 0
  %v3909 = vsel %vm1540, %v3792, 0
  %v3912 = vsel %vm1540, %v3797, 0
  %v3915 = vsel %vm1540, %v3800, 0
  %v3918 = vsel %vm1540, %v3805, 0
  %v3921 = vsel %vm1540, %v3808, 0
  %v3924 = vsel %vm1540, %v3813, 0
  %v3927 = vsel %vm1540, %v3816, 0
  %v3930 = vsel %vm1540, %v3821, 0
  %v3933 = vsel %vm1540, %v3824, 0
  %v3936 = vsel %vm1540, %v3829, 0
  %v3939 = vsel %vm1540, %v3832, 0
  %v3942 = vsel %vm1540, %v3837, 0
  %v3945 = vsel %vm1540, %v3840, 0
  %v3948 = vsel %vm1540, %v3845, 0
  %3950 = vmatprep.subr.mxu0 0.0
  %3951 = vmatpush1.msra.mxu0 %v3851
  %3952 = vmatprep.subr.mxu0 0.0
  %3953 = vmatpush1.msra.mxu0 %v3852
  %3954 = vmatprep.subr.mxu0 0.0
  %3955 = vmatpush1.msra.mxu0 %v3853
  %3956 = vmatprep.subr.mxu0 0.0
  %3957 = vmatpush1.msra.mxu0 %v3854
  %3958 = vmatprep.subr.mxu0 0.0
  %3959 = vmatpush1.msra.mxu0 %v3855
  %3960 = vmatprep.subr.mxu0 0.0
  %3961 = vmatpush1.msra.mxu0 %v3856
  %3962 = vmatprep.subr.mxu0 0.0
  %3963 = vmatpush1.msra.mxu0 0.0
  %3964 = vmatprep.subr.mxu0 0.0
  %3965 = vmatpush1.msra.mxu0 0.0
  %3966 = vmatprep.subr.mxu0 0.0
  %3967 = vmatpush1.msra.mxu0 0.0
  %3968 = vmatprep.subr.mxu0 0.0
  %3969 = vmatpush1.msra.mxu0 0.0
  %3970 = vmatprep.subr.mxu0 0.0
  %3971 = vmatpush1.msra.mxu0 0.0
  %3972 = vmatprep.subr.mxu0 0.0
  %3973 = vmatpush1.msra.mxu0 0.0
  %3974 = vmatprep.subr.mxu0 0.0
  %3975 = vmatpush1.msra.mxu0 0.0
  %3976 = vmatprep.subr.mxu0 0.0
  %3977 = vmatpush1.msra.mxu0 0.0
  %3978 = vmatprep.subr.mxu0 0.0
  %3979 = vmatpush1.msra.mxu0 0.0
  %3980 = vmatprep.subr.mxu0 0.0
  %3981 = vmatpush1.msra.mxu0 0.0
  %3982 = vmatprep.subr.mxu0 0.0
  %3983 = vmatpush1.msra.mxu0 0.0
  %3984 = vmatprep.subr.mxu0 0.0
  %3985 = vmatpush1.msra.mxu0 0.0
  %3986 = vmatprep.subr.mxu0 0.0
  %3987 = vmatpush1.msra.mxu0 0.0
  %3988 = vmatprep.subr.mxu0 0.0
  %3989 = vmatpush1.msra.mxu0 0.0
  %3990 = vmatprep.subr.mxu0 0.0
  %3991 = vmatpush1.msra.mxu0 0.0
  %3992 = vmatprep.subr.mxu0 0.0
  %3993 = vmatpush1.msra.mxu0 0.0
  %3994 = vmatprep.subr.mxu0 0.0
  %3995 = vmatpush1.msra.mxu0 0.0
  %3996 = vmatprep.subr.mxu0 0.0
  %3997 = vmatpush1.msra.mxu0 0.0
  %3998 = vmatprep.subr.mxu0 0.0
  %3999 = vmatpush1.msra.mxu0 0.0
  %4000 = vmatprep.subr.mxu0 0.0
  %4001 = vmatpush1.msra.mxu0 0.0
  %4002 = vmatprep.subr.mxu0 0.0
  %4003 = vmatpush1.msra.mxu0 0.0
  %4004 = vmatprep.subr.mxu0 0.0
  %4005 = vmatpush1.msra.mxu0 0.0
  %4006 = vmatprep.subr.mxu0 0.0
  %4007 = vmatpush1.msra.mxu0 0.0
  %4008 = vmatprep.subr.mxu0 0.0
  %4009 = vmatpush1.msra.mxu0 0.0
  %4010 = vmatprep.subr.mxu0 0.0
  %4011 = vmatpush1.msra.mxu0 0.0
  %4012 = vmatprep.subr.mxu0 0.0
  %4013 = vmatpush1.msra.mxu0 0.0
  %4014 = vmatprep.mubr.f32.mxu0 0.0
  %4015 = vmatmul.mubr.f32.gmra.mrb[0].mxu0 %v3858
  %v4016 = vpop.f32.mrb[0].mxu0
  %v4017 = vadd.f32 0.0, %v4016
  %v4018 = vpop.f32.mrb[0].mxu0
  %4019 = vmatprep.mubr.f32.mxu0 0.0
  %4020 = vmatmul.mubr.f32.gmra.mrb[0].mxu0 %v3861
  %v4021 = vpop.f32.mrb[0].mxu0
  %v4022 = vadd.f32 0.0, %v4021
  %v4023 = vpop.f32.mrb[0].mxu0
  %4024 = vmatprep.mubr.f32.mxu0 0.0
  %4025 = vmatmul.mubr.f32.gmra.mrb[0].mxu0 %v3864
  %v4026 = vpop.f32.mrb[0].mxu0
  %v4027 = vadd.f32 0.0, %v4026
  %v4028 = vpop.f32.mrb[0].mxu0
  %4029 = vmatprep.mubr.f32.mxu0 0.0
  %4030 = vmatmul.mubr.f32.gmra.mrb[0].mxu0 %v3867
  %v4031 = vpop.f32.mrb[0].mxu0
  %v4032 = vadd.f32 0.0, %v4031
  %v4033 = vpop.f32.mrb[0].mxu0
  %4034 = vmatprep.mubr.f32.mxu0 0.0
  %4035 = vmatmul.mubr.f32.gmra.mrb[0].mxu0 %v3870
  %v4036 = vpop.f32.mrb[0].mxu0
  %v4037 = vadd.f32 0.0, %v4036
  %v4038 = vpop.f32.mrb[0].mxu0
  %4039 = vmatprep.mubr.f32.mxu0 0.0
  %4040 = vmatmul.mubr.f32.gmra.mrb[0].mxu0 %v3873
  %v4041 = vpop.f32.mrb[0].mxu0
  %v4042 = vadd.f32 0.0, %v4041
  %v4043 = vpop.f32.mrb[0].mxu0
  %4044 = vmatprep.mubr.f32.mxu0 0.0
  %4045 = vmatmul.mubr.f32.gmra.mrb[0].mxu0 %v3876
  %v4046 = vpop.f32.mrb[0].mxu0
  %v4047 = vadd.f32 0.0, %v4046
  %v4048 = vpop.f32.mrb[0].mxu0
  %4049 = vmatprep.mubr.f32.mxu0 0.0
  %4050 = vmatmul.mubr.f32.gmra.mrb[0].mxu0 %v3879
  %v4051 = vpop.f32.mrb[0].mxu0
  %v4052 = vadd.f32 0.0, %v4051
  %v4053 = vpop.f32.mrb[0].mxu0
  %4054 = vmatprep.mubr.f32.mxu0 0.0
  %4055 = vmatmul.mubr.f32.gmra.mrb[0].mxu0 %v3882
  %v4056 = vpop.f32.mrb[0].mxu0
  %v4057 = vadd.f32 0.0, %v4056
  %v4058 = vpop.f32.mrb[0].mxu0
  %4059 = vmatprep.mubr.f32.mxu0 0.0
  %4060 = vmatmul.mubr.f32.gmra.mrb[0].mxu0 %v3885
  %v4061 = vpop.f32.mrb[0].mxu0
  %v4062 = vadd.f32 0.0, %v4061
  %v4063 = vpop.f32.mrb[0].mxu0
  %4064 = vmatprep.mubr.f32.mxu0 0.0
  %4065 = vmatmul.mubr.f32.gmra.mrb[0].mxu0 %v3888
  %v4066 = vpop.f32.mrb[0].mxu0
  %v4067 = vadd.f32 0.0, %v4066
  %v4068 = vpop.f32.mrb[0].mxu0
  %4069 = vmatprep.mubr.f32.mxu0 0.0
  %4070 = vmatmul.mubr.f32.gmra.mrb[0].mxu0 %v3891
  %v4071 = vpop.f32.mrb[0].mxu0
  %v4072 = vadd.f32 0.0, %v4071
  %v4073 = vpop.f32.mrb[0].mxu0
  %4074 = vmatprep.mubr.f32.mxu0 0.0
  %4075 = vmatmul.mubr.f32.gmra.mrb[0].mxu0 %v3894
  %v4076 = vpop.f32.mrb[0].mxu0
  %v4077 = vadd.f32 0.0, %v4076
  %v4078 = vpop.f32.mrb[0].mxu0
  %4079 = vmatprep.mubr.f32.mxu0 0.0
  %4080 = vmatmul.mubr.f32.gmra.mrb[0].mxu0 %v3897
  %v4081 = vpop.f32.mrb[0].mxu0
  %v4082 = vadd.f32 0.0, %v4081
  %v4083 = vpop.f32.mrb[0].mxu0
  %4084 = vmatprep.mubr.f32.mxu0 0.0
  %4085 = vmatmul.mubr.f32.gmra.mrb[0].mxu0 %v3900
  %v4086 = vpop.f32.mrb[0].mxu0
  %v4087 = vadd.f32 0.0, %v4086
  %v4088 = vpop.f32.mrb[0].mxu0
  %4089 = vmatprep.mubr.f32.mxu0 0.0
  %4090 = vmatmul.mubr.f32.gmra.mrb[0].mxu0 %v3903
  %v4091 = vpop.f32.mrb[0].mxu0
  %v4092 = vadd.f32 0.0, %v4091
  %v4093 = vpop.f32.mrb[0].mxu0
  %4094 = vmatprep.mubr.f32.mxu0 0.0
  %4095 = vmatmul.mubr.f32.gmra.mrb[0].mxu0 %v3906
  %v4096 = vpop.f32.mrb[0].mxu0
  %v4097 = vadd.f32 0.0, %v4096
  %v4098 = vpop.f32.mrb[0].mxu0
  %4099 = vmatprep.mubr.f32.mxu0 0.0
  %4100 = vmatmul.mubr.f32.gmra.mrb[0].mxu0 %v3909
  %v4101 = vpop.f32.mrb[0].mxu0
  %v4102 = vadd.f32 0.0, %v4101
  %v4103 = vpop.f32.mrb[0].mxu0
  %4104 = vmatprep.mubr.f32.mxu0 0.0
  %4105 = vmatmul.mubr.f32.gmra.mrb[0].mxu0 %v3912
  %v4106 = vpop.f32.mrb[0].mxu0
  %v4107 = vadd.f32 0.0, %v4106
  %v4108 = vpop.f32.mrb[0].mxu0
  %4109 = vmatprep.mubr.f32.mxu0 0.0
  %4110 = vmatmul.mubr.f32.gmra.mrb[0].mxu0 %v3915
  %v4111 = vpop.f32.mrb[0].mxu0
  %v4112 = vadd.f32 0.0, %v4111
  %v4113 = vpop.f32.mrb[0].mxu0
  %4114 = vmatprep.mubr.f32.mxu0 0.0
  %4115 = vmatmul.mubr.f32.gmra.mrb[0].mxu0 %v3918
  %v4116 = vpop.f32.mrb[0].mxu0
  %v4117 = vadd.f32 0.0, %v4116
  %v4118 = vpop.f32.mrb[0].mxu0
  %4119 = vmatprep.mubr.f32.mxu0 0.0
  %4120 = vmatmul.mubr.f32.gmra.mrb[0].mxu0 %v3921
  %v4121 = vpop.f32.mrb[0].mxu0
  %v4122 = vadd.f32 0.0, %v4121
  %v4123 = vpop.f32.mrb[0].mxu0
  %4124 = vmatprep.mubr.f32.mxu0 0.0
  %4125 = vmatmul.mubr.f32.gmra.mrb[0].mxu0 %v3924
  %v4126 = vpop.f32.mrb[0].mxu0
  %v4127 = vadd.f32 0.0, %v4126
  %v4128 = vpop.f32.mrb[0].mxu0
  %4129 = vmatprep.mubr.f32.mxu0 0.0
  %4130 = vmatmul.mubr.f32.gmra.mrb[0].mxu0 %v3927
  %v4131 = vpop.f32.mrb[0].mxu0
  %v4132 = vadd.f32 0.0, %v4131
  %v4133 = vpop.f32.mrb[0].mxu0
  %4134 = vmatprep.mubr.f32.mxu0 0.0
  %4135 = vmatmul.mubr.f32.gmra.mrb[0].mxu0 %v3930
  %v4136 = vpop.f32.mrb[0].mxu0
  %v4137 = vadd.f32 0.0, %v4136
  %v4138 = vpop.f32.mrb[0].mxu0
  %4139 = vmatprep.mubr.f32.mxu0 0.0
  %4140 = vmatmul.mubr.f32.gmra.mrb[0].mxu0 %v3933
  %v4141 = vpop.f32.mrb[0].mxu0
  %v4142 = vadd.f32 0.0, %v4141
  %v4143 = vpop.f32.mrb[0].mxu0
  %4144 = vmatprep.mubr.f32.mxu0 0.0
  %4145 = vmatmul.mubr.f32.gmra.mrb[0].mxu0 %v3936
  %v4146 = vpop.f32.mrb[0].mxu0
  %v4147 = vadd.f32 0.0, %v4146
  %v4148 = vpop.f32.mrb[0].mxu0
  %4149 = vmatprep.mubr.f32.mxu0 0.0
  %4150 = vmatmul.mubr.f32.gmra.mrb[0].mxu0 %v3939
  %v4151 = vpop.f32.mrb[0].mxu0
  %v4152 = vadd.f32 0.0, %v4151
  %v4153 = vpop.f32.mrb[0].mxu0
  %4154 = vmatprep.mubr.f32.mxu0 0.0
  %4155 = vmatmul.mubr.f32.gmra.mrb[0].mxu0 %v3942
  %v4156 = vpop.f32.mrb[0].mxu0
  %v4157 = vadd.f32 0.0, %v4156
  %v4158 = vpop.f32.mrb[0].mxu0
  %4159 = vmatprep.mubr.f32.mxu0 0.0
  %4160 = vmatmul.mubr.f32.gmra.mrb[0].mxu0 %v3945
  %v4161 = vpop.f32.mrb[0].mxu0
  %v4162 = vadd.f32 0.0, %v4161
  %v4163 = vpop.f32.mrb[0].mxu0
  %4164 = vmatprep.mubr.f32.mxu0 0.0
  %4165 = vmatmul.mubr.f32.gmra.mrb[0].mxu0 %v3948
  %v4166 = vpop.f32.mrb[0].mxu0
  %v4167 = vadd.f32 0.0, %v4166
  %v4168 = vpop.f32.mrb[0].mxu0
  %4169 = vdwg.mxu0
  %v4170 = vadd.f32 %v3153, %v4017
  %v4171 = vadd.f32 %v3154, %v4022
  %v4172 = vadd.f32 %v3155, %v4027
  %v4173 = vadd.f32 %v3156, %v4032
  %v4174 = vadd.f32 %v3157, %v4037
  %v4175 = vadd.f32 %v3158, %v4042
  %v4176 = vadd.f32 %v3159, %v4047
  %v4177 = vadd.f32 %v3160, %v4052
  %v4178 = vadd.f32 %v3161, %v4057
  %v4179 = vadd.f32 %v3162, %v4062
  %v4180 = vadd.f32 %v3163, %v4067
  %v4181 = vadd.f32 %v3164, %v4072
  %v4182 = vadd.f32 %v3165, %v4077
  %v4183 = vadd.f32 %v3166, %v4082
  %v4184 = vadd.f32 %v3167, %v4087
  %v4185 = vadd.f32 %v3168, %v4092
  %v4186 = vadd.f32 %v3169, %v4097
  %v4187 = vadd.f32 %v3170, %v4102
  %v4188 = vadd.f32 %v3171, %v4107
  %v4189 = vadd.f32 %v3172, %v4112
  %v4190 = vadd.f32 %v3173, %v4117
  %v4191 = vadd.f32 %v3174, %v4122
  %v4192 = vadd.f32 %v3175, %v4127
  %v4193 = vadd.f32 %v3176, %v4132
  %v4194 = vadd.f32 %v3177, %v4137
  %v4195 = vadd.f32 %v3178, %v4142
  %v4196 = vadd.f32 %v3179, %v4147
  %v4197 = vadd.f32 %v3180, %v4152
  %v4198 = vadd.f32 %v3181, %v4157
  %v4199 = vadd.f32 %v3182, %v4162
  %v4200 = vadd.f32 %v3183, %v4167
  %v4201 = vld [vmem:[%s3] sm:$0x1]
  %v4203 = vlaneseq
  %v4204 = vshrl.u32 %v4203, 7
  %v4205 = vsub.s32 0, %v4204
  %v4206 = vrot.slane %v4201, %v4205
  %v4208 = vadd.f32 %v4170, %v4206
  %v4209 = vadd.f32 %v4171, %v4206
  %v4210 = vadd.f32 %v4172, %v4206
  %v4211 = vadd.f32 %v4173, %v4206
  %v4212 = vadd.f32 %v4174, %v4206
  %v4213 = vadd.f32 %v4175, %v4206
  %v4214 = vadd.f32 %v4176, %v4206
  %v4215 = vadd.f32 %v4177, %v4206
  %v4216 = vadd.f32 %v4178, %v4206
  %v4217 = vadd.f32 %v4179, %v4206
  %v4218 = vadd.f32 %v4180, %v4206
  %v4219 = vadd.f32 %v4181, %v4206
  %v4220 = vadd.f32 %v4182, %v4206
  %v4221 = vadd.f32 %v4183, %v4206
  %v4222 = vadd.f32 %v4184, %v4206
  %v4223 = vadd.f32 %v4185, %v4206
  %v4224 = vadd.f32 %v4186, %v4206
  %v4225 = vadd.f32 %v4187, %v4206
  %v4226 = vadd.f32 %v4188, %v4206
  %v4227 = vadd.f32 %v4189, %v4206
  %v4228 = vadd.f32 %v4190, %v4206
  %v4229 = vadd.f32 %v4191, %v4206
  %v4230 = vadd.f32 %v4192, %v4206
  %v4231 = vadd.f32 %v4193, %v4206
  %v4232 = vadd.f32 %v4194, %v4206
  %v4233 = vadd.f32 %v4195, %v4206
  %v4234 = vadd.f32 %v4196, %v4206
  %v4235 = vadd.f32 %v4197, %v4206
  %v4236 = vadd.f32 %v4198, %v4206
  %v4237 = vadd.f32 %v4199, %v4206
  %v4238 = vadd.f32 %v4200, %v4206
  %v4239 = vmax.f32 %v4208, 0.0
  %v4240 = vmax.f32 %v4209, 0.0
  %v4241 = vmax.f32 %v4210, 0.0
  %v4242 = vmax.f32 %v4211, 0.0
  %v4243 = vmax.f32 %v4212, 0.0
  %v4244 = vmax.f32 %v4213, 0.0
  %v4245 = vmax.f32 %v4214, 0.0
  %v4246 = vmax.f32 %v4215, 0.0
  %v4247 = vmax.f32 %v4216, 0.0
  %v4248 = vmax.f32 %v4217, 0.0
  %v4249 = vmax.f32 %v4218, 0.0
  %v4250 = vmax.f32 %v4219, 0.0
  %v4251 = vmax.f32 %v4220, 0.0
  %v4252 = vmax.f32 %v4221, 0.0
  %v4253 = vmax.f32 %v4222, 0.0
  %v4254 = vmax.f32 %v4223, 0.0
  %v4255 = vmax.f32 %v4224, 0.0
  %v4256 = vmax.f32 %v4225, 0.0
  %v4257 = vmax.f32 %v4226, 0.0
  %v4258 = vmax.f32 %v4227, 0.0
  %v4259 = vmax.f32 %v4228, 0.0
  %v4260 = vmax.f32 %v4229, 0.0
  %v4261 = vmax.f32 %v4230, 0.0
  %v4262 = vmax.f32 %v4231, 0.0
  %v4263 = vmax.f32 %v4232, 0.0
  %v4264 = vmax.f32 %v4233, 0.0
  %v4265 = vmax.f32 %v4234, 0.0
  %v4266 = vmax.f32 %v4235, 0.0
  %v4267 = vmax.f32 %v4236, 0.0
  %v4268 = vmax.f32 %v4237, 0.0
  %v4269 = vmax.f32 %v4238, 0.0
  %v4270 = vld [vmem:[%s4] sm:$0xff]
  %v4271 = vld [vmem:[%s4 + $0x8] sm:$0xff]
  %v4272 = vld [vmem:[%s4 + $0x10] sm:$0xff]
  %v4273 = vld [vmem:[%s4 + $0x18] sm:$0xff]
  %v4274 = vld [vmem:[%s4 + $0x20] sm:$0xff]
  %v4275 = vld [vmem:[%s4 + $0x28] sm:$0xff]
  %v4276 = vld [vmem:[%s4 + $0x30] sm:$0xff]
  %v4277 = vld [vmem:[%s4 + $0x38] sm:$0xff]
  %vm4278 = vcmask 982016
  %v4280 = vsel %vm4278, %v4271, 0
  %v4283 = vsel %vm4278, %v4273, 0
  %v4286 = vsel %vm4278, %v4275, 0
  %v4289 = vsel %vm4278, %v4277, 0
  %4291 = vmatprep.subr.mxu0 0.0
  %4292 = vmatpush1.msra.mxu0 %v4239
  %4293 = vmatprep.subr.mxu0 0.0
  %4294 = vmatpush1.msra.mxu0 %v4240
  %4295 = vmatprep.subr.mxu0 0.0
  %4296 = vmatpush1.msra.mxu0 %v4241
  %4297 = vmatprep.subr.mxu0 0.0
  %4298 = vmatpush1.msra.mxu0 %v4242
  %4299 = vmatprep.subr.mxu0 0.0
  %4300 = vmatpush1.msra.mxu0 %v4243
  %4301 = vmatprep.subr.mxu0 0.0
  %4302 = vmatpush1.msra.mxu0 %v4244
  %4303 = vmatprep.subr.mxu0 0.0
  %4304 = vmatpush1.msra.mxu0 %v4245
  %4305 = vmatprep.subr.mxu0 0.0
  %4306 = vmatpush1.msra.mxu0 %v4246
  %4307 = vmatprep.subr.mxu0 0.0
  %4308 = vmatpush1.msra.mxu0 %v4247
  %4309 = vmatprep.subr.mxu0 0.0
  %4310 = vmatpush1.msra.mxu0 %v4248
  %4311 = vmatprep.subr.mxu0 0.0
  %4312 = vmatpush1.msra.mxu0 %v4249
  %4313 = vmatprep.subr.mxu0 0.0
  %4314 = vmatpush1.msra.mxu0 %v4250
  %4315 = vmatprep.subr.mxu0 0.0
  %4316 = vmatpush1.msra.mxu0 %v4251
  %4317 = vmatprep.subr.mxu0 0.0
  %4318 = vmatpush1.msra.mxu0 %v4252
  %4319 = vmatprep.subr.mxu0 0.0
  %4320 = vmatpush1.msra.mxu0 %v4253
  %4321 = vmatprep.subr.mxu0 0.0
  %4322 = vmatpush1.msra.mxu0 %v4254
  %4323 = vmatprep.subr.mxu0 0.0
  %4324 = vmatpush1.msra.mxu0 %v4255
  %4325 = vmatprep.subr.mxu0 0.0
  %4326 = vmatpush1.msra.mxu0 %v4256
  %4327 = vmatprep.subr.mxu0 0.0
  %4328 = vmatpush1.msra.mxu0 %v4257
  %4329 = vmatprep.subr.mxu0 0.0
  %4330 = vmatpush1.msra.mxu0 %v4258
  %4331 = vmatprep.subr.mxu0 0.0
  %4332 = vmatpush1.msra.mxu0 %v4259
  %4333 = vmatprep.subr.mxu0 0.0
  %4334 = vmatpush1.msra.mxu0 %v4260
  %4335 = vmatprep.subr.mxu0 0.0
  %4336 = vmatpush1.msra.mxu0 %v4261
  %4337 = vmatprep.subr.mxu0 0.0
  %4338 = vmatpush1.msra.mxu0 %v4262
  %4339 = vmatprep.subr.mxu0 0.0
  %4340 = vmatpush1.msra.mxu0 %v4263
  %4341 = vmatprep.subr.mxu0 0.0
  %4342 = vmatpush1.msra.mxu0 %v4264
  %4343 = vmatprep.subr.mxu0 0.0
  %4344 = vmatpush1.msra.mxu0 %v4265
  %4345 = vmatprep.subr.mxu0 0.0
  %4346 = vmatpush1.msra.mxu0 %v4266
  %4347 = vmatprep.subr.mxu0 0.0
  %4348 = vmatpush1.msra.mxu0 %v4267
  %4349 = vmatprep.subr.mxu0 0.0
  %4350 = vmatpush1.msra.mxu0 %v4268
  %4351 = vmatprep.subr.mxu0 0.0
  %4352 = vmatpush1.msra.mxu0 %v4269
  %4353 = vmatprep.subr.mxu0 0.0
  %4354 = vmatpush1.msra.mxu0 0.0
  %4355 = vmatprep.mubr.f32.mxu0 %v4280
  %4356 = vmatmul.mubr.f32.gmra.mrb[0].mxu0 %v4270
  %v4357 = vpop.f32.mrb[0].mxu0
  %v4358 = vadd.f32 0.0, %v4357
  %v4359 = vpop.f32.mrb[0].mxu0
  %4360 = vmatprep.mubr.f32.mxu0 %v4283
  %4361 = vmatmul.mubr.f32.gmra.mrb[0].mxu0 %v4272
  %v4362 = vpop.f32.mrb[0].mxu0
  %v4363 = vadd.f32 0.0, %v4362
  %v4364 = vpop.f32.mrb[0].mxu0
  %4365 = vmatprep.mubr.f32.mxu0 %v4286
  %4366 = vmatmul.mubr.f32.gmra.mrb[0].mxu0 %v4274
  %v4367 = vpop.f32.mrb[0].mxu0
  %v4368 = vadd.f32 0.0, %v4367
  %v4369 = vpop.f32.mrb[0].mxu0
  %4370 = vmatprep.mubr.f32.mxu0 %v4289
  %4371 = vmatmul.mubr.f32.gmra.mrb[0].mxu0 %v4276
  %v4372 = vpop.f32.mrb[0].mxu0
  %v4373 = vadd.f32 0.0, %v4372
  %v4374 = vpop.f32.mrb[0].mxu0
  %4375 = vdwg.mxu0
  %v4376 = vld [vmem:[%s5] sm:$0xff]
  %v4377 = vld [vmem:[%s5 + $0x8] sm:$0xff]
  %v4378 = vld [vmem:[%s5 + $0x10] sm:$0xff]
  %v4379 = vld [vmem:[%s5 + $0x18] sm:$0xff]
  %s4380 = scalar_lea.vmem %s4, 64
  %v4381 = vld [vmem:[%s4380] sm:$0xff]
  %v4382 = vld [vmem:[%s4380 + $0x8] sm:$0xff]
  %v4383 = vld [vmem:[%s4380 + $0x10] sm:$0xff]
  %v4384 = vld [vmem:[%s4380 + $0x18] sm:$0xff]
  %v4385 = vld [vmem:[%s4380 + $0x20] sm:$0xff]
  %v4386 = vld [vmem:[%s4380 + $0x28] sm:$0xff]
  %v4387 = vld [vmem:[%s4380 + $0x30] sm:$0xff]
  %v4388 = vld [vmem:[%s4380 + $0x38] sm:$0xff]
  %v4390 = vsel %vm4278, %v4382, 0
  %v4393 = vsel %vm4278, %v4384, 0
  %v4396 = vsel %vm4278, %v4386, 0
  %v4399 = vsel %vm4278, %v4388, 0
  %4401 = vmatprep.subr.mxu0 0.0
  %4402 = vmatpush1.msra.mxu0 %v4239
  %4403 = vmatprep.subr.mxu0 0.0
  %4404 = vmatpush1.msra.mxu0 %v4240
  %4405 = vmatprep.subr.mxu0 0.0
  %4406 = vmatpush1.msra.mxu0 %v4241
  %4407 = vmatprep.subr.mxu0 0.0
  %4408 = vmatpush1.msra.mxu0 %v4242
  %4409 = vmatprep.subr.mxu0 0.0
  %4410 = vmatpush1.msra.mxu0 %v4243
  %4411 = vmatprep.subr.mxu0 0.0
  %4412 = vmatpush1.msra.mxu0 %v4244
  %4413 = vmatprep.subr.mxu0 0.0
  %4414 = vmatpush1.msra.mxu0 %v4245
  %4415 = vmatprep.subr.mxu0 0.0
  %4416 = vmatpush1.msra.mxu0 %v4246
  %4417 = vmatprep.subr.mxu0 0.0
  %4418 = vmatpush1.msra.mxu0 %v4247
  %4419 = vmatprep.subr.mxu0 0.0
  %4420 = vmatpush1.msra.mxu0 %v4248
  %4421 = vmatprep.subr.mxu0 0.0
  %4422 = vmatpush1.msra.mxu0 %v4249
  %4423 = vmatprep.subr.mxu0 0.0
  %4424 = vmatpush1.msra.mxu0 %v4250
  %4425 = vmatprep.subr.mxu0 0.0
  %4426 = vmatpush1.msra.mxu0 %v4251
  %4427 = vmatprep.subr.mxu0 0.0
  %4428 = vmatpush1.msra.mxu0 %v4252
  %4429 = vmatprep.subr.mxu0 0.0
  %4430 = vmatpush1.msra.mxu0 %v4253
  %4431 = vmatprep.subr.mxu0 0.0
  %4432 = vmatpush1.msra.mxu0 %v4254
  %4433 = vmatprep.subr.mxu0 0.0
  %4434 = vmatpush1.msra.mxu0 %v4255
  %4435 = vmatprep.subr.mxu0 0.0
  %4436 = vmatpush1.msra.mxu0 %v4256
  %4437 = vmatprep.subr.mxu0 0.0
  %4438 = vmatpush1.msra.mxu0 %v4257
  %4439 = vmatprep.subr.mxu0 0.0
  %4440 = vmatpush1.msra.mxu0 %v4258
  %4441 = vmatprep.subr.mxu0 0.0
  %4442 = vmatpush1.msra.mxu0 %v4259
  %4443 = vmatprep.subr.mxu0 0.0
  %4444 = vmatpush1.msra.mxu0 %v4260
  %4445 = vmatprep.subr.mxu0 0.0
  %4446 = vmatpush1.msra.mxu0 %v4261
  %4447 = vmatprep.subr.mxu0 0.0
  %4448 = vmatpush1.msra.mxu0 %v4262
  %4449 = vmatprep.subr.mxu0 0.0
  %4450 = vmatpush1.msra.mxu0 %v4263
  %4451 = vmatprep.subr.mxu0 0.0
  %4452 = vmatpush1.msra.mxu0 %v4264
  %4453 = vmatprep.subr.mxu0 0.0
  %4454 = vmatpush1.msra.mxu0 %v4265
  %4455 = vmatprep.subr.mxu0 0.0
  %4456 = vmatpush1.msra.mxu0 %v4266
  %4457 = vmatprep.subr.mxu0 0.0
  %4458 = vmatpush1.msra.mxu0 %v4267
  %4459 = vmatprep.subr.mxu0 0.0
  %4460 = vmatpush1.msra.mxu0 %v4268
  %4461 = vmatprep.subr.mxu0 0.0
  %4462 = vmatpush1.msra.mxu0 %v4269
  %4463 = vmatprep.subr.mxu0 0.0
  %4464 = vmatpush1.msra.mxu0 0.0
  %4465 = vmatprep.mubr.f32.mxu0 %v4390
  %4466 = vmatmul.mubr.f32.gmra.mrb[0].mxu0 %v4381
  %v4467 = vpop.f32.mrb[0].mxu0
  %v4468 = vadd.f32 0.0, %v4467
  %v4469 = vpop.f32.mrb[0].mxu0
  %4470 = vmatprep.mubr.f32.mxu0 %v4393
  %4471 = vmatmul.mubr.f32.gmra.mrb[0].mxu0 %v4383
  %v4472 = vpop.f32.mrb[0].mxu0
  %v4473 = vadd.f32 0.0, %v4472
  %v4474 = vpop.f32.mrb[0].mxu0
  %4475 = vmatprep.mubr.f32.mxu0 %v4396
  %4476 = vmatmul.mubr.f32.gmra.mrb[0].mxu0 %v4385
  %v4477 = vpop.f32.mrb[0].mxu0
  %v4478 = vadd.f32 0.0, %v4477
  %v4479 = vpop.f32.mrb[0].mxu0
  %4480 = vmatprep.mubr.f32.mxu0 %v4399
  %4481 = vmatmul.mubr.f32.gmra.mrb[0].mxu0 %v4387
  %v4482 = vpop.f32.mrb[0].mxu0
  %v4483 = vadd.f32 0.0, %v4482
  %v4484 = vpop.f32.mrb[0].mxu0
  %4485 = vdwg.mxu0
  %s4486 = scalar_lea.vmem %s5, 32
  %v4487 = vld [vmem:[%s4486] sm:$0xff]
  %v4488 = vld [vmem:[%s4486 + $0x8] sm:$0xff]
  %v4489 = vld [vmem:[%s4486 + $0x10] sm:$0xff]
  %v4490 = vld [vmem:[%s4486 + $0x18] sm:$0xff]
  %v4492 = vsel %vm492, %v4468, 0
  %v4495 = vsel %vm492, %v4473, 0
  %v4498 = vsel %vm492, %v4478, 0
  %v4501 = vsel %vm492, %v4483, 0
  %4503 = vmatprep.subr.mxu0 0.0
  %4504 = vmatpush1.msra.mxu0 %v4487
  %4505 = vmatprep.subr.mxu0 0.0
  %4506 = vmatpush1.msra.mxu0 %v4488
  %4507 = vmatprep.subr.mxu0 0.0
  %4508 = vmatpush1.msra.mxu0 %v4489
  %4509 = vmatprep.subr.mxu0 0.0
  %4510 = vmatpush1.msra.mxu0 %v4490
  %4511 = vmatprep.subr.mxu0 0.0
  %4512 = vmatpush1.msra.mxu0 0.0
  %4513 = vmatprep.subr.mxu0 0.0
  %4514 = vmatpush1.msra.mxu0 0.0
  %4515 = vmatprep.subr.mxu0 0.0
  %4516 = vmatpush1.msra.mxu0 0.0
  %4517 = vmatprep.subr.mxu0 0.0
  %4518 = vmatpush1.msra.mxu0 0.0
  %4519 = vmatprep.subr.mxu0 0.0
  %4520 = vmatpush1.msra.mxu0 0.0
  %4521 = vmatprep.subr.mxu0 0.0
  %4522 = vmatpush1.msra.mxu0 0.0
  %4523 = vmatprep.subr.mxu0 0.0
  %4524 = vmatpush1.msra.mxu0 0.0
  %4525 = vmatprep.subr.mxu0 0.0
  %4526 = vmatpush1.msra.mxu0 0.0
  %4527 = vmatprep.subr.mxu0 0.0
  %4528 = vmatpush1.msra.mxu0 0.0
  %4529 = vmatprep.subr.mxu0 0.0
  %4530 = vmatpush1.msra.mxu0 0.0
  %4531 = vmatprep.subr.mxu0 0.0
  %4532 = vmatpush1.msra.mxu0 0.0
  %4533 = vmatprep.subr.mxu0 0.0
  %4534 = vmatpush1.msra.mxu0 0.0
  %4535 = vmatprep.subr.mxu0 0.0
  %4536 = vmatpush1.msra.mxu0 0.0
  %4537 = vmatprep.subr.mxu0 0.0
  %4538 = vmatpush1.msra.mxu0 0.0
  %4539 = vmatprep.subr.mxu0 0.0
  %4540 = vmatpush1.msra.mxu0 0.0
  %4541 = vmatprep.subr.mxu0 0.0
  %4542 = vmatpush1.msra.mxu0 0.0
  %4543 = vmatprep.subr.mxu0 0.0
  %4544 = vmatpush1.msra.mxu0 0.0
  %4545 = vmatprep.subr.mxu0 0.0
  %4546 = vmatpush1.msra.mxu0 0.0
  %4547 = vmatprep.subr.mxu0 0.0
  %4548 = vmatpush1.msra.mxu0 0.0
  %4549 = vmatprep.subr.mxu0 0.0
  %4550 = vmatpush1.msra.mxu0 0.0
  %4551 = vmatprep.subr.mxu0 0.0
  %4552 = vmatpush1.msra.mxu0 0.0
  %4553 = vmatprep.subr.mxu0 0.0
  %4554 = vmatpush1.msra.mxu0 0.0
  %4555 = vmatprep.subr.mxu0 0.0
  %4556 = vmatpush1.msra.mxu0 0.0
  %4557 = vmatprep.subr.mxu0 0.0
  %4558 = vmatpush1.msra.mxu0 0.0
  %4559 = vmatprep.subr.mxu0 0.0
  %4560 = vmatpush1.msra.mxu0 0.0
  %4561 = vmatprep.subr.mxu0 0.0
  %4562 = vmatpush1.msra.mxu0 0.0
  %4563 = vmatprep.subr.mxu0 0.0
  %4564 = vmatpush1.msra.mxu0 0.0
  %4565 = vmatprep.subr.mxu0 0.0
  %4566 = vmatpush1.msra.mxu0 0.0
  %4567 = vmatprep.mubr.f32.mxu0 0.0
  %4568 = vmatmul.mubr.f32.gmra.mrb[0].mxu0 %v4492
  %v4569 = vpop.f32.mrb[0].mxu0
  %v4570 = vadd.f32 0.0, %v4569
  %v4571 = vpop.f32.mrb[0].mxu0
  %4572 = vmatprep.mubr.f32.mxu0 0.0
  %4573 = vmatmul.mubr.f32.gmra.mrb[0].mxu0 %v4495
  %v4574 = vpop.f32.mrb[0].mxu0
  %v4575 = vadd.f32 0.0, %v4574
  %v4576 = vpop.f32.mrb[0].mxu0
  %4577 = vmatprep.mubr.f32.mxu0 0.0
  %4578 = vmatmul.mubr.f32.gmra.mrb[0].mxu0 %v4498
  %v4579 = vpop.f32.mrb[0].mxu0
  %v4580 = vadd.f32 0.0, %v4579
  %v4581 = vpop.f32.mrb[0].mxu0
  %4582 = vmatprep.mubr.f32.mxu0 0.0
  %4583 = vmatmul.mubr.f32.gmra.mrb[0].mxu0 %v4501
  %v4584 = vpop.f32.mrb[0].mxu0
  %v4585 = vadd.f32 0.0, %v4584
  %v4586 = vpop.f32.mrb[0].mxu0
  %4587 = vdwg.mxu0
  %v4589 = vsel %vm492, %v4358, 0
  %v4592 = vsel %vm492, %v4363, 0
  %v4595 = vsel %vm492, %v4368, 0
  %v4598 = vsel %vm492, %v4373, 0
  %4600 = vmatprep.subr.mxu0 0.0
  %4601 = vmatpush1.msra.mxu0 %v4376
  %4602 = vmatprep.subr.mxu0 0.0
  %4603 = vmatpush1.msra.mxu0 %v4377
  %4604 = vmatprep.subr.mxu0 0.0
  %4605 = vmatpush1.msra.mxu0 %v4378
  %4606 = vmatprep.subr.mxu0 0.0
  %4607 = vmatpush1.msra.mxu0 %v4379
  %4608 = vmatprep.subr.mxu0 0.0
  %4609 = vmatpush1.msra.mxu0 0.0
  %4610 = vmatprep.subr.mxu0 0.0
  %4611 = vmatpush1.msra.mxu0 0.0
  %4612 = vmatprep.subr.mxu0 0.0
  %4613 = vmatpush1.msra.mxu0 0.0
  %4614 = vmatprep.subr.mxu0 0.0
  %4615 = vmatpush1.msra.mxu0 0.0
  %4616 = vmatprep.subr.mxu0 0.0
  %4617 = vmatpush1.msra.mxu0 0.0
  %4618 = vmatprep.subr.mxu0 0.0
  %4619 = vmatpush1.msra.mxu0 0.0
  %4620 = vmatprep.subr.mxu0 0.0
  %4621 = vmatpush1.msra.mxu0 0.0
  %4622 = vmatprep.subr.mxu0 0.0
  %4623 = vmatpush1.msra.mxu0 0.0
  %4624 = vmatprep.subr.mxu0 0.0
  %4625 = vmatpush1.msra.mxu0 0.0
  %4626 = vmatprep.subr.mxu0 0.0
  %4627 = vmatpush1.msra.mxu0 0.0
  %4628 = vmatprep.subr.mxu0 0.0
  %4629 = vmatpush1.msra.mxu0 0.0
  %4630 = vmatprep.subr.mxu0 0.0
  %4631 = vmatpush1.msra.mxu0 0.0
  %4632 = vmatprep.subr.mxu0 0.0
  %4633 = vmatpush1.msra.mxu0 0.0
  %4634 = vmatprep.subr.mxu0 0.0
  %4635 = vmatpush1.msra.mxu0 0.0
  %4636 = vmatprep.subr.mxu0 0.0
  %4637 = vmatpush1.msra.mxu0 0.0
  %4638 = vmatprep.subr.mxu0 0.0
  %4639 = vmatpush1.msra.mxu0 0.0
  %4640 = vmatprep.subr.mxu0 0.0
  %4641 = vmatpush1.msra.mxu0 0.0
  %4642 = vmatprep.subr.mxu0 0.0
  %4643 = vmatpush1.msra.mxu0 0.0
  %4644 = vmatprep.subr.mxu0 0.0
  %4645 = vmatpush1.msra.mxu0 0.0
  %4646 = vmatprep.subr.mxu0 0.0
  %4647 = vmatpush1.msra.mxu0 0.0
  %4648 = vmatprep.subr.mxu0 0.0
  %4649 = vmatpush1.msra.mxu0 0.0
  %4650 = vmatprep.subr.mxu0 0.0
  %4651 = vmatpush1.msra.mxu0 0.0
  %4652 = vmatprep.subr.mxu0 0.0
  %4653 = vmatpush1.msra.mxu0 0.0
  %4654 = vmatprep.subr.mxu0 0.0
  %4655 = vmatpush1.msra.mxu0 0.0
  %4656 = vmatprep.subr.mxu0 0.0
  %4657 = vmatpush1.msra.mxu0 0.0
  %4658 = vmatprep.subr.mxu0 0.0
  %4659 = vmatpush1.msra.mxu0 0.0
  %4660 = vmatprep.subr.mxu0 0.0
  %4661 = vmatpush1.msra.mxu0 0.0
  %4662 = vmatprep.subr.mxu0 0.0
  %4663 = vmatpush1.msra.mxu0 0.0
  %4664 = vmatprep.mubr.f32.mxu0 0.0
  %4665 = vmatmul.mubr.f32.gmra.mrb[0].mxu0 %v4589
  %v4666 = vpop.f32.mrb[0].mxu0
  %v4667 = vadd.f32 %v4570, %v4666
  %v4668 = vpop.f32.mrb[0].mxu0
  %4669 = vmatprep.mubr.f32.mxu0 0.0
  %4670 = vmatmul.mubr.f32.gmra.mrb[0].mxu0 %v4592
  %v4671 = vpop.f32.mrb[0].mxu0
  %v4672 = vadd.f32 %v4575, %v4671
  %v4673 = vpop.f32.mrb[0].mxu0
  %4674 = vmatprep.mubr.f32.mxu0 0.0
  %4675 = vmatmul.mubr.f32.gmra.mrb[0].mxu0 %v4595
  %v4676 = vpop.f32.mrb[0].mxu0
  %v4677 = vadd.f32 %v4580, %v4676
  %v4678 = vpop.f32.mrb[0].mxu0
  %4679 = vmatprep.mubr.f32.mxu0 0.0
  %4680 = vmatmul.mubr.f32.gmra.mrb[0].mxu0 %v4598
  %v4681 = vpop.f32.mrb[0].mxu0
  %v4682 = vadd.f32 %v4585, %v4681
  %v4683 = vpop.f32.mrb[0].mxu0
  %4684 = vdwg.mxu0
  %s4685 = scalar_lea.vmem %s4, 128
  %v4686 = vld [vmem:[%s4685] sm:$0xff]
  %v4687 = vld [vmem:[%s4685 + $0x8] sm:$0xff]
  %v4688 = vld [vmem:[%s4685 + $0x10] sm:$0xff]
  %v4689 = vld [vmem:[%s4685 + $0x18] sm:$0xff]
  %v4690 = vld [vmem:[%s4685 + $0x20] sm:$0xff]
  %v4691 = vld [vmem:[%s4685 + $0x28] sm:$0xff]
  %v4692 = vld [vmem:[%s4685 + $0x30] sm:$0xff]
  %v4693 = vld [vmem:[%s4685 + $0x38] sm:$0xff]
  %v4695 = vsel %vm4278, %v4687, 0
  %v4698 = vsel %vm4278, %v4689, 0
  %v4701 = vsel %vm4278, %v4691, 0
  %v4704 = vsel %vm4278, %v4693, 0
  %4706 = vmatprep.subr.mxu0 0.0
  %4707 = vmatpush1.msra.mxu0 %v4239
  %4708 = vmatprep.subr.mxu0 0.0
  %4709 = vmatpush1.msra.mxu0 %v4240
  %4710 = vmatprep.subr.mxu0 0.0
  %4711 = vmatpush1.msra.mxu0 %v4241
  %4712 = vmatprep.subr.mxu0 0.0
  %4713 = vmatpush1.msra.mxu0 %v4242
  %4714 = vmatprep.subr.mxu0 0.0
  %4715 = vmatpush1.msra.mxu0 %v4243
  %4716 = vmatprep.subr.mxu0 0.0
  %4717 = vmatpush1.msra.mxu0 %v4244
  %4718 = vmatprep.subr.mxu0 0.0
  %4719 = vmatpush1.msra.mxu0 %v4245
  %4720 = vmatprep.subr.mxu0 0.0
  %4721 = vmatpush1.msra.mxu0 %v4246
  %4722 = vmatprep.subr.mxu0 0.0
  %4723 = vmatpush1.msra.mxu0 %v4247
  %4724 = vmatprep.subr.mxu0 0.0
  %4725 = vmatpush1.msra.mxu0 %v4248
  %4726 = vmatprep.subr.mxu0 0.0
  %4727 = vmatpush1.msra.mxu0 %v4249
  %4728 = vmatprep.subr.mxu0 0.0
  %4729 = vmatpush1.msra.mxu0 %v4250
  %4730 = vmatprep.subr.mxu0 0.0
  %4731 = vmatpush1.msra.mxu0 %v4251
  %4732 = vmatprep.subr.mxu0 0.0
  %4733 = vmatpush1.msra.mxu0 %v4252
  %4734 = vmatprep.subr.mxu0 0.0
  %4735 = vmatpush1.msra.mxu0 %v4253
  %4736 = vmatprep.subr.mxu0 0.0
  %4737 = vmatpush1.msra.mxu0 %v4254
  %4738 = vmatprep.subr.mxu0 0.0
  %4739 = vmatpush1.msra.mxu0 %v4255
  %4740 = vmatprep.subr.mxu0 0.0
  %4741 = vmatpush1.msra.mxu0 %v4256
  %4742 = vmatprep.subr.mxu0 0.0
  %4743 = vmatpush1.msra.mxu0 %v4257
  %4744 = vmatprep.subr.mxu0 0.0
  %4745 = vmatpush1.msra.mxu0 %v4258
  %4746 = vmatprep.subr.mxu0 0.0
  %4747 = vmatpush1.msra.mxu0 %v4259
  %4748 = vmatprep.subr.mxu0 0.0
  %4749 = vmatpush1.msra.mxu0 %v4260
  %4750 = vmatprep.subr.mxu0 0.0
  %4751 = vmatpush1.msra.mxu0 %v4261
  %4752 = vmatprep.subr.mxu0 0.0
  %4753 = vmatpush1.msra.mxu0 %v4262
  %4754 = vmatprep.subr.mxu0 0.0
  %4755 = vmatpush1.msra.mxu0 %v4263
  %4756 = vmatprep.subr.mxu0 0.0
  %4757 = vmatpush1.msra.mxu0 %v4264
  %4758 = vmatprep.subr.mxu0 0.0
  %4759 = vmatpush1.msra.mxu0 %v4265
  %4760 = vmatprep.subr.mxu0 0.0
  %4761 = vmatpush1.msra.mxu0 %v4266
  %4762 = vmatprep.subr.mxu0 0.0
  %4763 = vmatpush1.msra.mxu0 %v4267
  %4764 = vmatprep.subr.mxu0 0.0
  %4765 = vmatpush1.msra.mxu0 %v4268
  %4766 = vmatprep.subr.mxu0 0.0
  %4767 = vmatpush1.msra.mxu0 %v4269
  %4768 = vmatprep.subr.mxu0 0.0
  %4769 = vmatpush1.msra.mxu0 0.0
  %4770 = vmatprep.mubr.f32.mxu0 %v4695
  %4771 = vmatmul.mubr.f32.gmra.mrb[0].mxu0 %v4686
  %v4772 = vpop.f32.mrb[0].mxu0
  %v4773 = vadd.f32 0.0, %v4772
  %v4774 = vpop.f32.mrb[0].mxu0
  %4775 = vmatprep.mubr.f32.mxu0 %v4698
  %4776 = vmatmul.mubr.f32.gmra.mrb[0].mxu0 %v4688
  %v4777 = vpop.f32.mrb[0].mxu0
  %v4778 = vadd.f32 0.0, %v4777
  %v4779 = vpop.f32.mrb[0].mxu0
  %4780 = vmatprep.mubr.f32.mxu0 %v4701
  %4781 = vmatmul.mubr.f32.gmra.mrb[0].mxu0 %v4690
  %v4782 = vpop.f32.mrb[0].mxu0
  %v4783 = vadd.f32 0.0, %v4782
  %v4784 = vpop.f32.mrb[0].mxu0
  %4785 = vmatprep.mubr.f32.mxu0 %v4704
  %4786 = vmatmul.mubr.f32.gmra.mrb[0].mxu0 %v4692
  %v4787 = vpop.f32.mrb[0].mxu0
  %v4788 = vadd.f32 0.0, %v4787
  %v4789 = vpop.f32.mrb[0].mxu0
  %4790 = vdwg.mxu0
  %s4791 = scalar_lea.vmem %s5, 64
  %v4792 = vld [vmem:[%s4791] sm:$0xff]
  %v4793 = vld [vmem:[%s4791 + $0x8] sm:$0xff]
  %v4794 = vld [vmem:[%s4791 + $0x10] sm:$0xff]
  %v4795 = vld [vmem:[%s4791 + $0x18] sm:$0xff]
  %v4797 = vsel %vm492, %v4773, 0
  %v4800 = vsel %vm492, %v4778, 0
  %v4803 = vsel %vm492, %v4783, 0
  %v4806 = vsel %vm492, %v4788, 0
  %4808 = vmatprep.subr.mxu0 0.0
  %4809 = vmatpush1.msra.mxu0 %v4792
  %4810 = vmatprep.subr.mxu0 0.0
  %4811 = vmatpush1.msra.mxu0 %v4793
  %4812 = vmatprep.subr.mxu0 0.0
  %4813 = vmatpush1.msra.mxu0 %v4794
  %4814 = vmatprep.subr.mxu0 0.0
  %4815 = vmatpush1.msra.mxu0 %v4795
  %4816 = vmatprep.subr.mxu0 0.0
  %4817 = vmatpush1.msra.mxu0 0.0
  %4818 = vmatprep.subr.mxu0 0.0
  %4819 = vmatpush1.msra.mxu0 0.0
  %4820 = vmatprep.subr.mxu0 0.0
  %4821 = vmatpush1.msra.mxu0 0.0
  %4822 = vmatprep.subr.mxu0 0.0
  %4823 = vmatpush1.msra.mxu0 0.0
  %4824 = vmatprep.subr.mxu0 0.0
  %4825 = vmatpush1.msra.mxu0 0.0
  %4826 = vmatprep.subr.mxu0 0.0
  %4827 = vmatpush1.msra.mxu0 0.0
  %4828 = vmatprep.subr.mxu0 0.0
  %4829 = vmatpush1.msra.mxu0 0.0
  %4830 = vmatprep.subr.mxu0 0.0
  %4831 = vmatpush1.msra.mxu0 0.0
  %4832 = vmatprep.subr.mxu0 0.0
  %4833 = vmatpush1.msra.mxu0 0.0
  %4834 = vmatprep.subr.mxu0 0.0
  %4835 = vmatpush1.msra.mxu0 0.0
  %4836 = vmatprep.subr.mxu0 0.0
  %4837 = vmatpush1.msra.mxu0 0.0
  %4838 = vmatprep.subr.mxu0 0.0
  %4839 = vmatpush1.msra.mxu0 0.0
  %4840 = vmatprep.subr.mxu0 0.0
  %4841 = vmatpush1.msra.mxu0 0.0
  %4842 = vmatprep.subr.mxu0 0.0
  %4843 = vmatpush1.msra.mxu0 0.0
  %4844 = vmatprep.subr.mxu0 0.0
  %4845 = vmatpush1.msra.mxu0 0.0
  %4846 = vmatprep.subr.mxu0 0.0
  %4847 = vmatpush1.msra.mxu0 0.0
  %4848 = vmatprep.subr.mxu0 0.0
  %4849 = vmatpush1.msra.mxu0 0.0
  %4850 = vmatprep.subr.mxu0 0.0
  %4851 = vmatpush1.msra.mxu0 0.0
  %4852 = vmatprep.subr.mxu0 0.0
  %4853 = vmatpush1.msra.mxu0 0.0
  %4854 = vmatprep.subr.mxu0 0.0
  %4855 = vmatpush1.msra.mxu0 0.0
  %4856 = vmatprep.subr.mxu0 0.0
  %4857 = vmatpush1.msra.mxu0 0.0
  %4858 = vmatprep.subr.mxu0 0.0
  %4859 = vmatpush1.msra.mxu0 0.0
  %4860 = vmatprep.subr.mxu0 0.0
  %4861 = vmatpush1.msra.mxu0 0.0
  %4862 = vmatprep.subr.mxu0 0.0
  %4863 = vmatpush1.msra.mxu0 0.0
  %4864 = vmatprep.subr.mxu0 0.0
  %4865 = vmatpush1.msra.mxu0 0.0
  %4866 = vmatprep.subr.mxu0 0.0
  %4867 = vmatpush1.msra.mxu0 0.0
  %4868 = vmatprep.subr.mxu0 0.0
  %4869 = vmatpush1.msra.mxu0 0.0
  %4870 = vmatprep.subr.mxu0 0.0
  %4871 = vmatpush1.msra.mxu0 0.0
  %4872 = vmatprep.mubr.f32.mxu0 0.0
  %4873 = vmatmul.mubr.f32.gmra.mrb[0].mxu0 %v4797
  %v4874 = vpop.f32.mrb[0].mxu0
  %v4875 = vadd.f32 0.0, %v4874
  %v4876 = vpop.f32.mrb[0].mxu0
  %4877 = vmatprep.mubr.f32.mxu0 0.0
  %4878 = vmatmul.mubr.f32.gmra.mrb[0].mxu0 %v4800
  %v4879 = vpop.f32.mrb[0].mxu0
  %v4880 = vadd.f32 0.0, %v4879
  %v4881 = vpop.f32.mrb[0].mxu0
  %4882 = vmatprep.mubr.f32.mxu0 0.0
  %4883 = vmatmul.mubr.f32.gmra.mrb[0].mxu0 %v4803
  %v4884 = vpop.f32.mrb[0].mxu0
  %v4885 = vadd.f32 0.0, %v4884
  %v4886 = vpop.f32.mrb[0].mxu0
  %4887 = vmatprep.mubr.f32.mxu0 0.0
  %4888 = vmatmul.mubr.f32.gmra.mrb[0].mxu0 %v4806
  %v4889 = vpop.f32.mrb[0].mxu0
  %v4890 = vadd.f32 0.0, %v4889
  %v4891 = vpop.f32.mrb[0].mxu0
  %4892 = vdwg.mxu0
  %v4893 = vadd.f32 %v4667, %v4875
  %v4894 = vadd.f32 %v4672, %v4880
  %v4895 = vadd.f32 %v4677, %v4885
  %v4896 = vadd.f32 %v4682, %v4890
  %s4897 = scalar_lea.vmem %s4, 192
  %v4898 = vld [vmem:[%s4897] sm:$0xff]
  %v4899 = vld [vmem:[%s4897 + $0x8] sm:$0xff]
  %v4900 = vld [vmem:[%s4897 + $0x10] sm:$0xff]
  %v4901 = vld [vmem:[%s4897 + $0x18] sm:$0xff]
  %v4902 = vld [vmem:[%s4897 + $0x20] sm:$0xff]
  %v4903 = vld [vmem:[%s4897 + $0x28] sm:$0xff]
  %v4904 = vld [vmem:[%s4897 + $0x30] sm:$0xff]
  %v4905 = vld [vmem:[%s4897 + $0x38] sm:$0xff]
  %v4907 = vsel %vm4278, %v4899, 0
  %v4910 = vsel %vm4278, %v4901, 0
  %v4913 = vsel %vm4278, %v4903, 0
  %v4916 = vsel %vm4278, %v4905, 0
  %4918 = vmatprep.subr.mxu0 0.0
  %4919 = vmatpush1.msra.mxu0 %v4239
  %4920 = vmatprep.subr.mxu0 0.0
  %4921 = vmatpush1.msra.mxu0 %v4240
  %4922 = vmatprep.subr.mxu0 0.0
  %4923 = vmatpush1.msra.mxu0 %v4241
  %4924 = vmatprep.subr.mxu0 0.0
  %4925 = vmatpush1.msra.mxu0 %v4242
  %4926 = vmatprep.subr.mxu0 0.0
  %4927 = vmatpush1.msra.mxu0 %v4243
  %4928 = vmatprep.subr.mxu0 0.0
  %4929 = vmatpush1.msra.mxu0 %v4244
  %4930 = vmatprep.subr.mxu0 0.0
  %4931 = vmatpush1.msra.mxu0 %v4245
  %4932 = vmatprep.subr.mxu0 0.0
  %4933 = vmatpush1.msra.mxu0 %v4246
  %4934 = vmatprep.subr.mxu0 0.0
  %4935 = vmatpush1.msra.mxu0 %v4247
  %4936 = vmatprep.subr.mxu0 0.0
  %4937 = vmatpush1.msra.mxu0 %v4248
  %4938 = vmatprep.subr.mxu0 0.0
  %4939 = vmatpush1.msra.mxu0 %v4249
  %4940 = vmatprep.subr.mxu0 0.0
  %4941 = vmatpush1.msra.mxu0 %v4250
  %4942 = vmatprep.subr.mxu0 0.0
  %4943 = vmatpush1.msra.mxu0 %v4251
  %4944 = vmatprep.subr.mxu0 0.0
  %4945 = vmatpush1.msra.mxu0 %v4252
  %4946 = vmatprep.subr.mxu0 0.0
  %4947 = vmatpush1.msra.mxu0 %v4253
  %4948 = vmatprep.subr.mxu0 0.0
  %4949 = vmatpush1.msra.mxu0 %v4254
  %4950 = vmatprep.subr.mxu0 0.0
  %4951 = vmatpush1.msra.mxu0 %v4255
  %4952 = vmatprep.subr.mxu0 0.0
  %4953 = vmatpush1.msra.mxu0 %v4256
  %4954 = vmatprep.subr.mxu0 0.0
  %4955 = vmatpush1.msra.mxu0 %v4257
  %4956 = vmatprep.subr.mxu0 0.0
  %4957 = vmatpush1.msra.mxu0 %v4258
  %4958 = vmatprep.subr.mxu0 0.0
  %4959 = vmatpush1.msra.mxu0 %v4259
  %4960 = vmatprep.subr.mxu0 0.0
  %4961 = vmatpush1.msra.mxu0 %v4260
  %4962 = vmatprep.subr.mxu0 0.0
  %4963 = vmatpush1.msra.mxu0 %v4261
  %4964 = vmatprep.subr.mxu0 0.0
  %4965 = vmatpush1.msra.mxu0 %v4262
  %4966 = vmatprep.subr.mxu0 0.0
  %4967 = vmatpush1.msra.mxu0 %v4263
  %4968 = vmatprep.subr.mxu0 0.0
  %4969 = vmatpush1.msra.mxu0 %v4264
  %4970 = vmatprep.subr.mxu0 0.0
  %4971 = vmatpush1.msra.mxu0 %v4265
  %4972 = vmatprep.subr.mxu0 0.0
  %4973 = vmatpush1.msra.mxu0 %v4266
  %4974 = vmatprep.subr.mxu0 0.0
  %4975 = vmatpush1.msra.mxu0 %v4267
  %4976 = vmatprep.subr.mxu0 0.0
  %4977 = vmatpush1.msra.mxu0 %v4268
  %4978 = vmatprep.subr.mxu0 0.0
  %4979 = vmatpush1.msra.mxu0 %v4269
  %4980 = vmatprep.subr.mxu0 0.0
  %4981 = vmatpush1.msra.mxu0 0.0
  %4982 = vmatprep.mubr.f32.mxu0 %v4907
  %4983 = vmatmul.mubr.f32.gmra.mrb[0].mxu0 %v4898
  %v4984 = vpop.f32.mrb[0].mxu0
  %v4985 = vadd.f32 0.0, %v4984
  %v4986 = vpop.f32.mrb[0].mxu0
  %4987 = vmatprep.mubr.f32.mxu0 %v4910
  %4988 = vmatmul.mubr.f32.gmra.mrb[0].mxu0 %v4900
  %v4989 = vpop.f32.mrb[0].mxu0
  %v4990 = vadd.f32 0.0, %v4989
  %v4991 = vpop.f32.mrb[0].mxu0
  %4992 = vmatprep.mubr.f32.mxu0 %v4913
  %4993 = vmatmul.mubr.f32.gmra.mrb[0].mxu0 %v4902
  %v4994 = vpop.f32.mrb[0].mxu0
  %v4995 = vadd.f32 0.0, %v4994
  %v4996 = vpop.f32.mrb[0].mxu0
  %4997 = vmatprep.mubr.f32.mxu0 %v4916
  %4998 = vmatmul.mubr.f32.gmra.mrb[0].mxu0 %v4904
  %v4999 = vpop.f32.mrb[0].mxu0
  %v5000 = vadd.f32 0.0, %v4999
  %v5001 = vpop.f32.mrb[0].mxu0
  %5002 = vdwg.mxu0
  %s5003 = scalar_lea.vmem %s5, 96
  %v5004 = vld [vmem:[%s5003] sm:$0xff]
  %v5005 = vld [vmem:[%s5003 + $0x8] sm:$0xff]
  %v5006 = vld [vmem:[%s5003 + $0x10] sm:$0xff]
  %v5007 = vld [vmem:[%s5003 + $0x18] sm:$0xff]
  %v5009 = vsel %vm492, %v4985, 0
  %v5012 = vsel %vm492, %v4990, 0
  %v5015 = vsel %vm492, %v4995, 0
  %v5018 = vsel %vm492, %v5000, 0
  %5020 = vmatprep.subr.mxu0 0.0
  %5021 = vmatpush1.msra.mxu0 %v5004
  %5022 = vmatprep.subr.mxu0 0.0
  %5023 = vmatpush1.msra.mxu0 %v5005
  %5024 = vmatprep.subr.mxu0 0.0
  %5025 = vmatpush1.msra.mxu0 %v5006
  %5026 = vmatprep.subr.mxu0 0.0
  %5027 = vmatpush1.msra.mxu0 %v5007
  %5028 = vmatprep.subr.mxu0 0.0
  %5029 = vmatpush1.msra.mxu0 0.0
  %5030 = vmatprep.subr.mxu0 0.0
  %5031 = vmatpush1.msra.mxu0 0.0
  %5032 = vmatprep.subr.mxu0 0.0
  %5033 = vmatpush1.msra.mxu0 0.0
  %5034 = vmatprep.subr.mxu0 0.0
  %5035 = vmatpush1.msra.mxu0 0.0
  %5036 = vmatprep.subr.mxu0 0.0
  %5037 = vmatpush1.msra.mxu0 0.0
  %5038 = vmatprep.subr.mxu0 0.0
  %5039 = vmatpush1.msra.mxu0 0.0
  %5040 = vmatprep.subr.mxu0 0.0
  %5041 = vmatpush1.msra.mxu0 0.0
  %5042 = vmatprep.subr.mxu0 0.0
  %5043 = vmatpush1.msra.mxu0 0.0
  %5044 = vmatprep.subr.mxu0 0.0
  %5045 = vmatpush1.msra.mxu0 0.0
  %5046 = vmatprep.subr.mxu0 0.0
  %5047 = vmatpush1.msra.mxu0 0.0
  %5048 = vmatprep.subr.mxu0 0.0
  %5049 = vmatpush1.msra.mxu0 0.0
  %5050 = vmatprep.subr.mxu0 0.0
  %5051 = vmatpush1.msra.mxu0 0.0
  %5052 = vmatprep.subr.mxu0 0.0
  %5053 = vmatpush1.msra.mxu0 0.0
  %5054 = vmatprep.subr.mxu0 0.0
  %5055 = vmatpush1.msra.mxu0 0.0
  %5056 = vmatprep.subr.mxu0 0.0
  %5057 = vmatpush1.msra.mxu0 0.0
  %5058 = vmatprep.subr.mxu0 0.0
  %5059 = vmatpush1.msra.mxu0 0.0
  %5060 = vmatprep.subr.mxu0 0.0
  %5061 = vmatpush1.msra.mxu0 0.0
  %5062 = vmatprep.subr.mxu0 0.0
  %5063 = vmatpush1.msra.mxu0 0.0
  %5064 = vmatprep.subr.mxu0 0.0
  %5065 = vmatpush1.msra.mxu0 0.0
  %5066 = vmatprep.subr.mxu0 0.0
  %5067 = vmatpush1.msra.mxu0 0.0
  %5068 = vmatprep.subr.mxu0 0.0
  %5069 = vmatpush1.msra.mxu0 0.0
  %5070 = vmatprep.subr.mxu0 0.0
  %5071 = vmatpush1.msra.mxu0 0.0
  %5072 = vmatprep.subr.mxu0 0.0
  %5073 = vmatpush1.msra.mxu0 0.0
  %5074 = vmatprep.subr.mxu0 0.0
  %5075 = vmatpush1.msra.mxu0 0.0
  %5076 = vmatprep.subr.mxu0 0.0
  %5077 = vmatpush1.msra.mxu0 0.0
  %5078 = vmatprep.subr.mxu0 0.0
  %5079 = vmatpush1.msra.mxu0 0.0
  %5080 = vmatprep.subr.mxu0 0.0
  %5081 = vmatpush1.msra.mxu0 0.0
  %5082 = vmatprep.subr.mxu0 0.0
  %5083 = vmatpush1.msra.mxu0 0.0
  %5084 = vmatprep.mubr.f32.mxu0 0.0
  %5085 = vmatmul.mubr.f32.gmra.mrb[0].mxu0 %v5009
  %v5086 = vpop.f32.mrb[0].mxu0
  %v5087 = vadd.f32 0.0, %v5086
  %v5088 = vpop.f32.mrb[0].mxu0
  %5089 = vmatprep.mubr.f32.mxu0 0.0
  %5090 = vmatmul.mubr.f32.gmra.mrb[0].mxu0 %v5012
  %v5091 = vpop.f32.mrb[0].mxu0
  %v5092 = vadd.f32 0.0, %v5091
  %v5093 = vpop.f32.mrb[0].mxu0
  %5094 = vmatprep.mubr.f32.mxu0 0.0
  %5095 = vmatmul.mubr.f32.gmra.mrb[0].mxu0 %v5015
  %v5096 = vpop.f32.mrb[0].mxu0
  %v5097 = vadd.f32 0.0, %v5096
  %v5098 = vpop.f32.mrb[0].mxu0
  %5099 = vmatprep.mubr.f32.mxu0 0.0
  %5100 = vmatmul.mubr.f32.gmra.mrb[0].mxu0 %v5018
  %v5101 = vpop.f32.mrb[0].mxu0
  %v5102 = vadd.f32 0.0, %v5101
  %v5103 = vpop.f32.mrb[0].mxu0
  %5104 = vdwg.mxu0
  %v5105 = vadd.f32 %v4893, %v5087
  %v5106 = vadd.f32 %v4894, %v5092
  %v5107 = vadd.f32 %v4895, %v5097
  %v5108 = vadd.f32 %v4896, %v5102
  %s5109 = scalar_lea.vmem %s4, 256
  %v5110 = vld [vmem:[%s5109] sm:$0xff]
  %v5111 = vld [vmem:[%s5109 + $0x8] sm:$0xff]
  %v5112 = vld [vmem:[%s5109 + $0x10] sm:$0xff]
  %v5113 = vld [vmem:[%s5109 + $0x18] sm:$0xff]
  %v5114 = vld [vmem:[%s5109 + $0x20] sm:$0xff]
  %v5115 = vld [vmem:[%s5109 + $0x28] sm:$0xff]
  %v5116 = vld [vmem:[%s5109 + $0x30] sm:$0xff]
  %v5117 = vld [vmem:[%s5109 + $0x38] sm:$0xff]
  %v5119 = vsel %vm4278, %v5111, 0
  %v5122 = vsel %vm4278, %v5113, 0
  %v5125 = vsel %vm4278, %v5115, 0
  %v5128 = vsel %vm4278, %v5117, 0
  %5130 = vmatprep.subr.mxu0 0.0
  %5131 = vmatpush1.msra.mxu0 %v4239
  %5132 = vmatprep.subr.mxu0 0.0
  %5133 = vmatpush1.msra.mxu0 %v4240
  %5134 = vmatprep.subr.mxu0 0.0
  %5135 = vmatpush1.msra.mxu0 %v4241
  %5136 = vmatprep.subr.mxu0 0.0
  %5137 = vmatpush1.msra.mxu0 %v4242
  %5138 = vmatprep.subr.mxu0 0.0
  %5139 = vmatpush1.msra.mxu0 %v4243
  %5140 = vmatprep.subr.mxu0 0.0
  %5141 = vmatpush1.msra.mxu0 %v4244
  %5142 = vmatprep.subr.mxu0 0.0
  %5143 = vmatpush1.msra.mxu0 %v4245
  %5144 = vmatprep.subr.mxu0 0.0
  %5145 = vmatpush1.msra.mxu0 %v4246
  %5146 = vmatprep.subr.mxu0 0.0
  %5147 = vmatpush1.msra.mxu0 %v4247
  %5148 = vmatprep.subr.mxu0 0.0
  %5149 = vmatpush1.msra.mxu0 %v4248
  %5150 = vmatprep.subr.mxu0 0.0
  %5151 = vmatpush1.msra.mxu0 %v4249
  %5152 = vmatprep.subr.mxu0 0.0
  %5153 = vmatpush1.msra.mxu0 %v4250
  %5154 = vmatprep.subr.mxu0 0.0
  %5155 = vmatpush1.msra.mxu0 %v4251
  %5156 = vmatprep.subr.mxu0 0.0
  %5157 = vmatpush1.msra.mxu0 %v4252
  %5158 = vmatprep.subr.mxu0 0.0
  %5159 = vmatpush1.msra.mxu0 %v4253
  %5160 = vmatprep.subr.mxu0 0.0
  %5161 = vmatpush1.msra.mxu0 %v4254
  %5162 = vmatprep.subr.mxu0 0.0
  %5163 = vmatpush1.msra.mxu0 %v4255
  %5164 = vmatprep.subr.mxu0 0.0
  %5165 = vmatpush1.msra.mxu0 %v4256
  %5166 = vmatprep.subr.mxu0 0.0
  %5167 = vmatpush1.msra.mxu0 %v4257
  %5168 = vmatprep.subr.mxu0 0.0
  %5169 = vmatpush1.msra.mxu0 %v4258
  %5170 = vmatprep.subr.mxu0 0.0
  %5171 = vmatpush1.msra.mxu0 %v4259
  %5172 = vmatprep.subr.mxu0 0.0
  %5173 = vmatpush1.msra.mxu0 %v4260
  %5174 = vmatprep.subr.mxu0 0.0
  %5175 = vmatpush1.msra.mxu0 %v4261
  %5176 = vmatprep.subr.mxu0 0.0
  %5177 = vmatpush1.msra.mxu0 %v4262
  %5178 = vmatprep.subr.mxu0 0.0
  %5179 = vmatpush1.msra.mxu0 %v4263
  %5180 = vmatprep.subr.mxu0 0.0
  %5181 = vmatpush1.msra.mxu0 %v4264
  %5182 = vmatprep.subr.mxu0 0.0
  %5183 = vmatpush1.msra.mxu0 %v4265
  %5184 = vmatprep.subr.mxu0 0.0
  %5185 = vmatpush1.msra.mxu0 %v4266
  %5186 = vmatprep.subr.mxu0 0.0
  %5187 = vmatpush1.msra.mxu0 %v4267
  %5188 = vmatprep.subr.mxu0 0.0
  %5189 = vmatpush1.msra.mxu0 %v4268
  %5190 = vmatprep.subr.mxu0 0.0
  %5191 = vmatpush1.msra.mxu0 %v4269
  %5192 = vmatprep.subr.mxu0 0.0
  %5193 = vmatpush1.msra.mxu0 0.0
  %5194 = vmatprep.mubr.f32.mxu0 %v5119
  %5195 = vmatmul.mubr.f32.gmra.mrb[0].mxu0 %v5110
  %v5196 = vpop.f32.mrb[0].mxu0
  %v5197 = vadd.f32 0.0, %v5196
  %v5198 = vpop.f32.mrb[0].mxu0
  %5199 = vmatprep.mubr.f32.mxu0 %v5122
  %5200 = vmatmul.mubr.f32.gmra.mrb[0].mxu0 %v5112
  %v5201 = vpop.f32.mrb[0].mxu0
  %v5202 = vadd.f32 0.0, %v5201
  %v5203 = vpop.f32.mrb[0].mxu0
  %5204 = vmatprep.mubr.f32.mxu0 %v5125
  %5205 = vmatmul.mubr.f32.gmra.mrb[0].mxu0 %v5114
  %v5206 = vpop.f32.mrb[0].mxu0
  %v5207 = vadd.f32 0.0, %v5206
  %v5208 = vpop.f32.mrb[0].mxu0
  %5209 = vmatprep.mubr.f32.mxu0 %v5128
  %5210 = vmatmul.mubr.f32.gmra.mrb[0].mxu0 %v5116
  %v5211 = vpop.f32.mrb[0].mxu0
  %v5212 = vadd.f32 0.0, %v5211
  %v5213 = vpop.f32.mrb[0].mxu0
  %5214 = vdwg.mxu0
  %s5215 = scalar_lea.vmem %s5, 128
  %v5216 = vld [vmem:[%s5215] sm:$0xff]
  %v5217 = vld [vmem:[%s5215 + $0x8] sm:$0xff]
  %v5218 = vld [vmem:[%s5215 + $0x10] sm:$0xff]
  %v5219 = vld [vmem:[%s5215 + $0x18] sm:$0xff]
  %v5221 = vsel %vm492, %v5197, 0
  %v5224 = vsel %vm492, %v5202, 0
  %v5227 = vsel %vm492, %v5207, 0
  %v5230 = vsel %vm492, %v5212, 0
  %5232 = vmatprep.subr.mxu0 0.0
  %5233 = vmatpush1.msra.mxu0 %v5216
  %5234 = vmatprep.subr.mxu0 0.0
  %5235 = vmatpush1.msra.mxu0 %v5217
  %5236 = vmatprep.subr.mxu0 0.0
  %5237 = vmatpush1.msra.mxu0 %v5218
  %5238 = vmatprep.subr.mxu0 0.0
  %5239 = vmatpush1.msra.mxu0 %v5219
  %5240 = vmatprep.subr.mxu0 0.0
  %5241 = vmatpush1.msra.mxu0 0.0
  %5242 = vmatprep.subr.mxu0 0.0
  %5243 = vmatpush1.msra.mxu0 0.0
  %5244 = vmatprep.subr.mxu0 0.0
  %5245 = vmatpush1.msra.mxu0 0.0
  %5246 = vmatprep.subr.mxu0 0.0
  %5247 = vmatpush1.msra.mxu0 0.0
  %5248 = vmatprep.subr.mxu0 0.0
  %5249 = vmatpush1.msra.mxu0 0.0
  %5250 = vmatprep.subr.mxu0 0.0
  %5251 = vmatpush1.msra.mxu0 0.0
  %5252 = vmatprep.subr.mxu0 0.0
  %5253 = vmatpush1.msra.mxu0 0.0
  %5254 = vmatprep.subr.mxu0 0.0
  %5255 = vmatpush1.msra.mxu0 0.0
  %5256 = vmatprep.subr.mxu0 0.0
  %5257 = vmatpush1.msra.mxu0 0.0
  %5258 = vmatprep.subr.mxu0 0.0
  %5259 = vmatpush1.msra.mxu0 0.0
  %5260 = vmatprep.subr.mxu0 0.0
  %5261 = vmatpush1.msra.mxu0 0.0
  %5262 = vmatprep.subr.mxu0 0.0
  %5263 = vmatpush1.msra.mxu0 0.0
  %5264 = vmatprep.subr.mxu0 0.0
  %5265 = vmatpush1.msra.mxu0 0.0
  %5266 = vmatprep.subr.mxu0 0.0
  %5267 = vmatpush1.msra.mxu0 0.0
  %5268 = vmatprep.subr.mxu0 0.0
  %5269 = vmatpush1.msra.mxu0 0.0
  %5270 = vmatprep.subr.mxu0 0.0
  %5271 = vmatpush1.msra.mxu0 0.0
  %5272 = vmatprep.subr.mxu0 0.0
  %5273 = vmatpush1.msra.mxu0 0.0
  %5274 = vmatprep.subr.mxu0 0.0
  %5275 = vmatpush1.msra.mxu0 0.0
  %5276 = vmatprep.subr.mxu0 0.0
  %5277 = vmatpush1.msra.mxu0 0.0
  %5278 = vmatprep.subr.mxu0 0.0
  %5279 = vmatpush1.msra.mxu0 0.0
  %5280 = vmatprep.subr.mxu0 0.0
  %5281 = vmatpush1.msra.mxu0 0.0
  %5282 = vmatprep.subr.mxu0 0.0
  %5283 = vmatpush1.msra.mxu0 0.0
  %5284 = vmatprep.subr.mxu0 0.0
  %5285 = vmatpush1.msra.mxu0 0.0
  %5286 = vmatprep.subr.mxu0 0.0
  %5287 = vmatpush1.msra.mxu0 0.0
  %5288 = vmatprep.subr.mxu0 0.0
  %5289 = vmatpush1.msra.mxu0 0.0
  %5290 = vmatprep.subr.mxu0 0.0
  %5291 = vmatpush1.msra.mxu0 0.0
  %5292 = vmatprep.subr.mxu0 0.0
  %5293 = vmatpush1.msra.mxu0 0.0
  %5294 = vmatprep.subr.mxu0 0.0
  %5295 = vmatpush1.msra.mxu0 0.0
  %5296 = vmatprep.mubr.f32.mxu0 0.0
  %5297 = vmatmul.mubr.f32.gmra.mrb[0].mxu0 %v5221
  %v5298 = vpop.f32.mrb[0].mxu0
  %v5299 = vadd.f32 0.0, %v5298
  %v5300 = vpop.f32.mrb[0].mxu0
  %5301 = vmatprep.mubr.f32.mxu0 0.0
  %5302 = vmatmul.mubr.f32.gmra.mrb[0].mxu0 %v5224
  %v5303 = vpop.f32.mrb[0].mxu0
  %v5304 = vadd.f32 0.0, %v5303
  %v5305 = vpop.f32.mrb[0].mxu0
  %5306 = vmatprep.mubr.f32.mxu0 0.0
  %5307 = vmatmul.mubr.f32.gmra.mrb[0].mxu0 %v5227
  %v5308 = vpop.f32.mrb[0].mxu0
  %v5309 = vadd.f32 0.0, %v5308
  %v5310 = vpop.f32.mrb[0].mxu0
  %5311 = vmatprep.mubr.f32.mxu0 0.0
  %5312 = vmatmul.mubr.f32.gmra.mrb[0].mxu0 %v5230
  %v5313 = vpop.f32.mrb[0].mxu0
  %v5314 = vadd.f32 0.0, %v5313
  %v5315 = vpop.f32.mrb[0].mxu0
  %5316 = vdwg.mxu0
  %v5317 = vadd.f32 %v5105, %v5299
  %v5318 = vadd.f32 %v5106, %v5304
  %v5319 = vadd.f32 %v5107, %v5309
  %v5320 = vadd.f32 %v5108, %v5314
  %s5321 = scalar_lea.vmem %s4, 320
  %v5322 = vld [vmem:[%s5321] sm:$0xff]
  %v5323 = vld [vmem:[%s5321 + $0x8] sm:$0xff]
  %v5324 = vld [vmem:[%s5321 + $0x10] sm:$0xff]
  %v5325 = vld [vmem:[%s5321 + $0x18] sm:$0xff]
  %v5326 = vld [vmem:[%s5321 + $0x20] sm:$0xff]
  %v5327 = vld [vmem:[%s5321 + $0x28] sm:$0xff]
  %v5328 = vld [vmem:[%s5321 + $0x30] sm:$0xff]
  %v5329 = vld [vmem:[%s5321 + $0x38] sm:$0xff]
  %v5331 = vsel %vm4278, %v5323, 0
  %v5334 = vsel %vm4278, %v5325, 0
  %v5337 = vsel %vm4278, %v5327, 0
  %v5340 = vsel %vm4278, %v5329, 0
  %5342 = vmatprep.subr.mxu0 0.0
  %5343 = vmatpush1.msra.mxu0 %v4239
  %5344 = vmatprep.subr.mxu0 0.0
  %5345 = vmatpush1.msra.mxu0 %v4240
  %5346 = vmatprep.subr.mxu0 0.0
  %5347 = vmatpush1.msra.mxu0 %v4241
  %5348 = vmatprep.subr.mxu0 0.0
  %5349 = vmatpush1.msra.mxu0 %v4242
  %5350 = vmatprep.subr.mxu0 0.0
  %5351 = vmatpush1.msra.mxu0 %v4243
  %5352 = vmatprep.subr.mxu0 0.0
  %5353 = vmatpush1.msra.mxu0 %v4244
  %5354 = vmatprep.subr.mxu0 0.0
  %5355 = vmatpush1.msra.mxu0 %v4245
  %5356 = vmatprep.subr.mxu0 0.0
  %5357 = vmatpush1.msra.mxu0 %v4246
  %5358 = vmatprep.subr.mxu0 0.0
  %5359 = vmatpush1.msra.mxu0 %v4247
  %5360 = vmatprep.subr.mxu0 0.0
  %5361 = vmatpush1.msra.mxu0 %v4248
  %5362 = vmatprep.subr.mxu0 0.0
  %5363 = vmatpush1.msra.mxu0 %v4249
  %5364 = vmatprep.subr.mxu0 0.0
  %5365 = vmatpush1.msra.mxu0 %v4250
  %5366 = vmatprep.subr.mxu0 0.0
  %5367 = vmatpush1.msra.mxu0 %v4251
  %5368 = vmatprep.subr.mxu0 0.0
  %5369 = vmatpush1.msra.mxu0 %v4252
  %5370 = vmatprep.subr.mxu0 0.0
  %5371 = vmatpush1.msra.mxu0 %v4253
  %5372 = vmatprep.subr.mxu0 0.0
  %5373 = vmatpush1.msra.mxu0 %v4254
  %5374 = vmatprep.subr.mxu0 0.0
  %5375 = vmatpush1.msra.mxu0 %v4255
  %5376 = vmatprep.subr.mxu0 0.0
  %5377 = vmatpush1.msra.mxu0 %v4256
  %5378 = vmatprep.subr.mxu0 0.0
  %5379 = vmatpush1.msra.mxu0 %v4257
  %5380 = vmatprep.subr.mxu0 0.0
  %5381 = vmatpush1.msra.mxu0 %v4258
  %5382 = vmatprep.subr.mxu0 0.0
  %5383 = vmatpush1.msra.mxu0 %v4259
  %5384 = vmatprep.subr.mxu0 0.0
  %5385 = vmatpush1.msra.mxu0 %v4260
  %5386 = vmatprep.subr.mxu0 0.0
  %5387 = vmatpush1.msra.mxu0 %v4261
  %5388 = vmatprep.subr.mxu0 0.0
  %5389 = vmatpush1.msra.mxu0 %v4262
  %5390 = vmatprep.subr.mxu0 0.0
  %5391 = vmatpush1.msra.mxu0 %v4263
  %5392 = vmatprep.subr.mxu0 0.0
  %5393 = vmatpush1.msra.mxu0 %v4264
  %5394 = vmatprep.subr.mxu0 0.0
  %5395 = vmatpush1.msra.mxu0 %v4265
  %5396 = vmatprep.subr.mxu0 0.0
  %5397 = vmatpush1.msra.mxu0 %v4266
  %5398 = vmatprep.subr.mxu0 0.0
  %5399 = vmatpush1.msra.mxu0 %v4267
  %5400 = vmatprep.subr.mxu0 0.0
  %5401 = vmatpush1.msra.mxu0 %v4268
  %5402 = vmatprep.subr.mxu0 0.0
  %5403 = vmatpush1.msra.mxu0 %v4269
  %5404 = vmatprep.subr.mxu0 0.0
  %5405 = vmatpush1.msra.mxu0 0.0
  %5406 = vmatprep.mubr.f32.mxu0 %v5331
  %5407 = vmatmul.mubr.f32.gmra.mrb[0].mxu0 %v5322
  %v5408 = vpop.f32.mrb[0].mxu0
  %v5409 = vadd.f32 0.0, %v5408
  %v5410 = vpop.f32.mrb[0].mxu0
  %5411 = vmatprep.mubr.f32.mxu0 %v5334
  %5412 = vmatmul.mubr.f32.gmra.mrb[0].mxu0 %v5324
  %v5413 = vpop.f32.mrb[0].mxu0
  %v5414 = vadd.f32 0.0, %v5413
  %v5415 = vpop.f32.mrb[0].mxu0
  %5416 = vmatprep.mubr.f32.mxu0 %v5337
  %5417 = vmatmul.mubr.f32.gmra.mrb[0].mxu0 %v5326
  %v5418 = vpop.f32.mrb[0].mxu0
  %v5419 = vadd.f32 0.0, %v5418
  %v5420 = vpop.f32.mrb[0].mxu0
  %5421 = vmatprep.mubr.f32.mxu0 %v5340
  %5422 = vmatmul.mubr.f32.gmra.mrb[0].mxu0 %v5328
  %v5423 = vpop.f32.mrb[0].mxu0
  %v5424 = vadd.f32 0.0, %v5423
  %v5425 = vpop.f32.mrb[0].mxu0
  %5426 = vdwg.mxu0
  %s5427 = scalar_lea.vmem %s5, 160
  %v5428 = vld [vmem:[%s5427] sm:$0xff]
  %v5429 = vld [vmem:[%s5427 + $0x8] sm:$0xff]
  %v5430 = vld [vmem:[%s5427 + $0x10] sm:$0xff]
  %v5431 = vld [vmem:[%s5427 + $0x18] sm:$0xff]
  %v5433 = vsel %vm492, %v5409, 0
  %v5436 = vsel %vm492, %v5414, 0
  %v5439 = vsel %vm492, %v5419, 0
  %v5442 = vsel %vm492, %v5424, 0
  %5444 = vmatprep.subr.mxu0 0.0
  %5445 = vmatpush1.msra.mxu0 %v5428
  %5446 = vmatprep.subr.mxu0 0.0
  %5447 = vmatpush1.msra.mxu0 %v5429
  %5448 = vmatprep.subr.mxu0 0.0
  %5449 = vmatpush1.msra.mxu0 %v5430
  %5450 = vmatprep.subr.mxu0 0.0
  %5451 = vmatpush1.msra.mxu0 %v5431
  %5452 = vmatprep.subr.mxu0 0.0
  %5453 = vmatpush1.msra.mxu0 0.0
  %5454 = vmatprep.subr.mxu0 0.0
  %5455 = vmatpush1.msra.mxu0 0.0
  %5456 = vmatprep.subr.mxu0 0.0
  %5457 = vmatpush1.msra.mxu0 0.0
  %5458 = vmatprep.subr.mxu0 0.0
  %5459 = vmatpush1.msra.mxu0 0.0
  %5460 = vmatprep.subr.mxu0 0.0
  %5461 = vmatpush1.msra.mxu0 0.0
  %5462 = vmatprep.subr.mxu0 0.0
  %5463 = vmatpush1.msra.mxu0 0.0
  %5464 = vmatprep.subr.mxu0 0.0
  %5465 = vmatpush1.msra.mxu0 0.0
  %5466 = vmatprep.subr.mxu0 0.0
  %5467 = vmatpush1.msra.mxu0 0.0
  %5468 = vmatprep.subr.mxu0 0.0
  %5469 = vmatpush1.msra.mxu0 0.0
  %5470 = vmatprep.subr.mxu0 0.0
  %5471 = vmatpush1.msra.mxu0 0.0
  %5472 = vmatprep.subr.mxu0 0.0
  %5473 = vmatpush1.msra.mxu0 0.0
  %5474 = vmatprep.subr.mxu0 0.0
  %5475 = vmatpush1.msra.mxu0 0.0
  %5476 = vmatprep.subr.mxu0 0.0
  %5477 = vmatpush1.msra.mxu0 0.0
  %5478 = vmatprep.subr.mxu0 0.0
  %5479 = vmatpush1.msra.mxu0 0.0
  %5480 = vmatprep.subr.mxu0 0.0
  %5481 = vmatpush1.msra.mxu0 0.0
  %5482 = vmatprep.subr.mxu0 0.0
  %5483 = vmatpush1.msra.mxu0 0.0
  %5484 = vmatprep.subr.mxu0 0.0
  %5485 = vmatpush1.msra.mxu0 0.0
  %5486 = vmatprep.subr.mxu0 0.0
  %5487 = vmatpush1.msra.mxu0 0.0
  %5488 = vmatprep.subr.mxu0 0.0
  %5489 = vmatpush1.msra.mxu0 0.0
  %5490 = vmatprep.subr.mxu0 0.0
  %5491 = vmatpush1.msra.mxu0 0.0
  %5492 = vmatprep.subr.mxu0 0.0
  %5493 = vmatpush1.msra.mxu0 0.0
  %5494 = vmatprep.subr.mxu0 0.0
  %5495 = vmatpush1.msra.mxu0 0.0
  %5496 = vmatprep.subr.mxu0 0.0
  %5497 = vmatpush1.msra.mxu0 0.0
  %5498 = vmatprep.subr.mxu0 0.0
  %5499 = vmatpush1.msra.mxu0 0.0
  %5500 = vmatprep.subr.mxu0 0.0
  %5501 = vmatpush1.msra.mxu0 0.0
  %5502 = vmatprep.subr.mxu0 0.0
  %5503 = vmatpush1.msra.mxu0 0.0
  %5504 = vmatprep.subr.mxu0 0.0
  %5505 = vmatpush1.msra.mxu0 0.0
  %5506 = vmatprep.subr.mxu0 0.0
  %5507 = vmatpush1.msra.mxu0 0.0
  %5508 = vmatprep.mubr.f32.mxu0 0.0
  %5509 = vmatmul.mubr.f32.gmra.mrb[0].mxu0 %v5433
  %v5510 = vpop.f32.mrb[0].mxu0
  %v5511 = vadd.f32 0.0, %v5510
  %v5512 = vpop.f32.mrb[0].mxu0
  %5513 = vmatprep.mubr.f32.mxu0 0.0
  %5514 = vmatmul.mubr.f32.gmra.mrb[0].mxu0 %v5436
  %v5515 = vpop.f32.mrb[0].mxu0
  %v5516 = vadd.f32 0.0, %v5515
  %v5517 = vpop.f32.mrb[0].mxu0
  %5518 = vmatprep.mubr.f32.mxu0 0.0
  %5519 = vmatmul.mubr.f32.gmra.mrb[0].mxu0 %v5439
  %v5520 = vpop.f32.mrb[0].mxu0
  %v5521 = vadd.f32 0.0, %v5520
  %v5522 = vpop.f32.mrb[0].mxu0
  %5523 = vmatprep.mubr.f32.mxu0 0.0
  %5524 = vmatmul.mubr.f32.gmra.mrb[0].mxu0 %v5442
  %v5525 = vpop.f32.mrb[0].mxu0
  %v5526 = vadd.f32 0.0, %v5525
  %v5527 = vpop.f32.mrb[0].mxu0
  %5528 = vdwg.mxu0
  %v5529 = vadd.f32 %v5317, %v5511
  %v5530 = vadd.f32 %v5318, %v5516
  %v5531 = vadd.f32 %v5319, %v5521
  %v5532 = vadd.f32 %v5320, %v5526
  %s5533 = scalar_lea.vmem %s4, 384
  %v5534 = vld [vmem:[%s5533] sm:$0xff]
  %v5535 = vld [vmem:[%s5533 + $0x8] sm:$0xff]
  %v5536 = vld [vmem:[%s5533 + $0x10] sm:$0xff]
  %v5537 = vld [vmem:[%s5533 + $0x18] sm:$0xff]
  %v5538 = vld [vmem:[%s5533 + $0x20] sm:$0xff]
  %v5539 = vld [vmem:[%s5533 + $0x28] sm:$0xff]
  %v5540 = vld [vmem:[%s5533 + $0x30] sm:$0xff]
  %v5541 = vld [vmem:[%s5533 + $0x38] sm:$0xff]
  %v5543 = vsel %vm4278, %v5535, 0
  %v5546 = vsel %vm4278, %v5537, 0
  %v5549 = vsel %vm4278, %v5539, 0
  %v5552 = vsel %vm4278, %v5541, 0
  %5554 = vmatprep.subr.mxu0 0.0
  %5555 = vmatpush1.msra.mxu0 %v4239
  %5556 = vmatprep.subr.mxu0 0.0
  %5557 = vmatpush1.msra.mxu0 %v4240
  %5558 = vmatprep.subr.mxu0 0.0
  %5559 = vmatpush1.msra.mxu0 %v4241
  %5560 = vmatprep.subr.mxu0 0.0
  %5561 = vmatpush1.msra.mxu0 %v4242
  %5562 = vmatprep.subr.mxu0 0.0
  %5563 = vmatpush1.msra.mxu0 %v4243
  %5564 = vmatprep.subr.mxu0 0.0
  %5565 = vmatpush1.msra.mxu0 %v4244
  %5566 = vmatprep.subr.mxu0 0.0
  %5567 = vmatpush1.msra.mxu0 %v4245
  %5568 = vmatprep.subr.mxu0 0.0
  %5569 = vmatpush1.msra.mxu0 %v4246
  %5570 = vmatprep.subr.mxu0 0.0
  %5571 = vmatpush1.msra.mxu0 %v4247
  %5572 = vmatprep.subr.mxu0 0.0
  %5573 = vmatpush1.msra.mxu0 %v4248
  %5574 = vmatprep.subr.mxu0 0.0
  %5575 = vmatpush1.msra.mxu0 %v4249
  %5576 = vmatprep.subr.mxu0 0.0
  %5577 = vmatpush1.msra.mxu0 %v4250
  %5578 = vmatprep.subr.mxu0 0.0
  %5579 = vmatpush1.msra.mxu0 %v4251
  %5580 = vmatprep.subr.mxu0 0.0
  %5581 = vmatpush1.msra.mxu0 %v4252
  %5582 = vmatprep.subr.mxu0 0.0
  %5583 = vmatpush1.msra.mxu0 %v4253
  %5584 = vmatprep.subr.mxu0 0.0
  %5585 = vmatpush1.msra.mxu0 %v4254
  %5586 = vmatprep.subr.mxu0 0.0
  %5587 = vmatpush1.msra.mxu0 %v4255
  %5588 = vmatprep.subr.mxu0 0.0
  %5589 = vmatpush1.msra.mxu0 %v4256
  %5590 = vmatprep.subr.mxu0 0.0
  %5591 = vmatpush1.msra.mxu0 %v4257
  %5592 = vmatprep.subr.mxu0 0.0
  %5593 = vmatpush1.msra.mxu0 %v4258
  %5594 = vmatprep.subr.mxu0 0.0
  %5595 = vmatpush1.msra.mxu0 %v4259
  %5596 = vmatprep.subr.mxu0 0.0
  %5597 = vmatpush1.msra.mxu0 %v4260
  %5598 = vmatprep.subr.mxu0 0.0
  %5599 = vmatpush1.msra.mxu0 %v4261
  %5600 = vmatprep.subr.mxu0 0.0
  %5601 = vmatpush1.msra.mxu0 %v4262
  %5602 = vmatprep.subr.mxu0 0.0
  %5603 = vmatpush1.msra.mxu0 %v4263
  %5604 = vmatprep.subr.mxu0 0.0
  %5605 = vmatpush1.msra.mxu0 %v4264
  %5606 = vmatprep.subr.mxu0 0.0
  %5607 = vmatpush1.msra.mxu0 %v4265
  %5608 = vmatprep.subr.mxu0 0.0
  %5609 = vmatpush1.msra.mxu0 %v4266
  %5610 = vmatprep.subr.mxu0 0.0
  %5611 = vmatpush1.msra.mxu0 %v4267
  %5612 = vmatprep.subr.mxu0 0.0
  %5613 = vmatpush1.msra.mxu0 %v4268
  %5614 = vmatprep.subr.mxu0 0.0
  %5615 = vmatpush1.msra.mxu0 %v4269
  %5616 = vmatprep.subr.mxu0 0.0
  %5617 = vmatpush1.msra.mxu0 0.0
  %5618 = vmatprep.mubr.f32.mxu0 %v5543
  %5619 = vmatmul.mubr.f32.gmra.mrb[0].mxu0 %v5534
  %v5620 = vpop.f32.mrb[0].mxu0
  %v5621 = vadd.f32 0.0, %v5620
  %v5622 = vpop.f32.mrb[0].mxu0
  %5623 = vmatprep.mubr.f32.mxu0 %v5546
  %5624 = vmatmul.mubr.f32.gmra.mrb[0].mxu0 %v5536
  %v5625 = vpop.f32.mrb[0].mxu0
  %v5626 = vadd.f32 0.0, %v5625
  %v5627 = vpop.f32.mrb[0].mxu0
  %5628 = vmatprep.mubr.f32.mxu0 %v5549
  %5629 = vmatmul.mubr.f32.gmra.mrb[0].mxu0 %v5538
  %v5630 = vpop.f32.mrb[0].mxu0
  %v5631 = vadd.f32 0.0, %v5630
  %v5632 = vpop.f32.mrb[0].mxu0
  %5633 = vmatprep.mubr.f32.mxu0 %v5552
  %5634 = vmatmul.mubr.f32.gmra.mrb[0].mxu0 %v5540
  %v5635 = vpop.f32.mrb[0].mxu0
  %v5636 = vadd.f32 0.0, %v5635
  %v5637 = vpop.f32.mrb[0].mxu0
  %5638 = vdwg.mxu0
  %s5639 = scalar_lea.vmem %s5, 192
  %v5640 = vld [vmem:[%s5639] sm:$0xff]
  %v5641 = vld [vmem:[%s5639 + $0x8] sm:$0xff]
  %v5642 = vld [vmem:[%s5639 + $0x10] sm:$0xff]
  %v5643 = vld [vmem:[%s5639 + $0x18] sm:$0xff]
  %v5645 = vsel %vm492, %v5621, 0
  %v5648 = vsel %vm492, %v5626, 0
  %v5651 = vsel %vm492, %v5631, 0
  %v5654 = vsel %vm492, %v5636, 0
  %5656 = vmatprep.subr.mxu0 0.0
  %5657 = vmatpush1.msra.mxu0 %v5640
  %5658 = vmatprep.subr.mxu0 0.0
  %5659 = vmatpush1.msra.mxu0 %v5641
  %5660 = vmatprep.subr.mxu0 0.0
  %5661 = vmatpush1.msra.mxu0 %v5642
  %5662 = vmatprep.subr.mxu0 0.0
  %5663 = vmatpush1.msra.mxu0 %v5643
  %5664 = vmatprep.subr.mxu0 0.0
  %5665 = vmatpush1.msra.mxu0 0.0
  %5666 = vmatprep.subr.mxu0 0.0
  %5667 = vmatpush1.msra.mxu0 0.0
  %5668 = vmatprep.subr.mxu0 0.0
  %5669 = vmatpush1.msra.mxu0 0.0
  %5670 = vmatprep.subr.mxu0 0.0
  %5671 = vmatpush1.msra.mxu0 0.0
  %5672 = vmatprep.subr.mxu0 0.0
  %5673 = vmatpush1.msra.mxu0 0.0
  %5674 = vmatprep.subr.mxu0 0.0
  %5675 = vmatpush1.msra.mxu0 0.0
  %5676 = vmatprep.subr.mxu0 0.0
  %5677 = vmatpush1.msra.mxu0 0.0
  %5678 = vmatprep.subr.mxu0 0.0
  %5679 = vmatpush1.msra.mxu0 0.0
  %5680 = vmatprep.subr.mxu0 0.0
  %5681 = vmatpush1.msra.mxu0 0.0
  %5682 = vmatprep.subr.mxu0 0.0
  %5683 = vmatpush1.msra.mxu0 0.0
  %5684 = vmatprep.subr.mxu0 0.0
  %5685 = vmatpush1.msra.mxu0 0.0
  %5686 = vmatprep.subr.mxu0 0.0
  %5687 = vmatpush1.msra.mxu0 0.0
  %5688 = vmatprep.subr.mxu0 0.0
  %5689 = vmatpush1.msra.mxu0 0.0
  %5690 = vmatprep.subr.mxu0 0.0
  %5691 = vmatpush1.msra.mxu0 0.0
  %5692 = vmatprep.subr.mxu0 0.0
  %5693 = vmatpush1.msra.mxu0 0.0
  %5694 = vmatprep.subr.mxu0 0.0
  %5695 = vmatpush1.msra.mxu0 0.0
  %5696 = vmatprep.subr.mxu0 0.0
  %5697 = vmatpush1.msra.mxu0 0.0
  %5698 = vmatprep.subr.mxu0 0.0
  %5699 = vmatpush1.msra.mxu0 0.0
  %5700 = vmatprep.subr.mxu0 0.0
  %5701 = vmatpush1.msra.mxu0 0.0
  %5702 = vmatprep.subr.mxu0 0.0
  %5703 = vmatpush1.msra.mxu0 0.0
  %5704 = vmatprep.subr.mxu0 0.0
  %5705 = vmatpush1.msra.mxu0 0.0
  %5706 = vmatprep.subr.mxu0 0.0
  %5707 = vmatpush1.msra.mxu0 0.0
  %5708 = vmatprep.subr.mxu0 0.0
  %5709 = vmatpush1.msra.mxu0 0.0
  %5710 = vmatprep.subr.mxu0 0.0
  %5711 = vmatpush1.msra.mxu0 0.0
  %5712 = vmatprep.subr.mxu0 0.0
  %5713 = vmatpush1.msra.mxu0 0.0
  %5714 = vmatprep.subr.mxu0 0.0
  %5715 = vmatpush1.msra.mxu0 0.0
  %5716 = vmatprep.subr.mxu0 0.0
  %5717 = vmatpush1.msra.mxu0 0.0
  %5718 = vmatprep.subr.mxu0 0.0
  %5719 = vmatpush1.msra.mxu0 0.0
  %5720 = vmatprep.mubr.f32.mxu0 0.0
  %5721 = vmatmul.mubr.f32.gmra.mrb[0].mxu0 %v5645
  %v5722 = vpop.f32.mrb[0].mxu0
  %v5723 = vadd.f32 0.0, %v5722
  %v5724 = vpop.f32.mrb[0].mxu0
  %5725 = vmatprep.mubr.f32.mxu0 0.0
  %5726 = vmatmul.mubr.f32.gmra.mrb[0].mxu0 %v5648
  %v5727 = vpop.f32.mrb[0].mxu0
  %v5728 = vadd.f32 0.0, %v5727
  %v5729 = vpop.f32.mrb[0].mxu0
  %5730 = vmatprep.mubr.f32.mxu0 0.0
  %5731 = vmatmul.mubr.f32.gmra.mrb[0].mxu0 %v5651
  %v5732 = vpop.f32.mrb[0].mxu0
  %v5733 = vadd.f32 0.0, %v5732
  %v5734 = vpop.f32.mrb[0].mxu0
  %5735 = vmatprep.mubr.f32.mxu0 0.0
  %5736 = vmatmul.mubr.f32.gmra.mrb[0].mxu0 %v5654
  %v5737 = vpop.f32.mrb[0].mxu0
  %v5738 = vadd.f32 0.0, %v5737
  %v5739 = vpop.f32.mrb[0].mxu0
  %5740 = vdwg.mxu0
  %v5741 = vadd.f32 %v5529, %v5723
  %v5742 = vadd.f32 %v5530, %v5728
  %v5743 = vadd.f32 %v5531, %v5733
  %v5744 = vadd.f32 %v5532, %v5738
  %s5745 = scalar_lea.vmem %s4, 448
  %v5746 = vld [vmem:[%s5745] sm:$0xff]
  %v5747 = vld [vmem:[%s5745 + $0x8] sm:$0xff]
  %v5748 = vld [vmem:[%s5745 + $0x10] sm:$0xff]
  %v5749 = vld [vmem:[%s5745 + $0x18] sm:$0xff]
  %v5750 = vld [vmem:[%s5745 + $0x20] sm:$0xff]
  %v5751 = vld [vmem:[%s5745 + $0x28] sm:$0xff]
  %v5752 = vld [vmem:[%s5745 + $0x30] sm:$0xff]
  %v5753 = vld [vmem:[%s5745 + $0x38] sm:$0xff]
  %v5755 = vsel %vm4278, %v5747, 0
  %v5758 = vsel %vm4278, %v5749, 0
  %v5761 = vsel %vm4278, %v5751, 0
  %v5764 = vsel %vm4278, %v5753, 0
  %5766 = vmatprep.subr.mxu0 0.0
  %5767 = vmatpush1.msra.mxu0 %v4239
  %5768 = vmatprep.subr.mxu0 0.0
  %5769 = vmatpush1.msra.mxu0 %v4240
  %5770 = vmatprep.subr.mxu0 0.0
  %5771 = vmatpush1.msra.mxu0 %v4241
  %5772 = vmatprep.subr.mxu0 0.0
  %5773 = vmatpush1.msra.mxu0 %v4242
  %5774 = vmatprep.subr.mxu0 0.0
  %5775 = vmatpush1.msra.mxu0 %v4243
  %5776 = vmatprep.subr.mxu0 0.0
  %5777 = vmatpush1.msra.mxu0 %v4244
  %5778 = vmatprep.subr.mxu0 0.0
  %5779 = vmatpush1.msra.mxu0 %v4245
  %5780 = vmatprep.subr.mxu0 0.0
  %5781 = vmatpush1.msra.mxu0 %v4246
  %5782 = vmatprep.subr.mxu0 0.0
  %5783 = vmatpush1.msra.mxu0 %v4247
  %5784 = vmatprep.subr.mxu0 0.0
  %5785 = vmatpush1.msra.mxu0 %v4248
  %5786 = vmatprep.subr.mxu0 0.0
  %5787 = vmatpush1.msra.mxu0 %v4249
  %5788 = vmatprep.subr.mxu0 0.0
  %5789 = vmatpush1.msra.mxu0 %v4250
  %5790 = vmatprep.subr.mxu0 0.0
  %5791 = vmatpush1.msra.mxu0 %v4251
  %5792 = vmatprep.subr.mxu0 0.0
  %5793 = vmatpush1.msra.mxu0 %v4252
  %5794 = vmatprep.subr.mxu0 0.0
  %5795 = vmatpush1.msra.mxu0 %v4253
  %5796 = vmatprep.subr.mxu0 0.0
  %5797 = vmatpush1.msra.mxu0 %v4254
  %5798 = vmatprep.subr.mxu0 0.0
  %5799 = vmatpush1.msra.mxu0 %v4255
  %5800 = vmatprep.subr.mxu0 0.0
  %5801 = vmatpush1.msra.mxu0 %v4256
  %5802 = vmatprep.subr.mxu0 0.0
  %5803 = vmatpush1.msra.mxu0 %v4257
  %5804 = vmatprep.subr.mxu0 0.0
  %5805 = vmatpush1.msra.mxu0 %v4258
  %5806 = vmatprep.subr.mxu0 0.0
  %5807 = vmatpush1.msra.mxu0 %v4259
  %5808 = vmatprep.subr.mxu0 0.0
  %5809 = vmatpush1.msra.mxu0 %v4260
  %5810 = vmatprep.subr.mxu0 0.0
  %5811 = vmatpush1.msra.mxu0 %v4261
  %5812 = vmatprep.subr.mxu0 0.0
  %5813 = vmatpush1.msra.mxu0 %v4262
  %5814 = vmatprep.subr.mxu0 0.0
  %5815 = vmatpush1.msra.mxu0 %v4263
  %5816 = vmatprep.subr.mxu0 0.0
  %5817 = vmatpush1.msra.mxu0 %v4264
  %5818 = vmatprep.subr.mxu0 0.0
  %5819 = vmatpush1.msra.mxu0 %v4265
  %5820 = vmatprep.subr.mxu0 0.0
  %5821 = vmatpush1.msra.mxu0 %v4266
  %5822 = vmatprep.subr.mxu0 0.0
  %5823 = vmatpush1.msra.mxu0 %v4267
  %5824 = vmatprep.subr.mxu0 0.0
  %5825 = vmatpush1.msra.mxu0 %v4268
  %5826 = vmatprep.subr.mxu0 0.0
  %5827 = vmatpush1.msra.mxu0 %v4269
  %5828 = vmatprep.subr.mxu0 0.0
  %5829 = vmatpush1.msra.mxu0 0.0
  %5830 = vmatprep.mubr.f32.mxu0 %v5755
  %5831 = vmatmul.mubr.f32.gmra.mrb[0].mxu0 %v5746
  %v5832 = vpop.f32.mrb[0].mxu0
  %v5833 = vadd.f32 0.0, %v5832
  %v5834 = vpop.f32.mrb[0].mxu0
  %5835 = vmatprep.mubr.f32.mxu0 %v5758
  %5836 = vmatmul.mubr.f32.gmra.mrb[0].mxu0 %v5748
  %v5837 = vpop.f32.mrb[0].mxu0
  %v5838 = vadd.f32 0.0, %v5837
  %v5839 = vpop.f32.mrb[0].mxu0
  %5840 = vmatprep.mubr.f32.mxu0 %v5761
  %5841 = vmatmul.mubr.f32.gmra.mrb[0].mxu0 %v5750
  %v5842 = vpop.f32.mrb[0].mxu0
  %v5843 = vadd.f32 0.0, %v5842
  %v5844 = vpop.f32.mrb[0].mxu0
  %5845 = vmatprep.mubr.f32.mxu0 %v5764
  %5846 = vmatmul.mubr.f32.gmra.mrb[0].mxu0 %v5752
  %v5847 = vpop.f32.mrb[0].mxu0
  %v5848 = vadd.f32 0.0, %v5847
  %v5849 = vpop.f32.mrb[0].mxu0
  %5850 = vdwg.mxu0
  %s5851 = scalar_lea.vmem %s5, 224
  %v5852 = vld [vmem:[%s5851] sm:$0xff]
  %v5853 = vld [vmem:[%s5851 + $0x8] sm:$0xff]
  %v5854 = vld [vmem:[%s5851 + $0x10] sm:$0xff]
  %v5855 = vld [vmem:[%s5851 + $0x18] sm:$0xff]
  %v5857 = vsel %vm492, %v5833, 0
  %v5860 = vsel %vm492, %v5838, 0
  %v5863 = vsel %vm492, %v5843, 0
  %v5866 = vsel %vm492, %v5848, 0
  %5868 = vmatprep.subr.mxu0 0.0
  %5869 = vmatpush1.msra.mxu0 %v5852
  %5870 = vmatprep.subr.mxu0 0.0
  %5871 = vmatpush1.msra.mxu0 %v5853
  %5872 = vmatprep.subr.mxu0 0.0
  %5873 = vmatpush1.msra.mxu0 %v5854
  %5874 = vmatprep.subr.mxu0 0.0
  %5875 = vmatpush1.msra.mxu0 %v5855
  %5876 = vmatprep.subr.mxu0 0.0
  %5877 = vmatpush1.msra.mxu0 0.0
  %5878 = vmatprep.subr.mxu0 0.0
  %5879 = vmatpush1.msra.mxu0 0.0
  %5880 = vmatprep.subr.mxu0 0.0
  %5881 = vmatpush1.msra.mxu0 0.0
  %5882 = vmatprep.subr.mxu0 0.0
  %5883 = vmatpush1.msra.mxu0 0.0
  %5884 = vmatprep.subr.mxu0 0.0
  %5885 = vmatpush1.msra.mxu0 0.0
  %5886 = vmatprep.subr.mxu0 0.0
  %5887 = vmatpush1.msra.mxu0 0.0
  %5888 = vmatprep.subr.mxu0 0.0
  %5889 = vmatpush1.msra.mxu0 0.0
  %5890 = vmatprep.subr.mxu0 0.0
  %5891 = vmatpush1.msra.mxu0 0.0
  %5892 = vmatprep.subr.mxu0 0.0
  %5893 = vmatpush1.msra.mxu0 0.0
  %5894 = vmatprep.subr.mxu0 0.0
  %5895 = vmatpush1.msra.mxu0 0.0
  %5896 = vmatprep.subr.mxu0 0.0
  %5897 = vmatpush1.msra.mxu0 0.0
  %5898 = vmatprep.subr.mxu0 0.0
  %5899 = vmatpush1.msra.mxu0 0.0
  %5900 = vmatprep.subr.mxu0 0.0
  %5901 = vmatpush1.msra.mxu0 0.0
  %5902 = vmatprep.subr.mxu0 0.0
  %5903 = vmatpush1.msra.mxu0 0.0
  %5904 = vmatprep.subr.mxu0 0.0
  %5905 = vmatpush1.msra.mxu0 0.0
  %5906 = vmatprep.subr.mxu0 0.0
  %5907 = vmatpush1.msra.mxu0 0.0
  %5908 = vmatprep.subr.mxu0 0.0
  %5909 = vmatpush1.msra.mxu0 0.0
  %5910 = vmatprep.subr.mxu0 0.0
  %5911 = vmatpush1.msra.mxu0 0.0
  %5912 = vmatprep.subr.mxu0 0.0
  %5913 = vmatpush1.msra.mxu0 0.0
  %5914 = vmatprep.subr.mxu0 0.0
  %5915 = vmatpush1.msra.mxu0 0.0
  %5916 = vmatprep.subr.mxu0 0.0
  %5917 = vmatpush1.msra.mxu0 0.0
  %5918 = vmatprep.subr.mxu0 0.0
  %5919 = vmatpush1.msra.mxu0 0.0
  %5920 = vmatprep.subr.mxu0 0.0
  %5921 = vmatpush1.msra.mxu0 0.0
  %5922 = vmatprep.subr.mxu0 0.0
  %5923 = vmatpush1.msra.mxu0 0.0
  %5924 = vmatprep.subr.mxu0 0.0
  %5925 = vmatpush1.msra.mxu0 0.0
  %5926 = vmatprep.subr.mxu0 0.0
  %5927 = vmatpush1.msra.mxu0 0.0
  %5928 = vmatprep.subr.mxu0 0.0
  %5929 = vmatpush1.msra.mxu0 0.0
  %5930 = vmatprep.subr.mxu0 0.0
  %5931 = vmatpush1.msra.mxu0 0.0
  %5932 = vmatprep.mubr.f32.mxu0 0.0
  %5933 = vmatmul.mubr.f32.gmra.mrb[0].mxu0 %v5857
  %v5934 = vpop.f32.mrb[0].mxu0
  %v5935 = vadd.f32 0.0, %v5934
  %v5936 = vpop.f32.mrb[0].mxu0
  %5937 = vmatprep.mubr.f32.mxu0 0.0
  %5938 = vmatmul.mubr.f32.gmra.mrb[0].mxu0 %v5860
  %v5939 = vpop.f32.mrb[0].mxu0
  %v5940 = vadd.f32 0.0, %v5939
  %v5941 = vpop.f32.mrb[0].mxu0
  %5942 = vmatprep.mubr.f32.mxu0 0.0
  %5943 = vmatmul.mubr.f32.gmra.mrb[0].mxu0 %v5863
  %v5944 = vpop.f32.mrb[0].mxu0
  %v5945 = vadd.f32 0.0, %v5944
  %v5946 = vpop.f32.mrb[0].mxu0
  %5947 = vmatprep.mubr.f32.mxu0 0.0
  %5948 = vmatmul.mubr.f32.gmra.mrb[0].mxu0 %v5866
  %v5949 = vpop.f32.mrb[0].mxu0
  %v5950 = vadd.f32 0.0, %v5949
  %v5951 = vpop.f32.mrb[0].mxu0
  %5952 = vdwg.mxu0
  %v5953 = vadd.f32 %v5741, %v5935
  %v5954 = vadd.f32 %v5742, %v5940
  %v5955 = vadd.f32 %v5743, %v5945
  %v5956 = vadd.f32 %v5744, %v5950
  %s5957 = scalar_lea.vmem %s4, 512
  %v5958 = vld [vmem:[%s5957] sm:$0xff]
  %v5959 = vld [vmem:[%s5957 + $0x8] sm:$0xff]
  %v5960 = vld [vmem:[%s5957 + $0x10] sm:$0xff]
  %v5961 = vld [vmem:[%s5957 + $0x18] sm:$0xff]
  %v5962 = vld [vmem:[%s5957 + $0x20] sm:$0xff]
  %v5963 = vld [vmem:[%s5957 + $0x28] sm:$0xff]
  %v5964 = vld [vmem:[%s5957 + $0x30] sm:$0xff]
  %v5965 = vld [vmem:[%s5957 + $0x38] sm:$0xff]
  %v5967 = vsel %vm4278, %v5959, 0
  %v5970 = vsel %vm4278, %v5961, 0
  %v5973 = vsel %vm4278, %v5963, 0
  %v5976 = vsel %vm4278, %v5965, 0
  %5978 = vmatprep.subr.mxu0 0.0
  %5979 = vmatpush1.msra.mxu0 %v4239
  %5980 = vmatprep.subr.mxu0 0.0
  %5981 = vmatpush1.msra.mxu0 %v4240
  %5982 = vmatprep.subr.mxu0 0.0
  %5983 = vmatpush1.msra.mxu0 %v4241
  %5984 = vmatprep.subr.mxu0 0.0
  %5985 = vmatpush1.msra.mxu0 %v4242
  %5986 = vmatprep.subr.mxu0 0.0
  %5987 = vmatpush1.msra.mxu0 %v4243
  %5988 = vmatprep.subr.mxu0 0.0
  %5989 = vmatpush1.msra.mxu0 %v4244
  %5990 = vmatprep.subr.mxu0 0.0
  %5991 = vmatpush1.msra.mxu0 %v4245
  %5992 = vmatprep.subr.mxu0 0.0
  %5993 = vmatpush1.msra.mxu0 %v4246
  %5994 = vmatprep.subr.mxu0 0.0
  %5995 = vmatpush1.msra.mxu0 %v4247
  %5996 = vmatprep.subr.mxu0 0.0
  %5997 = vmatpush1.msra.mxu0 %v4248
  %5998 = vmatprep.subr.mxu0 0.0
  %5999 = vmatpush1.msra.mxu0 %v4249
  %6000 = vmatprep.subr.mxu0 0.0
  %6001 = vmatpush1.msra.mxu0 %v4250
  %6002 = vmatprep.subr.mxu0 0.0
  %6003 = vmatpush1.msra.mxu0 %v4251
  %6004 = vmatprep.subr.mxu0 0.0
  %6005 = vmatpush1.msra.mxu0 %v4252
  %6006 = vmatprep.subr.mxu0 0.0
  %6007 = vmatpush1.msra.mxu0 %v4253
  %6008 = vmatprep.subr.mxu0 0.0
  %6009 = vmatpush1.msra.mxu0 %v4254
  %6010 = vmatprep.subr.mxu0 0.0
  %6011 = vmatpush1.msra.mxu0 %v4255
  %6012 = vmatprep.subr.mxu0 0.0
  %6013 = vmatpush1.msra.mxu0 %v4256
  %6014 = vmatprep.subr.mxu0 0.0
  %6015 = vmatpush1.msra.mxu0 %v4257
  %6016 = vmatprep.subr.mxu0 0.0
  %6017 = vmatpush1.msra.mxu0 %v4258
  %6018 = vmatprep.subr.mxu0 0.0
  %6019 = vmatpush1.msra.mxu0 %v4259
  %6020 = vmatprep.subr.mxu0 0.0
  %6021 = vmatpush1.msra.mxu0 %v4260
  %6022 = vmatprep.subr.mxu0 0.0
  %6023 = vmatpush1.msra.mxu0 %v4261
  %6024 = vmatprep.subr.mxu0 0.0
  %6025 = vmatpush1.msra.mxu0 %v4262
  %6026 = vmatprep.subr.mxu0 0.0
  %6027 = vmatpush1.msra.mxu0 %v4263
  %6028 = vmatprep.subr.mxu0 0.0
  %6029 = vmatpush1.msra.mxu0 %v4264
  %6030 = vmatprep.subr.mxu0 0.0
  %6031 = vmatpush1.msra.mxu0 %v4265
  %6032 = vmatprep.subr.mxu0 0.0
  %6033 = vmatpush1.msra.mxu0 %v4266
  %6034 = vmatprep.subr.mxu0 0.0
  %6035 = vmatpush1.msra.mxu0 %v4267
  %6036 = vmatprep.subr.mxu0 0.0
  %6037 = vmatpush1.msra.mxu0 %v4268
  %6038 = vmatprep.subr.mxu0 0.0
  %6039 = vmatpush1.msra.mxu0 %v4269
  %6040 = vmatprep.subr.mxu0 0.0
  %6041 = vmatpush1.msra.mxu0 0.0
  %6042 = vmatprep.mubr.f32.mxu0 %v5967
  %6043 = vmatmul.mubr.f32.gmra.mrb[0].mxu0 %v5958
  %v6044 = vpop.f32.mrb[0].mxu0
  %v6045 = vadd.f32 0.0, %v6044
  %v6046 = vpop.f32.mrb[0].mxu0
  %6047 = vmatprep.mubr.f32.mxu0 %v5970
  %6048 = vmatmul.mubr.f32.gmra.mrb[0].mxu0 %v5960
  %v6049 = vpop.f32.mrb[0].mxu0
  %v6050 = vadd.f32 0.0, %v6049
  %v6051 = vpop.f32.mrb[0].mxu0
  %6052 = vmatprep.mubr.f32.mxu0 %v5973
  %6053 = vmatmul.mubr.f32.gmra.mrb[0].mxu0 %v5962
  %v6054 = vpop.f32.mrb[0].mxu0
  %v6055 = vadd.f32 0.0, %v6054
  %v6056 = vpop.f32.mrb[0].mxu0
  %6057 = vmatprep.mubr.f32.mxu0 %v5976
  %6058 = vmatmul.mubr.f32.gmra.mrb[0].mxu0 %v5964
  %v6059 = vpop.f32.mrb[0].mxu0
  %v6060 = vadd.f32 0.0, %v6059
  %v6061 = vpop.f32.mrb[0].mxu0
  %6062 = vdwg.mxu0
  %s6063 = scalar_lea.vmem %s5, 256
  %v6064 = vld [vmem:[%s6063] sm:$0xff]
  %v6065 = vld [vmem:[%s6063 + $0x8] sm:$0xff]
  %v6066 = vld [vmem:[%s6063 + $0x10] sm:$0xff]
  %v6067 = vld [vmem:[%s6063 + $0x18] sm:$0xff]
  %v6069 = vsel %vm492, %v6045, 0
  %v6072 = vsel %vm492, %v6050, 0
  %v6075 = vsel %vm492, %v6055, 0
  %v6078 = vsel %vm492, %v6060, 0
  %6080 = vmatprep.subr.mxu0 0.0
  %6081 = vmatpush1.msra.mxu0 %v6064
  %6082 = vmatprep.subr.mxu0 0.0
  %6083 = vmatpush1.msra.mxu0 %v6065
  %6084 = vmatprep.subr.mxu0 0.0
  %6085 = vmatpush1.msra.mxu0 %v6066
  %6086 = vmatprep.subr.mxu0 0.0
  %6087 = vmatpush1.msra.mxu0 %v6067
  %6088 = vmatprep.subr.mxu0 0.0
  %6089 = vmatpush1.msra.mxu0 0.0
  %6090 = vmatprep.subr.mxu0 0.0
  %6091 = vmatpush1.msra.mxu0 0.0
  %6092 = vmatprep.subr.mxu0 0.0
  %6093 = vmatpush1.msra.mxu0 0.0
  %6094 = vmatprep.subr.mxu0 0.0
  %6095 = vmatpush1.msra.mxu0 0.0
  %6096 = vmatprep.subr.mxu0 0.0
  %6097 = vmatpush1.msra.mxu0 0.0
  %6098 = vmatprep.subr.mxu0 0.0
  %6099 = vmatpush1.msra.mxu0 0.0
  %6100 = vmatprep.subr.mxu0 0.0
  %6101 = vmatpush1.msra.mxu0 0.0
  %6102 = vmatprep.subr.mxu0 0.0
  %6103 = vmatpush1.msra.mxu0 0.0
  %6104 = vmatprep.subr.mxu0 0.0
  %6105 = vmatpush1.msra.mxu0 0.0
  %6106 = vmatprep.subr.mxu0 0.0
  %6107 = vmatpush1.msra.mxu0 0.0
  %6108 = vmatprep.subr.mxu0 0.0
  %6109 = vmatpush1.msra.mxu0 0.0
  %6110 = vmatprep.subr.mxu0 0.0
  %6111 = vmatpush1.msra.mxu0 0.0
  %6112 = vmatprep.subr.mxu0 0.0
  %6113 = vmatpush1.msra.mxu0 0.0
  %6114 = vmatprep.subr.mxu0 0.0
  %6115 = vmatpush1.msra.mxu0 0.0
  %6116 = vmatprep.subr.mxu0 0.0
  %6117 = vmatpush1.msra.mxu0 0.0
  %6118 = vmatprep.subr.mxu0 0.0
  %6119 = vmatpush1.msra.mxu0 0.0
  %6120 = vmatprep.subr.mxu0 0.0
  %6121 = vmatpush1.msra.mxu0 0.0
  %6122 = vmatprep.subr.mxu0 0.0
  %6123 = vmatpush1.msra.mxu0 0.0
  %6124 = vmatprep.subr.mxu0 0.0
  %6125 = vmatpush1.msra.mxu0 0.0
  %6126 = vmatprep.subr.mxu0 0.0
  %6127 = vmatpush1.msra.mxu0 0.0
  %6128 = vmatprep.subr.mxu0 0.0
  %6129 = vmatpush1.msra.mxu0 0.0
  %6130 = vmatprep.subr.mxu0 0.0
  %6131 = vmatpush1.msra.mxu0 0.0
  %6132 = vmatprep.subr.mxu0 0.0
  %6133 = vmatpush1.msra.mxu0 0.0
  %6134 = vmatprep.subr.mxu0 0.0
  %6135 = vmatpush1.msra.mxu0 0.0
  %6136 = vmatprep.subr.mxu0 0.0
  %6137 = vmatpush1.msra.mxu0 0.0
  %6138 = vmatprep.subr.mxu0 0.0
  %6139 = vmatpush1.msra.mxu0 0.0
  %6140 = vmatprep.subr.mxu0 0.0
  %6141 = vmatpush1.msra.mxu0 0.0
  %6142 = vmatprep.subr.mxu0 0.0
  %6143 = vmatpush1.msra.mxu0 0.0
  %6144 = vmatprep.mubr.f32.mxu0 0.0
  %6145 = vmatmul.mubr.f32.gmra.mrb[0].mxu0 %v6069
  %v6146 = vpop.f32.mrb[0].mxu0
  %v6147 = vadd.f32 0.0, %v6146
  %v6148 = vpop.f32.mrb[0].mxu0
  %6149 = vmatprep.mubr.f32.mxu0 0.0
  %6150 = vmatmul.mubr.f32.gmra.mrb[0].mxu0 %v6072
  %v6151 = vpop.f32.mrb[0].mxu0
  %v6152 = vadd.f32 0.0, %v6151
  %v6153 = vpop.f32.mrb[0].mxu0
  %6154 = vmatprep.mubr.f32.mxu0 0.0
  %6155 = vmatmul.mubr.f32.gmra.mrb[0].mxu0 %v6075
  %v6156 = vpop.f32.mrb[0].mxu0
  %v6157 = vadd.f32 0.0, %v6156
  %v6158 = vpop.f32.mrb[0].mxu0
  %6159 = vmatprep.mubr.f32.mxu0 0.0
  %6160 = vmatmul.mubr.f32.gmra.mrb[0].mxu0 %v6078
  %v6161 = vpop.f32.mrb[0].mxu0
  %v6162 = vadd.f32 0.0, %v6161
  %v6163 = vpop.f32.mrb[0].mxu0
  %6164 = vdwg.mxu0
  %v6165 = vadd.f32 %v5953, %v6147
  %v6166 = vadd.f32 %v5954, %v6152
  %v6167 = vadd.f32 %v5955, %v6157
  %v6168 = vadd.f32 %v5956, %v6162
  %s6169 = scalar_lea.vmem %s4, 576
  %v6170 = vld [vmem:[%s6169] sm:$0xff]
  %v6171 = vld [vmem:[%s6169 + $0x8] sm:$0xff]
  %v6172 = vld [vmem:[%s6169 + $0x10] sm:$0xff]
  %v6173 = vld [vmem:[%s6169 + $0x18] sm:$0xff]
  %v6174 = vld [vmem:[%s6169 + $0x20] sm:$0xff]
  %v6175 = vld [vmem:[%s6169 + $0x28] sm:$0xff]
  %v6176 = vld [vmem:[%s6169 + $0x30] sm:$0xff]
  %v6177 = vld [vmem:[%s6169 + $0x38] sm:$0xff]
  %v6179 = vsel %vm4278, %v6171, 0
  %v6182 = vsel %vm4278, %v6173, 0
  %v6185 = vsel %vm4278, %v6175, 0
  %v6188 = vsel %vm4278, %v6177, 0
  %6190 = vmatprep.subr.mxu0 0.0
  %6191 = vmatpush1.msra.mxu0 %v4239
  %6192 = vmatprep.subr.mxu0 0.0
  %6193 = vmatpush1.msra.mxu0 %v4240
  %6194 = vmatprep.subr.mxu0 0.0
  %6195 = vmatpush1.msra.mxu0 %v4241
  %6196 = vmatprep.subr.mxu0 0.0
  %6197 = vmatpush1.msra.mxu0 %v4242
  %6198 = vmatprep.subr.mxu0 0.0
  %6199 = vmatpush1.msra.mxu0 %v4243
  %6200 = vmatprep.subr.mxu0 0.0
  %6201 = vmatpush1.msra.mxu0 %v4244
  %6202 = vmatprep.subr.mxu0 0.0
  %6203 = vmatpush1.msra.mxu0 %v4245
  %6204 = vmatprep.subr.mxu0 0.0
  %6205 = vmatpush1.msra.mxu0 %v4246
  %6206 = vmatprep.subr.mxu0 0.0
  %6207 = vmatpush1.msra.mxu0 %v4247
  %6208 = vmatprep.subr.mxu0 0.0
  %6209 = vmatpush1.msra.mxu0 %v4248
  %6210 = vmatprep.subr.mxu0 0.0
  %6211 = vmatpush1.msra.mxu0 %v4249
  %6212 = vmatprep.subr.mxu0 0.0
  %6213 = vmatpush1.msra.mxu0 %v4250
  %6214 = vmatprep.subr.mxu0 0.0
  %6215 = vmatpush1.msra.mxu0 %v4251
  %6216 = vmatprep.subr.mxu0 0.0
  %6217 = vmatpush1.msra.mxu0 %v4252
  %6218 = vmatprep.subr.mxu0 0.0
  %6219 = vmatpush1.msra.mxu0 %v4253
  %6220 = vmatprep.subr.mxu0 0.0
  %6221 = vmatpush1.msra.mxu0 %v4254
  %6222 = vmatprep.subr.mxu0 0.0
  %6223 = vmatpush1.msra.mxu0 %v4255
  %6224 = vmatprep.subr.mxu0 0.0
  %6225 = vmatpush1.msra.mxu0 %v4256
  %6226 = vmatprep.subr.mxu0 0.0
  %6227 = vmatpush1.msra.mxu0 %v4257
  %6228 = vmatprep.subr.mxu0 0.0
  %6229 = vmatpush1.msra.mxu0 %v4258
  %6230 = vmatprep.subr.mxu0 0.0
  %6231 = vmatpush1.msra.mxu0 %v4259
  %6232 = vmatprep.subr.mxu0 0.0
  %6233 = vmatpush1.msra.mxu0 %v4260
  %6234 = vmatprep.subr.mxu0 0.0
  %6235 = vmatpush1.msra.mxu0 %v4261
  %6236 = vmatprep.subr.mxu0 0.0
  %6237 = vmatpush1.msra.mxu0 %v4262
  %6238 = vmatprep.subr.mxu0 0.0
  %6239 = vmatpush1.msra.mxu0 %v4263
  %6240 = vmatprep.subr.mxu0 0.0
  %6241 = vmatpush1.msra.mxu0 %v4264
  %6242 = vmatprep.subr.mxu0 0.0
  %6243 = vmatpush1.msra.mxu0 %v4265
  %6244 = vmatprep.subr.mxu0 0.0
  %6245 = vmatpush1.msra.mxu0 %v4266
  %6246 = vmatprep.subr.mxu0 0.0
  %6247 = vmatpush1.msra.mxu0 %v4267
  %6248 = vmatprep.subr.mxu0 0.0
  %6249 = vmatpush1.msra.mxu0 %v4268
  %6250 = vmatprep.subr.mxu0 0.0
  %6251 = vmatpush1.msra.mxu0 %v4269
  %6252 = vmatprep.subr.mxu0 0.0
  %6253 = vmatpush1.msra.mxu0 0.0
  %6254 = vmatprep.mubr.f32.mxu0 %v6179
  %6255 = vmatmul.mubr.f32.gmra.mrb[0].mxu0 %v6170
  %v6256 = vpop.f32.mrb[0].mxu0
  %v6257 = vadd.f32 0.0, %v6256
  %v6258 = vpop.f32.mrb[0].mxu0
  %6259 = vmatprep.mubr.f32.mxu0 %v6182
  %6260 = vmatmul.mubr.f32.gmra.mrb[0].mxu0 %v6172
  %v6261 = vpop.f32.mrb[0].mxu0
  %v6262 = vadd.f32 0.0, %v6261
  %v6263 = vpop.f32.mrb[0].mxu0
  %6264 = vmatprep.mubr.f32.mxu0 %v6185
  %6265 = vmatmul.mubr.f32.gmra.mrb[0].mxu0 %v6174
  %v6266 = vpop.f32.mrb[0].mxu0
  %v6267 = vadd.f32 0.0, %v6266
  %v6268 = vpop.f32.mrb[0].mxu0
  %6269 = vmatprep.mubr.f32.mxu0 %v6188
  %6270 = vmatmul.mubr.f32.gmra.mrb[0].mxu0 %v6176
  %v6271 = vpop.f32.mrb[0].mxu0
  %v6272 = vadd.f32 0.0, %v6271
  %v6273 = vpop.f32.mrb[0].mxu0
  %6274 = vdwg.mxu0
  %s6275 = scalar_lea.vmem %s5, 288
  %v6276 = vld [vmem:[%s6275] sm:$0xff]
  %v6277 = vld [vmem:[%s6275 + $0x8] sm:$0xff]
  %v6278 = vld [vmem:[%s6275 + $0x10] sm:$0xff]
  %v6279 = vld [vmem:[%s6275 + $0x18] sm:$0xff]
  %v6281 = vsel %vm492, %v6257, 0
  %v6284 = vsel %vm492, %v6262, 0
  %v6287 = vsel %vm492, %v6267, 0
  %v6290 = vsel %vm492, %v6272, 0
  %6292 = vmatprep.subr.mxu0 0.0
  %6293 = vmatpush1.msra.mxu0 %v6276
  %6294 = vmatprep.subr.mxu0 0.0
  %6295 = vmatpush1.msra.mxu0 %v6277
  %6296 = vmatprep.subr.mxu0 0.0
  %6297 = vmatpush1.msra.mxu0 %v6278
  %6298 = vmatprep.subr.mxu0 0.0
  %6299 = vmatpush1.msra.mxu0 %v6279
  %6300 = vmatprep.subr.mxu0 0.0
  %6301 = vmatpush1.msra.mxu0 0.0
  %6302 = vmatprep.subr.mxu0 0.0
  %6303 = vmatpush1.msra.mxu0 0.0
  %6304 = vmatprep.subr.mxu0 0.0
  %6305 = vmatpush1.msra.mxu0 0.0
  %6306 = vmatprep.subr.mxu0 0.0
  %6307 = vmatpush1.msra.mxu0 0.0
  %6308 = vmatprep.subr.mxu0 0.0
  %6309 = vmatpush1.msra.mxu0 0.0
  %6310 = vmatprep.subr.mxu0 0.0
  %6311 = vmatpush1.msra.mxu0 0.0
  %6312 = vmatprep.subr.mxu0 0.0
  %6313 = vmatpush1.msra.mxu0 0.0
  %6314 = vmatprep.subr.mxu0 0.0
  %6315 = vmatpush1.msra.mxu0 0.0
  %6316 = vmatprep.subr.mxu0 0.0
  %6317 = vmatpush1.msra.mxu0 0.0
  %6318 = vmatprep.subr.mxu0 0.0
  %6319 = vmatpush1.msra.mxu0 0.0
  %6320 = vmatprep.subr.mxu0 0.0
  %6321 = vmatpush1.msra.mxu0 0.0
  %6322 = vmatprep.subr.mxu0 0.0
  %6323 = vmatpush1.msra.mxu0 0.0
  %6324 = vmatprep.subr.mxu0 0.0
  %6325 = vmatpush1.msra.mxu0 0.0
  %6326 = vmatprep.subr.mxu0 0.0
  %6327 = vmatpush1.msra.mxu0 0.0
  %6328 = vmatprep.subr.mxu0 0.0
  %6329 = vmatpush1.msra.mxu0 0.0
  %6330 = vmatprep.subr.mxu0 0.0
  %6331 = vmatpush1.msra.mxu0 0.0
  %6332 = vmatprep.subr.mxu0 0.0
  %6333 = vmatpush1.msra.mxu0 0.0
  %6334 = vmatprep.subr.mxu0 0.0
  %6335 = vmatpush1.msra.mxu0 0.0
  %6336 = vmatprep.subr.mxu0 0.0
  %6337 = vmatpush1.msra.mxu0 0.0
  %6338 = vmatprep.subr.mxu0 0.0
  %6339 = vmatpush1.msra.mxu0 0.0
  %6340 = vmatprep.subr.mxu0 0.0
  %6341 = vmatpush1.msra.mxu0 0.0
  %6342 = vmatprep.subr.mxu0 0.0
  %6343 = vmatpush1.msra.mxu0 0.0
  %6344 = vmatprep.subr.mxu0 0.0
  %6345 = vmatpush1.msra.mxu0 0.0
  %6346 = vmatprep.subr.mxu0 0.0
  %6347 = vmatpush1.msra.mxu0 0.0
  %6348 = vmatprep.subr.mxu0 0.0
  %6349 = vmatpush1.msra.mxu0 0.0
  %6350 = vmatprep.subr.mxu0 0.0
  %6351 = vmatpush1.msra.mxu0 0.0
  %6352 = vmatprep.subr.mxu0 0.0
  %6353 = vmatpush1.msra.mxu0 0.0
  %6354 = vmatprep.subr.mxu0 0.0
  %6355 = vmatpush1.msra.mxu0 0.0
  %6356 = vmatprep.mubr.f32.mxu0 0.0
  %6357 = vmatmul.mubr.f32.gmra.mrb[0].mxu0 %v6281
  %v6358 = vpop.f32.mrb[0].mxu0
  %v6359 = vadd.f32 0.0, %v6358
  %v6360 = vpop.f32.mrb[0].mxu0
  %6361 = vmatprep.mubr.f32.mxu0 0.0
  %6362 = vmatmul.mubr.f32.gmra.mrb[0].mxu0 %v6284
  %v6363 = vpop.f32.mrb[0].mxu0
  %v6364 = vadd.f32 0.0, %v6363
  %v6365 = vpop.f32.mrb[0].mxu0
  %6366 = vmatprep.mubr.f32.mxu0 0.0
  %6367 = vmatmul.mubr.f32.gmra.mrb[0].mxu0 %v6287
  %v6368 = vpop.f32.mrb[0].mxu0
  %v6369 = vadd.f32 0.0, %v6368
  %v6370 = vpop.f32.mrb[0].mxu0
  %6371 = vmatprep.mubr.f32.mxu0 0.0
  %6372 = vmatmul.mubr.f32.gmra.mrb[0].mxu0 %v6290
  %v6373 = vpop.f32.mrb[0].mxu0
  %v6374 = vadd.f32 0.0, %v6373
  %v6375 = vpop.f32.mrb[0].mxu0
  %6376 = vdwg.mxu0
  %v6377 = vadd.f32 %v6165, %v6359
  %v6378 = vadd.f32 %v6166, %v6364
  %v6379 = vadd.f32 %v6167, %v6369
  %v6380 = vadd.f32 %v6168, %v6374
  %s6381 = scalar_lea.vmem %s4, 640
  %v6382 = vld [vmem:[%s6381] sm:$0xff]
  %v6383 = vld [vmem:[%s6381 + $0x8] sm:$0xff]
  %v6384 = vld [vmem:[%s6381 + $0x10] sm:$0xff]
  %v6385 = vld [vmem:[%s6381 + $0x18] sm:$0xff]
  %v6386 = vld [vmem:[%s6381 + $0x20] sm:$0xff]
  %v6387 = vld [vmem:[%s6381 + $0x28] sm:$0xff]
  %v6388 = vld [vmem:[%s6381 + $0x30] sm:$0xff]
  %v6389 = vld [vmem:[%s6381 + $0x38] sm:$0xff]
  %v6391 = vsel %vm4278, %v6383, 0
  %v6394 = vsel %vm4278, %v6385, 0
  %v6397 = vsel %vm4278, %v6387, 0
  %v6400 = vsel %vm4278, %v6389, 0
  %6402 = vmatprep.subr.mxu0 0.0
  %6403 = vmatpush1.msra.mxu0 %v4239
  %6404 = vmatprep.subr.mxu0 0.0
  %6405 = vmatpush1.msra.mxu0 %v4240
  %6406 = vmatprep.subr.mxu0 0.0
  %6407 = vmatpush1.msra.mxu0 %v4241
  %6408 = vmatprep.subr.mxu0 0.0
  %6409 = vmatpush1.msra.mxu0 %v4242
  %6410 = vmatprep.subr.mxu0 0.0
  %6411 = vmatpush1.msra.mxu0 %v4243
  %6412 = vmatprep.subr.mxu0 0.0
  %6413 = vmatpush1.msra.mxu0 %v4244
  %6414 = vmatprep.subr.mxu0 0.0
  %6415 = vmatpush1.msra.mxu0 %v4245
  %6416 = vmatprep.subr.mxu0 0.0
  %6417 = vmatpush1.msra.mxu0 %v4246
  %6418 = vmatprep.subr.mxu0 0.0
  %6419 = vmatpush1.msra.mxu0 %v4247
  %6420 = vmatprep.subr.mxu0 0.0
  %6421 = vmatpush1.msra.mxu0 %v4248
  %6422 = vmatprep.subr.mxu0 0.0
  %6423 = vmatpush1.msra.mxu0 %v4249
  %6424 = vmatprep.subr.mxu0 0.0
  %6425 = vmatpush1.msra.mxu0 %v4250
  %6426 = vmatprep.subr.mxu0 0.0
  %6427 = vmatpush1.msra.mxu0 %v4251
  %6428 = vmatprep.subr.mxu0 0.0
  %6429 = vmatpush1.msra.mxu0 %v4252
  %6430 = vmatprep.subr.mxu0 0.0
  %6431 = vmatpush1.msra.mxu0 %v4253
  %6432 = vmatprep.subr.mxu0 0.0
  %6433 = vmatpush1.msra.mxu0 %v4254
  %6434 = vmatprep.subr.mxu0 0.0
  %6435 = vmatpush1.msra.mxu0 %v4255
  %6436 = vmatprep.subr.mxu0 0.0
  %6437 = vmatpush1.msra.mxu0 %v4256
  %6438 = vmatprep.subr.mxu0 0.0
  %6439 = vmatpush1.msra.mxu0 %v4257
  %6440 = vmatprep.subr.mxu0 0.0
  %6441 = vmatpush1.msra.mxu0 %v4258
  %6442 = vmatprep.subr.mxu0 0.0
  %6443 = vmatpush1.msra.mxu0 %v4259
  %6444 = vmatprep.subr.mxu0 0.0
  %6445 = vmatpush1.msra.mxu0 %v4260
  %6446 = vmatprep.subr.mxu0 0.0
  %6447 = vmatpush1.msra.mxu0 %v4261
  %6448 = vmatprep.subr.mxu0 0.0
  %6449 = vmatpush1.msra.mxu0 %v4262
  %6450 = vmatprep.subr.mxu0 0.0
  %6451 = vmatpush1.msra.mxu0 %v4263
  %6452 = vmatprep.subr.mxu0 0.0
  %6453 = vmatpush1.msra.mxu0 %v4264
  %6454 = vmatprep.subr.mxu0 0.0
  %6455 = vmatpush1.msra.mxu0 %v4265
  %6456 = vmatprep.subr.mxu0 0.0
  %6457 = vmatpush1.msra.mxu0 %v4266
  %6458 = vmatprep.subr.mxu0 0.0
  %6459 = vmatpush1.msra.mxu0 %v4267
  %6460 = vmatprep.subr.mxu0 0.0
  %6461 = vmatpush1.msra.mxu0 %v4268
  %6462 = vmatprep.subr.mxu0 0.0
  %6463 = vmatpush1.msra.mxu0 %v4269
  %6464 = vmatprep.subr.mxu0 0.0
  %6465 = vmatpush1.msra.mxu0 0.0
  %6466 = vmatprep.mubr.f32.mxu0 %v6391
  %6467 = vmatmul.mubr.f32.gmra.mrb[0].mxu0 %v6382
  %v6468 = vpop.f32.mrb[0].mxu0
  %v6469 = vadd.f32 0.0, %v6468
  %v6470 = vpop.f32.mrb[0].mxu0
  %6471 = vmatprep.mubr.f32.mxu0 %v6394
  %6472 = vmatmul.mubr.f32.gmra.mrb[0].mxu0 %v6384
  %v6473 = vpop.f32.mrb[0].mxu0
  %v6474 = vadd.f32 0.0, %v6473
  %v6475 = vpop.f32.mrb[0].mxu0
  %6476 = vmatprep.mubr.f32.mxu0 %v6397
  %6477 = vmatmul.mubr.f32.gmra.mrb[0].mxu0 %v6386
  %v6478 = vpop.f32.mrb[0].mxu0
  %v6479 = vadd.f32 0.0, %v6478
  %v6480 = vpop.f32.mrb[0].mxu0
  %6481 = vmatprep.mubr.f32.mxu0 %v6400
  %6482 = vmatmul.mubr.f32.gmra.mrb[0].mxu0 %v6388
  %v6483 = vpop.f32.mrb[0].mxu0
  %v6484 = vadd.f32 0.0, %v6483
  %v6485 = vpop.f32.mrb[0].mxu0
  %6486 = vdwg.mxu0
  %s6487 = scalar_lea.vmem %s5, 320
  %v6488 = vld [vmem:[%s6487] sm:$0xff]
  %v6489 = vld [vmem:[%s6487 + $0x8] sm:$0xff]
  %v6490 = vld [vmem:[%s6487 + $0x10] sm:$0xff]
  %v6491 = vld [vmem:[%s6487 + $0x18] sm:$0xff]
  %v6493 = vsel %vm492, %v6469, 0
  %v6496 = vsel %vm492, %v6474, 0
  %v6499 = vsel %vm492, %v6479, 0
  %v6502 = vsel %vm492, %v6484, 0
  %6504 = vmatprep.subr.mxu0 0.0
  %6505 = vmatpush1.msra.mxu0 %v6488
  %6506 = vmatprep.subr.mxu0 0.0
  %6507 = vmatpush1.msra.mxu0 %v6489
  %6508 = vmatprep.subr.mxu0 0.0
  %6509 = vmatpush1.msra.mxu0 %v6490
  %6510 = vmatprep.subr.mxu0 0.0
  %6511 = vmatpush1.msra.mxu0 %v6491
  %6512 = vmatprep.subr.mxu0 0.0
  %6513 = vmatpush1.msra.mxu0 0.0
  %6514 = vmatprep.subr.mxu0 0.0
  %6515 = vmatpush1.msra.mxu0 0.0
  %6516 = vmatprep.subr.mxu0 0.0
  %6517 = vmatpush1.msra.mxu0 0.0
  %6518 = vmatprep.subr.mxu0 0.0
  %6519 = vmatpush1.msra.mxu0 0.0
  %6520 = vmatprep.subr.mxu0 0.0
  %6521 = vmatpush1.msra.mxu0 0.0
  %6522 = vmatprep.subr.mxu0 0.0
  %6523 = vmatpush1.msra.mxu0 0.0
  %6524 = vmatprep.subr.mxu0 0.0
  %6525 = vmatpush1.msra.mxu0 0.0
  %6526 = vmatprep.subr.mxu0 0.0
  %6527 = vmatpush1.msra.mxu0 0.0
  %6528 = vmatprep.subr.mxu0 0.0
  %6529 = vmatpush1.msra.mxu0 0.0
  %6530 = vmatprep.subr.mxu0 0.0
  %6531 = vmatpush1.msra.mxu0 0.0
  %6532 = vmatprep.subr.mxu0 0.0
  %6533 = vmatpush1.msra.mxu0 0.0
  %6534 = vmatprep.subr.mxu0 0.0
  %6535 = vmatpush1.msra.mxu0 0.0
  %6536 = vmatprep.subr.mxu0 0.0
  %6537 = vmatpush1.msra.mxu0 0.0
  %6538 = vmatprep.subr.mxu0 0.0
  %6539 = vmatpush1.msra.mxu0 0.0
  %6540 = vmatprep.subr.mxu0 0.0
  %6541 = vmatpush1.msra.mxu0 0.0
  %6542 = vmatprep.subr.mxu0 0.0
  %6543 = vmatpush1.msra.mxu0 0.0
  %6544 = vmatprep.subr.mxu0 0.0
  %6545 = vmatpush1.msra.mxu0 0.0
  %6546 = vmatprep.subr.mxu0 0.0
  %6547 = vmatpush1.msra.mxu0 0.0
  %6548 = vmatprep.subr.mxu0 0.0
  %6549 = vmatpush1.msra.mxu0 0.0
  %6550 = vmatprep.subr.mxu0 0.0
  %6551 = vmatpush1.msra.mxu0 0.0
  %6552 = vmatprep.subr.mxu0 0.0
  %6553 = vmatpush1.msra.mxu0 0.0
  %6554 = vmatprep.subr.mxu0 0.0
  %6555 = vmatpush1.msra.mxu0 0.0
  %6556 = vmatprep.subr.mxu0 0.0
  %6557 = vmatpush1.msra.mxu0 0.0
  %6558 = vmatprep.subr.mxu0 0.0
  %6559 = vmatpush1.msra.mxu0 0.0
  %6560 = vmatprep.subr.mxu0 0.0
  %6561 = vmatpush1.msra.mxu0 0.0
  %6562 = vmatprep.subr.mxu0 0.0
  %6563 = vmatpush1.msra.mxu0 0.0
  %6564 = vmatprep.subr.mxu0 0.0
  %6565 = vmatpush1.msra.mxu0 0.0
  %6566 = vmatprep.subr.mxu0 0.0
  %6567 = vmatpush1.msra.mxu0 0.0
  %6568 = vmatprep.mubr.f32.mxu0 0.0
  %6569 = vmatmul.mubr.f32.gmra.mrb[0].mxu0 %v6493
  %v6570 = vpop.f32.mrb[0].mxu0
  %v6571 = vadd.f32 0.0, %v6570
  %v6572 = vpop.f32.mrb[0].mxu0
  %6573 = vmatprep.mubr.f32.mxu0 0.0
  %6574 = vmatmul.mubr.f32.gmra.mrb[0].mxu0 %v6496
  %v6575 = vpop.f32.mrb[0].mxu0
  %v6576 = vadd.f32 0.0, %v6575
  %v6577 = vpop.f32.mrb[0].mxu0
  %6578 = vmatprep.mubr.f32.mxu0 0.0
  %6579 = vmatmul.mubr.f32.gmra.mrb[0].mxu0 %v6499
  %v6580 = vpop.f32.mrb[0].mxu0
  %v6581 = vadd.f32 0.0, %v6580
  %v6582 = vpop.f32.mrb[0].mxu0
  %6583 = vmatprep.mubr.f32.mxu0 0.0
  %6584 = vmatmul.mubr.f32.gmra.mrb[0].mxu0 %v6502
  %v6585 = vpop.f32.mrb[0].mxu0
  %v6586 = vadd.f32 0.0, %v6585
  %v6587 = vpop.f32.mrb[0].mxu0
  %6588 = vdwg.mxu0
  %v6589 = vadd.f32 %v6377, %v6571
  %v6590 = vadd.f32 %v6378, %v6576
  %v6591 = vadd.f32 %v6379, %v6581
  %v6592 = vadd.f32 %v6380, %v6586
  %s6593 = scalar_lea.vmem %s4, 704
  %v6594 = vld [vmem:[%s6593] sm:$0xff]
  %v6595 = vld [vmem:[%s6593 + $0x8] sm:$0xff]
  %v6596 = vld [vmem:[%s6593 + $0x10] sm:$0xff]
  %v6597 = vld [vmem:[%s6593 + $0x18] sm:$0xff]
  %v6598 = vld [vmem:[%s6593 + $0x20] sm:$0xff]
  %v6599 = vld [vmem:[%s6593 + $0x28] sm:$0xff]
  %v6600 = vld [vmem:[%s6593 + $0x30] sm:$0xff]
  %v6601 = vld [vmem:[%s6593 + $0x38] sm:$0xff]
  %v6603 = vsel %vm4278, %v6595, 0
  %v6606 = vsel %vm4278, %v6597, 0
  %v6609 = vsel %vm4278, %v6599, 0
  %v6612 = vsel %vm4278, %v6601, 0
  %6614 = vmatprep.subr.mxu0 0.0
  %6615 = vmatpush1.msra.mxu0 %v4239
  %6616 = vmatprep.subr.mxu0 0.0
  %6617 = vmatpush1.msra.mxu0 %v4240
  %6618 = vmatprep.subr.mxu0 0.0
  %6619 = vmatpush1.msra.mxu0 %v4241
  %6620 = vmatprep.subr.mxu0 0.0
  %6621 = vmatpush1.msra.mxu0 %v4242
  %6622 = vmatprep.subr.mxu0 0.0
  %6623 = vmatpush1.msra.mxu0 %v4243
  %6624 = vmatprep.subr.mxu0 0.0
  %6625 = vmatpush1.msra.mxu0 %v4244
  %6626 = vmatprep.subr.mxu0 0.0
  %6627 = vmatpush1.msra.mxu0 %v4245
  %6628 = vmatprep.subr.mxu0 0.0
  %6629 = vmatpush1.msra.mxu0 %v4246
  %6630 = vmatprep.subr.mxu0 0.0
  %6631 = vmatpush1.msra.mxu0 %v4247
  %6632 = vmatprep.subr.mxu0 0.0
  %6633 = vmatpush1.msra.mxu0 %v4248
  %6634 = vmatprep.subr.mxu0 0.0
  %6635 = vmatpush1.msra.mxu0 %v4249
  %6636 = vmatprep.subr.mxu0 0.0
  %6637 = vmatpush1.msra.mxu0 %v4250
  %6638 = vmatprep.subr.mxu0 0.0
  %6639 = vmatpush1.msra.mxu0 %v4251
  %6640 = vmatprep.subr.mxu0 0.0
  %6641 = vmatpush1.msra.mxu0 %v4252
  %6642 = vmatprep.subr.mxu0 0.0
  %6643 = vmatpush1.msra.mxu0 %v4253
  %6644 = vmatprep.subr.mxu0 0.0
  %6645 = vmatpush1.msra.mxu0 %v4254
  %6646 = vmatprep.subr.mxu0 0.0
  %6647 = vmatpush1.msra.mxu0 %v4255
  %6648 = vmatprep.subr.mxu0 0.0
  %6649 = vmatpush1.msra.mxu0 %v4256
  %6650 = vmatprep.subr.mxu0 0.0
  %6651 = vmatpush1.msra.mxu0 %v4257
  %6652 = vmatprep.subr.mxu0 0.0
  %6653 = vmatpush1.msra.mxu0 %v4258
  %6654 = vmatprep.subr.mxu0 0.0
  %6655 = vmatpush1.msra.mxu0 %v4259
  %6656 = vmatprep.subr.mxu0 0.0
  %6657 = vmatpush1.msra.mxu0 %v4260
  %6658 = vmatprep.subr.mxu0 0.0
  %6659 = vmatpush1.msra.mxu0 %v4261
  %6660 = vmatprep.subr.mxu0 0.0
  %6661 = vmatpush1.msra.mxu0 %v4262
  %6662 = vmatprep.subr.mxu0 0.0
  %6663 = vmatpush1.msra.mxu0 %v4263
  %6664 = vmatprep.subr.mxu0 0.0
  %6665 = vmatpush1.msra.mxu0 %v4264
  %6666 = vmatprep.subr.mxu0 0.0
  %6667 = vmatpush1.msra.mxu0 %v4265
  %6668 = vmatprep.subr.mxu0 0.0
  %6669 = vmatpush1.msra.mxu0 %v4266
  %6670 = vmatprep.subr.mxu0 0.0
  %6671 = vmatpush1.msra.mxu0 %v4267
  %6672 = vmatprep.subr.mxu0 0.0
  %6673 = vmatpush1.msra.mxu0 %v4268
  %6674 = vmatprep.subr.mxu0 0.0
  %6675 = vmatpush1.msra.mxu0 %v4269
  %6676 = vmatprep.subr.mxu0 0.0
  %6677 = vmatpush1.msra.mxu0 0.0
  %6678 = vmatprep.mubr.f32.mxu0 %v6603
  %6679 = vmatmul.mubr.f32.gmra.mrb[0].mxu0 %v6594
  %v6680 = vpop.f32.mrb[0].mxu0
  %v6681 = vadd.f32 0.0, %v6680
  %v6682 = vpop.f32.mrb[0].mxu0
  %6683 = vmatprep.mubr.f32.mxu0 %v6606
  %6684 = vmatmul.mubr.f32.gmra.mrb[0].mxu0 %v6596
  %v6685 = vpop.f32.mrb[0].mxu0
  %v6686 = vadd.f32 0.0, %v6685
  %v6687 = vpop.f32.mrb[0].mxu0
  %6688 = vmatprep.mubr.f32.mxu0 %v6609
  %6689 = vmatmul.mubr.f32.gmra.mrb[0].mxu0 %v6598
  %v6690 = vpop.f32.mrb[0].mxu0
  %v6691 = vadd.f32 0.0, %v6690
  %v6692 = vpop.f32.mrb[0].mxu0
  %6693 = vmatprep.mubr.f32.mxu0 %v6612
  %6694 = vmatmul.mubr.f32.gmra.mrb[0].mxu0 %v6600
  %v6695 = vpop.f32.mrb[0].mxu0
  %v6696 = vadd.f32 0.0, %v6695
  %v6697 = vpop.f32.mrb[0].mxu0
  %6698 = vdwg.mxu0
  %s6699 = scalar_lea.vmem %s5, 352
  %v6700 = vld [vmem:[%s6699] sm:$0xff]
  %v6701 = vld [vmem:[%s6699 + $0x8] sm:$0xff]
  %v6702 = vld [vmem:[%s6699 + $0x10] sm:$0xff]
  %v6703 = vld [vmem:[%s6699 + $0x18] sm:$0xff]
  %v6705 = vsel %vm492, %v6681, 0
  %v6708 = vsel %vm492, %v6686, 0
  %v6711 = vsel %vm492, %v6691, 0
  %v6714 = vsel %vm492, %v6696, 0
  %6716 = vmatprep.subr.mxu0 0.0
  %6717 = vmatpush1.msra.mxu0 %v6700
  %6718 = vmatprep.subr.mxu0 0.0
  %6719 = vmatpush1.msra.mxu0 %v6701
  %6720 = vmatprep.subr.mxu0 0.0
  %6721 = vmatpush1.msra.mxu0 %v6702
  %6722 = vmatprep.subr.mxu0 0.0
  %6723 = vmatpush1.msra.mxu0 %v6703
  %6724 = vmatprep.subr.mxu0 0.0
  %6725 = vmatpush1.msra.mxu0 0.0
  %6726 = vmatprep.subr.mxu0 0.0
  %6727 = vmatpush1.msra.mxu0 0.0
  %6728 = vmatprep.subr.mxu0 0.0
  %6729 = vmatpush1.msra.mxu0 0.0
  %6730 = vmatprep.subr.mxu0 0.0
  %6731 = vmatpush1.msra.mxu0 0.0
  %6732 = vmatprep.subr.mxu0 0.0
  %6733 = vmatpush1.msra.mxu0 0.0
  %6734 = vmatprep.subr.mxu0 0.0
  %6735 = vmatpush1.msra.mxu0 0.0
  %6736 = vmatprep.subr.mxu0 0.0
  %6737 = vmatpush1.msra.mxu0 0.0
  %6738 = vmatprep.subr.mxu0 0.0
  %6739 = vmatpush1.msra.mxu0 0.0
  %6740 = vmatprep.subr.mxu0 0.0
  %6741 = vmatpush1.msra.mxu0 0.0
  %6742 = vmatprep.subr.mxu0 0.0
  %6743 = vmatpush1.msra.mxu0 0.0
  %6744 = vmatprep.subr.mxu0 0.0
  %6745 = vmatpush1.msra.mxu0 0.0
  %6746 = vmatprep.subr.mxu0 0.0
  %6747 = vmatpush1.msra.mxu0 0.0
  %6748 = vmatprep.subr.mxu0 0.0
  %6749 = vmatpush1.msra.mxu0 0.0
  %6750 = vmatprep.subr.mxu0 0.0
  %6751 = vmatpush1.msra.mxu0 0.0
  %6752 = vmatprep.subr.mxu0 0.0
  %6753 = vmatpush1.msra.mxu0 0.0
  %6754 = vmatprep.subr.mxu0 0.0
  %6755 = vmatpush1.msra.mxu0 0.0
  %6756 = vmatprep.subr.mxu0 0.0
  %6757 = vmatpush1.msra.mxu0 0.0
  %6758 = vmatprep.subr.mxu0 0.0
  %6759 = vmatpush1.msra.mxu0 0.0
  %6760 = vmatprep.subr.mxu0 0.0
  %6761 = vmatpush1.msra.mxu0 0.0
  %6762 = vmatprep.subr.mxu0 0.0
  %6763 = vmatpush1.msra.mxu0 0.0
  %6764 = vmatprep.subr.mxu0 0.0
  %6765 = vmatpush1.msra.mxu0 0.0
  %6766 = vmatprep.subr.mxu0 0.0
  %6767 = vmatpush1.msra.mxu0 0.0
  %6768 = vmatprep.subr.mxu0 0.0
  %6769 = vmatpush1.msra.mxu0 0.0
  %6770 = vmatprep.subr.mxu0 0.0
  %6771 = vmatpush1.msra.mxu0 0.0
  %6772 = vmatprep.subr.mxu0 0.0
  %6773 = vmatpush1.msra.mxu0 0.0
  %6774 = vmatprep.subr.mxu0 0.0
  %6775 = vmatpush1.msra.mxu0 0.0
  %6776 = vmatprep.subr.mxu0 0.0
  %6777 = vmatpush1.msra.mxu0 0.0
  %6778 = vmatprep.subr.mxu0 0.0
  %6779 = vmatpush1.msra.mxu0 0.0
  %6780 = vmatprep.mubr.f32.mxu0 0.0
  %6781 = vmatmul.mubr.f32.gmra.mrb[0].mxu0 %v6705
  %v6782 = vpop.f32.mrb[0].mxu0
  %v6783 = vadd.f32 0.0, %v6782
  %v6784 = vpop.f32.mrb[0].mxu0
  %6785 = vmatprep.mubr.f32.mxu0 0.0
  %6786 = vmatmul.mubr.f32.gmra.mrb[0].mxu0 %v6708
  %v6787 = vpop.f32.mrb[0].mxu0
  %v6788 = vadd.f32 0.0, %v6787
  %v6789 = vpop.f32.mrb[0].mxu0
  %6790 = vmatprep.mubr.f32.mxu0 0.0
  %6791 = vmatmul.mubr.f32.gmra.mrb[0].mxu0 %v6711
  %v6792 = vpop.f32.mrb[0].mxu0
  %v6793 = vadd.f32 0.0, %v6792
  %v6794 = vpop.f32.mrb[0].mxu0
  %6795 = vmatprep.mubr.f32.mxu0 0.0
  %6796 = vmatmul.mubr.f32.gmra.mrb[0].mxu0 %v6714
  %v6797 = vpop.f32.mrb[0].mxu0
  %v6798 = vadd.f32 0.0, %v6797
  %v6799 = vpop.f32.mrb[0].mxu0
  %6800 = vdwg.mxu0
  %v6801 = vadd.f32 %v6589, %v6783
  %v6802 = vadd.f32 %v6590, %v6788
  %v6803 = vadd.f32 %v6591, %v6793
  %v6804 = vadd.f32 %v6592, %v6798
  %s6805 = scalar_lea.vmem %s4, 768
  %v6806 = vld [vmem:[%s6805] sm:$0xff]
  %v6807 = vld [vmem:[%s6805 + $0x8] sm:$0xff]
  %v6808 = vld [vmem:[%s6805 + $0x10] sm:$0xff]
  %v6809 = vld [vmem:[%s6805 + $0x18] sm:$0xff]
  %v6810 = vld [vmem:[%s6805 + $0x20] sm:$0xff]
  %v6811 = vld [vmem:[%s6805 + $0x28] sm:$0xff]
  %v6812 = vld [vmem:[%s6805 + $0x30] sm:$0xff]
  %v6813 = vld [vmem:[%s6805 + $0x38] sm:$0xff]
  %v6815 = vsel %vm4278, %v6807, 0
  %v6818 = vsel %vm4278, %v6809, 0
  %v6821 = vsel %vm4278, %v6811, 0
  %v6824 = vsel %vm4278, %v6813, 0
  %6826 = vmatprep.subr.mxu0 0.0
  %6827 = vmatpush1.msra.mxu0 %v4239
  %6828 = vmatprep.subr.mxu0 0.0
  %6829 = vmatpush1.msra.mxu0 %v4240
  %6830 = vmatprep.subr.mxu0 0.0
  %6831 = vmatpush1.msra.mxu0 %v4241
  %6832 = vmatprep.subr.mxu0 0.0
  %6833 = vmatpush1.msra.mxu0 %v4242
  %6834 = vmatprep.subr.mxu0 0.0
  %6835 = vmatpush1.msra.mxu0 %v4243
  %6836 = vmatprep.subr.mxu0 0.0
  %6837 = vmatpush1.msra.mxu0 %v4244
  %6838 = vmatprep.subr.mxu0 0.0
  %6839 = vmatpush1.msra.mxu0 %v4245
  %6840 = vmatprep.subr.mxu0 0.0
  %6841 = vmatpush1.msra.mxu0 %v4246
  %6842 = vmatprep.subr.mxu0 0.0
  %6843 = vmatpush1.msra.mxu0 %v4247
  %6844 = vmatprep.subr.mxu0 0.0
  %6845 = vmatpush1.msra.mxu0 %v4248
  %6846 = vmatprep.subr.mxu0 0.0
  %6847 = vmatpush1.msra.mxu0 %v4249
  %6848 = vmatprep.subr.mxu0 0.0
  %6849 = vmatpush1.msra.mxu0 %v4250
  %6850 = vmatprep.subr.mxu0 0.0
  %6851 = vmatpush1.msra.mxu0 %v4251
  %6852 = vmatprep.subr.mxu0 0.0
  %6853 = vmatpush1.msra.mxu0 %v4252
  %6854 = vmatprep.subr.mxu0 0.0
  %6855 = vmatpush1.msra.mxu0 %v4253
  %6856 = vmatprep.subr.mxu0 0.0
  %6857 = vmatpush1.msra.mxu0 %v4254
  %6858 = vmatprep.subr.mxu0 0.0
  %6859 = vmatpush1.msra.mxu0 %v4255
  %6860 = vmatprep.subr.mxu0 0.0
  %6861 = vmatpush1.msra.mxu0 %v4256
  %6862 = vmatprep.subr.mxu0 0.0
  %6863 = vmatpush1.msra.mxu0 %v4257
  %6864 = vmatprep.subr.mxu0 0.0
  %6865 = vmatpush1.msra.mxu0 %v4258
  %6866 = vmatprep.subr.mxu0 0.0
  %6867 = vmatpush1.msra.mxu0 %v4259
  %6868 = vmatprep.subr.mxu0 0.0
  %6869 = vmatpush1.msra.mxu0 %v4260
  %6870 = vmatprep.subr.mxu0 0.0
  %6871 = vmatpush1.msra.mxu0 %v4261
  %6872 = vmatprep.subr.mxu0 0.0
  %6873 = vmatpush1.msra.mxu0 %v4262
  %6874 = vmatprep.subr.mxu0 0.0
  %6875 = vmatpush1.msra.mxu0 %v4263
  %6876 = vmatprep.subr.mxu0 0.0
  %6877 = vmatpush1.msra.mxu0 %v4264
  %6878 = vmatprep.subr.mxu0 0.0
  %6879 = vmatpush1.msra.mxu0 %v4265
  %6880 = vmatprep.subr.mxu0 0.0
  %6881 = vmatpush1.msra.mxu0 %v4266
  %6882 = vmatprep.subr.mxu0 0.0
  %6883 = vmatpush1.msra.mxu0 %v4267
  %6884 = vmatprep.subr.mxu0 0.0
  %6885 = vmatpush1.msra.mxu0 %v4268
  %6886 = vmatprep.subr.mxu0 0.0
  %6887 = vmatpush1.msra.mxu0 %v4269
  %6888 = vmatprep.subr.mxu0 0.0
  %6889 = vmatpush1.msra.mxu0 0.0
  %6890 = vmatprep.mubr.f32.mxu0 %v6815
  %6891 = vmatmul.mubr.f32.gmra.mrb[0].mxu0 %v6806
  %v6892 = vpop.f32.mrb[0].mxu0
  %v6893 = vadd.f32 0.0, %v6892
  %v6894 = vpop.f32.mrb[0].mxu0
  %6895 = vmatprep.mubr.f32.mxu0 %v6818
  %6896 = vmatmul.mubr.f32.gmra.mrb[0].mxu0 %v6808
  %v6897 = vpop.f32.mrb[0].mxu0
  %v6898 = vadd.f32 0.0, %v6897
  %v6899 = vpop.f32.mrb[0].mxu0
  %6900 = vmatprep.mubr.f32.mxu0 %v6821
  %6901 = vmatmul.mubr.f32.gmra.mrb[0].mxu0 %v6810
  %v6902 = vpop.f32.mrb[0].mxu0
  %v6903 = vadd.f32 0.0, %v6902
  %v6904 = vpop.f32.mrb[0].mxu0
  %6905 = vmatprep.mubr.f32.mxu0 %v6824
  %6906 = vmatmul.mubr.f32.gmra.mrb[0].mxu0 %v6812
  %v6907 = vpop.f32.mrb[0].mxu0
  %v6908 = vadd.f32 0.0, %v6907
  %v6909 = vpop.f32.mrb[0].mxu0
  %6910 = vdwg.mxu0
  %s6911 = scalar_lea.vmem %s5, 384
  %v6912 = vld [vmem:[%s6911] sm:$0xff]
  %v6913 = vld [vmem:[%s6911 + $0x8] sm:$0xff]
  %v6914 = vld [vmem:[%s6911 + $0x10] sm:$0xff]
  %v6915 = vld [vmem:[%s6911 + $0x18] sm:$0xff]
  %v6917 = vsel %vm492, %v6893, 0
  %v6920 = vsel %vm492, %v6898, 0
  %v6923 = vsel %vm492, %v6903, 0
  %v6926 = vsel %vm492, %v6908, 0
  %6928 = vmatprep.subr.mxu0 0.0
  %6929 = vmatpush1.msra.mxu0 %v6912
  %6930 = vmatprep.subr.mxu0 0.0
  %6931 = vmatpush1.msra.mxu0 %v6913
  %6932 = vmatprep.subr.mxu0 0.0
  %6933 = vmatpush1.msra.mxu0 %v6914
  %6934 = vmatprep.subr.mxu0 0.0
  %6935 = vmatpush1.msra.mxu0 %v6915
  %6936 = vmatprep.subr.mxu0 0.0
  %6937 = vmatpush1.msra.mxu0 0.0
  %6938 = vmatprep.subr.mxu0 0.0
  %6939 = vmatpush1.msra.mxu0 0.0
  %6940 = vmatprep.subr.mxu0 0.0
  %6941 = vmatpush1.msra.mxu0 0.0
  %6942 = vmatprep.subr.mxu0 0.0
  %6943 = vmatpush1.msra.mxu0 0.0
  %6944 = vmatprep.subr.mxu0 0.0
  %6945 = vmatpush1.msra.mxu0 0.0
  %6946 = vmatprep.subr.mxu0 0.0
  %6947 = vmatpush1.msra.mxu0 0.0
  %6948 = vmatprep.subr.mxu0 0.0
  %6949 = vmatpush1.msra.mxu0 0.0
  %6950 = vmatprep.subr.mxu0 0.0
  %6951 = vmatpush1.msra.mxu0 0.0
  %6952 = vmatprep.subr.mxu0 0.0
  %6953 = vmatpush1.msra.mxu0 0.0
  %6954 = vmatprep.subr.mxu0 0.0
  %6955 = vmatpush1.msra.mxu0 0.0
  %6956 = vmatprep.subr.mxu0 0.0
  %6957 = vmatpush1.msra.mxu0 0.0
  %6958 = vmatprep.subr.mxu0 0.0
  %6959 = vmatpush1.msra.mxu0 0.0
  %6960 = vmatprep.subr.mxu0 0.0
  %6961 = vmatpush1.msra.mxu0 0.0
  %6962 = vmatprep.subr.mxu0 0.0
  %6963 = vmatpush1.msra.mxu0 0.0
  %6964 = vmatprep.subr.mxu0 0.0
  %6965 = vmatpush1.msra.mxu0 0.0
  %6966 = vmatprep.subr.mxu0 0.0
  %6967 = vmatpush1.msra.mxu0 0.0
  %6968 = vmatprep.subr.mxu0 0.0
  %6969 = vmatpush1.msra.mxu0 0.0
  %6970 = vmatprep.subr.mxu0 0.0
  %6971 = vmatpush1.msra.mxu0 0.0
  %6972 = vmatprep.subr.mxu0 0.0
  %6973 = vmatpush1.msra.mxu0 0.0
  %6974 = vmatprep.subr.mxu0 0.0
  %6975 = vmatpush1.msra.mxu0 0.0
  %6976 = vmatprep.subr.mxu0 0.0
  %6977 = vmatpush1.msra.mxu0 0.0
  %6978 = vmatprep.subr.mxu0 0.0
  %6979 = vmatpush1.msra.mxu0 0.0
  %6980 = vmatprep.subr.mxu0 0.0
  %6981 = vmatpush1.msra.mxu0 0.0
  %6982 = vmatprep.subr.mxu0 0.0
  %6983 = vmatpush1.msra.mxu0 0.0
  %6984 = vmatprep.subr.mxu0 0.0
  %6985 = vmatpush1.msra.mxu0 0.0
  %6986 = vmatprep.subr.mxu0 0.0
  %6987 = vmatpush1.msra.mxu0 0.0
  %6988 = vmatprep.subr.mxu0 0.0
  %6989 = vmatpush1.msra.mxu0 0.0
  %6990 = vmatprep.subr.mxu0 0.0
  %6991 = vmatpush1.msra.mxu0 0.0
  %6992 = vmatprep.mubr.f32.mxu0 0.0
  %6993 = vmatmul.mubr.f32.gmra.mrb[0].mxu0 %v6917
  %v6994 = vpop.f32.mrb[0].mxu0
  %v6995 = vadd.f32 0.0, %v6994
  %v6996 = vpop.f32.mrb[0].mxu0
  %6997 = vmatprep.mubr.f32.mxu0 0.0
  %6998 = vmatmul.mubr.f32.gmra.mrb[0].mxu0 %v6920
  %v6999 = vpop.f32.mrb[0].mxu0
  %v7000 = vadd.f32 0.0, %v6999
  %v7001 = vpop.f32.mrb[0].mxu0
  %7002 = vmatprep.mubr.f32.mxu0 0.0
  %7003 = vmatmul.mubr.f32.gmra.mrb[0].mxu0 %v6923
  %v7004 = vpop.f32.mrb[0].mxu0
  %v7005 = vadd.f32 0.0, %v7004
  %v7006 = vpop.f32.mrb[0].mxu0
  %7007 = vmatprep.mubr.f32.mxu0 0.0
  %7008 = vmatmul.mubr.f32.gmra.mrb[0].mxu0 %v6926
  %v7009 = vpop.f32.mrb[0].mxu0
  %v7010 = vadd.f32 0.0, %v7009
  %v7011 = vpop.f32.mrb[0].mxu0
  %7012 = vdwg.mxu0
  %v7013 = vadd.f32 %v6801, %v6995
  %v7014 = vadd.f32 %v6802, %v7000
  %v7015 = vadd.f32 %v6803, %v7005
  %v7016 = vadd.f32 %v6804, %v7010
  %s7017 = scalar_lea.vmem %s4, 832
  %v7018 = vld [vmem:[%s7017] sm:$0xff]
  %v7019 = vld [vmem:[%s7017 + $0x8] sm:$0xff]
  %v7020 = vld [vmem:[%s7017 + $0x10] sm:$0xff]
  %v7021 = vld [vmem:[%s7017 + $0x18] sm:$0xff]
  %v7022 = vld [vmem:[%s7017 + $0x20] sm:$0xff]
  %v7023 = vld [vmem:[%s7017 + $0x28] sm:$0xff]
  %v7024 = vld [vmem:[%s7017 + $0x30] sm:$0xff]
  %v7025 = vld [vmem:[%s7017 + $0x38] sm:$0xff]
  %v7027 = vsel %vm4278, %v7019, 0
  %v7030 = vsel %vm4278, %v7021, 0
  %v7033 = vsel %vm4278, %v7023, 0
  %v7036 = vsel %vm4278, %v7025, 0
  %7038 = vmatprep.subr.mxu0 0.0
  %7039 = vmatpush1.msra.mxu0 %v4239
  %7040 = vmatprep.subr.mxu0 0.0
  %7041 = vmatpush1.msra.mxu0 %v4240
  %7042 = vmatprep.subr.mxu0 0.0
  %7043 = vmatpush1.msra.mxu0 %v4241
  %7044 = vmatprep.subr.mxu0 0.0
  %7045 = vmatpush1.msra.mxu0 %v4242
  %7046 = vmatprep.subr.mxu0 0.0
  %7047 = vmatpush1.msra.mxu0 %v4243
  %7048 = vmatprep.subr.mxu0 0.0
  %7049 = vmatpush1.msra.mxu0 %v4244
  %7050 = vmatprep.subr.mxu0 0.0
  %7051 = vmatpush1.msra.mxu0 %v4245
  %7052 = vmatprep.subr.mxu0 0.0
  %7053 = vmatpush1.msra.mxu0 %v4246
  %7054 = vmatprep.subr.mxu0 0.0
  %7055 = vmatpush1.msra.mxu0 %v4247
  %7056 = vmatprep.subr.mxu0 0.0
  %7057 = vmatpush1.msra.mxu0 %v4248
  %7058 = vmatprep.subr.mxu0 0.0
  %7059 = vmatpush1.msra.mxu0 %v4249
  %7060 = vmatprep.subr.mxu0 0.0
  %7061 = vmatpush1.msra.mxu0 %v4250
  %7062 = vmatprep.subr.mxu0 0.0
  %7063 = vmatpush1.msra.mxu0 %v4251
  %7064 = vmatprep.subr.mxu0 0.0
  %7065 = vmatpush1.msra.mxu0 %v4252
  %7066 = vmatprep.subr.mxu0 0.0
  %7067 = vmatpush1.msra.mxu0 %v4253
  %7068 = vmatprep.subr.mxu0 0.0
  %7069 = vmatpush1.msra.mxu0 %v4254
  %7070 = vmatprep.subr.mxu0 0.0
  %7071 = vmatpush1.msra.mxu0 %v4255
  %7072 = vmatprep.subr.mxu0 0.0
  %7073 = vmatpush1.msra.mxu0 %v4256
  %7074 = vmatprep.subr.mxu0 0.0
  %7075 = vmatpush1.msra.mxu0 %v4257
  %7076 = vmatprep.subr.mxu0 0.0
  %7077 = vmatpush1.msra.mxu0 %v4258
  %7078 = vmatprep.subr.mxu0 0.0
  %7079 = vmatpush1.msra.mxu0 %v4259
  %7080 = vmatprep.subr.mxu0 0.0
  %7081 = vmatpush1.msra.mxu0 %v4260
  %7082 = vmatprep.subr.mxu0 0.0
  %7083 = vmatpush1.msra.mxu0 %v4261
  %7084 = vmatprep.subr.mxu0 0.0
  %7085 = vmatpush1.msra.mxu0 %v4262
  %7086 = vmatprep.subr.mxu0 0.0
  %7087 = vmatpush1.msra.mxu0 %v4263
  %7088 = vmatprep.subr.mxu0 0.0
  %7089 = vmatpush1.msra.mxu0 %v4264
  %7090 = vmatprep.subr.mxu0 0.0
  %7091 = vmatpush1.msra.mxu0 %v4265
  %7092 = vmatprep.subr.mxu0 0.0
  %7093 = vmatpush1.msra.mxu0 %v4266
  %7094 = vmatprep.subr.mxu0 0.0
  %7095 = vmatpush1.msra.mxu0 %v4267
  %7096 = vmatprep.subr.mxu0 0.0
  %7097 = vmatpush1.msra.mxu0 %v4268
  %7098 = vmatprep.subr.mxu0 0.0
  %7099 = vmatpush1.msra.mxu0 %v4269
  %7100 = vmatprep.subr.mxu0 0.0
  %7101 = vmatpush1.msra.mxu0 0.0
  %7102 = vmatprep.mubr.f32.mxu0 %v7027
  %7103 = vmatmul.mubr.f32.gmra.mrb[0].mxu0 %v7018
  %v7104 = vpop.f32.mrb[0].mxu0
  %v7105 = vadd.f32 0.0, %v7104
  %v7106 = vpop.f32.mrb[0].mxu0
  %7107 = vmatprep.mubr.f32.mxu0 %v7030
  %7108 = vmatmul.mubr.f32.gmra.mrb[0].mxu0 %v7020
  %v7109 = vpop.f32.mrb[0].mxu0
  %v7110 = vadd.f32 0.0, %v7109
  %v7111 = vpop.f32.mrb[0].mxu0
  %7112 = vmatprep.mubr.f32.mxu0 %v7033
  %7113 = vmatmul.mubr.f32.gmra.mrb[0].mxu0 %v7022
  %v7114 = vpop.f32.mrb[0].mxu0
  %v7115 = vadd.f32 0.0, %v7114
  %v7116 = vpop.f32.mrb[0].mxu0
  %7117 = vmatprep.mubr.f32.mxu0 %v7036
  %7118 = vmatmul.mubr.f32.gmra.mrb[0].mxu0 %v7024
  %v7119 = vpop.f32.mrb[0].mxu0
  %v7120 = vadd.f32 0.0, %v7119
  %v7121 = vpop.f32.mrb[0].mxu0
  %7122 = vdwg.mxu0
  %s7123 = scalar_lea.vmem %s5, 416
  %v7124 = vld [vmem:[%s7123] sm:$0xff]
  %v7125 = vld [vmem:[%s7123 + $0x8] sm:$0xff]
  %v7126 = vld [vmem:[%s7123 + $0x10] sm:$0xff]
  %v7127 = vld [vmem:[%s7123 + $0x18] sm:$0xff]
  %v7129 = vsel %vm492, %v7105, 0
  %v7132 = vsel %vm492, %v7110, 0
  %v7135 = vsel %vm492, %v7115, 0
  %v7138 = vsel %vm492, %v7120, 0
  %7140 = vmatprep.subr.mxu0 0.0
  %7141 = vmatpush1.msra.mxu0 %v7124
  %7142 = vmatprep.subr.mxu0 0.0
  %7143 = vmatpush1.msra.mxu0 %v7125
  %7144 = vmatprep.subr.mxu0 0.0
  %7145 = vmatpush1.msra.mxu0 %v7126
  %7146 = vmatprep.subr.mxu0 0.0
  %7147 = vmatpush1.msra.mxu0 %v7127
  %7148 = vmatprep.subr.mxu0 0.0
  %7149 = vmatpush1.msra.mxu0 0.0
  %7150 = vmatprep.subr.mxu0 0.0
  %7151 = vmatpush1.msra.mxu0 0.0
  %7152 = vmatprep.subr.mxu0 0.0
  %7153 = vmatpush1.msra.mxu0 0.0
  %7154 = vmatprep.subr.mxu0 0.0
  %7155 = vmatpush1.msra.mxu0 0.0
  %7156 = vmatprep.subr.mxu0 0.0
  %7157 = vmatpush1.msra.mxu0 0.0
  %7158 = vmatprep.subr.mxu0 0.0
  %7159 = vmatpush1.msra.mxu0 0.0
  %7160 = vmatprep.subr.mxu0 0.0
  %7161 = vmatpush1.msra.mxu0 0.0
  %7162 = vmatprep.subr.mxu0 0.0
  %7163 = vmatpush1.msra.mxu0 0.0
  %7164 = vmatprep.subr.mxu0 0.0
  %7165 = vmatpush1.msra.mxu0 0.0
  %7166 = vmatprep.subr.mxu0 0.0
  %7167 = vmatpush1.msra.mxu0 0.0
  %7168 = vmatprep.subr.mxu0 0.0
  %7169 = vmatpush1.msra.mxu0 0.0
  %7170 = vmatprep.subr.mxu0 0.0
  %7171 = vmatpush1.msra.mxu0 0.0
  %7172 = vmatprep.subr.mxu0 0.0
  %7173 = vmatpush1.msra.mxu0 0.0
  %7174 = vmatprep.subr.mxu0 0.0
  %7175 = vmatpush1.msra.mxu0 0.0
  %7176 = vmatprep.subr.mxu0 0.0
  %7177 = vmatpush1.msra.mxu0 0.0
  %7178 = vmatprep.subr.mxu0 0.0
  %7179 = vmatpush1.msra.mxu0 0.0
  %7180 = vmatprep.subr.mxu0 0.0
  %7181 = vmatpush1.msra.mxu0 0.0
  %7182 = vmatprep.subr.mxu0 0.0
  %7183 = vmatpush1.msra.mxu0 0.0
  %7184 = vmatprep.subr.mxu0 0.0
  %7185 = vmatpush1.msra.mxu0 0.0
  %7186 = vmatprep.subr.mxu0 0.0
  %7187 = vmatpush1.msra.mxu0 0.0
  %7188 = vmatprep.subr.mxu0 0.0
  %7189 = vmatpush1.msra.mxu0 0.0
  %7190 = vmatprep.subr.mxu0 0.0
  %7191 = vmatpush1.msra.mxu0 0.0
  %7192 = vmatprep.subr.mxu0 0.0
  %7193 = vmatpush1.msra.mxu0 0.0
  %7194 = vmatprep.subr.mxu0 0.0
  %7195 = vmatpush1.msra.mxu0 0.0
  %7196 = vmatprep.subr.mxu0 0.0
  %7197 = vmatpush1.msra.mxu0 0.0
  %7198 = vmatprep.subr.mxu0 0.0
  %7199 = vmatpush1.msra.mxu0 0.0
  %7200 = vmatprep.subr.mxu0 0.0
  %7201 = vmatpush1.msra.mxu0 0.0
  %7202 = vmatprep.subr.mxu0 0.0
  %7203 = vmatpush1.msra.mxu0 0.0
  %7204 = vmatprep.mubr.f32.mxu0 0.0
  %7205 = vmatmul.mubr.f32.gmra.mrb[0].mxu0 %v7129
  %v7206 = vpop.f32.mrb[0].mxu0
  %v7207 = vadd.f32 0.0, %v7206
  %v7208 = vpop.f32.mrb[0].mxu0
  %7209 = vmatprep.mubr.f32.mxu0 0.0
  %7210 = vmatmul.mubr.f32.gmra.mrb[0].mxu0 %v7132
  %v7211 = vpop.f32.mrb[0].mxu0
  %v7212 = vadd.f32 0.0, %v7211
  %v7213 = vpop.f32.mrb[0].mxu0
  %7214 = vmatprep.mubr.f32.mxu0 0.0
  %7215 = vmatmul.mubr.f32.gmra.mrb[0].mxu0 %v7135
  %v7216 = vpop.f32.mrb[0].mxu0
  %v7217 = vadd.f32 0.0, %v7216
  %v7218 = vpop.f32.mrb[0].mxu0
  %7219 = vmatprep.mubr.f32.mxu0 0.0
  %7220 = vmatmul.mubr.f32.gmra.mrb[0].mxu0 %v7138
  %v7221 = vpop.f32.mrb[0].mxu0
  %v7222 = vadd.f32 0.0, %v7221
  %v7223 = vpop.f32.mrb[0].mxu0
  %7224 = vdwg.mxu0
  %v7225 = vadd.f32 %v7013, %v7207
  %v7226 = vadd.f32 %v7014, %v7212
  %v7227 = vadd.f32 %v7015, %v7217
  %v7228 = vadd.f32 %v7016, %v7222
  %s7229 = scalar_lea.vmem %s4, 896
  %v7230 = vld [vmem:[%s7229] sm:$0xff]
  %v7231 = vld [vmem:[%s7229 + $0x8] sm:$0xff]
  %v7232 = vld [vmem:[%s7229 + $0x10] sm:$0xff]
  %v7233 = vld [vmem:[%s7229 + $0x18] sm:$0xff]
  %v7234 = vld [vmem:[%s7229 + $0x20] sm:$0xff]
  %v7235 = vld [vmem:[%s7229 + $0x28] sm:$0xff]
  %v7236 = vld [vmem:[%s7229 + $0x30] sm:$0xff]
  %v7237 = vld [vmem:[%s7229 + $0x38] sm:$0xff]
  %v7239 = vsel %vm4278, %v7231, 0
  %v7242 = vsel %vm4278, %v7233, 0
  %v7245 = vsel %vm4278, %v7235, 0
  %v7248 = vsel %vm4278, %v7237, 0
  %7250 = vmatprep.subr.mxu0 0.0
  %7251 = vmatpush1.msra.mxu0 %v4239
  %7252 = vmatprep.subr.mxu0 0.0
  %7253 = vmatpush1.msra.mxu0 %v4240
  %7254 = vmatprep.subr.mxu0 0.0
  %7255 = vmatpush1.msra.mxu0 %v4241
  %7256 = vmatprep.subr.mxu0 0.0
  %7257 = vmatpush1.msra.mxu0 %v4242
  %7258 = vmatprep.subr.mxu0 0.0
  %7259 = vmatpush1.msra.mxu0 %v4243
  %7260 = vmatprep.subr.mxu0 0.0
  %7261 = vmatpush1.msra.mxu0 %v4244
  %7262 = vmatprep.subr.mxu0 0.0
  %7263 = vmatpush1.msra.mxu0 %v4245
  %7264 = vmatprep.subr.mxu0 0.0
  %7265 = vmatpush1.msra.mxu0 %v4246
  %7266 = vmatprep.subr.mxu0 0.0
  %7267 = vmatpush1.msra.mxu0 %v4247
  %7268 = vmatprep.subr.mxu0 0.0
  %7269 = vmatpush1.msra.mxu0 %v4248
  %7270 = vmatprep.subr.mxu0 0.0
  %7271 = vmatpush1.msra.mxu0 %v4249
  %7272 = vmatprep.subr.mxu0 0.0
  %7273 = vmatpush1.msra.mxu0 %v4250
  %7274 = vmatprep.subr.mxu0 0.0
  %7275 = vmatpush1.msra.mxu0 %v4251
  %7276 = vmatprep.subr.mxu0 0.0
  %7277 = vmatpush1.msra.mxu0 %v4252
  %7278 = vmatprep.subr.mxu0 0.0
  %7279 = vmatpush1.msra.mxu0 %v4253
  %7280 = vmatprep.subr.mxu0 0.0
  %7281 = vmatpush1.msra.mxu0 %v4254
  %7282 = vmatprep.subr.mxu0 0.0
  %7283 = vmatpush1.msra.mxu0 %v4255
  %7284 = vmatprep.subr.mxu0 0.0
  %7285 = vmatpush1.msra.mxu0 %v4256
  %7286 = vmatprep.subr.mxu0 0.0
  %7287 = vmatpush1.msra.mxu0 %v4257
  %7288 = vmatprep.subr.mxu0 0.0
  %7289 = vmatpush1.msra.mxu0 %v4258
  %7290 = vmatprep.subr.mxu0 0.0
  %7291 = vmatpush1.msra.mxu0 %v4259
  %7292 = vmatprep.subr.mxu0 0.0
  %7293 = vmatpush1.msra.mxu0 %v4260
  %7294 = vmatprep.subr.mxu0 0.0
  %7295 = vmatpush1.msra.mxu0 %v4261
  %7296 = vmatprep.subr.mxu0 0.0
  %7297 = vmatpush1.msra.mxu0 %v4262
  %7298 = vmatprep.subr.mxu0 0.0
  %7299 = vmatpush1.msra.mxu0 %v4263
  %7300 = vmatprep.subr.mxu0 0.0
  %7301 = vmatpush1.msra.mxu0 %v4264
  %7302 = vmatprep.subr.mxu0 0.0
  %7303 = vmatpush1.msra.mxu0 %v4265
  %7304 = vmatprep.subr.mxu0 0.0
  %7305 = vmatpush1.msra.mxu0 %v4266
  %7306 = vmatprep.subr.mxu0 0.0
  %7307 = vmatpush1.msra.mxu0 %v4267
  %7308 = vmatprep.subr.mxu0 0.0
  %7309 = vmatpush1.msra.mxu0 %v4268
  %7310 = vmatprep.subr.mxu0 0.0
  %7311 = vmatpush1.msra.mxu0 %v4269
  %7312 = vmatprep.subr.mxu0 0.0
  %7313 = vmatpush1.msra.mxu0 0.0
  %7314 = vmatprep.mubr.f32.mxu0 %v7239
  %7315 = vmatmul.mubr.f32.gmra.mrb[0].mxu0 %v7230
  %v7316 = vpop.f32.mrb[0].mxu0
  %v7317 = vadd.f32 0.0, %v7316
  %v7318 = vpop.f32.mrb[0].mxu0
  %7319 = vmatprep.mubr.f32.mxu0 %v7242
  %7320 = vmatmul.mubr.f32.gmra.mrb[0].mxu0 %v7232
  %v7321 = vpop.f32.mrb[0].mxu0
  %v7322 = vadd.f32 0.0, %v7321
  %v7323 = vpop.f32.mrb[0].mxu0
  %7324 = vmatprep.mubr.f32.mxu0 %v7245
  %7325 = vmatmul.mubr.f32.gmra.mrb[0].mxu0 %v7234
  %v7326 = vpop.f32.mrb[0].mxu0
  %v7327 = vadd.f32 0.0, %v7326
  %v7328 = vpop.f32.mrb[0].mxu0
  %7329 = vmatprep.mubr.f32.mxu0 %v7248
  %7330 = vmatmul.mubr.f32.gmra.mrb[0].mxu0 %v7236
  %v7331 = vpop.f32.mrb[0].mxu0
  %v7332 = vadd.f32 0.0, %v7331
  %v7333 = vpop.f32.mrb[0].mxu0
  %7334 = vdwg.mxu0
  %s7335 = scalar_lea.vmem %s5, 448
  %v7336 = vld [vmem:[%s7335] sm:$0xff]
  %v7337 = vld [vmem:[%s7335 + $0x8] sm:$0xff]
  %v7338 = vld [vmem:[%s7335 + $0x10] sm:$0xff]
  %v7339 = vld [vmem:[%s7335 + $0x18] sm:$0xff]
  %v7341 = vsel %vm492, %v7317, 0
  %v7344 = vsel %vm492, %v7322, 0
  %v7347 = vsel %vm492, %v7327, 0
  %v7350 = vsel %vm492, %v7332, 0
  %7352 = vmatprep.subr.mxu0 0.0
  %7353 = vmatpush1.msra.mxu0 %v7336
  %7354 = vmatprep.subr.mxu0 0.0
  %7355 = vmatpush1.msra.mxu0 %v7337
  %7356 = vmatprep.subr.mxu0 0.0
  %7357 = vmatpush1.msra.mxu0 %v7338
  %7358 = vmatprep.subr.mxu0 0.0
  %7359 = vmatpush1.msra.mxu0 %v7339
  %7360 = vmatprep.subr.mxu0 0.0
  %7361 = vmatpush1.msra.mxu0 0.0
  %7362 = vmatprep.subr.mxu0 0.0
  %7363 = vmatpush1.msra.mxu0 0.0
  %7364 = vmatprep.subr.mxu0 0.0
  %7365 = vmatpush1.msra.mxu0 0.0
  %7366 = vmatprep.subr.mxu0 0.0
  %7367 = vmatpush1.msra.mxu0 0.0
  %7368 = vmatprep.subr.mxu0 0.0
  %7369 = vmatpush1.msra.mxu0 0.0
  %7370 = vmatprep.subr.mxu0 0.0
  %7371 = vmatpush1.msra.mxu0 0.0
  %7372 = vmatprep.subr.mxu0 0.0
  %7373 = vmatpush1.msra.mxu0 0.0
  %7374 = vmatprep.subr.mxu0 0.0
  %7375 = vmatpush1.msra.mxu0 0.0
  %7376 = vmatprep.subr.mxu0 0.0
  %7377 = vmatpush1.msra.mxu0 0.0
  %7378 = vmatprep.subr.mxu0 0.0
  %7379 = vmatpush1.msra.mxu0 0.0
  %7380 = vmatprep.subr.mxu0 0.0
  %7381 = vmatpush1.msra.mxu0 0.0
  %7382 = vmatprep.subr.mxu0 0.0
  %7383 = vmatpush1.msra.mxu0 0.0
  %7384 = vmatprep.subr.mxu0 0.0
  %7385 = vmatpush1.msra.mxu0 0.0
  %7386 = vmatprep.subr.mxu0 0.0
  %7387 = vmatpush1.msra.mxu0 0.0
  %7388 = vmatprep.subr.mxu0 0.0
  %7389 = vmatpush1.msra.mxu0 0.0
  %7390 = vmatprep.subr.mxu0 0.0
  %7391 = vmatpush1.msra.mxu0 0.0
  %7392 = vmatprep.subr.mxu0 0.0
  %7393 = vmatpush1.msra.mxu0 0.0
  %7394 = vmatprep.subr.mxu0 0.0
  %7395 = vmatpush1.msra.mxu0 0.0
  %7396 = vmatprep.subr.mxu0 0.0
  %7397 = vmatpush1.msra.mxu0 0.0
  %7398 = vmatprep.subr.mxu0 0.0
  %7399 = vmatpush1.msra.mxu0 0.0
  %7400 = vmatprep.subr.mxu0 0.0
  %7401 = vmatpush1.msra.mxu0 0.0
  %7402 = vmatprep.subr.mxu0 0.0
  %7403 = vmatpush1.msra.mxu0 0.0
  %7404 = vmatprep.subr.mxu0 0.0
  %7405 = vmatpush1.msra.mxu0 0.0
  %7406 = vmatprep.subr.mxu0 0.0
  %7407 = vmatpush1.msra.mxu0 0.0
  %7408 = vmatprep.subr.mxu0 0.0
  %7409 = vmatpush1.msra.mxu0 0.0
  %7410 = vmatprep.subr.mxu0 0.0
  %7411 = vmatpush1.msra.mxu0 0.0
  %7412 = vmatprep.subr.mxu0 0.0
  %7413 = vmatpush1.msra.mxu0 0.0
  %7414 = vmatprep.subr.mxu0 0.0
  %7415 = vmatpush1.msra.mxu0 0.0
  %7416 = vmatprep.mubr.f32.mxu0 0.0
  %7417 = vmatmul.mubr.f32.gmra.mrb[0].mxu0 %v7341
  %v7418 = vpop.f32.mrb[0].mxu0
  %v7419 = vadd.f32 0.0, %v7418
  %v7420 = vpop.f32.mrb[0].mxu0
  %7421 = vmatprep.mubr.f32.mxu0 0.0
  %7422 = vmatmul.mubr.f32.gmra.mrb[0].mxu0 %v7344
  %v7423 = vpop.f32.mrb[0].mxu0
  %v7424 = vadd.f32 0.0, %v7423
  %v7425 = vpop.f32.mrb[0].mxu0
  %7426 = vmatprep.mubr.f32.mxu0 0.0
  %7427 = vmatmul.mubr.f32.gmra.mrb[0].mxu0 %v7347
  %v7428 = vpop.f32.mrb[0].mxu0
  %v7429 = vadd.f32 0.0, %v7428
  %v7430 = vpop.f32.mrb[0].mxu0
  %7431 = vmatprep.mubr.f32.mxu0 0.0
  %7432 = vmatmul.mubr.f32.gmra.mrb[0].mxu0 %v7350
  %v7433 = vpop.f32.mrb[0].mxu0
  %v7434 = vadd.f32 0.0, %v7433
  %v7435 = vpop.f32.mrb[0].mxu0
  %7436 = vdwg.mxu0
  %v7437 = vadd.f32 %v7225, %v7419
  %v7438 = vadd.f32 %v7226, %v7424
  %v7439 = vadd.f32 %v7227, %v7429
  %v7440 = vadd.f32 %v7228, %v7434
  %s7441 = scalar_lea.vmem %s4, 960
  %v7442 = vld [vmem:[%s7441] sm:$0xff]
  %v7443 = vld [vmem:[%s7441 + $0x8] sm:$0xff]
  %v7444 = vld [vmem:[%s7441 + $0x10] sm:$0xff]
  %v7445 = vld [vmem:[%s7441 + $0x18] sm:$0xff]
  %v7446 = vld [vmem:[%s7441 + $0x20] sm:$0xff]
  %v7447 = vld [vmem:[%s7441 + $0x28] sm:$0xff]
  %v7448 = vld [vmem:[%s7441 + $0x30] sm:$0xff]
  %v7449 = vld [vmem:[%s7441 + $0x38] sm:$0xff]
  %v7451 = vsel %vm4278, %v7443, 0
  %v7454 = vsel %vm4278, %v7445, 0
  %v7457 = vsel %vm4278, %v7447, 0
  %v7460 = vsel %vm4278, %v7449, 0
  %7462 = vmatprep.subr.mxu0 0.0
  %7463 = vmatpush1.msra.mxu0 %v4239
  %7464 = vmatprep.subr.mxu0 0.0
  %7465 = vmatpush1.msra.mxu0 %v4240
  %7466 = vmatprep.subr.mxu0 0.0
  %7467 = vmatpush1.msra.mxu0 %v4241
  %7468 = vmatprep.subr.mxu0 0.0
  %7469 = vmatpush1.msra.mxu0 %v4242
  %7470 = vmatprep.subr.mxu0 0.0
  %7471 = vmatpush1.msra.mxu0 %v4243
  %7472 = vmatprep.subr.mxu0 0.0
  %7473 = vmatpush1.msra.mxu0 %v4244
  %7474 = vmatprep.subr.mxu0 0.0
  %7475 = vmatpush1.msra.mxu0 %v4245
  %7476 = vmatprep.subr.mxu0 0.0
  %7477 = vmatpush1.msra.mxu0 %v4246
  %7478 = vmatprep.subr.mxu0 0.0
  %7479 = vmatpush1.msra.mxu0 %v4247
  %7480 = vmatprep.subr.mxu0 0.0
  %7481 = vmatpush1.msra.mxu0 %v4248
  %7482 = vmatprep.subr.mxu0 0.0
  %7483 = vmatpush1.msra.mxu0 %v4249
  %7484 = vmatprep.subr.mxu0 0.0
  %7485 = vmatpush1.msra.mxu0 %v4250
  %7486 = vmatprep.subr.mxu0 0.0
  %7487 = vmatpush1.msra.mxu0 %v4251
  %7488 = vmatprep.subr.mxu0 0.0
  %7489 = vmatpush1.msra.mxu0 %v4252
  %7490 = vmatprep.subr.mxu0 0.0
  %7491 = vmatpush1.msra.mxu0 %v4253
  %7492 = vmatprep.subr.mxu0 0.0
  %7493 = vmatpush1.msra.mxu0 %v4254
  %7494 = vmatprep.subr.mxu0 0.0
  %7495 = vmatpush1.msra.mxu0 %v4255
  %7496 = vmatprep.subr.mxu0 0.0
  %7497 = vmatpush1.msra.mxu0 %v4256
  %7498 = vmatprep.subr.mxu0 0.0
  %7499 = vmatpush1.msra.mxu0 %v4257
  %7500 = vmatprep.subr.mxu0 0.0
  %7501 = vmatpush1.msra.mxu0 %v4258
  %7502 = vmatprep.subr.mxu0 0.0
  %7503 = vmatpush1.msra.mxu0 %v4259
  %7504 = vmatprep.subr.mxu0 0.0
  %7505 = vmatpush1.msra.mxu0 %v4260
  %7506 = vmatprep.subr.mxu0 0.0
  %7507 = vmatpush1.msra.mxu0 %v4261
  %7508 = vmatprep.subr.mxu0 0.0
  %7509 = vmatpush1.msra.mxu0 %v4262
  %7510 = vmatprep.subr.mxu0 0.0
  %7511 = vmatpush1.msra.mxu0 %v4263
  %7512 = vmatprep.subr.mxu0 0.0
  %7513 = vmatpush1.msra.mxu0 %v4264
  %7514 = vmatprep.subr.mxu0 0.0
  %7515 = vmatpush1.msra.mxu0 %v4265
  %7516 = vmatprep.subr.mxu0 0.0
  %7517 = vmatpush1.msra.mxu0 %v4266
  %7518 = vmatprep.subr.mxu0 0.0
  %7519 = vmatpush1.msra.mxu0 %v4267
  %7520 = vmatprep.subr.mxu0 0.0
  %7521 = vmatpush1.msra.mxu0 %v4268
  %7522 = vmatprep.subr.mxu0 0.0
  %7523 = vmatpush1.msra.mxu0 %v4269
  %7524 = vmatprep.subr.mxu0 0.0
  %7525 = vmatpush1.msra.mxu0 0.0
  %7526 = vmatprep.mubr.f32.mxu0 %v7451
  %7527 = vmatmul.mubr.f32.gmra.mrb[0].mxu0 %v7442
  %v7528 = vpop.f32.mrb[0].mxu0
  %v7529 = vadd.f32 0.0, %v7528
  %v7530 = vpop.f32.mrb[0].mxu0
  %7531 = vmatprep.mubr.f32.mxu0 %v7454
  %7532 = vmatmul.mubr.f32.gmra.mrb[0].mxu0 %v7444
  %v7533 = vpop.f32.mrb[0].mxu0
  %v7534 = vadd.f32 0.0, %v7533
  %v7535 = vpop.f32.mrb[0].mxu0
  %7536 = vmatprep.mubr.f32.mxu0 %v7457
  %7537 = vmatmul.mubr.f32.gmra.mrb[0].mxu0 %v7446
  %v7538 = vpop.f32.mrb[0].mxu0
  %v7539 = vadd.f32 0.0, %v7538
  %v7540 = vpop.f32.mrb[0].mxu0
  %7541 = vmatprep.mubr.f32.mxu0 %v7460
  %7542 = vmatmul.mubr.f32.gmra.mrb[0].mxu0 %v7448
  %v7543 = vpop.f32.mrb[0].mxu0
  %v7544 = vadd.f32 0.0, %v7543
  %v7545 = vpop.f32.mrb[0].mxu0
  %7546 = vdwg.mxu0
  %s7547 = scalar_lea.vmem %s5, 480
  %v7548 = vld [vmem:[%s7547] sm:$0xff]
  %v7549 = vld [vmem:[%s7547 + $0x8] sm:$0xff]
  %v7550 = vld [vmem:[%s7547 + $0x10] sm:$0xff]
  %v7551 = vld [vmem:[%s7547 + $0x18] sm:$0xff]
  %v7553 = vsel %vm492, %v7529, 0
  %v7556 = vsel %vm492, %v7534, 0
  %v7559 = vsel %vm492, %v7539, 0
  %v7562 = vsel %vm492, %v7544, 0
  %7564 = vmatprep.subr.mxu0 0.0
  %7565 = vmatpush1.msra.mxu0 %v7548
  %7566 = vmatprep.subr.mxu0 0.0
  %7567 = vmatpush1.msra.mxu0 %v7549
  %7568 = vmatprep.subr.mxu0 0.0
  %7569 = vmatpush1.msra.mxu0 %v7550
  %7570 = vmatprep.subr.mxu0 0.0
  %7571 = vmatpush1.msra.mxu0 %v7551
  %7572 = vmatprep.subr.mxu0 0.0
  %7573 = vmatpush1.msra.mxu0 0.0
  %7574 = vmatprep.subr.mxu0 0.0
  %7575 = vmatpush1.msra.mxu0 0.0
  %7576 = vmatprep.subr.mxu0 0.0
  %7577 = vmatpush1.msra.mxu0 0.0
  %7578 = vmatprep.subr.mxu0 0.0
  %7579 = vmatpush1.msra.mxu0 0.0
  %7580 = vmatprep.subr.mxu0 0.0
  %7581 = vmatpush1.msra.mxu0 0.0
  %7582 = vmatprep.subr.mxu0 0.0
  %7583 = vmatpush1.msra.mxu0 0.0
  %7584 = vmatprep.subr.mxu0 0.0
  %7585 = vmatpush1.msra.mxu0 0.0
  %7586 = vmatprep.subr.mxu0 0.0
  %7587 = vmatpush1.msra.mxu0 0.0
  %7588 = vmatprep.subr.mxu0 0.0
  %7589 = vmatpush1.msra.mxu0 0.0
  %7590 = vmatprep.subr.mxu0 0.0
  %7591 = vmatpush1.msra.mxu0 0.0
  %7592 = vmatprep.subr.mxu0 0.0
  %7593 = vmatpush1.msra.mxu0 0.0
  %7594 = vmatprep.subr.mxu0 0.0
  %7595 = vmatpush1.msra.mxu0 0.0
  %7596 = vmatprep.subr.mxu0 0.0
  %7597 = vmatpush1.msra.mxu0 0.0
  %7598 = vmatprep.subr.mxu0 0.0
  %7599 = vmatpush1.msra.mxu0 0.0
  %7600 = vmatprep.subr.mxu0 0.0
  %7601 = vmatpush1.msra.mxu0 0.0
  %7602 = vmatprep.subr.mxu0 0.0
  %7603 = vmatpush1.msra.mxu0 0.0
  %7604 = vmatprep.subr.mxu0 0.0
  %7605 = vmatpush1.msra.mxu0 0.0
  %7606 = vmatprep.subr.mxu0 0.0
  %7607 = vmatpush1.msra.mxu0 0.0
  %7608 = vmatprep.subr.mxu0 0.0
  %7609 = vmatpush1.msra.mxu0 0.0
  %7610 = vmatprep.subr.mxu0 0.0
  %7611 = vmatpush1.msra.mxu0 0.0
  %7612 = vmatprep.subr.mxu0 0.0
  %7613 = vmatpush1.msra.mxu0 0.0
  %7614 = vmatprep.subr.mxu0 0.0
  %7615 = vmatpush1.msra.mxu0 0.0
  %7616 = vmatprep.subr.mxu0 0.0
  %7617 = vmatpush1.msra.mxu0 0.0
  %7618 = vmatprep.subr.mxu0 0.0
  %7619 = vmatpush1.msra.mxu0 0.0
  %7620 = vmatprep.subr.mxu0 0.0
  %7621 = vmatpush1.msra.mxu0 0.0
  %7622 = vmatprep.subr.mxu0 0.0
  %7623 = vmatpush1.msra.mxu0 0.0
  %7624 = vmatprep.subr.mxu0 0.0
  %7625 = vmatpush1.msra.mxu0 0.0
  %7626 = vmatprep.subr.mxu0 0.0
  %7627 = vmatpush1.msra.mxu0 0.0
  %7628 = vmatprep.mubr.f32.mxu0 0.0
  %7629 = vmatmul.mubr.f32.gmra.mrb[0].mxu0 %v7553
  %v7630 = vpop.f32.mrb[0].mxu0
  %v7631 = vadd.f32 0.0, %v7630
  %v7632 = vpop.f32.mrb[0].mxu0
  %7633 = vmatprep.mubr.f32.mxu0 0.0
  %7634 = vmatmul.mubr.f32.gmra.mrb[0].mxu0 %v7556
  %v7635 = vpop.f32.mrb[0].mxu0
  %v7636 = vadd.f32 0.0, %v7635
  %v7637 = vpop.f32.mrb[0].mxu0
  %7638 = vmatprep.mubr.f32.mxu0 0.0
  %7639 = vmatmul.mubr.f32.gmra.mrb[0].mxu0 %v7559
  %v7640 = vpop.f32.mrb[0].mxu0
  %v7641 = vadd.f32 0.0, %v7640
  %v7642 = vpop.f32.mrb[0].mxu0
  %7643 = vmatprep.mubr.f32.mxu0 0.0
  %7644 = vmatmul.mubr.f32.gmra.mrb[0].mxu0 %v7562
  %v7645 = vpop.f32.mrb[0].mxu0
  %v7646 = vadd.f32 0.0, %v7645
  %v7647 = vpop.f32.mrb[0].mxu0
  %7648 = vdwg.mxu0
  %v7649 = vadd.f32 %v7437, %v7631
  %v7650 = vadd.f32 %v7438, %v7636
  %v7651 = vadd.f32 %v7439, %v7641
  %v7652 = vadd.f32 %v7440, %v7646
  %v7653 = vld [vmem:[%s6] sm:$0x1]
  %v7655 = vlaneseq
  %v7656 = vshrl.u32 %v7655, 7
  %v7657 = vsub.s32 0, %v7656
  %v7658 = vrot.slane %v7653, %v7657
  %v7660 = vadd.f32 %v7649, %v7658
  %v7661 = vadd.f32 %v7650, %v7658
  %v7662 = vadd.f32 %v7651, %v7658
  %v7663 = vadd.f32 %v7652, %v7658
  %v7664 = vmax.f32 %v7660, 0.0
  %v7665 = vmax.f32 %v7661, 0.0
  %v7666 = vmax.f32 %v7662, 0.0
  %v7667 = vmax.f32 %v7663, 0.0
  %v7668 = vld [vmem:[%s7] sm:$0xff]
  %v7670 = vsel %vm492, %v7668, 0
  %7672 = vmatprep.subr.mxu0 0.0
  %7673 = vmatpush1.msra.mxu0 %v7664
  %7674 = vmatprep.subr.mxu0 0.0
  %7675 = vmatpush1.msra.mxu0 %v7665
  %7676 = vmatprep.subr.mxu0 0.0
  %7677 = vmatpush1.msra.mxu0 %v7666
  %7678 = vmatprep.subr.mxu0 0.0
  %7679 = vmatpush1.msra.mxu0 %v7667
  %7680 = vmatprep.subr.mxu0 0.0
  %7681 = vmatpush1.msra.mxu0 0.0
  %7682 = vmatprep.subr.mxu0 0.0
  %7683 = vmatpush1.msra.mxu0 0.0
  %7684 = vmatprep.subr.mxu0 0.0
  %7685 = vmatpush1.msra.mxu0 0.0
  %7686 = vmatprep.subr.mxu0 0.0
  %7687 = vmatpush1.msra.mxu0 0.0
  %7688 = vmatprep.subr.mxu0 0.0
  %7689 = vmatpush1.msra.mxu0 0.0
  %7690 = vmatprep.subr.mxu0 0.0
  %7691 = vmatpush1.msra.mxu0 0.0
  %7692 = vmatprep.subr.mxu0 0.0
  %7693 = vmatpush1.msra.mxu0 0.0
  %7694 = vmatprep.subr.mxu0 0.0
  %7695 = vmatpush1.msra.mxu0 0.0
  %7696 = vmatprep.subr.mxu0 0.0
  %7697 = vmatpush1.msra.mxu0 0.0
  %7698 = vmatprep.subr.mxu0 0.0
  %7699 = vmatpush1.msra.mxu0 0.0
  %7700 = vmatprep.subr.mxu0 0.0
  %7701 = vmatpush1.msra.mxu0 0.0
  %7702 = vmatprep.subr.mxu0 0.0
  %7703 = vmatpush1.msra.mxu0 0.0
  %7704 = vmatprep.subr.mxu0 0.0
  %7705 = vmatpush1.msra.mxu0 0.0
  %7706 = vmatprep.subr.mxu0 0.0
  %7707 = vmatpush1.msra.mxu0 0.0
  %7708 = vmatprep.subr.mxu0 0.0
  %7709 = vmatpush1.msra.mxu0 0.0
  %7710 = vmatprep.subr.mxu0 0.0
  %7711 = vmatpush1.msra.mxu0 0.0
  %7712 = vmatprep.subr.mxu0 0.0
  %7713 = vmatpush1.msra.mxu0 0.0
  %7714 = vmatprep.subr.mxu0 0.0
  %7715 = vmatpush1.msra.mxu0 0.0
  %7716 = vmatprep.subr.mxu0 0.0
  %7717 = vmatpush1.msra.mxu0 0.0
  %7718 = vmatprep.subr.mxu0 0.0
  %7719 = vmatpush1.msra.mxu0 0.0
  %7720 = vmatprep.subr.mxu0 0.0
  %7721 = vmatpush1.msra.mxu0 0.0
  %7722 = vmatprep.subr.mxu0 0.0
  %7723 = vmatpush1.msra.mxu0 0.0
  %7724 = vmatprep.subr.mxu0 0.0
  %7725 = vmatpush1.msra.mxu0 0.0
  %7726 = vmatprep.subr.mxu0 0.0
  %7727 = vmatpush1.msra.mxu0 0.0
  %7728 = vmatprep.subr.mxu0 0.0
  %7729 = vmatpush1.msra.mxu0 0.0
  %7730 = vmatprep.subr.mxu0 0.0
  %7731 = vmatpush1.msra.mxu0 0.0
  %7732 = vmatprep.subr.mxu0 0.0
  %7733 = vmatpush1.msra.mxu0 0.0
  %7734 = vmatprep.subr.mxu0 0.0
  %7735 = vmatpush1.msra.mxu0 0.0
  %7736 = vmatprep.mubr.f32.mxu0 0.0
  %7737 = vmatmul.mubr.f32.gmra.mrb[0].mxu0 %v7670
  %v7738 = vpop.f32.mrb[0].mxu0
  %v7739 = vadd.f32 0.0, %v7738
  %v7740 = vpop.f32.mrb[0].mxu0
  %7741 = vdwg.mxu0
  %v7742 = vld [vmem:[%s8] sm:$0xff]
  %v7743 = vld [vmem:[%s8 + $0x8] sm:$0xff]
  %v7744 = vld [vmem:[%s8 + $0x10] sm:$0xff]
  %v7745 = vld [vmem:[%s8 + $0x18] sm:$0xff]
  %v7746 = vld [vmem:[%s8 + $0x20] sm:$0xff]
  %v7747 = vld [vmem:[%s8 + $0x28] sm:$0xff]
  %v7748 = vld [vmem:[%s8 + $0x30] sm:$0xff]
  %v7749 = vld [vmem:[%s8 + $0x38] sm:$0xff]
  %s7750 = scalar_lea.vmem %s7, 8
  %v7751 = vld [vmem:[%s7750] sm:$0xff]
  %v7753 = vsel %vm492, %v7751, 0
  %7755 = vmatprep.subr.mxu0 0.0
  %7756 = vmatpush1.msra.mxu0 %v7664
  %7757 = vmatprep.subr.mxu0 0.0
  %7758 = vmatpush1.msra.mxu0 %v7665
  %7759 = vmatprep.subr.mxu0 0.0
  %7760 = vmatpush1.msra.mxu0 %v7666
  %7761 = vmatprep.subr.mxu0 0.0
  %7762 = vmatpush1.msra.mxu0 %v7667
  %7763 = vmatprep.subr.mxu0 0.0
  %7764 = vmatpush1.msra.mxu0 0.0
  %7765 = vmatprep.subr.mxu0 0.0
  %7766 = vmatpush1.msra.mxu0 0.0
  %7767 = vmatprep.subr.mxu0 0.0
  %7768 = vmatpush1.msra.mxu0 0.0
  %7769 = vmatprep.subr.mxu0 0.0
  %7770 = vmatpush1.msra.mxu0 0.0
  %7771 = vmatprep.subr.mxu0 0.0
  %7772 = vmatpush1.msra.mxu0 0.0
  %7773 = vmatprep.subr.mxu0 0.0
  %7774 = vmatpush1.msra.mxu0 0.0
  %7775 = vmatprep.subr.mxu0 0.0
  %7776 = vmatpush1.msra.mxu0 0.0
  %7777 = vmatprep.subr.mxu0 0.0
  %7778 = vmatpush1.msra.mxu0 0.0
  %7779 = vmatprep.subr.mxu0 0.0
  %7780 = vmatpush1.msra.mxu0 0.0
  %7781 = vmatprep.subr.mxu0 0.0
  %7782 = vmatpush1.msra.mxu0 0.0
  %7783 = vmatprep.subr.mxu0 0.0
  %7784 = vmatpush1.msra.mxu0 0.0
  %7785 = vmatprep.subr.mxu0 0.0
  %7786 = vmatpush1.msra.mxu0 0.0
  %7787 = vmatprep.subr.mxu0 0.0
  %7788 = vmatpush1.msra.mxu0 0.0
  %7789 = vmatprep.subr.mxu0 0.0
  %7790 = vmatpush1.msra.mxu0 0.0
  %7791 = vmatprep.subr.mxu0 0.0
  %7792 = vmatpush1.msra.mxu0 0.0
  %7793 = vmatprep.subr.mxu0 0.0
  %7794 = vmatpush1.msra.mxu0 0.0
  %7795 = vmatprep.subr.mxu0 0.0
  %7796 = vmatpush1.msra.mxu0 0.0
  %7797 = vmatprep.subr.mxu0 0.0
  %7798 = vmatpush1.msra.mxu0 0.0
  %7799 = vmatprep.subr.mxu0 0.0
  %7800 = vmatpush1.msra.mxu0 0.0
  %7801 = vmatprep.subr.mxu0 0.0
  %7802 = vmatpush1.msra.mxu0 0.0
  %7803 = vmatprep.subr.mxu0 0.0
  %7804 = vmatpush1.msra.mxu0 0.0
  %7805 = vmatprep.subr.mxu0 0.0
  %7806 = vmatpush1.msra.mxu0 0.0
  %7807 = vmatprep.subr.mxu0 0.0
  %7808 = vmatpush1.msra.mxu0 0.0
  %7809 = vmatprep.subr.mxu0 0.0
  %7810 = vmatpush1.msra.mxu0 0.0
  %7811 = vmatprep.subr.mxu0 0.0
  %7812 = vmatpush1.msra.mxu0 0.0
  %7813 = vmatprep.subr.mxu0 0.0
  %7814 = vmatpush1.msra.mxu0 0.0
  %7815 = vmatprep.subr.mxu0 0.0
  %7816 = vmatpush1.msra.mxu0 0.0
  %7817 = vmatprep.subr.mxu0 0.0
  %7818 = vmatpush1.msra.mxu0 0.0
  %7819 = vmatprep.mubr.f32.mxu0 0.0
  %7820 = vmatmul.mubr.f32.gmra.mrb[0].mxu0 %v7753
  %v7821 = vpop.f32.mrb[0].mxu0
  %v7822 = vadd.f32 0.0, %v7821
  %v7823 = vpop.f32.mrb[0].mxu0
  %7824 = vdwg.mxu0
  %s7825 = scalar_lea.vmem %s8, 64
  %v7826 = vld [vmem:[%s7825] sm:$0xff]
  %v7827 = vld [vmem:[%s7825 + $0x8] sm:$0xff]
  %v7828 = vld [vmem:[%s7825 + $0x10] sm:$0xff]
  %v7829 = vld [vmem:[%s7825 + $0x18] sm:$0xff]
  %v7830 = vld [vmem:[%s7825 + $0x20] sm:$0xff]
  %v7831 = vld [vmem:[%s7825 + $0x28] sm:$0xff]
  %v7832 = vld [vmem:[%s7825 + $0x30] sm:$0xff]
  %v7833 = vld [vmem:[%s7825 + $0x38] sm:$0xff]
  %vm7834 = vcmask 523264
  %v7836 = vsel %vm7834, %v7822, 0
  %7838 = vmatprep.subr.mxu0 0.0
  %7839 = vmatpush1.msra.mxu0 %v7826
  %7840 = vmatprep.subr.mxu0 0.0
  %7841 = vmatpush1.msra.mxu0 %v7827
  %7842 = vmatprep.subr.mxu0 0.0
  %7843 = vmatpush1.msra.mxu0 %v7828
  %7844 = vmatprep.subr.mxu0 0.0
  %7845 = vmatpush1.msra.mxu0 %v7829
  %7846 = vmatprep.subr.mxu0 0.0
  %7847 = vmatpush1.msra.mxu0 %v7830
  %7848 = vmatprep.subr.mxu0 0.0
  %7849 = vmatpush1.msra.mxu0 %v7831
  %7850 = vmatprep.subr.mxu0 0.0
  %7851 = vmatpush1.msra.mxu0 %v7832
  %7852 = vmatprep.subr.mxu0 0.0
  %7853 = vmatpush1.msra.mxu0 %v7833
  %7854 = vmatprep.subr.mxu0 0.0
  %7855 = vmatpush1.msra.mxu0 0.0
  %7856 = vmatprep.subr.mxu0 0.0
  %7857 = vmatpush1.msra.mxu0 0.0
  %7858 = vmatprep.subr.mxu0 0.0
  %7859 = vmatpush1.msra.mxu0 0.0
  %7860 = vmatprep.subr.mxu0 0.0
  %7861 = vmatpush1.msra.mxu0 0.0
  %7862 = vmatprep.subr.mxu0 0.0
  %7863 = vmatpush1.msra.mxu0 0.0
  %7864 = vmatprep.subr.mxu0 0.0
  %7865 = vmatpush1.msra.mxu0 0.0
  %7866 = vmatprep.subr.mxu0 0.0
  %7867 = vmatpush1.msra.mxu0 0.0
  %7868 = vmatprep.subr.mxu0 0.0
  %7869 = vmatpush1.msra.mxu0 0.0
  %7870 = vmatprep.subr.mxu0 0.0
  %7871 = vmatpush1.msra.mxu0 0.0
  %7872 = vmatprep.subr.mxu0 0.0
  %7873 = vmatpush1.msra.mxu0 0.0
  %7874 = vmatprep.subr.mxu0 0.0
  %7875 = vmatpush1.msra.mxu0 0.0
  %7876 = vmatprep.subr.mxu0 0.0
  %7877 = vmatpush1.msra.mxu0 0.0
  %7878 = vmatprep.subr.mxu0 0.0
  %7879 = vmatpush1.msra.mxu0 0.0
  %7880 = vmatprep.subr.mxu0 0.0
  %7881 = vmatpush1.msra.mxu0 0.0
  %7882 = vmatprep.subr.mxu0 0.0
  %7883 = vmatpush1.msra.mxu0 0.0
  %7884 = vmatprep.subr.mxu0 0.0
  %7885 = vmatpush1.msra.mxu0 0.0
  %7886 = vmatprep.subr.mxu0 0.0
  %7887 = vmatpush1.msra.mxu0 0.0
  %7888 = vmatprep.subr.mxu0 0.0
  %7889 = vmatpush1.msra.mxu0 0.0
  %7890 = vmatprep.subr.mxu0 0.0
  %7891 = vmatpush1.msra.mxu0 0.0
  %7892 = vmatprep.subr.mxu0 0.0
  %7893 = vmatpush1.msra.mxu0 0.0
  %7894 = vmatprep.subr.mxu0 0.0
  %7895 = vmatpush1.msra.mxu0 0.0
  %7896 = vmatprep.subr.mxu0 0.0
  %7897 = vmatpush1.msra.mxu0 0.0
  %7898 = vmatprep.subr.mxu0 0.0
  %7899 = vmatpush1.msra.mxu0 0.0
  %7900 = vmatprep.subr.mxu0 0.0
  %7901 = vmatpush1.msra.mxu0 0.0
  %7902 = vmatprep.mubr.f32.mxu0 0.0
  %7903 = vmatmul.mubr.f32.gmra.mrb[0].mxu0 %v7836
  %v7904 = vpop.f32.mrb[0].mxu0
  %v7905 = vadd.f32 0.0, %v7904
  %v7906 = vpop.f32.mrb[0].mxu0
  %7907 = vdwg.mxu0
  %v7909 = vsel %vm7834, %v7739, 0
  %7911 = vmatprep.subr.mxu0 0.0
  %7912 = vmatpush1.msra.mxu0 %v7742
  %7913 = vmatprep.subr.mxu0 0.0
  %7914 = vmatpush1.msra.mxu0 %v7743
  %7915 = vmatprep.subr.mxu0 0.0
  %7916 = vmatpush1.msra.mxu0 %v7744
  %7917 = vmatprep.subr.mxu0 0.0
  %7918 = vmatpush1.msra.mxu0 %v7745
  %7919 = vmatprep.subr.mxu0 0.0
  %7920 = vmatpush1.msra.mxu0 %v7746
  %7921 = vmatprep.subr.mxu0 0.0
  %7922 = vmatpush1.msra.mxu0 %v7747
  %7923 = vmatprep.subr.mxu0 0.0
  %7924 = vmatpush1.msra.mxu0 %v7748
  %7925 = vmatprep.subr.mxu0 0.0
  %7926 = vmatpush1.msra.mxu0 %v7749
  %7927 = vmatprep.subr.mxu0 0.0
  %7928 = vmatpush1.msra.mxu0 0.0
  %7929 = vmatprep.subr.mxu0 0.0
  %7930 = vmatpush1.msra.mxu0 0.0
  %7931 = vmatprep.subr.mxu0 0.0
  %7932 = vmatpush1.msra.mxu0 0.0
  %7933 = vmatprep.subr.mxu0 0.0
  %7934 = vmatpush1.msra.mxu0 0.0
  %7935 = vmatprep.subr.mxu0 0.0
  %7936 = vmatpush1.msra.mxu0 0.0
  %7937 = vmatprep.subr.mxu0 0.0
  %7938 = vmatpush1.msra.mxu0 0.0
  %7939 = vmatprep.subr.mxu0 0.0
  %7940 = vmatpush1.msra.mxu0 0.0
  %7941 = vmatprep.subr.mxu0 0.0
  %7942 = vmatpush1.msra.mxu0 0.0
  %7943 = vmatprep.subr.mxu0 0.0
  %7944 = vmatpush1.msra.mxu0 0.0
  %7945 = vmatprep.subr.mxu0 0.0
  %7946 = vmatpush1.msra.mxu0 0.0
  %7947 = vmatprep.subr.mxu0 0.0
  %7948 = vmatpush1.msra.mxu0 0.0
  %7949 = vmatprep.subr.mxu0 0.0
  %7950 = vmatpush1.msra.mxu0 0.0
  %7951 = vmatprep.subr.mxu0 0.0
  %7952 = vmatpush1.msra.mxu0 0.0
  %7953 = vmatprep.subr.mxu0 0.0
  %7954 = vmatpush1.msra.mxu0 0.0
  %7955 = vmatprep.subr.mxu0 0.0
  %7956 = vmatpush1.msra.mxu0 0.0
  %7957 = vmatprep.subr.mxu0 0.0
  %7958 = vmatpush1.msra.mxu0 0.0
  %7959 = vmatprep.subr.mxu0 0.0
  %7960 = vmatpush1.msra.mxu0 0.0
  %7961 = vmatprep.subr.mxu0 0.0
  %7962 = vmatpush1.msra.mxu0 0.0
  %7963 = vmatprep.subr.mxu0 0.0
  %7964 = vmatpush1.msra.mxu0 0.0
  %7965 = vmatprep.subr.mxu0 0.0
  %7966 = vmatpush1.msra.mxu0 0.0
  %7967 = vmatprep.subr.mxu0 0.0
  %7968 = vmatpush1.msra.mxu0 0.0
  %7969 = vmatprep.subr.mxu0 0.0
  %7970 = vmatpush1.msra.mxu0 0.0
  %7971 = vmatprep.subr.mxu0 0.0
  %7972 = vmatpush1.msra.mxu0 0.0
  %7973 = vmatprep.subr.mxu0 0.0
  %7974 = vmatpush1.msra.mxu0 0.0
  %7975 = vmatprep.mubr.f32.mxu0 0.0
  %7976 = vmatmul.mubr.f32.gmra.mrb[0].mxu0 %v7909
  %v7977 = vpop.f32.mrb[0].mxu0
  %v7978 = vadd.f32 %v7905, %v7977
  %v7979 = vpop.f32.mrb[0].mxu0
  %7980 = vdwg.mxu0
  %s7981 = scalar_lea.vmem %s7, 16
  %v7982 = vld [vmem:[%s7981] sm:$0xff]
  %v7984 = vsel %vm492, %v7982, 0
  %7986 = vmatprep.subr.mxu0 0.0
  %7987 = vmatpush1.msra.mxu0 %v7664
  %7988 = vmatprep.subr.mxu0 0.0
  %7989 = vmatpush1.msra.mxu0 %v7665
  %7990 = vmatprep.subr.mxu0 0.0
  %7991 = vmatpush1.msra.mxu0 %v7666
  %7992 = vmatprep.subr.mxu0 0.0
  %7993 = vmatpush1.msra.mxu0 %v7667
  %7994 = vmatprep.subr.mxu0 0.0
  %7995 = vmatpush1.msra.mxu0 0.0
  %7996 = vmatprep.subr.mxu0 0.0
  %7997 = vmatpush1.msra.mxu0 0.0
  %7998 = vmatprep.subr.mxu0 0.0
  %7999 = vmatpush1.msra.mxu0 0.0
  %8000 = vmatprep.subr.mxu0 0.0
  %8001 = vmatpush1.msra.mxu0 0.0
  %8002 = vmatprep.subr.mxu0 0.0
  %8003 = vmatpush1.msra.mxu0 0.0
  %8004 = vmatprep.subr.mxu0 0.0
  %8005 = vmatpush1.msra.mxu0 0.0
  %8006 = vmatprep.subr.mxu0 0.0
  %8007 = vmatpush1.msra.mxu0 0.0
  %8008 = vmatprep.subr.mxu0 0.0
  %8009 = vmatpush1.msra.mxu0 0.0
  %8010 = vmatprep.subr.mxu0 0.0
  %8011 = vmatpush1.msra.mxu0 0.0
  %8012 = vmatprep.subr.mxu0 0.0
  %8013 = vmatpush1.msra.mxu0 0.0
  %8014 = vmatprep.subr.mxu0 0.0
  %8015 = vmatpush1.msra.mxu0 0.0
  %8016 = vmatprep.subr.mxu0 0.0
  %8017 = vmatpush1.msra.mxu0 0.0
  %8018 = vmatprep.subr.mxu0 0.0
  %8019 = vmatpush1.msra.mxu0 0.0
  %8020 = vmatprep.subr.mxu0 0.0
  %8021 = vmatpush1.msra.mxu0 0.0
  %8022 = vmatprep.subr.mxu0 0.0
  %8023 = vmatpush1.msra.mxu0 0.0
  %8024 = vmatprep.subr.mxu0 0.0
  %8025 = vmatpush1.msra.mxu0 0.0
  %8026 = vmatprep.subr.mxu0 0.0
  %8027 = vmatpush1.msra.mxu0 0.0
  %8028 = vmatprep.subr.mxu0 0.0
  %8029 = vmatpush1.msra.mxu0 0.0
  %8030 = vmatprep.subr.mxu0 0.0
  %8031 = vmatpush1.msra.mxu0 0.0
  %8032 = vmatprep.subr.mxu0 0.0
  %8033 = vmatpush1.msra.mxu0 0.0
  %8034 = vmatprep.subr.mxu0 0.0
  %8035 = vmatpush1.msra.mxu0 0.0
  %8036 = vmatprep.subr.mxu0 0.0
  %8037 = vmatpush1.msra.mxu0 0.0
  %8038 = vmatprep.subr.mxu0 0.0
  %8039 = vmatpush1.msra.mxu0 0.0
  %8040 = vmatprep.subr.mxu0 0.0
  %8041 = vmatpush1.msra.mxu0 0.0
  %8042 = vmatprep.subr.mxu0 0.0
  %8043 = vmatpush1.msra.mxu0 0.0
  %8044 = vmatprep.subr.mxu0 0.0
  %8045 = vmatpush1.msra.mxu0 0.0
  %8046 = vmatprep.subr.mxu0 0.0
  %8047 = vmatpush1.msra.mxu0 0.0
  %8048 = vmatprep.subr.mxu0 0.0
  %8049 = vmatpush1.msra.mxu0 0.0
  %8050 = vmatprep.mubr.f32.mxu0 0.0
  %8051 = vmatmul.mubr.f32.gmra.mrb[0].mxu0 %v7984
  %v8052 = vpop.f32.mrb[0].mxu0
  %v8053 = vadd.f32 0.0, %v8052
  %v8054 = vpop.f32.mrb[0].mxu0
  %8055 = vdwg.mxu0
  %s8056 = scalar_lea.vmem %s8, 128
  %v8057 = vld [vmem:[%s8056] sm:$0xff]
  %v8058 = vld [vmem:[%s8056 + $0x8] sm:$0xff]
  %v8059 = vld [vmem:[%s8056 + $0x10] sm:$0xff]
  %v8060 = vld [vmem:[%s8056 + $0x18] sm:$0xff]
  %v8061 = vld [vmem:[%s8056 + $0x20] sm:$0xff]
  %v8062 = vld [vmem:[%s8056 + $0x28] sm:$0xff]
  %v8063 = vld [vmem:[%s8056 + $0x30] sm:$0xff]
  %v8064 = vld [vmem:[%s8056 + $0x38] sm:$0xff]
  %v8066 = vsel %vm7834, %v8053, 0
  %8068 = vmatprep.subr.mxu0 0.0
  %8069 = vmatpush1.msra.mxu0 %v8057
  %8070 = vmatprep.subr.mxu0 0.0
  %8071 = vmatpush1.msra.mxu0 %v8058
  %8072 = vmatprep.subr.mxu0 0.0
  %8073 = vmatpush1.msra.mxu0 %v8059
  %8074 = vmatprep.subr.mxu0 0.0
  %8075 = vmatpush1.msra.mxu0 %v8060
  %8076 = vmatprep.subr.mxu0 0.0
  %8077 = vmatpush1.msra.mxu0 %v8061
  %8078 = vmatprep.subr.mxu0 0.0
  %8079 = vmatpush1.msra.mxu0 %v8062
  %8080 = vmatprep.subr.mxu0 0.0
  %8081 = vmatpush1.msra.mxu0 %v8063
  %8082 = vmatprep.subr.mxu0 0.0
  %8083 = vmatpush1.msra.mxu0 %v8064
  %8084 = vmatprep.subr.mxu0 0.0
  %8085 = vmatpush1.msra.mxu0 0.0
  %8086 = vmatprep.subr.mxu0 0.0
  %8087 = vmatpush1.msra.mxu0 0.0
  %8088 = vmatprep.subr.mxu0 0.0
  %8089 = vmatpush1.msra.mxu0 0.0
  %8090 = vmatprep.subr.mxu0 0.0
  %8091 = vmatpush1.msra.mxu0 0.0
  %8092 = vmatprep.subr.mxu0 0.0
  %8093 = vmatpush1.msra.mxu0 0.0
  %8094 = vmatprep.subr.mxu0 0.0
  %8095 = vmatpush1.msra.mxu0 0.0
  %8096 = vmatprep.subr.mxu0 0.0
  %8097 = vmatpush1.msra.mxu0 0.0
  %8098 = vmatprep.subr.mxu0 0.0
  %8099 = vmatpush1.msra.mxu0 0.0
  %8100 = vmatprep.subr.mxu0 0.0
  %8101 = vmatpush1.msra.mxu0 0.0
  %8102 = vmatprep.subr.mxu0 0.0
  %8103 = vmatpush1.msra.mxu0 0.0
  %8104 = vmatprep.subr.mxu0 0.0
  %8105 = vmatpush1.msra.mxu0 0.0
  %8106 = vmatprep.subr.mxu0 0.0
  %8107 = vmatpush1.msra.mxu0 0.0
  %8108 = vmatprep.subr.mxu0 0.0
  %8109 = vmatpush1.msra.mxu0 0.0
  %8110 = vmatprep.subr.mxu0 0.0
  %8111 = vmatpush1.msra.mxu0 0.0
  %8112 = vmatprep.subr.mxu0 0.0
  %8113 = vmatpush1.msra.mxu0 0.0
  %8114 = vmatprep.subr.mxu0 0.0
  %8115 = vmatpush1.msra.mxu0 0.0
  %8116 = vmatprep.subr.mxu0 0.0
  %8117 = vmatpush1.msra.mxu0 0.0
  %8118 = vmatprep.subr.mxu0 0.0
  %8119 = vmatpush1.msra.mxu0 0.0
  %8120 = vmatprep.subr.mxu0 0.0
  %8121 = vmatpush1.msra.mxu0 0.0
  %8122 = vmatprep.subr.mxu0 0.0
  %8123 = vmatpush1.msra.mxu0 0.0
  %8124 = vmatprep.subr.mxu0 0.0
  %8125 = vmatpush1.msra.mxu0 0.0
  %8126 = vmatprep.subr.mxu0 0.0
  %8127 = vmatpush1.msra.mxu0 0.0
  %8128 = vmatprep.subr.mxu0 0.0
  %8129 = vmatpush1.msra.mxu0 0.0
  %8130 = vmatprep.subr.mxu0 0.0
  %8131 = vmatpush1.msra.mxu0 0.0
  %8132 = vmatprep.mubr.f32.mxu0 0.0
  %8133 = vmatmul.mubr.f32.gmra.mrb[0].mxu0 %v8066
  %v8134 = vpop.f32.mrb[0].mxu0
  %v8135 = vadd.f32 0.0, %v8134
  %v8136 = vpop.f32.mrb[0].mxu0
  %8137 = vdwg.mxu0
  %v8138 = vadd.f32 %v7978, %v8135
  %s8139 = scalar_lea.vmem %s7, 24
  %v8140 = vld [vmem:[%s8139] sm:$0xff]
  %v8142 = vsel %vm492, %v8140, 0
  %8144 = vmatprep.subr.mxu0 0.0
  %8145 = vmatpush1.msra.mxu0 %v7664
  %8146 = vmatprep.subr.mxu0 0.0
  %8147 = vmatpush1.msra.mxu0 %v7665
  %8148 = vmatprep.subr.mxu0 0.0
  %8149 = vmatpush1.msra.mxu0 %v7666
  %8150 = vmatprep.subr.mxu0 0.0
  %8151 = vmatpush1.msra.mxu0 %v7667
  %8152 = vmatprep.subr.mxu0 0.0
  %8153 = vmatpush1.msra.mxu0 0.0
  %8154 = vmatprep.subr.mxu0 0.0
  %8155 = vmatpush1.msra.mxu0 0.0
  %8156 = vmatprep.subr.mxu0 0.0
  %8157 = vmatpush1.msra.mxu0 0.0
  %8158 = vmatprep.subr.mxu0 0.0
  %8159 = vmatpush1.msra.mxu0 0.0
  %8160 = vmatprep.subr.mxu0 0.0
  %8161 = vmatpush1.msra.mxu0 0.0
  %8162 = vmatprep.subr.mxu0 0.0
  %8163 = vmatpush1.msra.mxu0 0.0
  %8164 = vmatprep.subr.mxu0 0.0
  %8165 = vmatpush1.msra.mxu0 0.0
  %8166 = vmatprep.subr.mxu0 0.0
  %8167 = vmatpush1.msra.mxu0 0.0
  %8168 = vmatprep.subr.mxu0 0.0
  %8169 = vmatpush1.msra.mxu0 0.0
  %8170 = vmatprep.subr.mxu0 0.0
  %8171 = vmatpush1.msra.mxu0 0.0
  %8172 = vmatprep.subr.mxu0 0.0
  %8173 = vmatpush1.msra.mxu0 0.0
  %8174 = vmatprep.subr.mxu0 0.0
  %8175 = vmatpush1.msra.mxu0 0.0
  %8176 = vmatprep.subr.mxu0 0.0
  %8177 = vmatpush1.msra.mxu0 0.0
  %8178 = vmatprep.subr.mxu0 0.0
  %8179 = vmatpush1.msra.mxu0 0.0
  %8180 = vmatprep.subr.mxu0 0.0
  %8181 = vmatpush1.msra.mxu0 0.0
  %8182 = vmatprep.subr.mxu0 0.0
  %8183 = vmatpush1.msra.mxu0 0.0
  %8184 = vmatprep.subr.mxu0 0.0
  %8185 = vmatpush1.msra.mxu0 0.0
  %8186 = vmatprep.subr.mxu0 0.0
  %8187 = vmatpush1.msra.mxu0 0.0
  %8188 = vmatprep.subr.mxu0 0.0
  %8189 = vmatpush1.msra.mxu0 0.0
  %8190 = vmatprep.subr.mxu0 0.0
  %8191 = vmatpush1.msra.mxu0 0.0
  %8192 = vmatprep.subr.mxu0 0.0
  %8193 = vmatpush1.msra.mxu0 0.0
  %8194 = vmatprep.subr.mxu0 0.0
  %8195 = vmatpush1.msra.mxu0 0.0
  %8196 = vmatprep.subr.mxu0 0.0
  %8197 = vmatpush1.msra.mxu0 0.0
  %8198 = vmatprep.subr.mxu0 0.0
  %8199 = vmatpush1.msra.mxu0 0.0
  %8200 = vmatprep.subr.mxu0 0.0
  %8201 = vmatpush1.msra.mxu0 0.0
  %8202 = vmatprep.subr.mxu0 0.0
  %8203 = vmatpush1.msra.mxu0 0.0
  %8204 = vmatprep.subr.mxu0 0.0
  %8205 = vmatpush1.msra.mxu0 0.0
  %8206 = vmatprep.subr.mxu0 0.0
  %8207 = vmatpush1.msra.mxu0 0.0
  %8208 = vmatprep.mubr.f32.mxu0 0.0
  %8209 = vmatmul.mubr.f32.gmra.mrb[0].mxu0 %v8142
  %v8210 = vpop.f32.mrb[0].mxu0
  %v8211 = vadd.f32 0.0, %v8210
  %v8212 = vpop.f32.mrb[0].mxu0
  %8213 = vdwg.mxu0
  %s8214 = scalar_lea.vmem %s8, 192
  %v8215 = vld [vmem:[%s8214] sm:$0xff]
  %v8216 = vld [vmem:[%s8214 + $0x8] sm:$0xff]
  %v8217 = vld [vmem:[%s8214 + $0x10] sm:$0xff]
  %v8218 = vld [vmem:[%s8214 + $0x18] sm:$0xff]
  %v8219 = vld [vmem:[%s8214 + $0x20] sm:$0xff]
  %v8220 = vld [vmem:[%s8214 + $0x28] sm:$0xff]
  %v8221 = vld [vmem:[%s8214 + $0x30] sm:$0xff]
  %v8222 = vld [vmem:[%s8214 + $0x38] sm:$0xff]
  %v8224 = vsel %vm7834, %v8211, 0
  %8226 = vmatprep.subr.mxu0 0.0
  %8227 = vmatpush1.msra.mxu0 %v8215
  %8228 = vmatprep.subr.mxu0 0.0
  %8229 = vmatpush1.msra.mxu0 %v8216
  %8230 = vmatprep.subr.mxu0 0.0
  %8231 = vmatpush1.msra.mxu0 %v8217
  %8232 = vmatprep.subr.mxu0 0.0
  %8233 = vmatpush1.msra.mxu0 %v8218
  %8234 = vmatprep.subr.mxu0 0.0
  %8235 = vmatpush1.msra.mxu0 %v8219
  %8236 = vmatprep.subr.mxu0 0.0
  %8237 = vmatpush1.msra.mxu0 %v8220
  %8238 = vmatprep.subr.mxu0 0.0
  %8239 = vmatpush1.msra.mxu0 %v8221
  %8240 = vmatprep.subr.mxu0 0.0
  %8241 = vmatpush1.msra.mxu0 %v8222
  %8242 = vmatprep.subr.mxu0 0.0
  %8243 = vmatpush1.msra.mxu0 0.0
  %8244 = vmatprep.subr.mxu0 0.0
  %8245 = vmatpush1.msra.mxu0 0.0
  %8246 = vmatprep.subr.mxu0 0.0
  %8247 = vmatpush1.msra.mxu0 0.0
  %8248 = vmatprep.subr.mxu0 0.0
  %8249 = vmatpush1.msra.mxu0 0.0
  %8250 = vmatprep.subr.mxu0 0.0
  %8251 = vmatpush1.msra.mxu0 0.0
  %8252 = vmatprep.subr.mxu0 0.0
  %8253 = vmatpush1.msra.mxu0 0.0
  %8254 = vmatprep.subr.mxu0 0.0
  %8255 = vmatpush1.msra.mxu0 0.0
  %8256 = vmatprep.subr.mxu0 0.0
  %8257 = vmatpush1.msra.mxu0 0.0
  %8258 = vmatprep.subr.mxu0 0.0
  %8259 = vmatpush1.msra.mxu0 0.0
  %8260 = vmatprep.subr.mxu0 0.0
  %8261 = vmatpush1.msra.mxu0 0.0
  %8262 = vmatprep.subr.mxu0 0.0
  %8263 = vmatpush1.msra.mxu0 0.0
  %8264 = vmatprep.subr.mxu0 0.0
  %8265 = vmatpush1.msra.mxu0 0.0
  %8266 = vmatprep.subr.mxu0 0.0
  %8267 = vmatpush1.msra.mxu0 0.0
  %8268 = vmatprep.subr.mxu0 0.0
  %8269 = vmatpush1.msra.mxu0 0.0
  %8270 = vmatprep.subr.mxu0 0.0
  %8271 = vmatpush1.msra.mxu0 0.0
  %8272 = vmatprep.subr.mxu0 0.0
  %8273 = vmatpush1.msra.mxu0 0.0
  %8274 = vmatprep.subr.mxu0 0.0
  %8275 = vmatpush1.msra.mxu0 0.0
  %8276 = vmatprep.subr.mxu0 0.0
  %8277 = vmatpush1.msra.mxu0 0.0
  %8278 = vmatprep.subr.mxu0 0.0
  %8279 = vmatpush1.msra.mxu0 0.0
  %8280 = vmatprep.subr.mxu0 0.0
  %8281 = vmatpush1.msra.mxu0 0.0
  %8282 = vmatprep.subr.mxu0 0.0
  %8283 = vmatpush1.msra.mxu0 0.0
  %8284 = vmatprep.subr.mxu0 0.0
  %8285 = vmatpush1.msra.mxu0 0.0
  %8286 = vmatprep.subr.mxu0 0.0
  %8287 = vmatpush1.msra.mxu0 0.0
  %8288 = vmatprep.subr.mxu0 0.0
  %8289 = vmatpush1.msra.mxu0 0.0
  %8290 = vmatprep.mubr.f32.mxu0 0.0
  %8291 = vmatmul.mubr.f32.gmra.mrb[0].mxu0 %v8224
  %v8292 = vpop.f32.mrb[0].mxu0
  %v8293 = vadd.f32 0.0, %v8292
  %v8294 = vpop.f32.mrb[0].mxu0
  %8295 = vdwg.mxu0
  %v8296 = vadd.f32 %v8138, %v8293
  %s8297 = scalar_lea.vmem %s7, 32
  %v8298 = vld [vmem:[%s8297] sm:$0xff]
  %v8300 = vsel %vm492, %v8298, 0
  %8302 = vmatprep.subr.mxu0 0.0
  %8303 = vmatpush1.msra.mxu0 %v7664
  %8304 = vmatprep.subr.mxu0 0.0
  %8305 = vmatpush1.msra.mxu0 %v7665
  %8306 = vmatprep.subr.mxu0 0.0
  %8307 = vmatpush1.msra.mxu0 %v7666
  %8308 = vmatprep.subr.mxu0 0.0
  %8309 = vmatpush1.msra.mxu0 %v7667
  %8310 = vmatprep.subr.mxu0 0.0
  %8311 = vmatpush1.msra.mxu0 0.0
  %8312 = vmatprep.subr.mxu0 0.0
  %8313 = vmatpush1.msra.mxu0 0.0
  %8314 = vmatprep.subr.mxu0 0.0
  %8315 = vmatpush1.msra.mxu0 0.0
  %8316 = vmatprep.subr.mxu0 0.0
  %8317 = vmatpush1.msra.mxu0 0.0
  %8318 = vmatprep.subr.mxu0 0.0
  %8319 = vmatpush1.msra.mxu0 0.0
  %8320 = vmatprep.subr.mxu0 0.0
  %8321 = vmatpush1.msra.mxu0 0.0
  %8322 = vmatprep.subr.mxu0 0.0
  %8323 = vmatpush1.msra.mxu0 0.0
  %8324 = vmatprep.subr.mxu0 0.0
  %8325 = vmatpush1.msra.mxu0 0.0
  %8326 = vmatprep.subr.mxu0 0.0
  %8327 = vmatpush1.msra.mxu0 0.0
  %8328 = vmatprep.subr.mxu0 0.0
  %8329 = vmatpush1.msra.mxu0 0.0
  %8330 = vmatprep.subr.mxu0 0.0
  %8331 = vmatpush1.msra.mxu0 0.0
  %8332 = vmatprep.subr.mxu0 0.0
  %8333 = vmatpush1.msra.mxu0 0.0
  %8334 = vmatprep.subr.mxu0 0.0
  %8335 = vmatpush1.msra.mxu0 0.0
  %8336 = vmatprep.subr.mxu0 0.0
  %8337 = vmatpush1.msra.mxu0 0.0
  %8338 = vmatprep.subr.mxu0 0.0
  %8339 = vmatpush1.msra.mxu0 0.0
  %8340 = vmatprep.subr.mxu0 0.0
  %8341 = vmatpush1.msra.mxu0 0.0
  %8342 = vmatprep.subr.mxu0 0.0
  %8343 = vmatpush1.msra.mxu0 0.0
  %8344 = vmatprep.subr.mxu0 0.0
  %8345 = vmatpush1.msra.mxu0 0.0
  %8346 = vmatprep.subr.mxu0 0.0
  %8347 = vmatpush1.msra.mxu0 0.0
  %8348 = vmatprep.subr.mxu0 0.0
  %8349 = vmatpush1.msra.mxu0 0.0
  %8350 = vmatprep.subr.mxu0 0.0
  %8351 = vmatpush1.msra.mxu0 0.0
  %8352 = vmatprep.subr.mxu0 0.0
  %8353 = vmatpush1.msra.mxu0 0.0
  %8354 = vmatprep.subr.mxu0 0.0
  %8355 = vmatpush1.msra.mxu0 0.0
  %8356 = vmatprep.subr.mxu0 0.0
  %8357 = vmatpush1.msra.mxu0 0.0
  %8358 = vmatprep.subr.mxu0 0.0
  %8359 = vmatpush1.msra.mxu0 0.0
  %8360 = vmatprep.subr.mxu0 0.0
  %8361 = vmatpush1.msra.mxu0 0.0
  %8362 = vmatprep.subr.mxu0 0.0
  %8363 = vmatpush1.msra.mxu0 0.0
  %8364 = vmatprep.subr.mxu0 0.0
  %8365 = vmatpush1.msra.mxu0 0.0
  %8366 = vmatprep.mubr.f32.mxu0 0.0
  %8367 = vmatmul.mubr.f32.gmra.mrb[0].mxu0 %v8300
  %v8368 = vpop.f32.mrb[0].mxu0
  %v8369 = vadd.f32 0.0, %v8368
  %v8370 = vpop.f32.mrb[0].mxu0
  %8371 = vdwg.mxu0
  %s8372 = scalar_lea.vmem %s8, 256
  %v8373 = vld [vmem:[%s8372] sm:$0xff]
  %v8374 = vld [vmem:[%s8372 + $0x8] sm:$0xff]
  %v8375 = vld [vmem:[%s8372 + $0x10] sm:$0xff]
  %v8376 = vld [vmem:[%s8372 + $0x18] sm:$0xff]
  %v8377 = vld [vmem:[%s8372 + $0x20] sm:$0xff]
  %v8378 = vld [vmem:[%s8372 + $0x28] sm:$0xff]
  %v8379 = vld [vmem:[%s8372 + $0x30] sm:$0xff]
  %v8380 = vld [vmem:[%s8372 + $0x38] sm:$0xff]
  %v8382 = vsel %vm7834, %v8369, 0
  %8384 = vmatprep.subr.mxu0 0.0
  %8385 = vmatpush1.msra.mxu0 %v8373
  %8386 = vmatprep.subr.mxu0 0.0
  %8387 = vmatpush1.msra.mxu0 %v8374
  %8388 = vmatprep.subr.mxu0 0.0
  %8389 = vmatpush1.msra.mxu0 %v8375
  %8390 = vmatprep.subr.mxu0 0.0
  %8391 = vmatpush1.msra.mxu0 %v8376
  %8392 = vmatprep.subr.mxu0 0.0
  %8393 = vmatpush1.msra.mxu0 %v8377
  %8394 = vmatprep.subr.mxu0 0.0
  %8395 = vmatpush1.msra.mxu0 %v8378
  %8396 = vmatprep.subr.mxu0 0.0
  %8397 = vmatpush1.msra.mxu0 %v8379
  %8398 = vmatprep.subr.mxu0 0.0
  %8399 = vmatpush1.msra.mxu0 %v8380
  %8400 = vmatprep.subr.mxu0 0.0
  %8401 = vmatpush1.msra.mxu0 0.0
  %8402 = vmatprep.subr.mxu0 0.0
  %8403 = vmatpush1.msra.mxu0 0.0
  %8404 = vmatprep.subr.mxu0 0.0
  %8405 = vmatpush1.msra.mxu0 0.0
  %8406 = vmatprep.subr.mxu0 0.0
  %8407 = vmatpush1.msra.mxu0 0.0
  %8408 = vmatprep.subr.mxu0 0.0
  %8409 = vmatpush1.msra.mxu0 0.0
  %8410 = vmatprep.subr.mxu0 0.0
  %8411 = vmatpush1.msra.mxu0 0.0
  %8412 = vmatprep.subr.mxu0 0.0
  %8413 = vmatpush1.msra.mxu0 0.0
  %8414 = vmatprep.subr.mxu0 0.0
  %8415 = vmatpush1.msra.mxu0 0.0
  %8416 = vmatprep.subr.mxu0 0.0
  %8417 = vmatpush1.msra.mxu0 0.0
  %8418 = vmatprep.subr.mxu0 0.0
  %8419 = vmatpush1.msra.mxu0 0.0
  %8420 = vmatprep.subr.mxu0 0.0
  %8421 = vmatpush1.msra.mxu0 0.0
  %8422 = vmatprep.subr.mxu0 0.0
  %8423 = vmatpush1.msra.mxu0 0.0
  %8424 = vmatprep.subr.mxu0 0.0
  %8425 = vmatpush1.msra.mxu0 0.0
  %8426 = vmatprep.subr.mxu0 0.0
  %8427 = vmatpush1.msra.mxu0 0.0
  %8428 = vmatprep.subr.mxu0 0.0
  %8429 = vmatpush1.msra.mxu0 0.0
  %8430 = vmatprep.subr.mxu0 0.0
  %8431 = vmatpush1.msra.mxu0 0.0
  %8432 = vmatprep.subr.mxu0 0.0
  %8433 = vmatpush1.msra.mxu0 0.0
  %8434 = vmatprep.subr.mxu0 0.0
  %8435 = vmatpush1.msra.mxu0 0.0
  %8436 = vmatprep.subr.mxu0 0.0
  %8437 = vmatpush1.msra.mxu0 0.0
  %8438 = vmatprep.subr.mxu0 0.0
  %8439 = vmatpush1.msra.mxu0 0.0
  %8440 = vmatprep.subr.mxu0 0.0
  %8441 = vmatpush1.msra.mxu0 0.0
  %8442 = vmatprep.subr.mxu0 0.0
  %8443 = vmatpush1.msra.mxu0 0.0
  %8444 = vmatprep.subr.mxu0 0.0
  %8445 = vmatpush1.msra.mxu0 0.0
  %8446 = vmatprep.subr.mxu0 0.0
  %8447 = vmatpush1.msra.mxu0 0.0
  %8448 = vmatprep.mubr.f32.mxu0 0.0
  %8449 = vmatmul.mubr.f32.gmra.mrb[0].mxu0 %v8382
  %v8450 = vpop.f32.mrb[0].mxu0
  %v8451 = vadd.f32 0.0, %v8450
  %v8452 = vpop.f32.mrb[0].mxu0
  %8453 = vdwg.mxu0
  %v8454 = vadd.f32 %v8296, %v8451
  %s8455 = scalar_lea.vmem %s7, 40
  %v8456 = vld [vmem:[%s8455] sm:$0xff]
  %v8458 = vsel %vm492, %v8456, 0
  %8460 = vmatprep.subr.mxu0 0.0
  %8461 = vmatpush1.msra.mxu0 %v7664
  %8462 = vmatprep.subr.mxu0 0.0
  %8463 = vmatpush1.msra.mxu0 %v7665
  %8464 = vmatprep.subr.mxu0 0.0
  %8465 = vmatpush1.msra.mxu0 %v7666
  %8466 = vmatprep.subr.mxu0 0.0
  %8467 = vmatpush1.msra.mxu0 %v7667
  %8468 = vmatprep.subr.mxu0 0.0
  %8469 = vmatpush1.msra.mxu0 0.0
  %8470 = vmatprep.subr.mxu0 0.0
  %8471 = vmatpush1.msra.mxu0 0.0
  %8472 = vmatprep.subr.mxu0 0.0
  %8473 = vmatpush1.msra.mxu0 0.0
  %8474 = vmatprep.subr.mxu0 0.0
  %8475 = vmatpush1.msra.mxu0 0.0
  %8476 = vmatprep.subr.mxu0 0.0
  %8477 = vmatpush1.msra.mxu0 0.0
  %8478 = vmatprep.subr.mxu0 0.0
  %8479 = vmatpush1.msra.mxu0 0.0
  %8480 = vmatprep.subr.mxu0 0.0
  %8481 = vmatpush1.msra.mxu0 0.0
  %8482 = vmatprep.subr.mxu0 0.0
  %8483 = vmatpush1.msra.mxu0 0.0
  %8484 = vmatprep.subr.mxu0 0.0
  %8485 = vmatpush1.msra.mxu0 0.0
  %8486 = vmatprep.subr.mxu0 0.0
  %8487 = vmatpush1.msra.mxu0 0.0
  %8488 = vmatprep.subr.mxu0 0.0
  %8489 = vmatpush1.msra.mxu0 0.0
  %8490 = vmatprep.subr.mxu0 0.0
  %8491 = vmatpush1.msra.mxu0 0.0
  %8492 = vmatprep.subr.mxu0 0.0
  %8493 = vmatpush1.msra.mxu0 0.0
  %8494 = vmatprep.subr.mxu0 0.0
  %8495 = vmatpush1.msra.mxu0 0.0
  %8496 = vmatprep.subr.mxu0 0.0
  %8497 = vmatpush1.msra.mxu0 0.0
  %8498 = vmatprep.subr.mxu0 0.0
  %8499 = vmatpush1.msra.mxu0 0.0
  %8500 = vmatprep.subr.mxu0 0.0
  %8501 = vmatpush1.msra.mxu0 0.0
  %8502 = vmatprep.subr.mxu0 0.0
  %8503 = vmatpush1.msra.mxu0 0.0
  %8504 = vmatprep.subr.mxu0 0.0
  %8505 = vmatpush1.msra.mxu0 0.0
  %8506 = vmatprep.subr.mxu0 0.0
  %8507 = vmatpush1.msra.mxu0 0.0
  %8508 = vmatprep.subr.mxu0 0.0
  %8509 = vmatpush1.msra.mxu0 0.0
  %8510 = vmatprep.subr.mxu0 0.0
  %8511 = vmatpush1.msra.mxu0 0.0
  %8512 = vmatprep.subr.mxu0 0.0
  %8513 = vmatpush1.msra.mxu0 0.0
  %8514 = vmatprep.subr.mxu0 0.0
  %8515 = vmatpush1.msra.mxu0 0.0
  %8516 = vmatprep.subr.mxu0 0.0
  %8517 = vmatpush1.msra.mxu0 0.0
  %8518 = vmatprep.subr.mxu0 0.0
  %8519 = vmatpush1.msra.mxu0 0.0
  %8520 = vmatprep.subr.mxu0 0.0
  %8521 = vmatpush1.msra.mxu0 0.0
  %8522 = vmatprep.subr.mxu0 0.0
  %8523 = vmatpush1.msra.mxu0 0.0
  %8524 = vmatprep.mubr.f32.mxu0 0.0
  %8525 = vmatmul.mubr.f32.gmra.mrb[0].mxu0 %v8458
  %v8526 = vpop.f32.mrb[0].mxu0
  %v8527 = vadd.f32 0.0, %v8526
  %v8528 = vpop.f32.mrb[0].mxu0
  %8529 = vdwg.mxu0
  %s8530 = scalar_lea.vmem %s8, 320
  %v8531 = vld [vmem:[%s8530] sm:$0xff]
  %v8532 = vld [vmem:[%s8530 + $0x8] sm:$0xff]
  %v8533 = vld [vmem:[%s8530 + $0x10] sm:$0xff]
  %v8534 = vld [vmem:[%s8530 + $0x18] sm:$0xff]
  %v8535 = vld [vmem:[%s8530 + $0x20] sm:$0xff]
  %v8536 = vld [vmem:[%s8530 + $0x28] sm:$0xff]
  %v8537 = vld [vmem:[%s8530 + $0x30] sm:$0xff]
  %v8538 = vld [vmem:[%s8530 + $0x38] sm:$0xff]
  %v8540 = vsel %vm7834, %v8527, 0
  %8542 = vmatprep.subr.mxu0 0.0
  %8543 = vmatpush1.msra.mxu0 %v8531
  %8544 = vmatprep.subr.mxu0 0.0
  %8545 = vmatpush1.msra.mxu0 %v8532
  %8546 = vmatprep.subr.mxu0 0.0
  %8547 = vmatpush1.msra.mxu0 %v8533
  %8548 = vmatprep.subr.mxu0 0.0
  %8549 = vmatpush1.msra.mxu0 %v8534
  %8550 = vmatprep.subr.mxu0 0.0
  %8551 = vmatpush1.msra.mxu0 %v8535
  %8552 = vmatprep.subr.mxu0 0.0
  %8553 = vmatpush1.msra.mxu0 %v8536
  %8554 = vmatprep.subr.mxu0 0.0
  %8555 = vmatpush1.msra.mxu0 %v8537
  %8556 = vmatprep.subr.mxu0 0.0
  %8557 = vmatpush1.msra.mxu0 %v8538
  %8558 = vmatprep.subr.mxu0 0.0
  %8559 = vmatpush1.msra.mxu0 0.0
  %8560 = vmatprep.subr.mxu0 0.0
  %8561 = vmatpush1.msra.mxu0 0.0
  %8562 = vmatprep.subr.mxu0 0.0
  %8563 = vmatpush1.msra.mxu0 0.0
  %8564 = vmatprep.subr.mxu0 0.0
  %8565 = vmatpush1.msra.mxu0 0.0
  %8566 = vmatprep.subr.mxu0 0.0
  %8567 = vmatpush1.msra.mxu0 0.0
  %8568 = vmatprep.subr.mxu0 0.0
  %8569 = vmatpush1.msra.mxu0 0.0
  %8570 = vmatprep.subr.mxu0 0.0
  %8571 = vmatpush1.msra.mxu0 0.0
  %8572 = vmatprep.subr.mxu0 0.0
  %8573 = vmatpush1.msra.mxu0 0.0
  %8574 = vmatprep.subr.mxu0 0.0
  %8575 = vmatpush1.msra.mxu0 0.0
  %8576 = vmatprep.subr.mxu0 0.0
  %8577 = vmatpush1.msra.mxu0 0.0
  %8578 = vmatprep.subr.mxu0 0.0
  %8579 = vmatpush1.msra.mxu0 0.0
  %8580 = vmatprep.subr.mxu0 0.0
  %8581 = vmatpush1.msra.mxu0 0.0
  %8582 = vmatprep.subr.mxu0 0.0
  %8583 = vmatpush1.msra.mxu0 0.0
  %8584 = vmatprep.subr.mxu0 0.0
  %8585 = vmatpush1.msra.mxu0 0.0
  %8586 = vmatprep.subr.mxu0 0.0
  %8587 = vmatpush1.msra.mxu0 0.0
  %8588 = vmatprep.subr.mxu0 0.0
  %8589 = vmatpush1.msra.mxu0 0.0
  %8590 = vmatprep.subr.mxu0 0.0
  %8591 = vmatpush1.msra.mxu0 0.0
  %8592 = vmatprep.subr.mxu0 0.0
  %8593 = vmatpush1.msra.mxu0 0.0
  %8594 = vmatprep.subr.mxu0 0.0
  %8595 = vmatpush1.msra.mxu0 0.0
  %8596 = vmatprep.subr.mxu0 0.0
  %8597 = vmatpush1.msra.mxu0 0.0
  %8598 = vmatprep.subr.mxu0 0.0
  %8599 = vmatpush1.msra.mxu0 0.0
  %8600 = vmatprep.subr.mxu0 0.0
  %8601 = vmatpush1.msra.mxu0 0.0
  %8602 = vmatprep.subr.mxu0 0.0
  %8603 = vmatpush1.msra.mxu0 0.0
  %8604 = vmatprep.subr.mxu0 0.0
  %8605 = vmatpush1.msra.mxu0 0.0
  %8606 = vmatprep.mubr.f32.mxu0 0.0
  %8607 = vmatmul.mubr.f32.gmra.mrb[0].mxu0 %v8540
  %v8608 = vpop.f32.mrb[0].mxu0
  %v8609 = vadd.f32 0.0, %v8608
  %v8610 = vpop.f32.mrb[0].mxu0
  %8611 = vdwg.mxu0
  %v8612 = vadd.f32 %v8454, %v8609
  %s8613 = scalar_lea.vmem %s7, 48
  %v8614 = vld [vmem:[%s8613] sm:$0xff]
  %v8616 = vsel %vm492, %v8614, 0
  %8618 = vmatprep.subr.mxu0 0.0
  %8619 = vmatpush1.msra.mxu0 %v7664
  %8620 = vmatprep.subr.mxu0 0.0
  %8621 = vmatpush1.msra.mxu0 %v7665
  %8622 = vmatprep.subr.mxu0 0.0
  %8623 = vmatpush1.msra.mxu0 %v7666
  %8624 = vmatprep.subr.mxu0 0.0
  %8625 = vmatpush1.msra.mxu0 %v7667
  %8626 = vmatprep.subr.mxu0 0.0
  %8627 = vmatpush1.msra.mxu0 0.0
  %8628 = vmatprep.subr.mxu0 0.0
  %8629 = vmatpush1.msra.mxu0 0.0
  %8630 = vmatprep.subr.mxu0 0.0
  %8631 = vmatpush1.msra.mxu0 0.0
  %8632 = vmatprep.subr.mxu0 0.0
  %8633 = vmatpush1.msra.mxu0 0.0
  %8634 = vmatprep.subr.mxu0 0.0
  %8635 = vmatpush1.msra.mxu0 0.0
  %8636 = vmatprep.subr.mxu0 0.0
  %8637 = vmatpush1.msra.mxu0 0.0
  %8638 = vmatprep.subr.mxu0 0.0
  %8639 = vmatpush1.msra.mxu0 0.0
  %8640 = vmatprep.subr.mxu0 0.0
  %8641 = vmatpush1.msra.mxu0 0.0
  %8642 = vmatprep.subr.mxu0 0.0
  %8643 = vmatpush1.msra.mxu0 0.0
  %8644 = vmatprep.subr.mxu0 0.0
  %8645 = vmatpush1.msra.mxu0 0.0
  %8646 = vmatprep.subr.mxu0 0.0
  %8647 = vmatpush1.msra.mxu0 0.0
  %8648 = vmatprep.subr.mxu0 0.0
  %8649 = vmatpush1.msra.mxu0 0.0
  %8650 = vmatprep.subr.mxu0 0.0
  %8651 = vmatpush1.msra.mxu0 0.0
  %8652 = vmatprep.subr.mxu0 0.0
  %8653 = vmatpush1.msra.mxu0 0.0
  %8654 = vmatprep.subr.mxu0 0.0
  %8655 = vmatpush1.msra.mxu0 0.0
  %8656 = vmatprep.subr.mxu0 0.0
  %8657 = vmatpush1.msra.mxu0 0.0
  %8658 = vmatprep.subr.mxu0 0.0
  %8659 = vmatpush1.msra.mxu0 0.0
  %8660 = vmatprep.subr.mxu0 0.0
  %8661 = vmatpush1.msra.mxu0 0.0
  %8662 = vmatprep.subr.mxu0 0.0
  %8663 = vmatpush1.msra.mxu0 0.0
  %8664 = vmatprep.subr.mxu0 0.0
  %8665 = vmatpush1.msra.mxu0 0.0
  %8666 = vmatprep.subr.mxu0 0.0
  %8667 = vmatpush1.msra.mxu0 0.0
  %8668 = vmatprep.subr.mxu0 0.0
  %8669 = vmatpush1.msra.mxu0 0.0
  %8670 = vmatprep.subr.mxu0 0.0
  %8671 = vmatpush1.msra.mxu0 0.0
  %8672 = vmatprep.subr.mxu0 0.0
  %8673 = vmatpush1.msra.mxu0 0.0
  %8674 = vmatprep.subr.mxu0 0.0
  %8675 = vmatpush1.msra.mxu0 0.0
  %8676 = vmatprep.subr.mxu0 0.0
  %8677 = vmatpush1.msra.mxu0 0.0
  %8678 = vmatprep.subr.mxu0 0.0
  %8679 = vmatpush1.msra.mxu0 0.0
  %8680 = vmatprep.subr.mxu0 0.0
  %8681 = vmatpush1.msra.mxu0 0.0
  %8682 = vmatprep.mubr.f32.mxu0 0.0
  %8683 = vmatmul.mubr.f32.gmra.mrb[0].mxu0 %v8616
  %v8684 = vpop.f32.mrb[0].mxu0
  %v8685 = vadd.f32 0.0, %v8684
  %v8686 = vpop.f32.mrb[0].mxu0
  %8687 = vdwg.mxu0
  %s8688 = scalar_lea.vmem %s8, 384
  %v8689 = vld [vmem:[%s8688] sm:$0xff]
  %v8690 = vld [vmem:[%s8688 + $0x8] sm:$0xff]
  %v8691 = vld [vmem:[%s8688 + $0x10] sm:$0xff]
  %v8692 = vld [vmem:[%s8688 + $0x18] sm:$0xff]
  %v8693 = vld [vmem:[%s8688 + $0x20] sm:$0xff]
  %v8694 = vld [vmem:[%s8688 + $0x28] sm:$0xff]
  %v8695 = vld [vmem:[%s8688 + $0x30] sm:$0xff]
  %v8696 = vld [vmem:[%s8688 + $0x38] sm:$0xff]
  %v8698 = vsel %vm7834, %v8685, 0
  %8700 = vmatprep.subr.mxu0 0.0
  %8701 = vmatpush1.msra.mxu0 %v8689
  %8702 = vmatprep.subr.mxu0 0.0
  %8703 = vmatpush1.msra.mxu0 %v8690
  %8704 = vmatprep.subr.mxu0 0.0
  %8705 = vmatpush1.msra.mxu0 %v8691
  %8706 = vmatprep.subr.mxu0 0.0
  %8707 = vmatpush1.msra.mxu0 %v8692
  %8708 = vmatprep.subr.mxu0 0.0
  %8709 = vmatpush1.msra.mxu0 %v8693
  %8710 = vmatprep.subr.mxu0 0.0
  %8711 = vmatpush1.msra.mxu0 %v8694
  %8712 = vmatprep.subr.mxu0 0.0
  %8713 = vmatpush1.msra.mxu0 %v8695
  %8714 = vmatprep.subr.mxu0 0.0
  %8715 = vmatpush1.msra.mxu0 %v8696
  %8716 = vmatprep.subr.mxu0 0.0
  %8717 = vmatpush1.msra.mxu0 0.0
  %8718 = vmatprep.subr.mxu0 0.0
  %8719 = vmatpush1.msra.mxu0 0.0
  %8720 = vmatprep.subr.mxu0 0.0
  %8721 = vmatpush1.msra.mxu0 0.0
  %8722 = vmatprep.subr.mxu0 0.0
  %8723 = vmatpush1.msra.mxu0 0.0
  %8724 = vmatprep.subr.mxu0 0.0
  %8725 = vmatpush1.msra.mxu0 0.0
  %8726 = vmatprep.subr.mxu0 0.0
  %8727 = vmatpush1.msra.mxu0 0.0
  %8728 = vmatprep.subr.mxu0 0.0
  %8729 = vmatpush1.msra.mxu0 0.0
  %8730 = vmatprep.subr.mxu0 0.0
  %8731 = vmatpush1.msra.mxu0 0.0
  %8732 = vmatprep.subr.mxu0 0.0
  %8733 = vmatpush1.msra.mxu0 0.0
  %8734 = vmatprep.subr.mxu0 0.0
  %8735 = vmatpush1.msra.mxu0 0.0
  %8736 = vmatprep.subr.mxu0 0.0
  %8737 = vmatpush1.msra.mxu0 0.0
  %8738 = vmatprep.subr.mxu0 0.0
  %8739 = vmatpush1.msra.mxu0 0.0
  %8740 = vmatprep.subr.mxu0 0.0
  %8741 = vmatpush1.msra.mxu0 0.0
  %8742 = vmatprep.subr.mxu0 0.0
  %8743 = vmatpush1.msra.mxu0 0.0
  %8744 = vmatprep.subr.mxu0 0.0
  %8745 = vmatpush1.msra.mxu0 0.0
  %8746 = vmatprep.subr.mxu0 0.0
  %8747 = vmatpush1.msra.mxu0 0.0
  %8748 = vmatprep.subr.mxu0 0.0
  %8749 = vmatpush1.msra.mxu0 0.0
  %8750 = vmatprep.subr.mxu0 0.0
  %8751 = vmatpush1.msra.mxu0 0.0
  %8752 = vmatprep.subr.mxu0 0.0
  %8753 = vmatpush1.msra.mxu0 0.0
  %8754 = vmatprep.subr.mxu0 0.0
  %8755 = vmatpush1.msra.mxu0 0.0
  %8756 = vmatprep.subr.mxu0 0.0
  %8757 = vmatpush1.msra.mxu0 0.0
  %8758 = vmatprep.subr.mxu0 0.0
  %8759 = vmatpush1.msra.mxu0 0.0
  %8760 = vmatprep.subr.mxu0 0.0
  %8761 = vmatpush1.msra.mxu0 0.0
  %8762 = vmatprep.subr.mxu0 0.0
  %8763 = vmatpush1.msra.mxu0 0.0
  %8764 = vmatprep.mubr.f32.mxu0 0.0
  %8765 = vmatmul.mubr.f32.gmra.mrb[0].mxu0 %v8698
  %v8766 = vpop.f32.mrb[0].mxu0
  %v8767 = vadd.f32 0.0, %v8766
  %v8768 = vpop.f32.mrb[0].mxu0
  %8769 = vdwg.mxu0
  %v8770 = vadd.f32 %v8612, %v8767
  %s8771 = scalar_lea.vmem %s7, 56
  %v8772 = vld [vmem:[%s8771] sm:$0xff]
  %v8774 = vsel %vm492, %v8772, 0
  %8776 = vmatprep.subr.mxu0 0.0
  %8777 = vmatpush1.msra.mxu0 %v7664
  %8778 = vmatprep.subr.mxu0 0.0
  %8779 = vmatpush1.msra.mxu0 %v7665
  %8780 = vmatprep.subr.mxu0 0.0
  %8781 = vmatpush1.msra.mxu0 %v7666
  %8782 = vmatprep.subr.mxu0 0.0
  %8783 = vmatpush1.msra.mxu0 %v7667
  %8784 = vmatprep.subr.mxu0 0.0
  %8785 = vmatpush1.msra.mxu0 0.0
  %8786 = vmatprep.subr.mxu0 0.0
  %8787 = vmatpush1.msra.mxu0 0.0
  %8788 = vmatprep.subr.mxu0 0.0
  %8789 = vmatpush1.msra.mxu0 0.0
  %8790 = vmatprep.subr.mxu0 0.0
  %8791 = vmatpush1.msra.mxu0 0.0
  %8792 = vmatprep.subr.mxu0 0.0
  %8793 = vmatpush1.msra.mxu0 0.0
  %8794 = vmatprep.subr.mxu0 0.0
  %8795 = vmatpush1.msra.mxu0 0.0
  %8796 = vmatprep.subr.mxu0 0.0
  %8797 = vmatpush1.msra.mxu0 0.0
  %8798 = vmatprep.subr.mxu0 0.0
  %8799 = vmatpush1.msra.mxu0 0.0
  %8800 = vmatprep.subr.mxu0 0.0
  %8801 = vmatpush1.msra.mxu0 0.0
  %8802 = vmatprep.subr.mxu0 0.0
  %8803 = vmatpush1.msra.mxu0 0.0
  %8804 = vmatprep.subr.mxu0 0.0
  %8805 = vmatpush1.msra.mxu0 0.0
  %8806 = vmatprep.subr.mxu0 0.0
  %8807 = vmatpush1.msra.mxu0 0.0
  %8808 = vmatprep.subr.mxu0 0.0
  %8809 = vmatpush1.msra.mxu0 0.0
  %8810 = vmatprep.subr.mxu0 0.0
  %8811 = vmatpush1.msra.mxu0 0.0
  %8812 = vmatprep.subr.mxu0 0.0
  %8813 = vmatpush1.msra.mxu0 0.0
  %8814 = vmatprep.subr.mxu0 0.0
  %8815 = vmatpush1.msra.mxu0 0.0
  %8816 = vmatprep.subr.mxu0 0.0
  %8817 = vmatpush1.msra.mxu0 0.0
  %8818 = vmatprep.subr.mxu0 0.0
  %8819 = vmatpush1.msra.mxu0 0.0
  %8820 = vmatprep.subr.mxu0 0.0
  %8821 = vmatpush1.msra.mxu0 0.0
  %8822 = vmatprep.subr.mxu0 0.0
  %8823 = vmatpush1.msra.mxu0 0.0
  %8824 = vmatprep.subr.mxu0 0.0
  %8825 = vmatpush1.msra.mxu0 0.0
  %8826 = vmatprep.subr.mxu0 0.0
  %8827 = vmatpush1.msra.mxu0 0.0
  %8828 = vmatprep.subr.mxu0 0.0
  %8829 = vmatpush1.msra.mxu0 0.0
  %8830 = vmatprep.subr.mxu0 0.0
  %8831 = vmatpush1.msra.mxu0 0.0
  %8832 = vmatprep.subr.mxu0 0.0
  %8833 = vmatpush1.msra.mxu0 0.0
  %8834 = vmatprep.subr.mxu0 0.0
  %8835 = vmatpush1.msra.mxu0 0.0
  %8836 = vmatprep.subr.mxu0 0.0
  %8837 = vmatpush1.msra.mxu0 0.0
  %8838 = vmatprep.subr.mxu0 0.0
  %8839 = vmatpush1.msra.mxu0 0.0
  %8840 = vmatprep.mubr.f32.mxu0 0.0
  %8841 = vmatmul.mubr.f32.gmra.mrb[0].mxu0 %v8774
  %v8842 = vpop.f32.mrb[0].mxu0
  %v8843 = vadd.f32 0.0, %v8842
  %v8844 = vpop.f32.mrb[0].mxu0
  %8845 = vdwg.mxu0
  %s8846 = scalar_lea.vmem %s8, 448
  %v8847 = vld [vmem:[%s8846] sm:$0xff]
  %v8848 = vld [vmem:[%s8846 + $0x8] sm:$0xff]
  %v8849 = vld [vmem:[%s8846 + $0x10] sm:$0xff]
  %v8850 = vld [vmem:[%s8846 + $0x18] sm:$0xff]
  %v8851 = vld [vmem:[%s8846 + $0x20] sm:$0xff]
  %v8852 = vld [vmem:[%s8846 + $0x28] sm:$0xff]
  %v8853 = vld [vmem:[%s8846 + $0x30] sm:$0xff]
  %v8854 = vld [vmem:[%s8846 + $0x38] sm:$0xff]
  %v8856 = vsel %vm7834, %v8843, 0
  %8858 = vmatprep.subr.mxu0 0.0
  %8859 = vmatpush1.msra.mxu0 %v8847
  %8860 = vmatprep.subr.mxu0 0.0
  %8861 = vmatpush1.msra.mxu0 %v8848
  %8862 = vmatprep.subr.mxu0 0.0
  %8863 = vmatpush1.msra.mxu0 %v8849
  %8864 = vmatprep.subr.mxu0 0.0
  %8865 = vmatpush1.msra.mxu0 %v8850
  %8866 = vmatprep.subr.mxu0 0.0
  %8867 = vmatpush1.msra.mxu0 %v8851
  %8868 = vmatprep.subr.mxu0 0.0
  %8869 = vmatpush1.msra.mxu0 %v8852
  %8870 = vmatprep.subr.mxu0 0.0
  %8871 = vmatpush1.msra.mxu0 %v8853
  %8872 = vmatprep.subr.mxu0 0.0
  %8873 = vmatpush1.msra.mxu0 %v8854
  %8874 = vmatprep.subr.mxu0 0.0
  %8875 = vmatpush1.msra.mxu0 0.0
  %8876 = vmatprep.subr.mxu0 0.0
  %8877 = vmatpush1.msra.mxu0 0.0
  %8878 = vmatprep.subr.mxu0 0.0
  %8879 = vmatpush1.msra.mxu0 0.0
  %8880 = vmatprep.subr.mxu0 0.0
  %8881 = vmatpush1.msra.mxu0 0.0
  %8882 = vmatprep.subr.mxu0 0.0
  %8883 = vmatpush1.msra.mxu0 0.0
  %8884 = vmatprep.subr.mxu0 0.0
  %8885 = vmatpush1.msra.mxu0 0.0
  %8886 = vmatprep.subr.mxu0 0.0
  %8887 = vmatpush1.msra.mxu0 0.0
  %8888 = vmatprep.subr.mxu0 0.0
  %8889 = vmatpush1.msra.mxu0 0.0
  %8890 = vmatprep.subr.mxu0 0.0
  %8891 = vmatpush1.msra.mxu0 0.0
  %8892 = vmatprep.subr.mxu0 0.0
  %8893 = vmatpush1.msra.mxu0 0.0
  %8894 = vmatprep.subr.mxu0 0.0
  %8895 = vmatpush1.msra.mxu0 0.0
  %8896 = vmatprep.subr.mxu0 0.0
  %8897 = vmatpush1.msra.mxu0 0.0
  %8898 = vmatprep.subr.mxu0 0.0
  %8899 = vmatpush1.msra.mxu0 0.0
  %8900 = vmatprep.subr.mxu0 0.0
  %8901 = vmatpush1.msra.mxu0 0.0
  %8902 = vmatprep.subr.mxu0 0.0
  %8903 = vmatpush1.msra.mxu0 0.0
  %8904 = vmatprep.subr.mxu0 0.0
  %8905 = vmatpush1.msra.mxu0 0.0
  %8906 = vmatprep.subr.mxu0 0.0
  %8907 = vmatpush1.msra.mxu0 0.0
  %8908 = vmatprep.subr.mxu0 0.0
  %8909 = vmatpush1.msra.mxu0 0.0
  %8910 = vmatprep.subr.mxu0 0.0
  %8911 = vmatpush1.msra.mxu0 0.0
  %8912 = vmatprep.subr.mxu0 0.0
  %8913 = vmatpush1.msra.mxu0 0.0
  %8914 = vmatprep.subr.mxu0 0.0
  %8915 = vmatpush1.msra.mxu0 0.0
  %8916 = vmatprep.subr.mxu0 0.0
  %8917 = vmatpush1.msra.mxu0 0.0
  %8918 = vmatprep.subr.mxu0 0.0
  %8919 = vmatpush1.msra.mxu0 0.0
  %8920 = vmatprep.subr.mxu0 0.0
  %8921 = vmatpush1.msra.mxu0 0.0
  %8922 = vmatprep.mubr.f32.mxu0 0.0
  %8923 = vmatmul.mubr.f32.gmra.mrb[0].mxu0 %v8856
  %v8924 = vpop.f32.mrb[0].mxu0
  %v8925 = vadd.f32 0.0, %v8924
  %v8926 = vpop.f32.mrb[0].mxu0
  %8927 = vdwg.mxu0
  %v8928 = vadd.f32 %v8770, %v8925
  %s8929 = scalar_lea.vmem %s7, 64
  %v8930 = vld [vmem:[%s8929] sm:$0xff]
  %v8932 = vsel %vm492, %v8930, 0
  %8934 = vmatprep.subr.mxu0 0.0
  %8935 = vmatpush1.msra.mxu0 %v7664
  %8936 = vmatprep.subr.mxu0 0.0
  %8937 = vmatpush1.msra.mxu0 %v7665
  %8938 = vmatprep.subr.mxu0 0.0
  %8939 = vmatpush1.msra.mxu0 %v7666
  %8940 = vmatprep.subr.mxu0 0.0
  %8941 = vmatpush1.msra.mxu0 %v7667
  %8942 = vmatprep.subr.mxu0 0.0
  %8943 = vmatpush1.msra.mxu0 0.0
  %8944 = vmatprep.subr.mxu0 0.0
  %8945 = vmatpush1.msra.mxu0 0.0
  %8946 = vmatprep.subr.mxu0 0.0
  %8947 = vmatpush1.msra.mxu0 0.0
  %8948 = vmatprep.subr.mxu0 0.0
  %8949 = vmatpush1.msra.mxu0 0.0
  %8950 = vmatprep.subr.mxu0 0.0
  %8951 = vmatpush1.msra.mxu0 0.0
  %8952 = vmatprep.subr.mxu0 0.0
  %8953 = vmatpush1.msra.mxu0 0.0
  %8954 = vmatprep.subr.mxu0 0.0
  %8955 = vmatpush1.msra.mxu0 0.0
  %8956 = vmatprep.subr.mxu0 0.0
  %8957 = vmatpush1.msra.mxu0 0.0
  %8958 = vmatprep.subr.mxu0 0.0
  %8959 = vmatpush1.msra.mxu0 0.0
  %8960 = vmatprep.subr.mxu0 0.0
  %8961 = vmatpush1.msra.mxu0 0.0
  %8962 = vmatprep.subr.mxu0 0.0
  %8963 = vmatpush1.msra.mxu0 0.0
  %8964 = vmatprep.subr.mxu0 0.0
  %8965 = vmatpush1.msra.mxu0 0.0
  %8966 = vmatprep.subr.mxu0 0.0
  %8967 = vmatpush1.msra.mxu0 0.0
  %8968 = vmatprep.subr.mxu0 0.0
  %8969 = vmatpush1.msra.mxu0 0.0
  %8970 = vmatprep.subr.mxu0 0.0
  %8971 = vmatpush1.msra.mxu0 0.0
  %8972 = vmatprep.subr.mxu0 0.0
  %8973 = vmatpush1.msra.mxu0 0.0
  %8974 = vmatprep.subr.mxu0 0.0
  %8975 = vmatpush1.msra.mxu0 0.0
  %8976 = vmatprep.subr.mxu0 0.0
  %8977 = vmatpush1.msra.mxu0 0.0
  %8978 = vmatprep.subr.mxu0 0.0
  %8979 = vmatpush1.msra.mxu0 0.0
  %8980 = vmatprep.subr.mxu0 0.0
  %8981 = vmatpush1.msra.mxu0 0.0
  %8982 = vmatprep.subr.mxu0 0.0
  %8983 = vmatpush1.msra.mxu0 0.0
  %8984 = vmatprep.subr.mxu0 0.0
  %8985 = vmatpush1.msra.mxu0 0.0
  %8986 = vmatprep.subr.mxu0 0.0
  %8987 = vmatpush1.msra.mxu0 0.0
  %8988 = vmatprep.subr.mxu0 0.0
  %8989 = vmatpush1.msra.mxu0 0.0
  %8990 = vmatprep.subr.mxu0 0.0
  %8991 = vmatpush1.msra.mxu0 0.0
  %8992 = vmatprep.subr.mxu0 0.0
  %8993 = vmatpush1.msra.mxu0 0.0
  %8994 = vmatprep.subr.mxu0 0.0
  %8995 = vmatpush1.msra.mxu0 0.0
  %8996 = vmatprep.subr.mxu0 0.0
  %8997 = vmatpush1.msra.mxu0 0.0
  %8998 = vmatprep.mubr.f32.mxu0 0.0
  %8999 = vmatmul.mubr.f32.gmra.mrb[0].mxu0 %v8932
  %v9000 = vpop.f32.mrb[0].mxu0
  %v9001 = vadd.f32 0.0, %v9000
  %v9002 = vpop.f32.mrb[0].mxu0
  %9003 = vdwg.mxu0
  %s9004 = scalar_lea.vmem %s8, 512
  %v9005 = vld [vmem:[%s9004] sm:$0xff]
  %v9006 = vld [vmem:[%s9004 + $0x8] sm:$0xff]
  %v9007 = vld [vmem:[%s9004 + $0x10] sm:$0xff]
  %v9008 = vld [vmem:[%s9004 + $0x18] sm:$0xff]
  %v9009 = vld [vmem:[%s9004 + $0x20] sm:$0xff]
  %v9010 = vld [vmem:[%s9004 + $0x28] sm:$0xff]
  %v9011 = vld [vmem:[%s9004 + $0x30] sm:$0xff]
  %v9012 = vld [vmem:[%s9004 + $0x38] sm:$0xff]
  %v9014 = vsel %vm7834, %v9001, 0
  %9016 = vmatprep.subr.mxu0 0.0
  %9017 = vmatpush1.msra.mxu0 %v9005
  %9018 = vmatprep.subr.mxu0 0.0
  %9019 = vmatpush1.msra.mxu0 %v9006
  %9020 = vmatprep.subr.mxu0 0.0
  %9021 = vmatpush1.msra.mxu0 %v9007
  %9022 = vmatprep.subr.mxu0 0.0
  %9023 = vmatpush1.msra.mxu0 %v9008
  %9024 = vmatprep.subr.mxu0 0.0
  %9025 = vmatpush1.msra.mxu0 %v9009
  %9026 = vmatprep.subr.mxu0 0.0
  %9027 = vmatpush1.msra.mxu0 %v9010
  %9028 = vmatprep.subr.mxu0 0.0
  %9029 = vmatpush1.msra.mxu0 %v9011
  %9030 = vmatprep.subr.mxu0 0.0
  %9031 = vmatpush1.msra.mxu0 %v9012
  %9032 = vmatprep.subr.mxu0 0.0
  %9033 = vmatpush1.msra.mxu0 0.0
  %9034 = vmatprep.subr.mxu0 0.0
  %9035 = vmatpush1.msra.mxu0 0.0
  %9036 = vmatprep.subr.mxu0 0.0
  %9037 = vmatpush1.msra.mxu0 0.0
  %9038 = vmatprep.subr.mxu0 0.0
  %9039 = vmatpush1.msra.mxu0 0.0
  %9040 = vmatprep.subr.mxu0 0.0
  %9041 = vmatpush1.msra.mxu0 0.0
  %9042 = vmatprep.subr.mxu0 0.0
  %9043 = vmatpush1.msra.mxu0 0.0
  %9044 = vmatprep.subr.mxu0 0.0
  %9045 = vmatpush1.msra.mxu0 0.0
  %9046 = vmatprep.subr.mxu0 0.0
  %9047 = vmatpush1.msra.mxu0 0.0
  %9048 = vmatprep.subr.mxu0 0.0
  %9049 = vmatpush1.msra.mxu0 0.0
  %9050 = vmatprep.subr.mxu0 0.0
  %9051 = vmatpush1.msra.mxu0 0.0
  %9052 = vmatprep.subr.mxu0 0.0
  %9053 = vmatpush1.msra.mxu0 0.0
  %9054 = vmatprep.subr.mxu0 0.0
  %9055 = vmatpush1.msra.mxu0 0.0
  %9056 = vmatprep.subr.mxu0 0.0
  %9057 = vmatpush1.msra.mxu0 0.0
  %9058 = vmatprep.subr.mxu0 0.0
  %9059 = vmatpush1.msra.mxu0 0.0
  %9060 = vmatprep.subr.mxu0 0.0
  %9061 = vmatpush1.msra.mxu0 0.0
  %9062 = vmatprep.subr.mxu0 0.0
  %9063 = vmatpush1.msra.mxu0 0.0
  %9064 = vmatprep.subr.mxu0 0.0
  %9065 = vmatpush1.msra.mxu0 0.0
  %9066 = vmatprep.subr.mxu0 0.0
  %9067 = vmatpush1.msra.mxu0 0.0
  %9068 = vmatprep.subr.mxu0 0.0
  %9069 = vmatpush1.msra.mxu0 0.0
  %9070 = vmatprep.subr.mxu0 0.0
  %9071 = vmatpush1.msra.mxu0 0.0
  %9072 = vmatprep.subr.mxu0 0.0
  %9073 = vmatpush1.msra.mxu0 0.0
  %9074 = vmatprep.subr.mxu0 0.0
  %9075 = vmatpush1.msra.mxu0 0.0
  %9076 = vmatprep.subr.mxu0 0.0
  %9077 = vmatpush1.msra.mxu0 0.0
  %9078 = vmatprep.subr.mxu0 0.0
  %9079 = vmatpush1.msra.mxu0 0.0
  %9080 = vmatprep.mubr.f32.mxu0 0.0
  %9081 = vmatmul.mubr.f32.gmra.mrb[0].mxu0 %v9014
  %v9082 = vpop.f32.mrb[0].mxu0
  %v9083 = vadd.f32 0.0, %v9082
  %v9084 = vpop.f32.mrb[0].mxu0
  %9085 = vdwg.mxu0
  %v9086 = vadd.f32 %v8928, %v9083
  %v9087 = vld [vmem:[%s9] sm:$0x1]
  %v9089 = vlaneseq
  %v9090 = vshrl.u32 %v9089, 7
  %v9091 = vsub.s32 0, %v9090
  %v9092 = vrot.slane %v9087, %v9091
  %v9094 = vadd.f32 %v9086, %v9092
  %v9095 = vmax.f32 %v9094, 0.0
  %v9096 = vld [vmem:[%s10] sm:$0xff]
  %vm9097 = vcmask 64512
  %v9099 = vsel %vm9097, %v9096, 0
  %9101 = vmatprep.subr.mxu0 0.0
  %9102 = vmatpush1.msra.mxu0 %v9095
  %9103 = vmatprep.subr.mxu0 0.0
  %9104 = vmatpush1.msra.mxu0 0.0
  %9105 = vmatprep.subr.mxu0 0.0
  %9106 = vmatpush1.msra.mxu0 0.0
  %9107 = vmatprep.subr.mxu0 0.0
  %9108 = vmatpush1.msra.mxu0 0.0
  %9109 = vmatprep.subr.mxu0 0.0
  %9110 = vmatpush1.msra.mxu0 0.0
  %9111 = vmatprep.subr.mxu0 0.0
  %9112 = vmatpush1.msra.mxu0 0.0
  %9113 = vmatprep.subr.mxu0 0.0
  %9114 = vmatpush1.msra.mxu0 0.0
  %9115 = vmatprep.subr.mxu0 0.0
  %9116 = vmatpush1.msra.mxu0 0.0
  %9117 = vmatprep.subr.mxu0 0.0
  %9118 = vmatpush1.msra.mxu0 0.0
  %9119 = vmatprep.subr.mxu0 0.0
  %9120 = vmatpush1.msra.mxu0 0.0
  %9121 = vmatprep.subr.mxu0 0.0
  %9122 = vmatpush1.msra.mxu0 0.0
  %9123 = vmatprep.subr.mxu0 0.0
  %9124 = vmatpush1.msra.mxu0 0.0
  %9125 = vmatprep.subr.mxu0 0.0
  %9126 = vmatpush1.msra.mxu0 0.0
  %9127 = vmatprep.subr.mxu0 0.0
  %9128 = vmatpush1.msra.mxu0 0.0
  %9129 = vmatprep.subr.mxu0 0.0
  %9130 = vmatpush1.msra.mxu0 0.0
  %9131 = vmatprep.subr.mxu0 0.0
  %9132 = vmatpush1.msra.mxu0 0.0
  %9133 = vmatprep.subr.mxu0 0.0
  %9134 = vmatpush1.msra.mxu0 0.0
  %9135 = vmatprep.subr.mxu0 0.0
  %9136 = vmatpush1.msra.mxu0 0.0
  %9137 = vmatprep.subr.mxu0 0.0
  %9138 = vmatpush1.msra.mxu0 0.0
  %9139 = vmatprep.subr.mxu0 0.0
  %9140 = vmatpush1.msra.mxu0 0.0
  %9141 = vmatprep.subr.mxu0 0.0
  %9142 = vmatpush1.msra.mxu0 0.0
  %9143 = vmatprep.subr.mxu0 0.0
  %9144 = vmatpush1.msra.mxu0 0.0
  %9145 = vmatprep.subr.mxu0 0.0
  %9146 = vmatpush1.msra.mxu0 0.0
  %9147 = vmatprep.subr.mxu0 0.0
  %9148 = vmatpush1.msra.mxu0 0.0
  %9149 = vmatprep.subr.mxu0 0.0
  %9150 = vmatpush1.msra.mxu0 0.0
  %9151 = vmatprep.subr.mxu0 0.0
  %9152 = vmatpush1.msra.mxu0 0.0
  %9153 = vmatprep.subr.mxu0 0.0
  %9154 = vmatpush1.msra.mxu0 0.0
  %9155 = vmatprep.subr.mxu0 0.0
  %9156 = vmatpush1.msra.mxu0 0.0
  %9157 = vmatprep.subr.mxu0 0.0
  %9158 = vmatpush1.msra.mxu0 0.0
  %9159 = vmatprep.subr.mxu0 0.0
  %9160 = vmatpush1.msra.mxu0 0.0
  %9161 = vmatprep.subr.mxu0 0.0
  %9162 = vmatpush1.msra.mxu0 0.0
  %9163 = vmatprep.subr.mxu0 0.0
  %9164 = vmatpush1.msra.mxu0 0.0
  %9165 = vmatprep.mubr.f32.mxu0 0.0
  %9166 = vmatmul.mubr.f32.gmra.mrb[0].mxu0 %v9099
  %v9167 = vpop.f32.mrb[0].mxu0
  %v9168 = vadd.f32 0.0, %v9167
  %v9169 = vpop.f32.mrb[0].mxu0
  %9170 = vdwg.mxu0
  %v9171 = vld [vmem:[%s11] sm:$0xff]
  %v9172 = vld [vmem:[%s11 + $0x8] sm:$0xff]
  %v9173 = vld [vmem:[%s11 + $0x10] sm:$0xff]
  %v9174 = vld [vmem:[%s11 + $0x18] sm:$0xff]
  %v9175 = vld [vmem:[%s11 + $0x20] sm:$0xff]
  %v9176 = vld [vmem:[%s11 + $0x28] sm:$0xff]
  %v9177 = vld [vmem:[%s11 + $0x30] sm:$0xff]
  %v9178 = vld [vmem:[%s11 + $0x38] sm:$0xff]
  %v9179 = vld [vmem:[%s11 + $0x40] sm:$0xff]
  %v9180 = vld [vmem:[%s11 + $0x48] sm:$0xff]
  %v9181 = vld [vmem:[%s11 + $0x50] sm:$0xff]
  %v9182 = vld [vmem:[%s11 + $0x58] sm:$0xff]
  %v9183 = vld [vmem:[%s11 + $0x60] sm:$0xff]
  %v9184 = vld [vmem:[%s11 + $0x68] sm:$0xff]
  %v9185 = vld [vmem:[%s11 + $0x70] sm:$0xff]
  %v9186 = vld [vmem:[%s11 + $0x78] sm:$0xff]
  %v9187 = vld [vmem:[%s11 + $0x80] sm:$0xff]
  %v9188 = vld [vmem:[%s11 + $0x88] sm:$0xff]
  %v9189 = vld [vmem:[%s11 + $0x90] sm:$0xff]
  %v9190 = vld [vmem:[%s11 + $0x98] sm:$0xff]
  %v9191 = vld [vmem:[%s11 + $0xa0] sm:$0xff]
  %v9192 = vld [vmem:[%s11 + $0xa8] sm:$0xff]
  %v9193 = vld [vmem:[%s11 + $0xb0] sm:$0xff]
  %v9194 = vld [vmem:[%s11 + $0xb8] sm:$0xff]
  %v9195 = vld [vmem:[%s11 + $0xc0] sm:$0xff]
  %v9196 = vld [vmem:[%s11 + $0xc8] sm:$0xff]
  %v9197 = vld [vmem:[%s11 + $0xd0] sm:$0xff]
  %v9198 = vld [vmem:[%s11 + $0xd8] sm:$0xff]
  %v9199 = vld [vmem:[%s11 + $0xe0] sm:$0xff]
  %v9200 = vld [vmem:[%s11 + $0xe8] sm:$0xff]
  %v9201 = vld [vmem:[%s11 + $0xf0] sm:$0xff]
  %v9202 = vld [vmem:[%s11 + $0xf8] sm:$0xff]
  %s9203 = scalar_lea.vmem %s10, 8
  %v9204 = vld [vmem:[%s9203] sm:$0xff]
  %v9206 = vsel %vm9097, %v9204, 0
  %9208 = vmatprep.subr.mxu0 0.0
  %9209 = vmatpush1.msra.mxu0 %v9095
  %9210 = vmatprep.subr.mxu0 0.0
  %9211 = vmatpush1.msra.mxu0 0.0
  %9212 = vmatprep.subr.mxu0 0.0
  %9213 = vmatpush1.msra.mxu0 0.0
  %9214 = vmatprep.subr.mxu0 0.0
  %9215 = vmatpush1.msra.mxu0 0.0
  %9216 = vmatprep.subr.mxu0 0.0
  %9217 = vmatpush1.msra.mxu0 0.0
  %9218 = vmatprep.subr.mxu0 0.0
  %9219 = vmatpush1.msra.mxu0 0.0
  %9220 = vmatprep.subr.mxu0 0.0
  %9221 = vmatpush1.msra.mxu0 0.0
  %9222 = vmatprep.subr.mxu0 0.0
  %9223 = vmatpush1.msra.mxu0 0.0
  %9224 = vmatprep.subr.mxu0 0.0
  %9225 = vmatpush1.msra.mxu0 0.0
  %9226 = vmatprep.subr.mxu0 0.0
  %9227 = vmatpush1.msra.mxu0 0.0
  %9228 = vmatprep.subr.mxu0 0.0
  %9229 = vmatpush1.msra.mxu0 0.0
  %9230 = vmatprep.subr.mxu0 0.0
  %9231 = vmatpush1.msra.mxu0 0.0
  %9232 = vmatprep.subr.mxu0 0.0
  %9233 = vmatpush1.msra.mxu0 0.0
  %9234 = vmatprep.subr.mxu0 0.0
  %9235 = vmatpush1.msra.mxu0 0.0
  %9236 = vmatprep.subr.mxu0 0.0
  %9237 = vmatpush1.msra.mxu0 0.0
  %9238 = vmatprep.subr.mxu0 0.0
  %9239 = vmatpush1.msra.mxu0 0.0
  %9240 = vmatprep.subr.mxu0 0.0
  %9241 = vmatpush1.msra.mxu0 0.0
  %9242 = vmatprep.subr.mxu0 0.0
  %9243 = vmatpush1.msra.mxu0 0.0
  %9244 = vmatprep.subr.mxu0 0.0
  %9245 = vmatpush1.msra.mxu0 0.0
  %9246 = vmatprep.subr.mxu0 0.0
  %9247 = vmatpush1.msra.mxu0 0.0
  %9248 = vmatprep.subr.mxu0 0.0
  %9249 = vmatpush1.msra.mxu0 0.0
  %9250 = vmatprep.subr.mxu0 0.0
  %9251 = vmatpush1.msra.mxu0 0.0
  %9252 = vmatprep.subr.mxu0 0.0
  %9253 = vmatpush1.msra.mxu0 0.0
  %9254 = vmatprep.subr.mxu0 0.0
  %9255 = vmatpush1.msra.mxu0 0.0
  %9256 = vmatprep.subr.mxu0 0.0
  %9257 = vmatpush1.msra.mxu0 0.0
  %9258 = vmatprep.subr.mxu0 0.0
  %9259 = vmatpush1.msra.mxu0 0.0
  %9260 = vmatprep.subr.mxu0 0.0
  %9261 = vmatpush1.msra.mxu0 0.0
  %9262 = vmatprep.subr.mxu0 0.0
  %9263 = vmatpush1.msra.mxu0 0.0
  %9264 = vmatprep.subr.mxu0 0.0
  %9265 = vmatpush1.msra.mxu0 0.0
  %9266 = vmatprep.subr.mxu0 0.0
  %9267 = vmatpush1.msra.mxu0 0.0
  %9268 = vmatprep.subr.mxu0 0.0
  %9269 = vmatpush1.msra.mxu0 0.0
  %9270 = vmatprep.subr.mxu0 0.0
  %9271 = vmatpush1.msra.mxu0 0.0
  %9272 = vmatprep.mubr.f32.mxu0 0.0
  %9273 = vmatmul.mubr.f32.gmra.mrb[0].mxu0 %v9206
  %v9274 = vpop.f32.mrb[0].mxu0
  %v9275 = vadd.f32 0.0, %v9274
  %v9276 = vpop.f32.mrb[0].mxu0
  %9277 = vdwg.mxu0
  %s9278 = scalar_lea.vmem %s11, 256
  %v9279 = vld [vmem:[%s9278] sm:$0xff]
  %v9280 = vld [vmem:[%s9278 + $0x8] sm:$0xff]
  %v9281 = vld [vmem:[%s9278 + $0x10] sm:$0xff]
  %v9282 = vld [vmem:[%s9278 + $0x18] sm:$0xff]
  %v9283 = vld [vmem:[%s9278 + $0x20] sm:$0xff]
  %v9284 = vld [vmem:[%s9278 + $0x28] sm:$0xff]
  %v9285 = vld [vmem:[%s9278 + $0x30] sm:$0xff]
  %v9286 = vld [vmem:[%s9278 + $0x38] sm:$0xff]
  %v9287 = vld [vmem:[%s9278 + $0x40] sm:$0xff]
  %v9288 = vld [vmem:[%s9278 + $0x48] sm:$0xff]
  %v9289 = vld [vmem:[%s9278 + $0x50] sm:$0xff]
  %v9290 = vld [vmem:[%s9278 + $0x58] sm:$0xff]
  %v9291 = vld [vmem:[%s9278 + $0x60] sm:$0xff]
  %v9292 = vld [vmem:[%s9278 + $0x68] sm:$0xff]
  %v9293 = vld [vmem:[%s9278 + $0x70] sm:$0xff]
  %v9294 = vld [vmem:[%s9278 + $0x78] sm:$0xff]
  %v9295 = vld [vmem:[%s9278 + $0x80] sm:$0xff]
  %v9296 = vld [vmem:[%s9278 + $0x88] sm:$0xff]
  %v9297 = vld [vmem:[%s9278 + $0x90] sm:$0xff]
  %v9298 = vld [vmem:[%s9278 + $0x98] sm:$0xff]
  %v9299 = vld [vmem:[%s9278 + $0xa0] sm:$0xff]
  %v9300 = vld [vmem:[%s9278 + $0xa8] sm:$0xff]
  %v9301 = vld [vmem:[%s9278 + $0xb0] sm:$0xff]
  %v9302 = vld [vmem:[%s9278 + $0xb8] sm:$0xff]
  %v9303 = vld [vmem:[%s9278 + $0xc0] sm:$0xff]
  %v9304 = vld [vmem:[%s9278 + $0xc8] sm:$0xff]
  %v9305 = vld [vmem:[%s9278 + $0xd0] sm:$0xff]
  %v9306 = vld [vmem:[%s9278 + $0xd8] sm:$0xff]
  %v9307 = vld [vmem:[%s9278 + $0xe0] sm:$0xff]
  %v9308 = vld [vmem:[%s9278 + $0xe8] sm:$0xff]
  %v9309 = vld [vmem:[%s9278 + $0xf0] sm:$0xff]
  %v9310 = vld [vmem:[%s9278 + $0xf8] sm:$0xff]
  %v9312 = vsel %vm7834, %v9275, 0
  %9314 = vmatprep.subr.mxu0 %v9280
  %9315 = vmatpush1.msra.mxu0 %v9279
  %9316 = vmatprep.subr.mxu0 %v9284
  %9317 = vmatpush1.msra.mxu0 %v9283
  %9318 = vmatprep.subr.mxu0 %v9288
  %9319 = vmatpush1.msra.mxu0 %v9287
  %9320 = vmatprep.subr.mxu0 %v9292
  %9321 = vmatpush1.msra.mxu0 %v9291
  %9322 = vmatprep.subr.mxu0 %v9296
  %9323 = vmatpush1.msra.mxu0 %v9295
  %9324 = vmatprep.subr.mxu0 %v9300
  %9325 = vmatpush1.msra.mxu0 %v9299
  %9326 = vmatprep.subr.mxu0 %v9304
  %9327 = vmatpush1.msra.mxu0 %v9303
  %9328 = vmatprep.subr.mxu0 %v9308
  %9329 = vmatpush1.msra.mxu0 %v9307
  %9330 = vmatprep.subr.mxu0 0.0
  %9331 = vmatpush1.msra.mxu0 0.0
  %9332 = vmatprep.subr.mxu0 0.0
  %9333 = vmatpush1.msra.mxu0 0.0
  %9334 = vmatprep.subr.mxu0 0.0
  %9335 = vmatpush1.msra.mxu0 0.0
  %9336 = vmatprep.subr.mxu0 0.0
  %9337 = vmatpush1.msra.mxu0 0.0
  %9338 = vmatprep.subr.mxu0 0.0
  %9339 = vmatpush1.msra.mxu0 0.0
  %9340 = vmatprep.subr.mxu0 0.0
  %9341 = vmatpush1.msra.mxu0 0.0
  %9342 = vmatprep.subr.mxu0 0.0
  %9343 = vmatpush1.msra.mxu0 0.0
  %9344 = vmatprep.subr.mxu0 0.0
  %9345 = vmatpush1.msra.mxu0 0.0
  %9346 = vmatprep.subr.mxu0 0.0
  %9347 = vmatpush1.msra.mxu0 0.0
  %9348 = vmatprep.subr.mxu0 0.0
  %9349 = vmatpush1.msra.mxu0 0.0
  %9350 = vmatprep.subr.mxu0 0.0
  %9351 = vmatpush1.msra.mxu0 0.0
  %9352 = vmatprep.subr.mxu0 0.0
  %9353 = vmatpush1.msra.mxu0 0.0
  %9354 = vmatprep.subr.mxu0 0.0
  %9355 = vmatpush1.msra.mxu0 0.0
  %9356 = vmatprep.subr.mxu0 0.0
  %9357 = vmatpush1.msra.mxu0 0.0
  %9358 = vmatprep.subr.mxu0 0.0
  %9359 = vmatpush1.msra.mxu0 0.0
  %9360 = vmatprep.subr.mxu0 0.0
  %9361 = vmatpush1.msra.mxu0 0.0
  %9362 = vmatprep.subr.mxu0 0.0
  %9363 = vmatpush1.msra.mxu0 0.0
  %9364 = vmatprep.subr.mxu0 0.0
  %9365 = vmatpush1.msra.mxu0 0.0
  %9366 = vmatprep.subr.mxu0 0.0
  %9367 = vmatpush1.msra.mxu0 0.0
  %9368 = vmatprep.subr.mxu0 0.0
  %9369 = vmatpush1.msra.mxu0 0.0
  %9370 = vmatprep.subr.mxu0 0.0
  %9371 = vmatpush1.msra.mxu0 0.0
  %9372 = vmatprep.subr.mxu0 0.0
  %9373 = vmatpush1.msra.mxu0 0.0
  %9374 = vmatprep.subr.mxu0 0.0
  %9375 = vmatpush1.msra.mxu0 0.0
  %9376 = vmatprep.subr.mxu0 0.0
  %9377 = vmatpush1.msra.mxu0 0.0
  %9378 = vmatprep.mubr.f32.mxu0 0.0
  %9379 = vmatmul.mubr.f32.gmra.mrb[0].mxu0 %v9312
  %v9380 = vpop.f32.mrb[0].mxu0
  %v9381 = vadd.f32 0.0, %v9380
  %v9382 = vpop.f32.mrb[0].mxu0
  %v9383 = vadd.f32 0.0, %v9382
  %9384 = vdwg.mxu0
  %9385 = vmatprep.subr.mxu0 %v9282
  %9386 = vmatpush1.msra.mxu0 %v9281
  %9387 = vmatprep.subr.mxu0 %v9286
  %9388 = vmatpush1.msra.mxu0 %v9285
  %9389 = vmatprep.subr.mxu0 %v9290
  %9390 = vmatpush1.msra.mxu0 %v9289
  %9391 = vmatprep.subr.mxu0 %v9294
  %9392 = vmatpush1.msra.mxu0 %v9293
  %9393 = vmatprep.subr.mxu0 %v9298
  %9394 = vmatpush1.msra.mxu0 %v9297
  %9395 = vmatprep.subr.mxu0 %v9302
  %9396 = vmatpush1.msra.mxu0 %v9301
  %9397 = vmatprep.subr.mxu0 %v9306
  %9398 = vmatpush1.msra.mxu0 %v9305
  %9399 = vmatprep.subr.mxu0 %v9310
  %9400 = vmatpush1.msra.mxu0 %v9309
  %9401 = vmatprep.subr.mxu0 0.0
  %9402 = vmatpush1.msra.mxu0 0.0
  %9403 = vmatprep.subr.mxu0 0.0
  %9404 = vmatpush1.msra.mxu0 0.0
  %9405 = vmatprep.subr.mxu0 0.0
  %9406 = vmatpush1.msra.mxu0 0.0
  %9407 = vmatprep.subr.mxu0 0.0
  %9408 = vmatpush1.msra.mxu0 0.0
  %9409 = vmatprep.subr.mxu0 0.0
  %9410 = vmatpush1.msra.mxu0 0.0
  %9411 = vmatprep.subr.mxu0 0.0
  %9412 = vmatpush1.msra.mxu0 0.0
  %9413 = vmatprep.subr.mxu0 0.0
  %9414 = vmatpush1.msra.mxu0 0.0
  %9415 = vmatprep.subr.mxu0 0.0
  %9416 = vmatpush1.msra.mxu0 0.0
  %9417 = vmatprep.subr.mxu0 0.0
  %9418 = vmatpush1.msra.mxu0 0.0
  %9419 = vmatprep.subr.mxu0 0.0
  %9420 = vmatpush1.msra.mxu0 0.0
  %9421 = vmatprep.subr.mxu0 0.0
  %9422 = vmatpush1.msra.mxu0 0.0
  %9423 = vmatprep.subr.mxu0 0.0
  %9424 = vmatpush1.msra.mxu0 0.0
  %9425 = vmatprep.subr.mxu0 0.0
  %9426 = vmatpush1.msra.mxu0 0.0
  %9427 = vmatprep.subr.mxu0 0.0
  %9428 = vmatpush1.msra.mxu0 0.0
  %9429 = vmatprep.subr.mxu0 0.0
  %9430 = vmatpush1.msra.mxu0 0.0
  %9431 = vmatprep.subr.mxu0 0.0
  %9432 = vmatpush1.msra.mxu0 0.0
  %9433 = vmatprep.subr.mxu0 0.0
  %9434 = vmatpush1.msra.mxu0 0.0
  %9435 = vmatprep.subr.mxu0 0.0
  %9436 = vmatpush1.msra.mxu0 0.0
  %9437 = vmatprep.subr.mxu0 0.0
  %9438 = vmatpush1.msra.mxu0 0.0
  %9439 = vmatprep.subr.mxu0 0.0
  %9440 = vmatpush1.msra.mxu0 0.0
  %9441 = vmatprep.subr.mxu0 0.0
  %9442 = vmatpush1.msra.mxu0 0.0
  %9443 = vmatprep.subr.mxu0 0.0
  %9444 = vmatpush1.msra.mxu0 0.0
  %9445 = vmatprep.subr.mxu0 0.0
  %9446 = vmatpush1.msra.mxu0 0.0
  %9447 = vmatprep.subr.mxu0 0.0
  %9448 = vmatpush1.msra.mxu0 0.0
  %9449 = vmatprep.mubr.f32.mxu0 0.0
  %9450 = vmatmul.mubr.f32.gmra.mrb[0].mxu0 %v9312
  %v9451 = vpop.f32.mrb[0].mxu0
  %v9452 = vadd.f32 0.0, %v9451
  %v9453 = vpop.f32.mrb[0].mxu0
  %v9454 = vadd.f32 0.0, %v9453
  %9455 = vdwg.mxu0
  %v9457 = vsel %vm7834, %v9168, 0
  %9459 = vmatprep.subr.mxu0 %v9172
  %9460 = vmatpush1.msra.mxu0 %v9171
  %9461 = vmatprep.subr.mxu0 %v9176
  %9462 = vmatpush1.msra.mxu0 %v9175
  %9463 = vmatprep.subr.mxu0 %v9180
  %9464 = vmatpush1.msra.mxu0 %v9179
  %9465 = vmatprep.subr.mxu0 %v9184
  %9466 = vmatpush1.msra.mxu0 %v9183
  %9467 = vmatprep.subr.mxu0 %v9188
  %9468 = vmatpush1.msra.mxu0 %v9187
  %9469 = vmatprep.subr.mxu0 %v9192
  %9470 = vmatpush1.msra.mxu0 %v9191
  %9471 = vmatprep.subr.mxu0 %v9196
  %9472 = vmatpush1.msra.mxu0 %v9195
  %9473 = vmatprep.subr.mxu0 %v9200
  %9474 = vmatpush1.msra.mxu0 %v9199
  %9475 = vmatprep.subr.mxu0 0.0
  %9476 = vmatpush1.msra.mxu0 0.0
  %9477 = vmatprep.subr.mxu0 0.0
  %9478 = vmatpush1.msra.mxu0 0.0
  %9479 = vmatprep.subr.mxu0 0.0
  %9480 = vmatpush1.msra.mxu0 0.0
  %9481 = vmatprep.subr.mxu0 0.0
  %9482 = vmatpush1.msra.mxu0 0.0
  %9483 = vmatprep.subr.mxu0 0.0
  %9484 = vmatpush1.msra.mxu0 0.0
  %9485 = vmatprep.subr.mxu0 0.0
  %9486 = vmatpush1.msra.mxu0 0.0
  %9487 = vmatprep.subr.mxu0 0.0
  %9488 = vmatpush1.msra.mxu0 0.0
  %9489 = vmatprep.subr.mxu0 0.0
  %9490 = vmatpush1.msra.mxu0 0.0
  %9491 = vmatprep.subr.mxu0 0.0
  %9492 = vmatpush1.msra.mxu0 0.0
  %9493 = vmatprep.subr.mxu0 0.0
  %9494 = vmatpush1.msra.mxu0 0.0
  %9495 = vmatprep.subr.mxu0 0.0
  %9496 = vmatpush1.msra.mxu0 0.0
  %9497 = vmatprep.subr.mxu0 0.0
  %9498 = vmatpush1.msra.mxu0 0.0
  %9499 = vmatprep.subr.mxu0 0.0
  %9500 = vmatpush1.msra.mxu0 0.0
  %9501 = vmatprep.subr.mxu0 0.0
  %9502 = vmatpush1.msra.mxu0 0.0
  %9503 = vmatprep.subr.mxu0 0.0
  %9504 = vmatpush1.msra.mxu0 0.0
  %9505 = vmatprep.subr.mxu0 0.0
  %9506 = vmatpush1.msra.mxu0 0.0
  %9507 = vmatprep.subr.mxu0 0.0
  %9508 = vmatpush1.msra.mxu0 0.0
  %9509 = vmatprep.subr.mxu0 0.0
  %9510 = vmatpush1.msra.mxu0 0.0
  %9511 = vmatprep.subr.mxu0 0.0
  %9512 = vmatpush1.msra.mxu0 0.0
  %9513 = vmatprep.subr.mxu0 0.0
  %9514 = vmatpush1.msra.mxu0 0.0
  %9515 = vmatprep.subr.mxu0 0.0
  %9516 = vmatpush1.msra.mxu0 0.0
  %9517 = vmatprep.subr.mxu0 0.0
  %9518 = vmatpush1.msra.mxu0 0.0
  %9519 = vmatprep.subr.mxu0 0.0
  %9520 = vmatpush1.msra.mxu0 0.0
  %9521 = vmatprep.subr.mxu0 0.0
  %9522 = vmatpush1.msra.mxu0 0.0
  %9523 = vmatprep.mubr.f32.mxu0 0.0
  %9524 = vmatmul.mubr.f32.gmra.mrb[0].mxu0 %v9457
  %v9525 = vpop.f32.mrb[0].mxu0
  %v9526 = vadd.f32 %v9381, %v9525
  %v9527 = vpop.f32.mrb[0].mxu0
  %v9528 = vadd.f32 %v9383, %v9527
  %9529 = vdwg.mxu0
  %9530 = vmatprep.subr.mxu0 %v9174
  %9531 = vmatpush1.msra.mxu0 %v9173
  %9532 = vmatprep.subr.mxu0 %v9178
  %9533 = vmatpush1.msra.mxu0 %v9177
  %9534 = vmatprep.subr.mxu0 %v9182
  %9535 = vmatpush1.msra.mxu0 %v9181
  %9536 = vmatprep.subr.mxu0 %v9186
  %9537 = vmatpush1.msra.mxu0 %v9185
  %9538 = vmatprep.subr.mxu0 %v9190
  %9539 = vmatpush1.msra.mxu0 %v9189
  %9540 = vmatprep.subr.mxu0 %v9194
  %9541 = vmatpush1.msra.mxu0 %v9193
  %9542 = vmatprep.subr.mxu0 %v9198
  %9543 = vmatpush1.msra.mxu0 %v9197
  %9544 = vmatprep.subr.mxu0 %v9202
  %9545 = vmatpush1.msra.mxu0 %v9201
  %9546 = vmatprep.subr.mxu0 0.0
  %9547 = vmatpush1.msra.mxu0 0.0
  %9548 = vmatprep.subr.mxu0 0.0
  %9549 = vmatpush1.msra.mxu0 0.0
  %9550 = vmatprep.subr.mxu0 0.0
  %9551 = vmatpush1.msra.mxu0 0.0
  %9552 = vmatprep.subr.mxu0 0.0
  %9553 = vmatpush1.msra.mxu0 0.0
  %9554 = vmatprep.subr.mxu0 0.0
  %9555 = vmatpush1.msra.mxu0 0.0
  %9556 = vmatprep.subr.mxu0 0.0
  %9557 = vmatpush1.msra.mxu0 0.0
  %9558 = vmatprep.subr.mxu0 0.0
  %9559 = vmatpush1.msra.mxu0 0.0
  %9560 = vmatprep.subr.mxu0 0.0
  %9561 = vmatpush1.msra.mxu0 0.0
  %9562 = vmatprep.subr.mxu0 0.0
  %9563 = vmatpush1.msra.mxu0 0.0
  %9564 = vmatprep.subr.mxu0 0.0
  %9565 = vmatpush1.msra.mxu0 0.0
  %9566 = vmatprep.subr.mxu0 0.0
  %9567 = vmatpush1.msra.mxu0 0.0
  %9568 = vmatprep.subr.mxu0 0.0
  %9569 = vmatpush1.msra.mxu0 0.0
  %9570 = vmatprep.subr.mxu0 0.0
  %9571 = vmatpush1.msra.mxu0 0.0
  %9572 = vmatprep.subr.mxu0 0.0
  %9573 = vmatpush1.msra.mxu0 0.0
  %9574 = vmatprep.subr.mxu0 0.0
  %9575 = vmatpush1.msra.mxu0 0.0
  %9576 = vmatprep.subr.mxu0 0.0
  %9577 = vmatpush1.msra.mxu0 0.0
  %9578 = vmatprep.subr.mxu0 0.0
  %9579 = vmatpush1.msra.mxu0 0.0
  %9580 = vmatprep.subr.mxu0 0.0
  %9581 = vmatpush1.msra.mxu0 0.0
  %9582 = vmatprep.subr.mxu0 0.0
  %9583 = vmatpush1.msra.mxu0 0.0
  %9584 = vmatprep.subr.mxu0 0.0
  %9585 = vmatpush1.msra.mxu0 0.0
  %9586 = vmatprep.subr.mxu0 0.0
  %9587 = vmatpush1.msra.mxu0 0.0
  %9588 = vmatprep.subr.mxu0 0.0
  %9589 = vmatpush1.msra.mxu0 0.0
  %9590 = vmatprep.subr.mxu0 0.0
  %9591 = vmatpush1.msra.mxu0 0.0
  %9592 = vmatprep.subr.mxu0 0.0
  %9593 = vmatpush1.msra.mxu0 0.0
  %9594 = vmatprep.mubr.f32.mxu0 0.0
  %9595 = vmatmul.mubr.f32.gmra.mrb[0].mxu0 %v9457
  %v9596 = vpop.f32.mrb[0].mxu0
  %v9597 = vadd.f32 %v9452, %v9596
  %v9598 = vpop.f32.mrb[0].mxu0
  %v9599 = vadd.f32 %v9454, %v9598
  %9600 = vdwg.mxu0
  %s9601 = scalar_lea.vmem %s10, 16
  %v9602 = vld [vmem:[%s9601] sm:$0xff]
  %v9604 = vsel %vm9097, %v9602, 0
  %9606 = vmatprep.subr.mxu0 0.0
  %9607 = vmatpush1.msra.mxu0 %v9095
  %9608 = vmatprep.subr.mxu0 0.0
  %9609 = vmatpush1.msra.mxu0 0.0
  %9610 = vmatprep.subr.mxu0 0.0
  %9611 = vmatpush1.msra.mxu0 0.0
  %9612 = vmatprep.subr.mxu0 0.0
  %9613 = vmatpush1.msra.mxu0 0.0
  %9614 = vmatprep.subr.mxu0 0.0
  %9615 = vmatpush1.msra.mxu0 0.0
  %9616 = vmatprep.subr.mxu0 0.0
  %9617 = vmatpush1.msra.mxu0 0.0
  %9618 = vmatprep.subr.mxu0 0.0
  %9619 = vmatpush1.msra.mxu0 0.0
  %9620 = vmatprep.subr.mxu0 0.0
  %9621 = vmatpush1.msra.mxu0 0.0
  %9622 = vmatprep.subr.mxu0 0.0
  %9623 = vmatpush1.msra.mxu0 0.0
  %9624 = vmatprep.subr.mxu0 0.0
  %9625 = vmatpush1.msra.mxu0 0.0
  %9626 = vmatprep.subr.mxu0 0.0
  %9627 = vmatpush1.msra.mxu0 0.0
  %9628 = vmatprep.subr.mxu0 0.0
  %9629 = vmatpush1.msra.mxu0 0.0
  %9630 = vmatprep.subr.mxu0 0.0
  %9631 = vmatpush1.msra.mxu0 0.0
  %9632 = vmatprep.subr.mxu0 0.0
  %9633 = vmatpush1.msra.mxu0 0.0
  %9634 = vmatprep.subr.mxu0 0.0
  %9635 = vmatpush1.msra.mxu0 0.0
  %9636 = vmatprep.subr.mxu0 0.0
  %9637 = vmatpush1.msra.mxu0 0.0
  %9638 = vmatprep.subr.mxu0 0.0
  %9639 = vmatpush1.msra.mxu0 0.0
  %9640 = vmatprep.subr.mxu0 0.0
  %9641 = vmatpush1.msra.mxu0 0.0
  %9642 = vmatprep.subr.mxu0 0.0
  %9643 = vmatpush1.msra.mxu0 0.0
  %9644 = vmatprep.subr.mxu0 0.0
  %9645 = vmatpush1.msra.mxu0 0.0
  %9646 = vmatprep.subr.mxu0 0.0
  %9647 = vmatpush1.msra.mxu0 0.0
  %9648 = vmatprep.subr.mxu0 0.0
  %9649 = vmatpush1.msra.mxu0 0.0
  %9650 = vmatprep.subr.mxu0 0.0
  %9651 = vmatpush1.msra.mxu0 0.0
  %9652 = vmatprep.subr.mxu0 0.0
  %9653 = vmatpush1.msra.mxu0 0.0
  %9654 = vmatprep.subr.mxu0 0.0
  %9655 = vmatpush1.msra.mxu0 0.0
  %9656 = vmatprep.subr.mxu0 0.0
  %9657 = vmatpush1.msra.mxu0 0.0
  %9658 = vmatprep.subr.mxu0 0.0
  %9659 = vmatpush1.msra.mxu0 0.0
  %9660 = vmatprep.subr.mxu0 0.0
  %9661 = vmatpush1.msra.mxu0 0.0
  %9662 = vmatprep.subr.mxu0 0.0
  %9663 = vmatpush1.msra.mxu0 0.0
  %9664 = vmatprep.subr.mxu0 0.0
  %9665 = vmatpush1.msra.mxu0 0.0
  %9666 = vmatprep.subr.mxu0 0.0
  %9667 = vmatpush1.msra.mxu0 0.0
  %9668 = vmatprep.subr.mxu0 0.0
  %9669 = vmatpush1.msra.mxu0 0.0
  %9670 = vmatprep.mubr.f32.mxu0 0.0
  %9671 = vmatmul.mubr.f32.gmra.mrb[0].mxu0 %v9604
  %v9672 = vpop.f32.mrb[0].mxu0
  %v9673 = vadd.f32 0.0, %v9672
  %v9674 = vpop.f32.mrb[0].mxu0
  %9675 = vdwg.mxu0
  %s9676 = scalar_lea.vmem %s11, 512
  %v9677 = vld [vmem:[%s9676] sm:$0xff]
  %v9678 = vld [vmem:[%s9676 + $0x8] sm:$0xff]
  %v9679 = vld [vmem:[%s9676 + $0x10] sm:$0xff]
  %v9680 = vld [vmem:[%s9676 + $0x18] sm:$0xff]
  %v9681 = vld [vmem:[%s9676 + $0x20] sm:$0xff]
  %v9682 = vld [vmem:[%s9676 + $0x28] sm:$0xff]
  %v9683 = vld [vmem:[%s9676 + $0x30] sm:$0xff]
  %v9684 = vld [vmem:[%s9676 + $0x38] sm:$0xff]
  %v9685 = vld [vmem:[%s9676 + $0x40] sm:$0xff]
  %v9686 = vld [vmem:[%s9676 + $0x48] sm:$0xff]
  %v9687 = vld [vmem:[%s9676 + $0x50] sm:$0xff]
  %v9688 = vld [vmem:[%s9676 + $0x58] sm:$0xff]
  %v9689 = vld [vmem:[%s9676 + $0x60] sm:$0xff]
  %v9690 = vld [vmem:[%s9676 + $0x68] sm:$0xff]
  %v9691 = vld [vmem:[%s9676 + $0x70] sm:$0xff]
  %v9692 = vld [vmem:[%s9676 + $0x78] sm:$0xff]
  %v9693 = vld [vmem:[%s9676 + $0x80] sm:$0xff]
  %v9694 = vld [vmem:[%s9676 + $0x88] sm:$0xff]
  %v9695 = vld [vmem:[%s9676 + $0x90] sm:$0xff]
  %v9696 = vld [vmem:[%s9676 + $0x98] sm:$0xff]
  %v9697 = vld [vmem:[%s9676 + $0xa0] sm:$0xff]
  %v9698 = vld [vmem:[%s9676 + $0xa8] sm:$0xff]
  %v9699 = vld [vmem:[%s9676 + $0xb0] sm:$0xff]
  %v9700 = vld [vmem:[%s9676 + $0xb8] sm:$0xff]
  %v9701 = vld [vmem:[%s9676 + $0xc0] sm:$0xff]
  %v9702 = vld [vmem:[%s9676 + $0xc8] sm:$0xff]
  %v9703 = vld [vmem:[%s9676 + $0xd0] sm:$0xff]
  %v9704 = vld [vmem:[%s9676 + $0xd8] sm:$0xff]
  %v9705 = vld [vmem:[%s9676 + $0xe0] sm:$0xff]
  %v9706 = vld [vmem:[%s9676 + $0xe8] sm:$0xff]
  %v9707 = vld [vmem:[%s9676 + $0xf0] sm:$0xff]
  %v9708 = vld [vmem:[%s9676 + $0xf8] sm:$0xff]
  %v9710 = vsel %vm7834, %v9673, 0
  %9712 = vmatprep.subr.mxu0 %v9678
  %9713 = vmatpush1.msra.mxu0 %v9677
  %9714 = vmatprep.subr.mxu0 %v9682
  %9715 = vmatpush1.msra.mxu0 %v9681
  %9716 = vmatprep.subr.mxu0 %v9686
  %9717 = vmatpush1.msra.mxu0 %v9685
  %9718 = vmatprep.subr.mxu0 %v9690
  %9719 = vmatpush1.msra.mxu0 %v9689
  %9720 = vmatprep.subr.mxu0 %v9694
  %9721 = vmatpush1.msra.mxu0 %v9693
  %9722 = vmatprep.subr.mxu0 %v9698
  %9723 = vmatpush1.msra.mxu0 %v9697
  %9724 = vmatprep.subr.mxu0 %v9702
  %9725 = vmatpush1.msra.mxu0 %v9701
  %9726 = vmatprep.subr.mxu0 %v9706
  %9727 = vmatpush1.msra.mxu0 %v9705
  %9728 = vmatprep.subr.mxu0 0.0
  %9729 = vmatpush1.msra.mxu0 0.0
  %9730 = vmatprep.subr.mxu0 0.0
  %9731 = vmatpush1.msra.mxu0 0.0
  %9732 = vmatprep.subr.mxu0 0.0
  %9733 = vmatpush1.msra.mxu0 0.0
  %9734 = vmatprep.subr.mxu0 0.0
  %9735 = vmatpush1.msra.mxu0 0.0
  %9736 = vmatprep.subr.mxu0 0.0
  %9737 = vmatpush1.msra.mxu0 0.0
  %9738 = vmatprep.subr.mxu0 0.0
  %9739 = vmatpush1.msra.mxu0 0.0
  %9740 = vmatprep.subr.mxu0 0.0
  %9741 = vmatpush1.msra.mxu0 0.0
  %9742 = vmatprep.subr.mxu0 0.0
  %9743 = vmatpush1.msra.mxu0 0.0
  %9744 = vmatprep.subr.mxu0 0.0
  %9745 = vmatpush1.msra.mxu0 0.0
  %9746 = vmatprep.subr.mxu0 0.0
  %9747 = vmatpush1.msra.mxu0 0.0
  %9748 = vmatprep.subr.mxu0 0.0
  %9749 = vmatpush1.msra.mxu0 0.0
  %9750 = vmatprep.subr.mxu0 0.0
  %9751 = vmatpush1.msra.mxu0 0.0
  %9752 = vmatprep.subr.mxu0 0.0
  %9753 = vmatpush1.msra.mxu0 0.0
  %9754 = vmatprep.subr.mxu0 0.0
  %9755 = vmatpush1.msra.mxu0 0.0
  %9756 = vmatprep.subr.mxu0 0.0
  %9757 = vmatpush1.msra.mxu0 0.0
  %9758 = vmatprep.subr.mxu0 0.0
  %9759 = vmatpush1.msra.mxu0 0.0
  %9760 = vmatprep.subr.mxu0 0.0
  %9761 = vmatpush1.msra.mxu0 0.0
  %9762 = vmatprep.subr.mxu0 0.0
  %9763 = vmatpush1.msra.mxu0 0.0
  %9764 = vmatprep.subr.mxu0 0.0
  %9765 = vmatpush1.msra.mxu0 0.0
  %9766 = vmatprep.subr.mxu0 0.0
  %9767 = vmatpush1.msra.mxu0 0.0
  %9768 = vmatprep.subr.mxu0 0.0
  %9769 = vmatpush1.msra.mxu0 0.0
  %9770 = vmatprep.subr.mxu0 0.0
  %9771 = vmatpush1.msra.mxu0 0.0
  %9772 = vmatprep.subr.mxu0 0.0
  %9773 = vmatpush1.msra.mxu0 0.0
  %9774 = vmatprep.subr.mxu0 0.0
  %9775 = vmatpush1.msra.mxu0 0.0
  %9776 = vmatprep.mubr.f32.mxu0 0.0
  %9777 = vmatmul.mubr.f32.gmra.mrb[0].mxu0 %v9710
  %v9778 = vpop.f32.mrb[0].mxu0
  %v9779 = vadd.f32 0.0, %v9778
  %v9780 = vpop.f32.mrb[0].mxu0
  %v9781 = vadd.f32 0.0, %v9780
  %9782 = vdwg.mxu0
  %9783 = vmatprep.subr.mxu0 %v9680
  %9784 = vmatpush1.msra.mxu0 %v9679
  %9785 = vmatprep.subr.mxu0 %v9684
  %9786 = vmatpush1.msra.mxu0 %v9683
  %9787 = vmatprep.subr.mxu0 %v9688
  %9788 = vmatpush1.msra.mxu0 %v9687
  %9789 = vmatprep.subr.mxu0 %v9692
  %9790 = vmatpush1.msra.mxu0 %v9691
  %9791 = vmatprep.subr.mxu0 %v9696
  %9792 = vmatpush1.msra.mxu0 %v9695
  %9793 = vmatprep.subr.mxu0 %v9700
  %9794 = vmatpush1.msra.mxu0 %v9699
  %9795 = vmatprep.subr.mxu0 %v9704
  %9796 = vmatpush1.msra.mxu0 %v9703
  %9797 = vmatprep.subr.mxu0 %v9708
  %9798 = vmatpush1.msra.mxu0 %v9707
  %9799 = vmatprep.subr.mxu0 0.0
  %9800 = vmatpush1.msra.mxu0 0.0
  %9801 = vmatprep.subr.mxu0 0.0
  %9802 = vmatpush1.msra.mxu0 0.0
  %9803 = vmatprep.subr.mxu0 0.0
  %9804 = vmatpush1.msra.mxu0 0.0
  %9805 = vmatprep.subr.mxu0 0.0
  %9806 = vmatpush1.msra.mxu0 0.0
  %9807 = vmatprep.subr.mxu0 0.0
  %9808 = vmatpush1.msra.mxu0 0.0
  %9809 = vmatprep.subr.mxu0 0.0
  %9810 = vmatpush1.msra.mxu0 0.0
  %9811 = vmatprep.subr.mxu0 0.0
  %9812 = vmatpush1.msra.mxu0 0.0
  %9813 = vmatprep.subr.mxu0 0.0
  %9814 = vmatpush1.msra.mxu0 0.0
  %9815 = vmatprep.subr.mxu0 0.0
  %9816 = vmatpush1.msra.mxu0 0.0
  %9817 = vmatprep.subr.mxu0 0.0
  %9818 = vmatpush1.msra.mxu0 0.0
  %9819 = vmatprep.subr.mxu0 0.0
  %9820 = vmatpush1.msra.mxu0 0.0
  %9821 = vmatprep.subr.mxu0 0.0
  %9822 = vmatpush1.msra.mxu0 0.0
  %9823 = vmatprep.subr.mxu0 0.0
  %9824 = vmatpush1.msra.mxu0 0.0
  %9825 = vmatprep.subr.mxu0 0.0
  %9826 = vmatpush1.msra.mxu0 0.0
  %9827 = vmatprep.subr.mxu0 0.0
  %9828 = vmatpush1.msra.mxu0 0.0
  %9829 = vmatprep.subr.mxu0 0.0
  %9830 = vmatpush1.msra.mxu0 0.0
  %9831 = vmatprep.subr.mxu0 0.0
  %9832 = vmatpush1.msra.mxu0 0.0
  %9833 = vmatprep.subr.mxu0 0.0
  %9834 = vmatpush1.msra.mxu0 0.0
  %9835 = vmatprep.subr.mxu0 0.0
  %9836 = vmatpush1.msra.mxu0 0.0
  %9837 = vmatprep.subr.mxu0 0.0
  %9838 = vmatpush1.msra.mxu0 0.0
  %9839 = vmatprep.subr.mxu0 0.0
  %9840 = vmatpush1.msra.mxu0 0.0
  %9841 = vmatprep.subr.mxu0 0.0
  %9842 = vmatpush1.msra.mxu0 0.0
  %9843 = vmatprep.subr.mxu0 0.0
  %9844 = vmatpush1.msra.mxu0 0.0
  %9845 = vmatprep.subr.mxu0 0.0
  %9846 = vmatpush1.msra.mxu0 0.0
  %9847 = vmatprep.mubr.f32.mxu0 0.0
  %9848 = vmatmul.mubr.f32.gmra.mrb[0].mxu0 %v9710
  %v9849 = vpop.f32.mrb[0].mxu0
  %v9850 = vadd.f32 0.0, %v9849
  %v9851 = vpop.f32.mrb[0].mxu0
  %v9852 = vadd.f32 0.0, %v9851
  %9853 = vdwg.mxu0
  %v9854 = vadd.f32 %v9526, %v9779
  %v9855 = vadd.f32 %v9528, %v9781
  %v9856 = vadd.f32 %v9597, %v9850
  %v9857 = vadd.f32 %v9599, %v9852
  %s9858 = scalar_lea.vmem %s10, 24
  %v9859 = vld [vmem:[%s9858] sm:$0xff]
  %v9861 = vsel %vm9097, %v9859, 0
  %9863 = vmatprep.subr.mxu0 0.0
  %9864 = vmatpush1.msra.mxu0 %v9095
  %9865 = vmatprep.subr.mxu0 0.0
  %9866 = vmatpush1.msra.mxu0 0.0
  %9867 = vmatprep.subr.mxu0 0.0
  %9868 = vmatpush1.msra.mxu0 0.0
  %9869 = vmatprep.subr.mxu0 0.0
  %9870 = vmatpush1.msra.mxu0 0.0
  %9871 = vmatprep.subr.mxu0 0.0
  %9872 = vmatpush1.msra.mxu0 0.0
  %9873 = vmatprep.subr.mxu0 0.0
  %9874 = vmatpush1.msra.mxu0 0.0
  %9875 = vmatprep.subr.mxu0 0.0
  %9876 = vmatpush1.msra.mxu0 0.0
  %9877 = vmatprep.subr.mxu0 0.0
  %9878 = vmatpush1.msra.mxu0 0.0
  %9879 = vmatprep.subr.mxu0 0.0
  %9880 = vmatpush1.msra.mxu0 0.0
  %9881 = vmatprep.subr.mxu0 0.0
  %9882 = vmatpush1.msra.mxu0 0.0
  %9883 = vmatprep.subr.mxu0 0.0
  %9884 = vmatpush1.msra.mxu0 0.0
  %9885 = vmatprep.subr.mxu0 0.0
  %9886 = vmatpush1.msra.mxu0 0.0
  %9887 = vmatprep.subr.mxu0 0.0
  %9888 = vmatpush1.msra.mxu0 0.0
  %9889 = vmatprep.subr.mxu0 0.0
  %9890 = vmatpush1.msra.mxu0 0.0
  %9891 = vmatprep.subr.mxu0 0.0
  %9892 = vmatpush1.msra.mxu0 0.0
  %9893 = vmatprep.subr.mxu0 0.0
  %9894 = vmatpush1.msra.mxu0 0.0
  %9895 = vmatprep.subr.mxu0 0.0
  %9896 = vmatpush1.msra.mxu0 0.0
  %9897 = vmatprep.subr.mxu0 0.0
  %9898 = vmatpush1.msra.mxu0 0.0
  %9899 = vmatprep.subr.mxu0 0.0
  %9900 = vmatpush1.msra.mxu0 0.0
  %9901 = vmatprep.subr.mxu0 0.0
  %9902 = vmatpush1.msra.mxu0 0.0
  %9903 = vmatprep.subr.mxu0 0.0
  %9904 = vmatpush1.msra.mxu0 0.0
  %9905 = vmatprep.subr.mxu0 0.0
  %9906 = vmatpush1.msra.mxu0 0.0
  %9907 = vmatprep.subr.mxu0 0.0
  %9908 = vmatpush1.msra.mxu0 0.0
  %9909 = vmatprep.subr.mxu0 0.0
  %9910 = vmatpush1.msra.mxu0 0.0
  %9911 = vmatprep.subr.mxu0 0.0
  %9912 = vmatpush1.msra.mxu0 0.0
  %9913 = vmatprep.subr.mxu0 0.0
  %9914 = vmatpush1.msra.mxu0 0.0
  %9915 = vmatprep.subr.mxu0 0.0
  %9916 = vmatpush1.msra.mxu0 0.0
  %9917 = vmatprep.subr.mxu0 0.0
  %9918 = vmatpush1.msra.mxu0 0.0
  %9919 = vmatprep.subr.mxu0 0.0
  %9920 = vmatpush1.msra.mxu0 0.0
  %9921 = vmatprep.subr.mxu0 0.0
  %9922 = vmatpush1.msra.mxu0 0.0
  %9923 = vmatprep.subr.mxu0 0.0
  %9924 = vmatpush1.msra.mxu0 0.0
  %9925 = vmatprep.subr.mxu0 0.0
  %9926 = vmatpush1.msra.mxu0 0.0
  %9927 = vmatprep.mubr.f32.mxu0 0.0
  %9928 = vmatmul.mubr.f32.gmra.mrb[0].mxu0 %v9861
  %v9929 = vpop.f32.mrb[0].mxu0
  %v9930 = vadd.f32 0.0, %v9929
  %v9931 = vpop.f32.mrb[0].mxu0
  %9932 = vdwg.mxu0
  %s9933 = scalar_lea.vmem %s11, 768
  %v9934 = vld [vmem:[%s9933] sm:$0xff]
  %v9935 = vld [vmem:[%s9933 + $0x8] sm:$0xff]
  %v9936 = vld [vmem:[%s9933 + $0x10] sm:$0xff]
  %v9937 = vld [vmem:[%s9933 + $0x18] sm:$0xff]
  %v9938 = vld [vmem:[%s9933 + $0x20] sm:$0xff]
  %v9939 = vld [vmem:[%s9933 + $0x28] sm:$0xff]
  %v9940 = vld [vmem:[%s9933 + $0x30] sm:$0xff]
  %v9941 = vld [vmem:[%s9933 + $0x38] sm:$0xff]
  %v9942 = vld [vmem:[%s9933 + $0x40] sm:$0xff]
  %v9943 = vld [vmem:[%s9933 + $0x48] sm:$0xff]
  %v9944 = vld [vmem:[%s9933 + $0x50] sm:$0xff]
  %v9945 = vld [vmem:[%s9933 + $0x58] sm:$0xff]
  %v9946 = vld [vmem:[%s9933 + $0x60] sm:$0xff]
  %v9947 = vld [vmem:[%s9933 + $0x68] sm:$0xff]
  %v9948 = vld [vmem:[%s9933 + $0x70] sm:$0xff]
  %v9949 = vld [vmem:[%s9933 + $0x78] sm:$0xff]
  %v9950 = vld [vmem:[%s9933 + $0x80] sm:$0xff]
  %v9951 = vld [vmem:[%s9933 + $0x88] sm:$0xff]
  %v9952 = vld [vmem:[%s9933 + $0x90] sm:$0xff]
  %v9953 = vld [vmem:[%s9933 + $0x98] sm:$0xff]
  %v9954 = vld [vmem:[%s9933 + $0xa0] sm:$0xff]
  %v9955 = vld [vmem:[%s9933 + $0xa8] sm:$0xff]
  %v9956 = vld [vmem:[%s9933 + $0xb0] sm:$0xff]
  %v9957 = vld [vmem:[%s9933 + $0xb8] sm:$0xff]
  %v9958 = vld [vmem:[%s9933 + $0xc0] sm:$0xff]
  %v9959 = vld [vmem:[%s9933 + $0xc8] sm:$0xff]
  %v9960 = vld [vmem:[%s9933 + $0xd0] sm:$0xff]
  %v9961 = vld [vmem:[%s9933 + $0xd8] sm:$0xff]
  %v9962 = vld [vmem:[%s9933 + $0xe0] sm:$0xff]
  %v9963 = vld [vmem:[%s9933 + $0xe8] sm:$0xff]
  %v9964 = vld [vmem:[%s9933 + $0xf0] sm:$0xff]
  %v9965 = vld [vmem:[%s9933 + $0xf8] sm:$0xff]
  %v9967 = vsel %vm7834, %v9930, 0
  %9969 = vmatprep.subr.mxu0 %v9935
  %9970 = vmatpush1.msra.mxu0 %v9934
  %9971 = vmatprep.subr.mxu0 %v9939
  %9972 = vmatpush1.msra.mxu0 %v9938
  %9973 = vmatprep.subr.mxu0 %v9943
  %9974 = vmatpush1.msra.mxu0 %v9942
  %9975 = vmatprep.subr.mxu0 %v9947
  %9976 = vmatpush1.msra.mxu0 %v9946
  %9977 = vmatprep.subr.mxu0 %v9951
  %9978 = vmatpush1.msra.mxu0 %v9950
  %9979 = vmatprep.subr.mxu0 %v9955
  %9980 = vmatpush1.msra.mxu0 %v9954
  %9981 = vmatprep.subr.mxu0 %v9959
  %9982 = vmatpush1.msra.mxu0 %v9958
  %9983 = vmatprep.subr.mxu0 %v9963
  %9984 = vmatpush1.msra.mxu0 %v9962
  %9985 = vmatprep.subr.mxu0 0.0
  %9986 = vmatpush1.msra.mxu0 0.0
  %9987 = vmatprep.subr.mxu0 0.0
  %9988 = vmatpush1.msra.mxu0 0.0
  %9989 = vmatprep.subr.mxu0 0.0
  %9990 = vmatpush1.msra.mxu0 0.0
  %9991 = vmatprep.subr.mxu0 0.0
  %9992 = vmatpush1.msra.mxu0 0.0
  %9993 = vmatprep.subr.mxu0 0.0
  %9994 = vmatpush1.msra.mxu0 0.0
  %9995 = vmatprep.subr.mxu0 0.0
  %9996 = vmatpush1.msra.mxu0 0.0
  %9997 = vmatprep.subr.mxu0 0.0
  %9998 = vmatpush1.msra.mxu0 0.0
  %9999 = vmatprep.subr.mxu0 0.0
  %10000 = vmatpush1.msra.mxu0 0.0
  %10001 = vmatprep.subr.mxu0 0.0
  %10002 = vmatpush1.msra.mxu0 0.0
  %10003 = vmatprep.subr.mxu0 0.0
  %10004 = vmatpush1.msra.mxu0 0.0
  %10005 = vmatprep.subr.mxu0 0.0
  %10006 = vmatpush1.msra.mxu0 0.0
  %10007 = vmatprep.subr.mxu0 0.0
  %10008 = vmatpush1.msra.mxu0 0.0
  %10009 = vmatprep.subr.mxu0 0.0
  %10010 = vmatpush1.msra.mxu0 0.0
  %10011 = vmatprep.subr.mxu0 0.0
  %10012 = vmatpush1.msra.mxu0 0.0
  %10013 = vmatprep.subr.mxu0 0.0
  %10014 = vmatpush1.msra.mxu0 0.0
  %10015 = vmatprep.subr.mxu0 0.0
  %10016 = vmatpush1.msra.mxu0 0.0
  %10017 = vmatprep.subr.mxu0 0.0
  %10018 = vmatpush1.msra.mxu0 0.0
  %10019 = vmatprep.subr.mxu0 0.0
  %10020 = vmatpush1.msra.mxu0 0.0
  %10021 = vmatprep.subr.mxu0 0.0
  %10022 = vmatpush1.msra.mxu0 0.0
  %10023 = vmatprep.subr.mxu0 0.0
  %10024 = vmatpush1.msra.mxu0 0.0
  %10025 = vmatprep.subr.mxu0 0.0
  %10026 = vmatpush1.msra.mxu0 0.0
  %10027 = vmatprep.subr.mxu0 0.0
  %10028 = vmatpush1.msra.mxu0 0.0
  %10029 = vmatprep.subr.mxu0 0.0
  %10030 = vmatpush1.msra.mxu0 0.0
  %10031 = vmatprep.subr.mxu0 0.0
  %10032 = vmatpush1.msra.mxu0 0.0
  %10033 = vmatprep.mubr.f32.mxu0 0.0
  %10034 = vmatmul.mubr.f32.gmra.mrb[0].mxu0 %v9967
  %v10035 = vpop.f32.mrb[0].mxu0
  %v10036 = vadd.f32 0.0, %v10035
  %v10037 = vpop.f32.mrb[0].mxu0
  %v10038 = vadd.f32 0.0, %v10037
  %10039 = vdwg.mxu0
  %10040 = vmatprep.subr.mxu0 %v9937
  %10041 = vmatpush1.msra.mxu0 %v9936
  %10042 = vmatprep.subr.mxu0 %v9941
  %10043 = vmatpush1.msra.mxu0 %v9940
  %10044 = vmatprep.subr.mxu0 %v9945
  %10045 = vmatpush1.msra.mxu0 %v9944
  %10046 = vmatprep.subr.mxu0 %v9949
  %10047 = vmatpush1.msra.mxu0 %v9948
  %10048 = vmatprep.subr.mxu0 %v9953
  %10049 = vmatpush1.msra.mxu0 %v9952
  %10050 = vmatprep.subr.mxu0 %v9957
  %10051 = vmatpush1.msra.mxu0 %v9956
  %10052 = vmatprep.subr.mxu0 %v9961
  %10053 = vmatpush1.msra.mxu0 %v9960
  %10054 = vmatprep.subr.mxu0 %v9965
  %10055 = vmatpush1.msra.mxu0 %v9964
  %10056 = vmatprep.subr.mxu0 0.0
  %10057 = vmatpush1.msra.mxu0 0.0
  %10058 = vmatprep.subr.mxu0 0.0
  %10059 = vmatpush1.msra.mxu0 0.0
  %10060 = vmatprep.subr.mxu0 0.0
  %10061 = vmatpush1.msra.mxu0 0.0
  %10062 = vmatprep.subr.mxu0 0.0
  %10063 = vmatpush1.msra.mxu0 0.0
  %10064 = vmatprep.subr.mxu0 0.0
  %10065 = vmatpush1.msra.mxu0 0.0
  %10066 = vmatprep.subr.mxu0 0.0
  %10067 = vmatpush1.msra.mxu0 0.0
  %10068 = vmatprep.subr.mxu0 0.0
  %10069 = vmatpush1.msra.mxu0 0.0
  %10070 = vmatprep.subr.mxu0 0.0
  %10071 = vmatpush1.msra.mxu0 0.0
  %10072 = vmatprep.subr.mxu0 0.0
  %10073 = vmatpush1.msra.mxu0 0.0
  %10074 = vmatprep.subr.mxu0 0.0
  %10075 = vmatpush1.msra.mxu0 0.0
  %10076 = vmatprep.subr.mxu0 0.0
  %10077 = vmatpush1.msra.mxu0 0.0
  %10078 = vmatprep.subr.mxu0 0.0
  %10079 = vmatpush1.msra.mxu0 0.0
  %10080 = vmatprep.subr.mxu0 0.0
  %10081 = vmatpush1.msra.mxu0 0.0
  %10082 = vmatprep.subr.mxu0 0.0
  %10083 = vmatpush1.msra.mxu0 0.0
  %10084 = vmatprep.subr.mxu0 0.0
  %10085 = vmatpush1.msra.mxu0 0.0
  %10086 = vmatprep.subr.mxu0 0.0
  %10087 = vmatpush1.msra.mxu0 0.0
  %10088 = vmatprep.subr.mxu0 0.0
  %10089 = vmatpush1.msra.mxu0 0.0
  %10090 = vmatprep.subr.mxu0 0.0
  %10091 = vmatpush1.msra.mxu0 0.0
  %10092 = vmatprep.subr.mxu0 0.0
  %10093 = vmatpush1.msra.mxu0 0.0
  %10094 = vmatprep.subr.mxu0 0.0
  %10095 = vmatpush1.msra.mxu0 0.0
  %10096 = vmatprep.subr.mxu0 0.0
  %10097 = vmatpush1.msra.mxu0 0.0
  %10098 = vmatprep.subr.mxu0 0.0
  %10099 = vmatpush1.msra.mxu0 0.0
  %10100 = vmatprep.subr.mxu0 0.0
  %10101 = vmatpush1.msra.mxu0 0.0
  %10102 = vmatprep.subr.mxu0 0.0
  %10103 = vmatpush1.msra.mxu0 0.0
  %10104 = vmatprep.mubr.f32.mxu0 0.0
  %10105 = vmatmul.mubr.f32.gmra.mrb[0].mxu0 %v9967
  %v10106 = vpop.f32.mrb[0].mxu0
  %v10107 = vadd.f32 0.0, %v10106
  %v10108 = vpop.f32.mrb[0].mxu0
  %v10109 = vadd.f32 0.0, %v10108
  %10110 = vdwg.mxu0
  %v10111 = vadd.f32 %v9854, %v10036
  %v10112 = vadd.f32 %v9855, %v10038
  %v10113 = vadd.f32 %v9856, %v10107
  %v10114 = vadd.f32 %v9857, %v10109
  %v10115 = vld [vmem:[%s12] sm:$0xf]
  %v10117 = vlaneseq
  %v10118 = vshrl.u32 %v10117, 7
  %v10119 = vsub.s32 0, %v10118
  %v10120 = vrot.slane %v10115, %v10119
  %v10121 = vlaneseq
  %v10122 = vshrl.u32 %v10121, 7
  %v10123 = vsub.s32 1, %v10122
  %v10124 = vrot.slane %v10115, %v10123
  %v10125 = vlaneseq
  %v10126 = vshrl.u32 %v10125, 7
  %v10127 = vsub.s32 2, %v10126
  %v10128 = vrot.slane %v10115, %v10127
  %v10129 = vlaneseq
  %v10130 = vshrl.u32 %v10129, 7
  %v10131 = vsub.s32 3, %v10130
  %v10132 = vrot.slane %v10115, %v10131
  %v10137 = vadd.f32 %v10111, %v10120
  %v10138 = vadd.f32 %v10112, %v10124
  %v10139 = vadd.f32 %v10113, %v10128
  %v10140 = vadd.f32 %v10114, %v10132
  %v10141 = vmax.f32 %v10137, 0.0
  %v10142 = vmax.f32 %v10138, 0.0
  %v10143 = vmax.f32 %v10139, 0.0
  %v10144 = vmax.f32 %v10140, 0.0
  %v10145 = vld [vmem:[%s13] sm:$0xff]
  %v10146 = vld [vmem:[%s13 + $0x8] sm:$0xff]
  %v10147 = vld [vmem:[%s13 + $0x10] sm:$0xff]
  %v10148 = vld [vmem:[%s13 + $0x18] sm:$0xff]
  %v10149 = vld [vmem:[%s13 + $0x20] sm:$0xff]
  %v10150 = vld [vmem:[%s13 + $0x28] sm:$0xff]
  %v10151 = vld [vmem:[%s13 + $0x30] sm:$0xff]
  %v10152 = vld [vmem:[%s13 + $0x38] sm:$0xff]
  %v10153 = vld [vmem:[%s13 + $0x40] sm:$0xff]
  %v10154 = vld [vmem:[%s13 + $0x48] sm:$0xff]
  %v10155 = vld [vmem:[%s13 + $0x50] sm:$0xff]
  %v10156 = vld [vmem:[%s13 + $0x58] sm:$0xff]
  %v10157 = vld [vmem:[%s13 + $0x60] sm:$0xff]
  %v10158 = vld [vmem:[%s13 + $0x68] sm:$0xff]
  %v10159 = vld [vmem:[%s13 + $0x70] sm:$0xff]
  %v10160 = vld [vmem:[%s13 + $0x78] sm:$0xff]
  %v10161 = vld [vmem:[%s13 + $0x80] sm:$0xff]
  %v10162 = vld [vmem:[%s13 + $0x88] sm:$0xff]
  %v10163 = vld [vmem:[%s13 + $0x90] sm:$0xff]
  %v10164 = vld [vmem:[%s13 + $0x98] sm:$0xff]
  %v10165 = vld [vmem:[%s13 + $0xa0] sm:$0xff]
  %v10166 = vld [vmem:[%s13 + $0xa8] sm:$0xff]
  %v10167 = vld [vmem:[%s13 + $0xb0] sm:$0xff]
  %v10168 = vld [vmem:[%s13 + $0xb8] sm:$0xff]
  %v10169 = vld [vmem:[%s13 + $0xc0] sm:$0xff]
  %v10170 = vld [vmem:[%s13 + $0xc8] sm:$0xff]
  %v10171 = vld [vmem:[%s13 + $0xd0] sm:$0xff]
  %v10172 = vld [vmem:[%s13 + $0xd8] sm:$0xff]
  %v10173 = vld [vmem:[%s13 + $0xe0] sm:$0xff]
  %v10174 = vld [vmem:[%s13 + $0xe8] sm:$0xff]
  %v10175 = vld [vmem:[%s13 + $0xf0] sm:$0xff]
  %v10176 = vld [vmem:[%s13 + $0xf8] sm:$0xff]
  %v10177 = vld [vmem:[%s13 + $0x100] sm:$0xff]
  %v10178 = vld [vmem:[%s13 + $0x108] sm:$0xff]
  %v10179 = vld [vmem:[%s13 + $0x110] sm:$0xff]
  %v10180 = vld [vmem:[%s13 + $0x118] sm:$0xff]
  %v10181 = vld [vmem:[%s13 + $0x120] sm:$0xff]
  %v10182 = vld [vmem:[%s13 + $0x128] sm:$0xff]
  %v10183 = vld [vmem:[%s13 + $0x130] sm:$0xff]
  %v10184 = vld [vmem:[%s13 + $0x138] sm:$0xff]
  %v10185 = vld [vmem:[%s13 + $0x140] sm:$0xff]
  %v10186 = vld [vmem:[%s13 + $0x148] sm:$0xff]
  %v10187 = vld [vmem:[%s13 + $0x150] sm:$0xff]
  %v10188 = vld [vmem:[%s13 + $0x158] sm:$0xff]
  %v10189 = vld [vmem:[%s13 + $0x160] sm:$0xff]
  %v10190 = vld [vmem:[%s13 + $0x168] sm:$0xff]
  %v10191 = vld [vmem:[%s13 + $0x170] sm:$0xff]
  %v10192 = vld [vmem:[%s13 + $0x178] sm:$0xff]
  %v10193 = vld [vmem:[%s13 + $0x180] sm:$0xff]
  %v10194 = vld [vmem:[%s13 + $0x188] sm:$0xff]
  %v10195 = vld [vmem:[%s13 + $0x190] sm:$0xff]
  %v10196 = vld [vmem:[%s13 + $0x198] sm:$0xff]
  %v10197 = vld [vmem:[%s13 + $0x1a0] sm:$0xff]
  %v10198 = vld [vmem:[%s13 + $0x1a8] sm:$0xff]
  %v10199 = vld [vmem:[%s13 + $0x1b0] sm:$0xff]
  %v10200 = vld [vmem:[%s13 + $0x1b8] sm:$0xff]
  %v10201 = vld [vmem:[%s13 + $0x1c0] sm:$0xff]
  %v10202 = vld [vmem:[%s13 + $0x1c8] sm:$0xff]
  %v10203 = vld [vmem:[%s13 + $0x1d0] sm:$0xff]
  %v10204 = vld [vmem:[%s13 + $0x1d8] sm:$0xff]
  %v10205 = vld [vmem:[%s13 + $0x1e0] sm:$0xff]
  %v10206 = vld [vmem:[%s13 + $0x1e8] sm:$0xff]
  %v10207 = vld [vmem:[%s13 + $0x1f0] sm:$0xff]
  %v10208 = vld [vmem:[%s13 + $0x1f8] sm:$0xff]
  %v10209 = vld [vmem:[%s14] sm:$0x1]
  %v10211 = vlaneseq
  %v10212 = vshrl.u32 %v10211, 7
  %v10213 = vsub.s32 0, %v10212
  %v10214 = vrot.slane %v10209, %v10213
  %10216 = vmatprep.subr.mxu0 0.0
  %10217 = vmatpush1.msra.mxu0 %v10145
  %10218 = vmatprep.subr.mxu0 0.0
  %10219 = vmatpush1.msra.mxu0 %v10146
  %10220 = vmatprep.subr.mxu0 0.0
  %10221 = vmatpush1.msra.mxu0 %v10147
  %10222 = vmatprep.subr.mxu0 0.0
  %10223 = vmatpush1.msra.mxu0 %v10148
  %10224 = vmatprep.subr.mxu0 0.0
  %10225 = vmatpush1.msra.mxu0 %v10149
  %10226 = vmatprep.subr.mxu0 0.0
  %10227 = vmatpush1.msra.mxu0 %v10150
  %10228 = vmatprep.subr.mxu0 0.0
  %10229 = vmatpush1.msra.mxu0 %v10151
  %10230 = vmatprep.subr.mxu0 0.0
  %10231 = vmatpush1.msra.mxu0 %v10152
  %10232 = vmatprep.subr.mxu0 0.0
  %10233 = vmatpush1.msra.mxu0 %v10153
  %10234 = vmatprep.subr.mxu0 0.0
  %10235 = vmatpush1.msra.mxu0 %v10154
  %10236 = vmatprep.subr.mxu0 0.0
  %10237 = vmatpush1.msra.mxu0 %v10155
  %10238 = vmatprep.subr.mxu0 0.0
  %10239 = vmatpush1.msra.mxu0 %v10156
  %10240 = vmatprep.subr.mxu0 0.0
  %10241 = vmatpush1.msra.mxu0 %v10157
  %10242 = vmatprep.subr.mxu0 0.0
  %10243 = vmatpush1.msra.mxu0 %v10158
  %10244 = vmatprep.subr.mxu0 0.0
  %10245 = vmatpush1.msra.mxu0 %v10159
  %10246 = vmatprep.subr.mxu0 0.0
  %10247 = vmatpush1.msra.mxu0 %v10160
  %10248 = vmatprep.subr.mxu0 0.0
  %10249 = vmatpush1.msra.mxu0 %v10161
  %10250 = vmatprep.subr.mxu0 0.0
  %10251 = vmatpush1.msra.mxu0 %v10162
  %10252 = vmatprep.subr.mxu0 0.0
  %10253 = vmatpush1.msra.mxu0 %v10163
  %10254 = vmatprep.subr.mxu0 0.0
  %10255 = vmatpush1.msra.mxu0 %v10164
  %10256 = vmatprep.subr.mxu0 0.0
  %10257 = vmatpush1.msra.mxu0 %v10165
  %10258 = vmatprep.subr.mxu0 0.0
  %10259 = vmatpush1.msra.mxu0 %v10166
  %10260 = vmatprep.subr.mxu0 0.0
  %10261 = vmatpush1.msra.mxu0 %v10167
  %10262 = vmatprep.subr.mxu0 0.0
  %10263 = vmatpush1.msra.mxu0 %v10168
  %10264 = vmatprep.subr.mxu0 0.0
  %10265 = vmatpush1.msra.mxu0 %v10169
  %10266 = vmatprep.subr.mxu0 0.0
  %10267 = vmatpush1.msra.mxu0 %v10170
  %10268 = vmatprep.subr.mxu0 0.0
  %10269 = vmatpush1.msra.mxu0 %v10171
  %10270 = vmatprep.subr.mxu0 0.0
  %10271 = vmatpush1.msra.mxu0 %v10172
  %10272 = vmatprep.subr.mxu0 0.0
  %10273 = vmatpush1.msra.mxu0 %v10173
  %10274 = vmatprep.subr.mxu0 0.0
  %10275 = vmatpush1.msra.mxu0 %v10174
  %10276 = vmatprep.subr.mxu0 0.0
  %10277 = vmatpush1.msra.mxu0 %v10175
  %10278 = vmatprep.subr.mxu0 0.0
  %10279 = vmatpush1.msra.mxu0 %v10176
  %10280 = vmatprep.mubr.f32.mxu0 %v10142
  %10281 = vmatmul.mubr.f32.gmra.mrb[0].mxu0 %v10141
  %v10282 = vpop.f32.mrb[0].mxu0
  %v10283 = vadd.f32 %v10214, %v10282
  %v10284 = vpop.f32.mrb[0].mxu0
  %10285 = vdwg.mxu0
  %10286 = vmatprep.subr.mxu0 0.0
  %10287 = vmatpush1.msra.mxu0 %v10177
  %10288 = vmatprep.subr.mxu0 0.0
  %10289 = vmatpush1.msra.mxu0 %v10178
  %10290 = vmatprep.subr.mxu0 0.0
  %10291 = vmatpush1.msra.mxu0 %v10179
  %10292 = vmatprep.subr.mxu0 0.0
  %10293 = vmatpush1.msra.mxu0 %v10180
  %10294 = vmatprep.subr.mxu0 0.0
  %10295 = vmatpush1.msra.mxu0 %v10181
  %10296 = vmatprep.subr.mxu0 0.0
  %10297 = vmatpush1.msra.mxu0 %v10182
  %10298 = vmatprep.subr.mxu0 0.0
  %10299 = vmatpush1.msra.mxu0 %v10183
  %10300 = vmatprep.subr.mxu0 0.0
  %10301 = vmatpush1.msra.mxu0 %v10184
  %10302 = vmatprep.subr.mxu0 0.0
  %10303 = vmatpush1.msra.mxu0 %v10185
  %10304 = vmatprep.subr.mxu0 0.0
  %10305 = vmatpush1.msra.mxu0 %v10186
  %10306 = vmatprep.subr.mxu0 0.0
  %10307 = vmatpush1.msra.mxu0 %v10187
  %10308 = vmatprep.subr.mxu0 0.0
  %10309 = vmatpush1.msra.mxu0 %v10188
  %10310 = vmatprep.subr.mxu0 0.0
  %10311 = vmatpush1.msra.mxu0 %v10189
  %10312 = vmatprep.subr.mxu0 0.0
  %10313 = vmatpush1.msra.mxu0 %v10190
  %10314 = vmatprep.subr.mxu0 0.0
  %10315 = vmatpush1.msra.mxu0 %v10191
  %10316 = vmatprep.subr.mxu0 0.0
  %10317 = vmatpush1.msra.mxu0 %v10192
  %10318 = vmatprep.subr.mxu0 0.0
  %10319 = vmatpush1.msra.mxu0 %v10193
  %10320 = vmatprep.subr.mxu0 0.0
  %10321 = vmatpush1.msra.mxu0 %v10194
  %10322 = vmatprep.subr.mxu0 0.0
  %10323 = vmatpush1.msra.mxu0 %v10195
  %10324 = vmatprep.subr.mxu0 0.0
  %10325 = vmatpush1.msra.mxu0 %v10196
  %10326 = vmatprep.subr.mxu0 0.0
  %10327 = vmatpush1.msra.mxu0 %v10197
  %10328 = vmatprep.subr.mxu0 0.0
  %10329 = vmatpush1.msra.mxu0 %v10198
  %10330 = vmatprep.subr.mxu0 0.0
  %10331 = vmatpush1.msra.mxu0 %v10199
  %10332 = vmatprep.subr.mxu0 0.0
  %10333 = vmatpush1.msra.mxu0 %v10200
  %10334 = vmatprep.subr.mxu0 0.0
  %10335 = vmatpush1.msra.mxu0 %v10201
  %10336 = vmatprep.subr.mxu0 0.0
  %10337 = vmatpush1.msra.mxu0 %v10202
  %10338 = vmatprep.subr.mxu0 0.0
  %10339 = vmatpush1.msra.mxu0 %v10203
  %10340 = vmatprep.subr.mxu0 0.0
  %10341 = vmatpush1.msra.mxu0 %v10204
  %10342 = vmatprep.subr.mxu0 0.0
  %10343 = vmatpush1.msra.mxu0 %v10205
  %10344 = vmatprep.subr.mxu0 0.0
  %10345 = vmatpush1.msra.mxu0 %v10206
  %10346 = vmatprep.subr.mxu0 0.0
  %10347 = vmatpush1.msra.mxu0 %v10207
  %10348 = vmatprep.subr.mxu0 0.0
  %10349 = vmatpush1.msra.mxu0 %v10208
  %10350 = vmatprep.mubr.f32.mxu0 %v10144
  %10351 = vmatmul.mubr.f32.gmra.mrb[0].mxu0 %v10143
  %v10352 = vpop.f32.mrb[0].mxu0
  %v10353 = vadd.f32 %v10283, %v10352
  %v10354 = vpop.f32.mrb[0].mxu0
  %10355 = vdwg.mxu0
  %10356 = vst [vmem:[%s15] sm:$0xff] %v10353
  // Predicated region
  $region62: #{_lambda_.1} parent=0 // pred_check
    _
  $region63: #{_lambda_.1} parent=0 // pred_check_branch
    %10358 = sbr.rel (0) target = $region65
  $region64: #{_lambda_.1} parent=0 // pred_region
    _
  $region65: #{_lambda_.1} parent=0 // pred_fallthru
    _
  // Predicated region
  $region66: #{_lambda_.1} parent=0 // pred_check
    _
  $region67: #{_lambda_.1} parent=0 // pred_check_branch
    %10360 = sbr.rel (0) target = $region69
  $region68: #{_lambda_.1} parent=0 // pred_region
    _
  $region69: #{_lambda_.1} parent=0 // pred_fallthru
    _

</llo_original>
